<compile_context>
chip_gen: v5e
topology: v5e:2x2
jax: 0.10.0
libtpu: 0.0.40
codegen_flags: <defaults>
</compile_context>

<pallas_src>
import math
from functools import partial

import jax
import jax.numpy as jnp
from jax.experimental import pallas as pl
from jax.experimental.pallas import tpu as pltpu

MAX_NODE_TYPE = 3


# ----------------------------------------------------------------------------
# in-kernel helpers
# ----------------------------------------------------------------------------
def _ln(x, g=None, b=None, eps=1e-5):
    # single-pass (sum / sum-of-squares) f32 LayerNorm; rsqrt on the EUP; affine optional.
    mu = jnp.mean(x, axis=-1, keepdims=True)
    ms = jnp.mean(x * x, axis=-1, keepdims=True)
    var = ms - mu * mu
    y = (x - mu) * jax.lax.rsqrt(var + eps)
    if g is not None:
        y = y * g + b
    return y


def _bdot(a, b):
    # MXU matmul: bf16 operands, f32 accumulation.
    return jnp.dot(a.astype(jnp.bfloat16), b.astype(jnp.bfloat16),
                   preferred_element_type=jnp.float32)


def _bdotg(a, b, contract):
    # dot_general so the MXU consumes operands directly (no materialized transpose).
    return jax.lax.dot_general(a.astype(jnp.bfloat16), b.astype(jnp.bfloat16),
                               dimension_numbers=(contract, ((), ())),
                               preferred_element_type=jnp.float32)


def _node_type_emb(nt, node_emb_ref):
    # (N, 1) int32 node type -> (N, D) embedding via two VPU selects (no MXU, no
    # narrow-lane relayout).  Note: types >= MAX_NODE_TYPE clamp to the last row
    # (torch nn.Embedding would raise on such inputs).
    e = node_emb_ref[...]
    return jnp.where(nt == 0, e[0:1, :], jnp.where(nt == 1, e[1:2, :], e[2:3, :]))


# ----------------------------------------------------------------------------
# Pallas kernels
# ----------------------------------------------------------------------------
def encoder_kernel(fx_ref, nt_ref, pos_ref,
                   emb_w1, emb_w2, node_emb, comb_wh, comb_wn, pos_w,
                   ln1g, ln1b, wqkv, wo, ln2g, ln2b, w1, b1, w2, b2,
                   wproj, z_ref, *, depth, d):
    # Fused: embedding (MLP + node-type + split comb + positional) followed by all
    # `depth` pre-norm Galerkin (linear) attention blocks and the latent projection.
    fx = fx_ref[0]                                       # (N, cin)
    nt = nt_ref[0]                                       # (N, 1) int32
    pos = pos_ref[0]                                     # (N, 2)
    n = fx.shape[0]
    inv_n = 1.0 / jnp.float32(n)

    # --- embedding ---
    h = jax.nn.gelu(_bdot(fx, emb_w1[...]))
    h = _bdot(h, emb_w2[...])                            # (N, D)
    nt_emb = _node_type_emb(nt, node_emb)                # (N, D), pure VPU
    pw = pos_w[...]                                      # (2, D)
    pos_emb = pos[:, 0:1] * pw[0:1, :] + pos[:, 1:2] * pw[1:2, :]   # K=2 "matmul" on VPU
    x = _bdot(h, comb_wh[...]) + _bdot(nt_emb, comb_wn[...]) + pos_emb

    # --- Galerkin attention blocks (fori_loop bounds per-layer live ranges) ---
    def layer(l, x):
        h = _ln(x, ln1g[l], ln1b[l])
        qkv = _bdot(h, wqkv[l])                          # fused QKV: one (N,D)x(D,3D)
        q = qkv[:, :d]
        k = _ln(qkv[:, d:2 * d])                         # non-affine feature LN (Galerkin)
        v = _ln(qkv[:, 2 * d:])
        kv = _bdotg(k, v, ((0,), (0,))) * inv_n          # k^T v -> (D, D), no transpose
        x = x + _bdot(_bdot(q, kv), wo[l])
        h2 = _ln(x, ln2g[l], ln2b[l])
        x = x + _bdot(jax.nn.gelu(_bdot(h2, w1[l]) + b1[l]), w2[l]) + b2[l]
        return x

    x = jax.lax.fori_loop(0, depth, layer, x)
    z_ref[0] = _bdot(x, wproj[...]).astype(z_ref.dtype)  # latent projection, bf16 out


def decoder_kernel(pos_ref, nt_ref, z_ref,
                   coord_w1, coord_w2, node_emb, comb_wh, comb_wn,
                   lnqg, lnqb, lnkg, lnkb, wq, wkv, wo,
                   lnpg, lnpb, wp1, bp1, wp2, bp2, wout, bout,
                   o_ref,
                   xq_scr, q_scr, m_scr, l_scr, acc_scr, *, d, steps):
    # Fused: decoder coordinate embedding + flash-style cross-attention (online softmax
    # over Nk tiles) + multi-step rollout with a lane-dense (out_ch, tq) store.
    ki = pl.program_id(2)
    nk = pl.num_programs(2)

    @pl.when(ki == 0)
    def _():
        # query embedding + Q projection, computed once per (batch, q-tile)
        pos = pos_ref[0]                                 # (tq, 2)
        nt = nt_ref[0]                                   # (tq, 1) int32
        cw1 = coord_w1[...]                              # (2, D)
        h = pos[:, 0:1] * cw1[0:1, :] + pos[:, 1:2] * cw1[1:2, :]   # VPU, not MXU
        h = _bdot(jax.nn.gelu(h), coord_w2[...])         # (tq, D)
        nt_emb = _node_type_emb(nt, node_emb)
        xq = _bdot(h, comb_wh[...]) + _bdot(nt_emb, comb_wn[...])
        xq_scr[...] = xq
        q_scr[...] = _bdot(_ln(xq, lnqg[...], lnqb[...]), wq[...])
        m_scr[...] = jnp.full_like(m_scr, -jnp.inf)
        l_scr[...] = jnp.zeros_like(l_scr)
        acc_scr[...] = jnp.zeros_like(acc_scr)

    # --- online-softmax cross-attention step over the ki-th key/value tile ---
    hk = _ln(z_ref[0].astype(jnp.float32), lnkg[...], lnkb[...])
    kv = _bdot(hk, wkv[...])                             # fused K/V: one (tk,D)x(D,2D)
    k = kv[:, :d]
    v = kv[:, d:]
    q = q_scr[...]
    s = _bdotg(q, k, ((1,), (1,))) * (1.0 / math.sqrt(d))   # (tq, tk), no transpose
    m_new = jnp.maximum(m_scr[...], jnp.max(s, axis=-1, keepdims=True))
    a = jnp.exp(m_scr[...] - m_new)
    p = jnp.exp(s - m_new)
    l_scr[...] = a * l_scr[...] + jnp.sum(p, axis=-1, keepdims=True)
    acc_scr[...] = a * acc_scr[...] + _bdot(p, v)
    m_scr[...] = m_new

    @pl.when(ki == nk - 1)
    def _():
        attn = acc_scr[...] / l_scr[...]                 # exact softmax normalization
        x = xq_scr[...] + _bdot(attn, wo[...])           # (tq, D) decoder latent
        # --- rollout: hoist all weight loads / broadcasts out of the step loop ---
        g = lnpg[...]
        be = lnpb[...]
        w1v = wp1[...]
        b1v = bp1[...]
        w2v = wp2[...]
        b2v = bp2[...]
        woutv = wout[...]                                # (D, out_ch)
        boutv = bout[...]                                # (out_ch, 1)
        for st in range(steps):                          # static unroll (multi_step_size)
            h2 = _ln(x, g, be)
            x = x + _bdot(jax.nn.gelu(_bdot(h2, w1v) + b1v), w2v) + b2v
            u_t = _bdotg(woutv, x, ((0,), (1,))) + boutv  # (out_ch, tq): points on lanes
            o_ref[0, st] = u_t.astype(o_ref.dtype)


# ----------------------------------------------------------------------------
# pallas_call wrappers
# ----------------------------------------------------------------------------
def _full(shape):
    nd = len(shape)
    return pl.BlockSpec(shape, lambda *_: (0,) * nd)


def _vmem_limit(nbytes):
    # explicit scoped-VMEM limit: above the 16/32 MiB defaults, capped at v7x's 64 MiB.
    return int(min(max(nbytes, 32 * 2**20), 64 * 2**20))


def _pick_tile(n, candidates=(512, 256, 128)):
    for c in candidates:
        if n % c == 0:
            return c
    return n


def _nbytes(arrs):
    return sum(int(v.size) * v.dtype.itemsize for v in arrs)


def pallas_encoder(fx, nt, pos, enc, depth, d):
    B, N, cin = fx.shape
    blk = enc["blocks"]
    weights = (enc["emb_w1"], enc["emb_w2"], enc["node_emb"], enc["comb_wh"],
               enc["comb_wn"], enc["pos_w"], blk["ln1_g"], blk["ln1_b"], blk["wqkv"],
               blk["wo"], blk["ln2_g"], blk["ln2_b"], blk["w1"], blk["b1"], blk["w2"],
               blk["b2"], enc["proj_latent"])
    act_bytes = (N * d * 4 * 10                       # x, qkv, attn/FFN temporaries
                 + 2 * N * (cin + 1 + pos.shape[-1]) * 4    # double-buffered inputs
                 + 2 * N * d * 2)                     # double-buffered bf16 output
    vmem = _vmem_limit(act_bytes + 2 * _nbytes(weights) + (4 << 20))
    return pl.pallas_call(
        partial(encoder_kernel, depth=depth, d=d),
        out_shape=jax.ShapeDtypeStruct((B, N, d), jnp.bfloat16),
        grid_spec=pltpu.PrefetchScalarGridSpec(
            num_scalar_prefetch=0, grid=(B,),
            in_specs=[pl.BlockSpec((1, N, cin), lambda b: (b, 0, 0)),
                      pl.BlockSpec((1, N, 1), lambda b: (b, 0, 0)),
                      pl.BlockSpec((1, N, pos.shape[-1]), lambda b: (b, 0, 0)),
                      _full(enc["emb_w1"].shape), _full(enc["emb_w2"].shape),
                      _full(enc["node_emb"].shape),
                      _full(enc["comb_wh"].shape), _full(enc["comb_wn"].shape),
                      _full(enc["pos_w"].shape),
                      _full(blk["ln1_g"].shape), _full(blk["ln1_b"].shape),
                      _full(blk["wqkv"].shape), _full(blk["wo"].shape),
                      _full(blk["ln2_g"].shape), _full(blk["ln2_b"].shape),
                      _full(blk["w1"].shape), _full(blk["b1"].shape),
                      _full(blk["w2"].shape), _full(blk["b2"].shape),
                      _full(enc["proj_latent"].shape)],
            out_specs=pl.BlockSpec((1, N, d), lambda b: (b, 0, 0))),
        compiler_params=pltpu.CompilerParams(
            dimension_semantics=("parallel",), vmem_limit_bytes=vmem),
    )(fx, nt, pos,
      enc["emb_w1"], enc["emb_w2"], enc["node_emb"], enc["comb_wh"], enc["comb_wn"],
      enc["pos_w"],
      blk["ln1_g"], blk["ln1_b"], blk["wqkv"], blk["wo"],
      blk["ln2_g"], blk["ln2_b"], blk["w1"], blk["b1"], blk["w2"], blk["b2"],
      enc["proj_latent"])


def pallas_decoder(pos, nt, z, dec, steps, out_ch, d):
    B, N, pdim = pos.shape
    cross, prop = dec["cross"], dec["prop"]
    tq = _pick_tile(N)                                   # 'parallel' query tiles
    tk = _pick_tile(N)                                   # 'arbitrary' key/value tiles
    nQ, nK = N // tq, N // tk
    weights = (dec["coord_w1"], dec["coord_w2"], dec["node_emb"], dec["comb_wh"],
               dec["comb_wn"], cross["lnq_g"], cross["lnq_b"], cross["lnk_g"],
               cross["lnk_b"], cross["wq"], cross["wkv"], cross["wo"],
               prop["lnp_g"], prop["lnp_b"], prop["wp1"], prop["bp1"], prop["wp2"],
               prop["bp2"], prop["wout"], prop["bout"])
    act_bytes = (tq * d * 4 * 8 + tk * d * 4 * 6 + tq * tk * 4 * 3
                 + 2 * steps * out_ch * tq * 4
                 + 2 * (tq * (pdim + 1) + tk * d) * 4)
    vmem = _vmem_limit(act_bytes + 2 * _nbytes(weights) + (4 << 20))
    raw = pl.pallas_call(
        partial(decoder_kernel, d=d, steps=steps),
        out_shape=jax.ShapeDtypeStruct((B, steps, out_ch, N), jnp.float32),
        grid_spec=pltpu.PrefetchScalarGridSpec(
            num_scalar_prefetch=0, grid=(B, nQ, nK),
            in_specs=[pl.BlockSpec((1, tq, pdim), lambda b, qi, ki: (b, qi, 0)),
                      pl.BlockSpec((1, tq, 1), lambda b, qi, ki: (b, qi, 0)),
                      pl.BlockSpec((1, tk, d), lambda b, qi, ki: (b, ki, 0)),
                      _full(dec["coord_w1"].shape), _full(dec["coord_w2"].shape),
                      _full(dec["node_emb"].shape),
                      _full(dec["comb_wh"].shape), _full(dec["comb_wn"].shape),
                      _full(cross["lnq_g"].shape), _full(cross["lnq_b"].shape),
                      _full(cross["lnk_g"].shape), _full(cross["lnk_b"].shape),
                      _full(cross["wq"].shape), _full(cross["wkv"].shape),
                      _full(cross["wo"].shape),
                      _full(prop["lnp_g"].shape), _full(prop["lnp_b"].shape),
                      _full(prop["wp1"].shape), _full(prop["bp1"].shape),
                      _full(prop["wp2"].shape), _full(prop["bp2"].shape),
                      _full(prop["wout"].shape), _full(prop["bout"].shape)],
            out_specs=pl.BlockSpec((1, steps, out_ch, tq),
                                   lambda b, qi, ki: (b, 0, 0, qi)),
            scratch_shapes=[pltpu.VMEM((tq, d), jnp.float32),   # xq (embed / residual)
                            pltpu.VMEM((tq, d), jnp.float32),   # q
                            pltpu.VMEM((tq, 1), jnp.float32),   # m (online softmax)
                            pltpu.VMEM((tq, 1), jnp.float32),   # l
                            pltpu.VMEM((tq, d), jnp.float32)]), # acc
        compiler_params=pltpu.CompilerParams(
            dimension_semantics=("parallel", "parallel", "arbitrary"),
            vmem_limit_bytes=vmem),
    )(pos, nt, z,
      dec["coord_w1"], dec["coord_w2"], dec["node_emb"], dec["comb_wh"], dec["comb_wn"],
      cross["lnq_g"], cross["lnq_b"], cross["lnk_g"], cross["lnk_b"],
      cross["wq"], cross["wkv"], cross["wo"],
      prop["lnp_g"], prop["lnp_b"], prop["wp1"], prop["bp1"],
      prop["wp2"], prop["bp2"], prop["wout"], prop["bout"])
    return jnp.swapaxes(raw, 2, 3)                       # (B, S, N, out_ch), tiny transpose


# ----------------------------------------------------------------------------
# parameter construction (deterministic, synthetic)
# ----------------------------------------------------------------------------
def init_params(key, input_ch, output_ch, d=128, depth=4,
                max_node_type=MAX_NODE_TYPE, pos_dim=2):
    keys = iter(jax.random.split(key, 64))

    def w(shape, dtype=jnp.bfloat16):
        # matmul weights stored in bf16 (MXU operand dtype; halves HBM/VMEM bytes)
        fan_in = shape[-2]
        return ((1.0 / math.sqrt(fan_in)) *
                jax.random.normal(next(keys), shape, jnp.float32)).astype(dtype)

    def wf(shape):        # f32 weights used on the VPU elementwise path
        fan_in = shape[-2]
        return (1.0 / math.sqrt(fan_in)) * jax.random.normal(next(keys), shape, jnp.float32)

    def ones(shape):
        return jnp.ones(shape, jnp.float32)

    def zeros(shape):
        return jnp.zeros(shape, jnp.float32)

    blocks = dict(                                      # stacked along the depth axis
        ln1_g=ones((depth, 1, d)), ln1_b=zeros((depth, 1, d)),
        wqkv=w((depth, d, 3 * d)), wo=w((depth, d, d)),
        ln2_g=ones((depth, 1, d)), ln2_b=zeros((depth, 1, d)),
        w1=w((depth, d, d)), b1=zeros((depth, 1, d)),
        w2=w((depth, d, d)), b2=zeros((depth, 1, d)),
    )

    params = dict(
        enc=dict(
            emb_w1=w((input_ch, d)), emb_w2=w((d, d)),
            node_emb=0.02 * jax.random.normal(next(keys), (max_node_type, d), jnp.float32),
            comb_wh=w((d, d)), comb_wn=w((d, d)),       # split of the (2d, d) comb weight
            pos_w=wf((pos_dim, d)),
            blocks=blocks,
            proj_latent=w((d, d)),
        ),
        dec=dict(
            coord_w1=wf((pos_dim, d)), coord_w2=w((d, d)),
            node_emb=0.02 * jax.random.normal(next(keys), (max_node_type, d), jnp.float32),
            comb_wh=w((d, d)), comb_wn=w((d, d)),
            cross=dict(
                lnq_g=ones((1, d)), lnq_b=zeros((1, d)),
                lnk_g=ones((1, d)), lnk_b=zeros((1, d)),
                wq=w((d, d)), wkv=w((d, 2 * d)), wo=w((d, d)),
            ),
            prop=dict(
                lnp_g=ones((1, d)), lnp_b=zeros((1, d)),
                wp1=w((d, d)), bp1=zeros((1, d)),
                wp2=w((d, d)), bp2=zeros((1, d)),
                wout=w((d, output_ch)), bout=zeros((output_ch, 1)),
            ),
        ),
    )
    return params


# ----------------------------------------------------------------------------
# Oformer forward (mirrors the PyTorch Oformer.forward semantics)
# ----------------------------------------------------------------------------
def oformer_forward(params, x, case_params, node_type, grid,
                    n_tolx, multi_step_size, output_ch, d=128, depth=4):
    # reshape exactly as the torch module does
    x = x.reshape(-1, 1, n_tolx, x.shape[-1])
    node_type = node_type.astype(jnp.int32).reshape(-1, multi_step_size, n_tolx,
                                                    node_type.shape[-1])
    grid = grid.reshape(-1, n_tolx, grid.shape[-1])
    case_params = case_params.reshape(-1, 1, n_tolx, case_params.shape[-1])
    input_pos = prop_pos = grid

    fx = jnp.concatenate([x, case_params], axis=-1)     # (B, 1, N, input_ch)
    B, _, N, cin = fx.shape
    fx = fx.reshape(B, N, cin)                          # 'b t n c -> b n (t c)', t = 1
    nt0 = node_type[:, 0, :, :1]                        # (B, N, 1) int32 node types

    # encoder: fused embed + 4 Galerkin blocks + latent projection (z in bf16)
    z = pallas_encoder(fx, nt0, input_pos, params["enc"], depth, d)
    # decoder: fused coord embed + flash cross-attention + multi-step rollout
    pred = pallas_decoder(prop_pos, nt0, z, params["dec"], multi_step_size, output_ch, d)
    return pred


# ----------------------------------------------------------------------------
if __name__ == "__main__":
    # small, module-consistent shapes
    B, N, S = 2, 64, 2              # batch, n_tolx mesh points, multi_step_size
    x_ch, cp_ch, out_ch = 3, 5, 3   # input_ch = x_ch + cp_ch = 8, output_ch = 3
    input_ch = x_ch + cp_ch

    key = jax.random.PRNGKey(0)
    k1, k2, k3, k4, kp = jax.random.split(key, 5)
    x = jax.random.normal(k1, (B, N, x_ch), jnp.float32)
    case_params = jax.random.normal(k2, (B, N, cp_ch), jnp.float32)
    node_type = jax.random.randint(k3, (B, S, N, 1), 0, 3)
    grid_pts = jax.random.uniform(k4, (B, N, 2), dtype=jnp.float32)

    params = init_params(kp, input_ch=input_ch, output_ch=out_ch, d=128, depth=4)

    fwd = jax.jit(partial(oformer_forward, n_tolx=N, multi_step_size=S,
                          output_ch=out_ch, d=128, depth=4))
    pred = fwd(params, x, case_params, node_type, grid_pts)
    jax.block_until_ready(pred)
    assert pred.shape == (B, S, N, out_ch), pred.shape
    assert bool(jnp.all(jnp.isfinite(pred)))
    print("KERNEL_OK")
</pallas_src>

<mosaic_0001>
module attributes {stable_mosaic.version = 11 : i64} {
  func.func @encoder_kernel(%arg0: i32, %arg1: memref<1x64x8xf32, #tpu.memory_space<vmem>>, %arg2: memref<1x64x1xi32, #tpu.memory_space<vmem>>, %arg3: memref<1x64x2xf32, #tpu.memory_space<vmem>>, %arg4: memref<8x128xbf16, #tpu.memory_space<vmem>>, %arg5: memref<128x128xbf16, #tpu.memory_space<vmem>>, %arg6: memref<3x128xf32, #tpu.memory_space<vmem>>, %arg7: memref<128x128xbf16, #tpu.memory_space<vmem>>, %arg8: memref<128x128xbf16, #tpu.memory_space<vmem>>, %arg9: memref<2x128xf32, #tpu.memory_space<vmem>>, %arg10: memref<4x1x128xf32, #tpu.memory_space<vmem>>, %arg11: memref<4x1x128xf32, #tpu.memory_space<vmem>>, %arg12: memref<4x128x384xbf16, #tpu.memory_space<vmem>>, %arg13: memref<4x128x128xbf16, #tpu.memory_space<vmem>>, %arg14: memref<4x1x128xf32, #tpu.memory_space<vmem>>, %arg15: memref<4x1x128xf32, #tpu.memory_space<vmem>>, %arg16: memref<4x128x128xbf16, #tpu.memory_space<vmem>>, %arg17: memref<4x1x128xf32, #tpu.memory_space<vmem>>, %arg18: memref<4x128x128xbf16, #tpu.memory_space<vmem>>, %arg19: memref<4x1x128xf32, #tpu.memory_space<vmem>>, %arg20: memref<128x128xbf16, #tpu.memory_space<vmem>>, %arg21: memref<1x64x128xbf16, #tpu.memory_space<vmem>>) attributes {dimension_semantics = [#tpu.dimension_semantics<parallel>], iteration_bounds = array<i64: 2>, scalar_prefetch = 0 : i64, scratch_operands = 0 : i64, tpu.core_type = #tpu.core_type<tc>, window_params = [{transform_indices = @transform_0, window_bounds = array<i64: 1, 64, 8>}, {transform_indices = @transform_1, window_bounds = array<i64: 1, 64, 1>}, {transform_indices = @transform_2, window_bounds = array<i64: 1, 64, 2>}, {pipeline_mode = #tpu.pipeline_mode<synchronous>, transform_indices = @transform_3, window_bounds = array<i64: 8, 128>}, {pipeline_mode = #tpu.pipeline_mode<synchronous>, transform_indices = @transform_4, window_bounds = array<i64: 128, 128>}, {pipeline_mode = #tpu.pipeline_mode<synchronous>, transform_indices = @transform_5, window_bounds = array<i64: 3, 128>}, {pipeline_mode = #tpu.pipeline_mode<synchronous>, transform_indices = @transform_6, window_bounds = array<i64: 128, 128>}, {pipeline_mode = #tpu.pipeline_mode<synchronous>, transform_indices = @transform_7, window_bounds = array<i64: 128, 128>}, {pipeline_mode = #tpu.pipeline_mode<synchronous>, transform_indices = @transform_8, window_bounds = array<i64: 2, 128>}, {pipeline_mode = #tpu.pipeline_mode<synchronous>, transform_indices = @transform_9, window_bounds = array<i64: 4, 1, 128>}, {pipeline_mode = #tpu.pipeline_mode<synchronous>, transform_indices = @transform_10, window_bounds = array<i64: 4, 1, 128>}, {pipeline_mode = #tpu.pipeline_mode<synchronous>, transform_indices = @transform_11, window_bounds = array<i64: 4, 128, 384>}, {pipeline_mode = #tpu.pipeline_mode<synchronous>, transform_indices = @transform_12, window_bounds = array<i64: 4, 128, 128>}, {pipeline_mode = #tpu.pipeline_mode<synchronous>, transform_indices = @transform_13, window_bounds = array<i64: 4, 1, 128>}, {pipeline_mode = #tpu.pipeline_mode<synchronous>, transform_indices = @transform_14, window_bounds = array<i64: 4, 1, 128>}, {pipeline_mode = #tpu.pipeline_mode<synchronous>, transform_indices = @transform_15, window_bounds = array<i64: 4, 128, 128>}, {pipeline_mode = #tpu.pipeline_mode<synchronous>, transform_indices = @transform_16, window_bounds = array<i64: 4, 1, 128>}, {pipeline_mode = #tpu.pipeline_mode<synchronous>, transform_indices = @transform_17, window_bounds = array<i64: 4, 128, 128>}, {pipeline_mode = #tpu.pipeline_mode<synchronous>, transform_indices = @transform_18, window_bounds = array<i64: 4, 1, 128>}, {pipeline_mode = #tpu.pipeline_mode<synchronous>, transform_indices = @transform_19, window_bounds = array<i64: 128, 128>}, {transform_indices = @transform_20, window_bounds = array<i64: 1, 64, 128>}]} {
    %c0 = arith.constant 0 : index
    %c0_0 = arith.constant 0 : index
    %c0_1 = arith.constant 0 : index
    %0 = vector.load %arg1[%c0, %c0_0, %c0_1] : memref<1x64x8xf32, #tpu.memory_space<vmem>>, vector<1x64x8xf32>
    %1 = vector.shape_cast %0 : vector<1x64x8xf32> to vector<64x8xf32>
    %c0_2 = arith.constant 0 : index
    %c0_3 = arith.constant 0 : index
    %c0_4 = arith.constant 0 : index
    %2 = vector.load %arg2[%c0_2, %c0_3, %c0_4] : memref<1x64x1xi32, #tpu.memory_space<vmem>>, vector<1x64x1xi32>
    %3 = vector.shape_cast %2 : vector<1x64x1xi32> to vector<64x1xi32>
    %c0_5 = arith.constant 0 : index
    %c0_6 = arith.constant 0 : index
    %c0_7 = arith.constant 0 : index
    %4 = vector.load %arg3[%c0_5, %c0_6, %c0_7] : memref<1x64x2xf32, #tpu.memory_space<vmem>>, vector<1x64x2xf32>
    %5 = vector.shape_cast %4 : vector<1x64x2xf32> to vector<64x2xf32>
    %cst = arith.constant 1.000000e+00 : f32
    %cst_8 = arith.constant 6.400000e+01 : f32
    %6 = arith.divf %cst, %cst_8 : f32
    %c0_9 = arith.constant 0 : index
    %c0_10 = arith.constant 0 : index
    %7 = vector.load %arg4[%c0_9, %c0_10] : memref<8x128xbf16, #tpu.memory_space<vmem>>, vector<8x128xbf16>
    %8 = arith.truncf %1 : vector<64x8xf32> to vector<64x8xbf16>
    %cst_11 = arith.constant dense<0.000000e+00> : vector<64x128xf32>
    %9 = tpu.matmul %8, %7, %cst_11 {dimension_numbers = #tpu.dot_dimension_numbers<[1], [0], [0], [1], [0, 0, 1, 1], [], []>} : vector<64x8xbf16>, vector<8x128xbf16>, vector<64x128xf32> -> vector<64x128xf32>
    %10 = arith.mulf %9, %9 : vector<64x128xf32>
    %11 = arith.mulf %9, %10 : vector<64x128xf32>
    %cst_12 = arith.constant 4.471500e-02 : f32
    %12 = vector.broadcast %cst_12 : f32 to vector<64x128xf32>
    %13 = arith.mulf %12, %11 : vector<64x128xf32>
    %14 = arith.addf %9, %13 : vector<64x128xf32>
    %cst_13 = arith.constant 0.797884583 : f32
    %15 = vector.broadcast %cst_13 : f32 to vector<64x128xf32>
    %16 = arith.mulf %15, %14 : vector<64x128xf32>
    %17 = math.tanh %16 : vector<64x128xf32>
    %cst_14 = arith.constant 1.000000e+00 : f32
    %18 = vector.broadcast %cst_14 : f32 to vector<64x128xf32>
    %19 = arith.addf %18, %17 : vector<64x128xf32>
    %cst_15 = arith.constant 5.000000e-01 : f32
    %20 = vector.broadcast %cst_15 : f32 to vector<64x128xf32>
    %21 = arith.mulf %20, %19 : vector<64x128xf32>
    %22 = arith.mulf %9, %21 : vector<64x128xf32>
    %c0_16 = arith.constant 0 : index
    %c0_17 = arith.constant 0 : index
    %23 = vector.load %arg5[%c0_16, %c0_17] : memref<128x128xbf16, #tpu.memory_space<vmem>>, vector<128x128xbf16>
    %24 = arith.truncf %22 : vector<64x128xf32> to vector<64x128xbf16>
    %cst_18 = arith.constant dense<0.000000e+00> : vector<64x128xf32>
    %25 = tpu.matmul %24, %23, %cst_18 {dimension_numbers = #tpu.dot_dimension_numbers<[1], [0], [0], [1], [0, 0, 1, 1], [], []>} : vector<64x128xbf16>, vector<128x128xbf16>, vector<64x128xf32> -> vector<64x128xf32>
    %c0_19 = arith.constant 0 : index
    %c0_20 = arith.constant 0 : index
    %26 = vector.load %arg6[%c0_19, %c0_20] : memref<3x128xf32, #tpu.memory_space<vmem>>, vector<3x128xf32>
    %c0_i32 = arith.constant 0 : i32
    %27 = vector.broadcast %c0_i32 : i32 to vector<64x1xi32>
    %28 = arith.cmpi eq, %3, %27 : vector<64x1xi32>
    %29 = vector.extract_strided_slice %26 {offsets = [0, 0], sizes = [1, 128], strides = [1, 1]} : vector<3x128xf32> to vector<1x128xf32>
    %c1_i32 = arith.constant 1 : i32
    %30 = vector.broadcast %c1_i32 : i32 to vector<64x1xi32>
    %31 = arith.cmpi eq, %3, %30 : vector<64x1xi32>
    %32 = vector.extract_strided_slice %26 {offsets = [1, 0], sizes = [1, 128], strides = [1, 1]} : vector<3x128xf32> to vector<1x128xf32>
    %33 = vector.extract_strided_slice %26 {offsets = [2, 0], sizes = [1, 128], strides = [1, 1]} : vector<3x128xf32> to vector<1x128xf32>
    %34 = vector.shape_cast %31 : vector<64x1xi1> to vector<64x1xi1>
    %35 = vector.broadcast %34 : vector<64x1xi1> to vector<64x128xi1>
    %36 = vector.shape_cast %32 : vector<1x128xf32> to vector<1x128xf32>
    %37 = vector.broadcast %36 : vector<1x128xf32> to vector<64x128xf32>
    %38 = vector.shape_cast %33 : vector<1x128xf32> to vector<1x128xf32>
    %39 = vector.broadcast %38 : vector<1x128xf32> to vector<64x128xf32>
    %40 = arith.select %35, %37, %39 : vector<64x128xi1>, vector<64x128xf32>
    %41 = vector.shape_cast %28 : vector<64x1xi1> to vector<64x1xi1>
    %42 = vector.broadcast %41 : vector<64x1xi1> to vector<64x128xi1>
    %43 = vector.shape_cast %29 : vector<1x128xf32> to vector<1x128xf32>
    %44 = vector.broadcast %43 : vector<1x128xf32> to vector<64x128xf32>
    %45 = arith.select %42, %44, %40 : vector<64x128xi1>, vector<64x128xf32>
    %c0_21 = arith.constant 0 : index
    %c0_22 = arith.constant 0 : index
    %46 = vector.load %arg9[%c0_21, %c0_22] : memref<2x128xf32, #tpu.memory_space<vmem>>, vector<2x128xf32>
    %47 = vector.extract_strided_slice %5 {offsets = [0, 0], sizes = [64, 1], strides = [1, 1]} : vector<64x2xf32> to vector<64x1xf32>
    %48 = vector.extract_strided_slice %46 {offsets = [0, 0], sizes = [1, 128], strides = [1, 1]} : vector<2x128xf32> to vector<1x128xf32>
    %49 = vector.broadcast %47 : vector<64x1xf32> to vector<64x128xf32>
    %50 = vector.broadcast %48 : vector<1x128xf32> to vector<64x128xf32>
    %51 = arith.mulf %49, %50 : vector<64x128xf32>
    %52 = vector.extract_strided_slice %5 {offsets = [0, 1], sizes = [64, 1], strides = [1, 1]} : vector<64x2xf32> to vector<64x1xf32>
    %53 = vector.extract_strided_slice %46 {offsets = [1, 0], sizes = [1, 128], strides = [1, 1]} : vector<2x128xf32> to vector<1x128xf32>
    %54 = vector.broadcast %52 : vector<64x1xf32> to vector<64x128xf32>
    %55 = vector.broadcast %53 : vector<1x128xf32> to vector<64x128xf32>
    %56 = arith.mulf %54, %55 : vector<64x128xf32>
    %57 = arith.addf %51, %56 : vector<64x128xf32>
    %c0_23 = arith.constant 0 : index
    %c0_24 = arith.constant 0 : index
    %58 = vector.load %arg7[%c0_23, %c0_24] : memref<128x128xbf16, #tpu.memory_space<vmem>>, vector<128x128xbf16>
    %59 = arith.truncf %25 : vector<64x128xf32> to vector<64x128xbf16>
    %cst_25 = arith.constant dense<0.000000e+00> : vector<64x128xf32>
    %60 = tpu.matmul %59, %58, %cst_25 {dimension_numbers = #tpu.dot_dimension_numbers<[1], [0], [0], [1], [0, 0, 1, 1], [], []>} : vector<64x128xbf16>, vector<128x128xbf16>, vector<64x128xf32> -> vector<64x128xf32>
    %c0_26 = arith.constant 0 : index
    %c0_27 = arith.constant 0 : index
    %61 = vector.load %arg8[%c0_26, %c0_27] : memref<128x128xbf16, #tpu.memory_space<vmem>>, vector<128x128xbf16>
    %62 = arith.truncf %45 : vector<64x128xf32> to vector<64x128xbf16>
    %cst_28 = arith.constant dense<0.000000e+00> : vector<64x128xf32>
    %63 = tpu.matmul %62, %61, %cst_28 {dimension_numbers = #tpu.dot_dimension_numbers<[1], [0], [0], [1], [0, 0, 1, 1], [], []>} : vector<64x128xbf16>, vector<128x128xbf16>, vector<64x128xf32> -> vector<64x128xf32>
    %64 = arith.addf %60, %63 : vector<64x128xf32>
    %65 = arith.addf %64, %57 : vector<64x128xf32>
    %c0_i32_29 = arith.constant 0 : i32
    %c4_i32 = arith.constant 4 : i32
    %66 = arith.addi %c0_i32_29, %c4_i32 : i32
    %c1_i32_30 = arith.constant 1 : i32
    %67 = scf.for %arg22 = %c0_i32_29 to %66 step %c1_i32_30 iter_args(%arg23 = %65) -> (vector<64x128xf32>)  : i32 {
      %75 = arith.index_cast %arg22 : i32 to index
      %c0_38 = arith.constant 0 : index
      %c0_39 = arith.constant 0 : index
      %76 = vector.load %arg10[%75, %c0_38, %c0_39] : memref<4x1x128xf32, #tpu.memory_space<vmem>>, vector<1x1x128xf32>
      %77 = vector.shape_cast %76 : vector<1x1x128xf32> to vector<1x128xf32>
      %78 = arith.index_cast %arg22 : i32 to index
      %c0_40 = arith.constant 0 : index
      %c0_41 = arith.constant 0 : index
      %79 = vector.load %arg11[%78, %c0_40, %c0_41] : memref<4x1x128xf32, #tpu.memory_space<vmem>>, vector<1x1x128xf32>
      %80 = vector.shape_cast %79 : vector<1x1x128xf32> to vector<1x128xf32>
      %cst_42 = arith.constant dense<0.000000e+00> : vector<64xf32>
      %81 = vector.multi_reduction <add>, %arg23, %cst_42 [1] : vector<64x128xf32> to vector<64xf32>
      %82 = vector.shape_cast %81 : vector<64xf32> to vector<64x1xf32>
      %cst_43 = arith.constant 1.280000e+02 : f32
      %83 = vector.broadcast %cst_43 : f32 to vector<64x1xf32>
      %84 = arith.divf %82, %83 : vector<64x1xf32>
      %85 = arith.mulf %arg23, %arg23 : vector<64x128xf32>
      %cst_44 = arith.constant dense<0.000000e+00> : vector<64xf32>
      %86 = vector.multi_reduction <add>, %85, %cst_44 [1] : vector<64x128xf32> to vector<64xf32>
      %87 = vector.shape_cast %86 : vector<64xf32> to vector<64x1xf32>
      %cst_45 = arith.constant 1.280000e+02 : f32
      %88 = vector.broadcast %cst_45 : f32 to vector<64x1xf32>
      %89 = arith.divf %87, %88 : vector<64x1xf32>
      %90 = arith.mulf %84, %84 : vector<64x1xf32>
      %91 = arith.subf %89, %90 : vector<64x1xf32>
      %92 = vector.broadcast %84 : vector<64x1xf32> to vector<64x128xf32>
      %93 = arith.subf %arg23, %92 : vector<64x128xf32>
      %cst_46 = arith.constant 9.99999974E-6 : f32
      %94 = vector.broadcast %cst_46 : f32 to vector<64x1xf32>
      %95 = arith.addf %91, %94 : vector<64x1xf32>
      %96 = math.rsqrt %95 : vector<64x1xf32>
      %97 = vector.broadcast %96 : vector<64x1xf32> to vector<64x128xf32>
      %98 = arith.mulf %93, %97 : vector<64x128xf32>
      %99 = vector.broadcast %77 : vector<1x128xf32> to vector<64x128xf32>
      %100 = arith.mulf %98, %99 : vector<64x128xf32>
      %101 = vector.broadcast %80 : vector<1x128xf32> to vector<64x128xf32>
      %102 = arith.addf %100, %101 : vector<64x128xf32>
      %103 = arith.index_cast %arg22 : i32 to index
      %c0_47 = arith.constant 0 : index
      %c0_48 = arith.constant 0 : index
      %104 = vector.load %arg12[%103, %c0_47, %c0_48] : memref<4x128x384xbf16, #tpu.memory_space<vmem>>, vector<1x128x384xbf16>
      %105 = vector.shape_cast %104 : vector<1x128x384xbf16> to vector<128x384xbf16>
      %106 = arith.truncf %102 : vector<64x128xf32> to vector<64x128xbf16>
      %cst_49 = arith.constant dense<0.000000e+00> : vector<64x384xf32>
      %107 = tpu.matmul %106, %105, %cst_49 {dimension_numbers = #tpu.dot_dimension_numbers<[1], [0], [0], [1], [0, 0, 1, 1], [], []>} : vector<64x128xbf16>, vector<128x384xbf16>, vector<64x384xf32> -> vector<64x384xf32>
      %108 = vector.extract_strided_slice %107 {offsets = [0, 0], sizes = [64, 128], strides = [1, 1]} : vector<64x384xf32> to vector<64x128xf32>
      %109 = vector.extract_strided_slice %107 {offsets = [0, 128], sizes = [64, 128], strides = [1, 1]} : vector<64x384xf32> to vector<64x128xf32>
      %cst_50 = arith.constant dense<0.000000e+00> : vector<64xf32>
      %110 = vector.multi_reduction <add>, %109, %cst_50 [1] : vector<64x128xf32> to vector<64xf32>
      %111 = vector.shape_cast %110 : vector<64xf32> to vector<64x1xf32>
      %cst_51 = arith.constant 1.280000e+02 : f32
      %112 = vector.broadcast %cst_51 : f32 to vector<64x1xf32>
      %113 = arith.divf %111, %112 : vector<64x1xf32>
      %114 = arith.mulf %109, %109 : vector<64x128xf32>
      %cst_52 = arith.constant dense<0.000000e+00> : vector<64xf32>
      %115 = vector.multi_reduction <add>, %114, %cst_52 [1] : vector<64x128xf32> to vector<64xf32>
      %116 = vector.shape_cast %115 : vector<64xf32> to vector<64x1xf32>
      %cst_53 = arith.constant 1.280000e+02 : f32
      %117 = vector.broadcast %cst_53 : f32 to vector<64x1xf32>
      %118 = arith.divf %116, %117 : vector<64x1xf32>
      %119 = arith.mulf %113, %113 : vector<64x1xf32>
      %120 = arith.subf %118, %119 : vector<64x1xf32>
      %121 = vector.broadcast %113 : vector<64x1xf32> to vector<64x128xf32>
      %122 = arith.subf %109, %121 : vector<64x128xf32>
      %cst_54 = arith.constant 9.99999974E-6 : f32
      %123 = vector.broadcast %cst_54 : f32 to vector<64x1xf32>
      %124 = arith.addf %120, %123 : vector<64x1xf32>
      %125 = math.rsqrt %124 : vector<64x1xf32>
      %126 = vector.broadcast %125 : vector<64x1xf32> to vector<64x128xf32>
      %127 = arith.mulf %122, %126 : vector<64x128xf32>
      %128 = vector.extract_strided_slice %107 {offsets = [0, 256], sizes = [64, 128], strides = [1, 1]} : vector<64x384xf32> to vector<64x128xf32>
      %cst_55 = arith.constant dense<0.000000e+00> : vector<64xf32>
      %129 = vector.multi_reduction <add>, %128, %cst_55 [1] : vector<64x128xf32> to vector<64xf32>
      %130 = vector.shape_cast %129 : vector<64xf32> to vector<64x1xf32>
      %cst_56 = arith.constant 1.280000e+02 : f32
      %131 = vector.broadcast %cst_56 : f32 to vector<64x1xf32>
      %132 = arith.divf %130, %131 : vector<64x1xf32>
      %133 = arith.mulf %128, %128 : vector<64x128xf32>
      %cst_57 = arith.constant dense<0.000000e+00> : vector<64xf32>
      %134 = vector.multi_reduction <add>, %133, %cst_57 [1] : vector<64x128xf32> to vector<64xf32>
      %135 = vector.shape_cast %134 : vector<64xf32> to vector<64x1xf32>
      %cst_58 = arith.constant 1.280000e+02 : f32
      %136 = vector.broadcast %cst_58 : f32 to vector<64x1xf32>
      %137 = arith.divf %135, %136 : vector<64x1xf32>
      %138 = arith.mulf %132, %132 : vector<64x1xf32>
      %139 = arith.subf %137, %138 : vector<64x1xf32>
      %140 = vector.broadcast %132 : vector<64x1xf32> to vector<64x128xf32>
      %141 = arith.subf %128, %140 : vector<64x128xf32>
      %cst_59 = arith.constant 9.99999974E-6 : f32
      %142 = vector.broadcast %cst_59 : f32 to vector<64x1xf32>
      %143 = arith.addf %139, %142 : vector<64x1xf32>
      %144 = math.rsqrt %143 : vector<64x1xf32>
      %145 = vector.broadcast %144 : vector<64x1xf32> to vector<64x128xf32>
      %146 = arith.mulf %141, %145 : vector<64x128xf32>
      %147 = arith.truncf %127 : vector<64x128xf32> to vector<64x128xbf16>
      %148 = arith.truncf %146 : vector<64x128xf32> to vector<64x128xbf16>
      %cst_60 = arith.constant dense<0.000000e+00> : vector<128x128xf32>
      %149 = tpu.matmul %147, %148, %cst_60 {dimension_numbers = #tpu.dot_dimension_numbers<[0], [0], [1], [1], [0, 1, 1, 1], [], []>} : vector<64x128xbf16>, vector<64x128xbf16>, vector<128x128xf32> -> vector<128x128xf32>
      %150 = vector.broadcast %6 : f32 to vector<128x128xf32>
      %151 = arith.mulf %149, %150 : vector<128x128xf32>
      %152 = arith.truncf %108 : vector<64x128xf32> to vector<64x128xbf16>
      %153 = arith.truncf %151 : vector<128x128xf32> to vector<128x128xbf16>
      %cst_61 = arith.constant dense<0.000000e+00> : vector<64x128xf32>
      %154 = tpu.matmul %152, %153, %cst_61 {dimension_numbers = #tpu.dot_dimension_numbers<[1], [0], [0], [1], [0, 0, 1, 1], [], []>} : vector<64x128xbf16>, vector<128x128xbf16>, vector<64x128xf32> -> vector<64x128xf32>
      %155 = arith.index_cast %arg22 : i32 to index
      %c0_62 = arith.constant 0 : index
      %c0_63 = arith.constant 0 : index
      %156 = vector.load %arg13[%155, %c0_62, %c0_63] : memref<4x128x128xbf16, #tpu.memory_space<vmem>>, vector<1x128x128xbf16>
      %157 = vector.shape_cast %156 : vector<1x128x128xbf16> to vector<128x128xbf16>
      %158 = arith.truncf %154 : vector<64x128xf32> to vector<64x128xbf16>
      %cst_64 = arith.constant dense<0.000000e+00> : vector<64x128xf32>
      %159 = tpu.matmul %158, %157, %cst_64 {dimension_numbers = #tpu.dot_dimension_numbers<[1], [0], [0], [1], [0, 0, 1, 1], [], []>} : vector<64x128xbf16>, vector<128x128xbf16>, vector<64x128xf32> -> vector<64x128xf32>
      %160 = arith.addf %arg23, %159 : vector<64x128xf32>
      %161 = arith.index_cast %arg22 : i32 to index
      %c0_65 = arith.constant 0 : index
      %c0_66 = arith.constant 0 : index
      %162 = vector.load %arg14[%161, %c0_65, %c0_66] : memref<4x1x128xf32, #tpu.memory_space<vmem>>, vector<1x1x128xf32>
      %163 = vector.shape_cast %162 : vector<1x1x128xf32> to vector<1x128xf32>
      %164 = arith.index_cast %arg22 : i32 to index
      %c0_67 = arith.constant 0 : index
      %c0_68 = arith.constant 0 : index
      %165 = vector.load %arg15[%164, %c0_67, %c0_68] : memref<4x1x128xf32, #tpu.memory_space<vmem>>, vector<1x1x128xf32>
      %166 = vector.shape_cast %165 : vector<1x1x128xf32> to vector<1x128xf32>
      %cst_69 = arith.constant dense<0.000000e+00> : vector<64xf32>
      %167 = vector.multi_reduction <add>, %160, %cst_69 [1] : vector<64x128xf32> to vector<64xf32>
      %168 = vector.shape_cast %167 : vector<64xf32> to vector<64x1xf32>
      %cst_70 = arith.constant 1.280000e+02 : f32
      %169 = vector.broadcast %cst_70 : f32 to vector<64x1xf32>
      %170 = arith.divf %168, %169 : vector<64x1xf32>
      %171 = arith.mulf %160, %160 : vector<64x128xf32>
      %cst_71 = arith.constant dense<0.000000e+00> : vector<64xf32>
      %172 = vector.multi_reduction <add>, %171, %cst_71 [1] : vector<64x128xf32> to vector<64xf32>
      %173 = vector.shape_cast %172 : vector<64xf32> to vector<64x1xf32>
      %cst_72 = arith.constant 1.280000e+02 : f32
      %174 = vector.broadcast %cst_72 : f32 to vector<64x1xf32>
      %175 = arith.divf %173, %174 : vector<64x1xf32>
      %176 = arith.mulf %170, %170 : vector<64x1xf32>
      %177 = arith.subf %175, %176 : vector<64x1xf32>
      %178 = vector.broadcast %170 : vector<64x1xf32> to vector<64x128xf32>
      %179 = arith.subf %160, %178 : vector<64x128xf32>
      %cst_73 = arith.constant 9.99999974E-6 : f32
      %180 = vector.broadcast %cst_73 : f32 to vector<64x1xf32>
      %181 = arith.addf %177, %180 : vector<64x1xf32>
      %182 = math.rsqrt %181 : vector<64x1xf32>
      %183 = vector.broadcast %182 : vector<64x1xf32> to vector<64x128xf32>
      %184 = arith.mulf %179, %183 : vector<64x128xf32>
      %185 = vector.broadcast %163 : vector<1x128xf32> to vector<64x128xf32>
      %186 = arith.mulf %184, %185 : vector<64x128xf32>
      %187 = vector.broadcast %166 : vector<1x128xf32> to vector<64x128xf32>
      %188 = arith.addf %186, %187 : vector<64x128xf32>
      %189 = arith.index_cast %arg22 : i32 to index
      %c0_74 = arith.constant 0 : index
      %c0_75 = arith.constant 0 : index
      %190 = vector.load %arg16[%189, %c0_74, %c0_75] : memref<4x128x128xbf16, #tpu.memory_space<vmem>>, vector<1x128x128xbf16>
      %191 = vector.shape_cast %190 : vector<1x128x128xbf16> to vector<128x128xbf16>
      %192 = arith.truncf %188 : vector<64x128xf32> to vector<64x128xbf16>
      %cst_76 = arith.constant dense<0.000000e+00> : vector<64x128xf32>
      %193 = tpu.matmul %192, %191, %cst_76 {dimension_numbers = #tpu.dot_dimension_numbers<[1], [0], [0], [1], [0, 0, 1, 1], [], []>} : vector<64x128xbf16>, vector<128x128xbf16>, vector<64x128xf32> -> vector<64x128xf32>
      %194 = arith.index_cast %arg22 : i32 to index
      %c0_77 = arith.constant 0 : index
      %c0_78 = arith.constant 0 : index
      %195 = vector.load %arg17[%194, %c0_77, %c0_78] : memref<4x1x128xf32, #tpu.memory_space<vmem>>, vector<1x1x128xf32>
      %196 = vector.shape_cast %195 : vector<1x1x128xf32> to vector<1x128xf32>
      %197 = vector.broadcast %196 : vector<1x128xf32> to vector<64x128xf32>
      %198 = arith.addf %193, %197 : vector<64x128xf32>
      %199 = arith.mulf %198, %198 : vector<64x128xf32>
      %200 = arith.mulf %198, %199 : vector<64x128xf32>
      %cst_79 = arith.constant 4.471500e-02 : f32
      %201 = vector.broadcast %cst_79 : f32 to vector<64x128xf32>
      %202 = arith.mulf %201, %200 : vector<64x128xf32>
      %203 = arith.addf %198, %202 : vector<64x128xf32>
      %cst_80 = arith.constant 0.797884583 : f32
      %204 = vector.broadcast %cst_80 : f32 to vector<64x128xf32>
      %205 = arith.mulf %204, %203 : vector<64x128xf32>
      %206 = math.tanh %205 : vector<64x128xf32>
      %cst_81 = arith.constant 1.000000e+00 : f32
      %207 = vector.broadcast %cst_81 : f32 to vector<64x128xf32>
      %208 = arith.addf %207, %206 : vector<64x128xf32>
      %cst_82 = arith.constant 5.000000e-01 : f32
      %209 = vector.broadcast %cst_82 : f32 to vector<64x128xf32>
      %210 = arith.mulf %209, %208 : vector<64x128xf32>
      %211 = arith.mulf %198, %210 : vector<64x128xf32>
      %212 = arith.index_cast %arg22 : i32 to index
      %c0_83 = arith.constant 0 : index
      %c0_84 = arith.constant 0 : index
      %213 = vector.load %arg18[%212, %c0_83, %c0_84] : memref<4x128x128xbf16, #tpu.memory_space<vmem>>, vector<1x128x128xbf16>
      %214 = vector.shape_cast %213 : vector<1x128x128xbf16> to vector<128x128xbf16>
      %215 = arith.truncf %211 : vector<64x128xf32> to vector<64x128xbf16>
      %cst_85 = arith.constant dense<0.000000e+00> : vector<64x128xf32>
      %216 = tpu.matmul %215, %214, %cst_85 {dimension_numbers = #tpu.dot_dimension_numbers<[1], [0], [0], [1], [0, 0, 1, 1], [], []>} : vector<64x128xbf16>, vector<128x128xbf16>, vector<64x128xf32> -> vector<64x128xf32>
      %217 = arith.addf %160, %216 : vector<64x128xf32>
      %218 = arith.index_cast %arg22 : i32 to index
      %c0_86 = arith.constant 0 : index
      %c0_87 = arith.constant 0 : index
      %219 = vector.load %arg19[%218, %c0_86, %c0_87] : memref<4x1x128xf32, #tpu.memory_space<vmem>>, vector<1x1x128xf32>
      %220 = vector.shape_cast %219 : vector<1x1x128xf32> to vector<1x128xf32>
      %221 = vector.broadcast %220 : vector<1x128xf32> to vector<64x128xf32>
      %222 = arith.addf %217, %221 : vector<64x128xf32>
      scf.yield %222 : vector<64x128xf32>
    }
    %c4_i32_31 = arith.constant 4 : i32
    %c0_32 = arith.constant 0 : index
    %c0_33 = arith.constant 0 : index
    %68 = vector.load %arg20[%c0_32, %c0_33] : memref<128x128xbf16, #tpu.memory_space<vmem>>, vector<128x128xbf16>
    %69 = arith.truncf %67 : vector<64x128xf32> to vector<64x128xbf16>
    %cst_34 = arith.constant dense<0.000000e+00> : vector<64x128xf32>
    %70 = tpu.matmul %69, %68, %cst_34 {dimension_numbers = #tpu.dot_dimension_numbers<[1], [0], [0], [1], [0, 0, 1, 1], [], []>} : vector<64x128xbf16>, vector<128x128xbf16>, vector<64x128xf32> -> vector<64x128xf32>
    %71 = arith.truncf %70 : vector<64x128xf32> to vector<64x128xbf16>
    %c0_35 = arith.constant 0 : index
    %c0_36 = arith.constant 0 : index
    %c0_37 = arith.constant 0 : index
    %72 = vector.load %arg21[%c0_35, %c0_36, %c0_37] : memref<1x64x128xbf16, #tpu.memory_space<vmem>>, vector<1x64x128xbf16>
    %73 = vector.shape_cast %72 : vector<1x64x128xbf16> to vector<64x128xbf16>
    %74 = vector.shape_cast %71 : vector<64x128xbf16> to vector<1x64x128xbf16>
    tpu.vector_store %arg21[%c0_35, %c0_36, %c0_37], %74 {strides = array<i32>} : memref<1x64x128xbf16, #tpu.memory_space<vmem>>, vector<1x64x128xbf16>,
    return
  }
  func.func @transform_0(%arg0: i32) -> (i32, i32, i32) {
    %c0_i32 = arith.constant 0 : i32
    %c0_i32_0 = arith.constant 0 : i32
    %c0_i32_1 = arith.constant 0 : i32
    return %arg0, %c0_i32, %c0_i32_0 : i32, i32, i32
  }
  func.func @transform_1(%arg0: i32) -> (i32, i32, i32) {
    %c0_i32 = arith.constant 0 : i32
    %c0_i32_0 = arith.constant 0 : i32
    %c0_i32_1 = arith.constant 0 : i32
    return %arg0, %c0_i32, %c0_i32_0 : i32, i32, i32
  }
  func.func @transform_2(%arg0: i32) -> (i32, i32, i32) {
    %c0_i32 = arith.constant 0 : i32
    %c0_i32_0 = arith.constant 0 : i32
    %c0_i32_1 = arith.constant 0 : i32
    return %arg0, %c0_i32, %c0_i32_0 : i32, i32, i32
  }
  func.func @transform_3(%arg0: i32) -> (i32, i32) {
    %c0_i32 = arith.constant 0 : i32
    %c0_i32_0 = arith.constant 0 : i32
    %c0_i32_1 = arith.constant 0 : i32
    return %c0_i32, %c0_i32_0 : i32, i32
  }
  func.func @transform_4(%arg0: i32) -> (i32, i32) {
    %c0_i32 = arith.constant 0 : i32
    %c0_i32_0 = arith.constant 0 : i32
    %c0_i32_1 = arith.constant 0 : i32
    return %c0_i32, %c0_i32_0 : i32, i32
  }
  func.func @transform_5(%arg0: i32) -> (i32, i32) {
    %c0_i32 = arith.constant 0 : i32
    %c0_i32_0 = arith.constant 0 : i32
    %c0_i32_1 = arith.constant 0 : i32
    return %c0_i32, %c0_i32_0 : i32, i32
  }
  func.func @transform_6(%arg0: i32) -> (i32, i32) {
    %c0_i32 = arith.constant 0 : i32
    %c0_i32_0 = arith.constant 0 : i32
    %c0_i32_1 = arith.constant 0 : i32
    return %c0_i32, %c0_i32_0 : i32, i32
  }
  func.func @transform_7(%arg0: i32) -> (i32, i32) {
    %c0_i32 = arith.constant 0 : i32
    %c0_i32_0 = arith.constant 0 : i32
    %c0_i32_1 = arith.constant 0 : i32
    return %c0_i32, %c0_i32_0 : i32, i32
  }
  func.func @transform_8(%arg0: i32) -> (i32, i32) {
    %c0_i32 = arith.constant 0 : i32
    %c0_i32_0 = arith.constant 0 : i32
    %c0_i32_1 = arith.constant 0 : i32
    return %c0_i32, %c0_i32_0 : i32, i32
  }
  func.func @transform_9(%arg0: i32) -> (i32, i32, i32) {
    %c0_i32 = arith.constant 0 : i32
    %c0_i32_0 = arith.constant 0 : i32
    %c0_i32_1 = arith.constant 0 : i32
    %c0_i32_2 = arith.constant 0 : i32
    return %c0_i32, %c0_i32_0, %c0_i32_1 : i32, i32, i32
  }
  func.func @transform_10(%arg0: i32) -> (i32, i32, i32) {
    %c0_i32 = arith.constant 0 : i32
    %c0_i32_0 = arith.constant 0 : i32
    %c0_i32_1 = arith.constant 0 : i32
    %c0_i32_2 = arith.constant 0 : i32
    return %c0_i32, %c0_i32_0, %c0_i32_1 : i32, i32, i32
  }
  func.func @transform_11(%arg0: i32) -> (i32, i32, i32) {
    %c0_i32 = arith.constant 0 : i32
    %c0_i32_0 = arith.constant 0 : i32
    %c0_i32_1 = arith.constant 0 : i32
    %c0_i32_2 = arith.constant 0 : i32
    return %c0_i32, %c0_i32_0, %c0_i32_1 : i32, i32, i32
  }
  func.func @transform_12(%arg0: i32) -> (i32, i32, i32) {
    %c0_i32 = arith.constant 0 : i32
    %c0_i32_0 = arith.constant 0 : i32
    %c0_i32_1 = arith.constant 0 : i32
    %c0_i32_2 = arith.constant 0 : i32
    return %c0_i32, %c0_i32_0, %c0_i32_1 : i32, i32, i32
  }
  func.func @transform_13(%arg0: i32) -> (i32, i32, i32) {
    %c0_i32 = arith.constant 0 : i32
    %c0_i32_0 = arith.constant 0 : i32
    %c0_i32_1 = arith.constant 0 : i32
    %c0_i32_2 = arith.constant 0 : i32
    return %c0_i32, %c0_i32_0, %c0_i32_1 : i32, i32, i32
  }
  func.func @transform_14(%arg0: i32) -> (i32, i32, i32) {
    %c0_i32 = arith.constant 0 : i32
    %c0_i32_0 = arith.constant 0 : i32
    %c0_i32_1 = arith.constant 0 : i32
    %c0_i32_2 = arith.constant 0 : i32
    return %c0_i32, %c0_i32_0, %c0_i32_1 : i32, i32, i32
  }
  func.func @transform_15(%arg0: i32) -> (i32, i32, i32) {
    %c0_i32 = arith.constant 0 : i32
    %c0_i32_0 = arith.constant 0 : i32
    %c0_i32_1 = arith.constant 0 : i32
    %c0_i32_2 = arith.constant 0 : i32
    return %c0_i32, %c0_i32_0, %c0_i32_1 : i32, i32, i32
  }
  func.func @transform_16(%arg0: i32) -> (i32, i32, i32) {
    %c0_i32 = arith.constant 0 : i32
    %c0_i32_0 = arith.constant 0 : i32
    %c0_i32_1 = arith.constant 0 : i32
    %c0_i32_2 = arith.constant 0 : i32
    return %c0_i32, %c0_i32_0, %c0_i32_1 : i32, i32, i32
  }
  func.func @transform_17(%arg0: i32) -> (i32, i32, i32) {
    %c0_i32 = arith.constant 0 : i32
    %c0_i32_0 = arith.constant 0 : i32
    %c0_i32_1 = arith.constant 0 : i32
    %c0_i32_2 = arith.constant 0 : i32
    return %c0_i32, %c0_i32_0, %c0_i32_1 : i32, i32, i32
  }
  func.func @transform_18(%arg0: i32) -> (i32, i32, i32) {
    %c0_i32 = arith.constant 0 : i32
    %c0_i32_0 = arith.constant 0 : i32
    %c0_i32_1 = arith.constant 0 : i32
    %c0_i32_2 = arith.constant 0 : i32
    return %c0_i32, %c0_i32_0, %c0_i32_1 : i32, i32, i32
  }
  func.func @transform_19(%arg0: i32) -> (i32, i32) {
    %c0_i32 = arith.constant 0 : i32
    %c0_i32_0 = arith.constant 0 : i32
    %c0_i32_1 = arith.constant 0 : i32
    return %c0_i32, %c0_i32_0 : i32, i32
  }
  func.func @transform_20(%arg0: i32) -> (i32, i32, i32) {
    %c0_i32 = arith.constant 0 : i32
    %c0_i32_0 = arith.constant 0 : i32
    %c0_i32_1 = arith.constant 0 : i32
    return %arg0, %c0_i32, %c0_i32_0 : i32, i32, i32
  }
}

module attributes {stable_mosaic.version = 11 : i64} {
  func.func @decoder_kernel(%arg0: i32, %arg1: i32, %arg2: i32, %arg3: memref<1x64x2xf32, #tpu.memory_space<vmem>>, %arg4: memref<1x64x1xi32, #tpu.memory_space<vmem>>, %arg5: memref<1x64x128xbf16, #tpu.memory_space<vmem>>, %arg6: memref<2x128xf32, #tpu.memory_space<vmem>>, %arg7: memref<128x128xbf16, #tpu.memory_space<vmem>>, %arg8: memref<3x128xf32, #tpu.memory_space<vmem>>, %arg9: memref<128x128xbf16, #tpu.memory_space<vmem>>, %arg10: memref<128x128xbf16, #tpu.memory_space<vmem>>, %arg11: memref<1x128xf32, #tpu.memory_space<vmem>>, %arg12: memref<1x128xf32, #tpu.memory_space<vmem>>, %arg13: memref<1x128xf32, #tpu.memory_space<vmem>>, %arg14: memref<1x128xf32, #tpu.memory_space<vmem>>, %arg15: memref<128x128xbf16, #tpu.memory_space<vmem>>, %arg16: memref<128x256xbf16, #tpu.memory_space<vmem>>, %arg17: memref<128x128xbf16, #tpu.memory_space<vmem>>, %arg18: memref<1x128xf32, #tpu.memory_space<vmem>>, %arg19: memref<1x128xf32, #tpu.memory_space<vmem>>, %arg20: memref<128x128xbf16, #tpu.memory_space<vmem>>, %arg21: memref<1x128xf32, #tpu.memory_space<vmem>>, %arg22: memref<128x128xbf16, #tpu.memory_space<vmem>>, %arg23: memref<1x128xf32, #tpu.memory_space<vmem>>, %arg24: memref<128x3xbf16, #tpu.memory_space<vmem>>, %arg25: memref<3x1xf32, #tpu.memory_space<vmem>>, %arg26: memref<1x2x3x64xf32, #tpu.memory_space<vmem>>, %arg27: memref<64x128xf32, #tpu.memory_space<vmem>>, %arg28: memref<64x128xf32, #tpu.memory_space<vmem>>, %arg29: memref<64x1xf32, #tpu.memory_space<vmem>>, %arg30: memref<64x1xf32, #tpu.memory_space<vmem>>, %arg31: memref<64x128xf32, #tpu.memory_space<vmem>>) attributes {dimension_semantics = [#tpu.dimension_semantics<parallel>, #tpu.dimension_semantics<parallel>, #tpu.dimension_semantics<arbitrary>], iteration_bounds = array<i64: 2, 1, 1>, scalar_prefetch = 0 : i64, scratch_operands = 5 : i64, tpu.core_type = #tpu.core_type<tc>, window_params = [{transform_indices = @transform_0, window_bounds = array<i64: 1, 64, 2>}, {transform_indices = @transform_1, window_bounds = array<i64: 1, 64, 1>}, {transform_indices = @transform_2, window_bounds = array<i64: 1, 64, 128>}, {pipeline_mode = #tpu.pipeline_mode<synchronous>, transform_indices = @transform_3, window_bounds = array<i64: 2, 128>}, {pipeline_mode = #tpu.pipeline_mode<synchronous>, transform_indices = @transform_4, window_bounds = array<i64: 128, 128>}, {pipeline_mode = #tpu.pipeline_mode<synchronous>, transform_indices = @transform_5, window_bounds = array<i64: 3, 128>}, {pipeline_mode = #tpu.pipeline_mode<synchronous>, transform_indices = @transform_6, window_bounds = array<i64: 128, 128>}, {pipeline_mode = #tpu.pipeline_mode<synchronous>, transform_indices = @transform_7, window_bounds = array<i64: 128, 128>}, {pipeline_mode = #tpu.pipeline_mode<synchronous>, transform_indices = @transform_8, window_bounds = array<i64: 1, 128>}, {pipeline_mode = #tpu.pipeline_mode<synchronous>, transform_indices = @transform_9, window_bounds = array<i64: 1, 128>}, {pipeline_mode = #tpu.pipeline_mode<synchronous>, transform_indices = @transform_10, window_bounds = array<i64: 1, 128>}, {pipeline_mode = #tpu.pipeline_mode<synchronous>, transform_indices = @transform_11, window_bounds = array<i64: 1, 128>}, {pipeline_mode = #tpu.pipeline_mode<synchronous>, transform_indices = @transform_12, window_bounds = array<i64: 128, 128>}, {pipeline_mode = #tpu.pipeline_mode<synchronous>, transform_indices = @transform_13, window_bounds = array<i64: 128, 256>}, {pipeline_mode = #tpu.pipeline_mode<synchronous>, transform_indices = @transform_14, window_bounds = array<i64: 128, 128>}, {pipeline_mode = #tpu.pipeline_mode<synchronous>, transform_indices = @transform_15, window_bounds = array<i64: 1, 128>}, {pipeline_mode = #tpu.pipeline_mode<synchronous>, transform_indices = @transform_16, window_bounds = array<i64: 1, 128>}, {pipeline_mode = #tpu.pipeline_mode<synchronous>, transform_indices = @transform_17, window_bounds = array<i64: 128, 128>}, {pipeline_mode = #tpu.pipeline_mode<synchronous>, transform_indices = @transform_18, window_bounds = array<i64: 1, 128>}, {pipeline_mode = #tpu.pipeline_mode<synchronous>, transform_indices = @transform_19, window_bounds = array<i64: 128, 128>}, {pipeline_mode = #tpu.pipeline_mode<synchronous>, transform_indices = @transform_20, window_bounds = array<i64: 1, 128>}, {pipeline_mode = #tpu.pipeline_mode<synchronous>, transform_indices = @transform_21, window_bounds = array<i64: 128, 3>}, {pipeline_mode = #tpu.pipeline_mode<synchronous>, transform_indices = @transform_22, window_bounds = array<i64: 3, 1>}, {transform_indices = @transform_23, window_bounds = array<i64: 1, 2, 3, 64>}]} {
    %c0_i32 = arith.constant 0 : i32
    %0 = arith.cmpi eq, %arg2, %c0_i32 : i32
    %1 = arith.extui %0 : i1 to i32
    %c0_i32_0 = arith.constant 0 : i32
    %2 = arith.cmpi ne, %1, %c0_i32_0 : i32
    scf.if %2 {
      %c0_37 = arith.constant 0 : index
      %c0_38 = arith.constant 0 : index
      %c0_39 = arith.constant 0 : index
      %69 = vector.load %arg3[%c0_37, %c0_38, %c0_39] : memref<1x64x2xf32, #tpu.memory_space<vmem>>, vector<1x64x2xf32>
      %70 = vector.shape_cast %69 : vector<1x64x2xf32> to vector<64x2xf32>
      %c0_40 = arith.constant 0 : index
      %c0_41 = arith.constant 0 : index
      %c0_42 = arith.constant 0 : index
      %71 = vector.load %arg4[%c0_40, %c0_41, %c0_42] : memref<1x64x1xi32, #tpu.memory_space<vmem>>, vector<1x64x1xi32>
      %72 = vector.shape_cast %71 : vector<1x64x1xi32> to vector<64x1xi32>
      %c0_43 = arith.constant 0 : index
      %c0_44 = arith.constant 0 : index
      %73 = vector.load %arg6[%c0_43, %c0_44] : memref<2x128xf32, #tpu.memory_space<vmem>>, vector<2x128xf32>
      %74 = vector.extract_strided_slice %70 {offsets = [0, 0], sizes = [64, 1], strides = [1, 1]} : vector<64x2xf32> to vector<64x1xf32>
      %75 = vector.extract_strided_slice %73 {offsets = [0, 0], sizes = [1, 128], strides = [1, 1]} : vector<2x128xf32> to vector<1x128xf32>
      %76 = vector.broadcast %74 : vector<64x1xf32> to vector<64x128xf32>
      %77 = vector.broadcast %75 : vector<1x128xf32> to vector<64x128xf32>
      %78 = arith.mulf %76, %77 : vector<64x128xf32>
      %79 = vector.extract_strided_slice %70 {offsets = [0, 1], sizes = [64, 1], strides = [1, 1]} : vector<64x2xf32> to vector<64x1xf32>
      %80 = vector.extract_strided_slice %73 {offsets = [1, 0], sizes = [1, 128], strides = [1, 1]} : vector<2x128xf32> to vector<1x128xf32>
      %81 = vector.broadcast %79 : vector<64x1xf32> to vector<64x128xf32>
      %82 = vector.broadcast %80 : vector<1x128xf32> to vector<64x128xf32>
      %83 = arith.mulf %81, %82 : vector<64x128xf32>
      %84 = arith.addf %78, %83 : vector<64x128xf32>
      %85 = arith.mulf %84, %84 : vector<64x128xf32>
      %86 = arith.mulf %84, %85 : vector<64x128xf32>
      %cst_45 = arith.constant 4.471500e-02 : f32
      %87 = vector.broadcast %cst_45 : f32 to vector<64x128xf32>
      %88 = arith.mulf %87, %86 : vector<64x128xf32>
      %89 = arith.addf %84, %88 : vector<64x128xf32>
      %cst_46 = arith.constant 0.797884583 : f32
      %90 = vector.broadcast %cst_46 : f32 to vector<64x128xf32>
      %91 = arith.mulf %90, %89 : vector<64x128xf32>
      %92 = math.tanh %91 : vector<64x128xf32>
      %cst_47 = arith.constant 1.000000e+00 : f32
      %93 = vector.broadcast %cst_47 : f32 to vector<64x128xf32>
      %94 = arith.addf %93, %92 : vector<64x128xf32>
      %cst_48 = arith.constant 5.000000e-01 : f32
      %95 = vector.broadcast %cst_48 : f32 to vector<64x128xf32>
      %96 = arith.mulf %95, %94 : vector<64x128xf32>
      %97 = arith.mulf %84, %96 : vector<64x128xf32>
      %c0_49 = arith.constant 0 : index
      %c0_50 = arith.constant 0 : index
      %98 = vector.load %arg7[%c0_49, %c0_50] : memref<128x128xbf16, #tpu.memory_space<vmem>>, vector<128x128xbf16>
      %99 = arith.truncf %97 : vector<64x128xf32> to vector<64x128xbf16>
      %cst_51 = arith.constant dense<0.000000e+00> : vector<64x128xf32>
      %100 = tpu.matmul %99, %98, %cst_51 {dimension_numbers = #tpu.dot_dimension_numbers<[1], [0], [0], [1], [0, 0, 1, 1], [], []>} : vector<64x128xbf16>, vector<128x128xbf16>, vector<64x128xf32> -> vector<64x128xf32>
      %c0_52 = arith.constant 0 : index
      %c0_53 = arith.constant 0 : index
      %101 = vector.load %arg8[%c0_52, %c0_53] : memref<3x128xf32, #tpu.memory_space<vmem>>, vector<3x128xf32>
      %c0_i32_54 = arith.constant 0 : i32
      %102 = vector.broadcast %c0_i32_54 : i32 to vector<64x1xi32>
      %103 = arith.cmpi eq, %72, %102 : vector<64x1xi32>
      %104 = vector.extract_strided_slice %101 {offsets = [0, 0], sizes = [1, 128], strides = [1, 1]} : vector<3x128xf32> to vector<1x128xf32>
      %c1_i32 = arith.constant 1 : i32
      %105 = vector.broadcast %c1_i32 : i32 to vector<64x1xi32>
      %106 = arith.cmpi eq, %72, %105 : vector<64x1xi32>
      %107 = vector.extract_strided_slice %101 {offsets = [1, 0], sizes = [1, 128], strides = [1, 1]} : vector<3x128xf32> to vector<1x128xf32>
      %108 = vector.extract_strided_slice %101 {offsets = [2, 0], sizes = [1, 128], strides = [1, 1]} : vector<3x128xf32> to vector<1x128xf32>
      %109 = vector.shape_cast %106 : vector<64x1xi1> to vector<64x1xi1>
      %110 = vector.broadcast %109 : vector<64x1xi1> to vector<64x128xi1>
      %111 = vector.shape_cast %107 : vector<1x128xf32> to vector<1x128xf32>
      %112 = vector.broadcast %111 : vector<1x128xf32> to vector<64x128xf32>
      %113 = vector.shape_cast %108 : vector<1x128xf32> to vector<1x128xf32>
      %114 = vector.broadcast %113 : vector<1x128xf32> to vector<64x128xf32>
      %115 = arith.select %110, %112, %114 : vector<64x128xi1>, vector<64x128xf32>
      %116 = vector.shape_cast %103 : vector<64x1xi1> to vector<64x1xi1>
      %117 = vector.broadcast %116 : vector<64x1xi1> to vector<64x128xi1>
      %118 = vector.shape_cast %104 : vector<1x128xf32> to vector<1x128xf32>
      %119 = vector.broadcast %118 : vector<1x128xf32> to vector<64x128xf32>
      %120 = arith.select %117, %119, %115 : vector<64x128xi1>, vector<64x128xf32>
      %c0_55 = arith.constant 0 : index
      %c0_56 = arith.constant 0 : index
      %121 = vector.load %arg9[%c0_55, %c0_56] : memref<128x128xbf16, #tpu.memory_space<vmem>>, vector<128x128xbf16>
      %122 = arith.truncf %100 : vector<64x128xf32> to vector<64x128xbf16>
      %cst_57 = arith.constant dense<0.000000e+00> : vector<64x128xf32>
      %123 = tpu.matmul %122, %121, %cst_57 {dimension_numbers = #tpu.dot_dimension_numbers<[1], [0], [0], [1], [0, 0, 1, 1], [], []>} : vector<64x128xbf16>, vector<128x128xbf16>, vector<64x128xf32> -> vector<64x128xf32>
      %c0_58 = arith.constant 0 : index
      %c0_59 = arith.constant 0 : index
      %124 = vector.load %arg10[%c0_58, %c0_59] : memref<128x128xbf16, #tpu.memory_space<vmem>>, vector<128x128xbf16>
      %125 = arith.truncf %120 : vector<64x128xf32> to vector<64x128xbf16>
      %cst_60 = arith.constant dense<0.000000e+00> : vector<64x128xf32>
      %126 = tpu.matmul %125, %124, %cst_60 {dimension_numbers = #tpu.dot_dimension_numbers<[1], [0], [0], [1], [0, 0, 1, 1], [], []>} : vector<64x128xbf16>, vector<128x128xbf16>, vector<64x128xf32> -> vector<64x128xf32>
      %127 = arith.addf %123, %126 : vector<64x128xf32>
      %c0_61 = arith.constant 0 : index
      %c0_62 = arith.constant 0 : index
      %128 = vector.load %arg27[%c0_61, %c0_62] : memref<64x128xf32, #tpu.memory_space<vmem>>, vector<64x128xf32>
      tpu.vector_store %arg27[%c0_61, %c0_62], %127 {strides = array<i32>} : memref<64x128xf32, #tpu.memory_space<vmem>>, vector<64x128xf32>,
      %c0_63 = arith.constant 0 : index
      %c0_64 = arith.constant 0 : index
      %129 = vector.load %arg11[%c0_63, %c0_64] : memref<1x128xf32, #tpu.memory_space<vmem>>, vector<1x128xf32>
      %c0_65 = arith.constant 0 : index
      %c0_66 = arith.constant 0 : index
      %130 = vector.load %arg12[%c0_65, %c0_66] : memref<1x128xf32, #tpu.memory_space<vmem>>, vector<1x128xf32>
      %cst_67 = arith.constant dense<0.000000e+00> : vector<64xf32>
      %131 = vector.multi_reduction <add>, %127, %cst_67 [1] : vector<64x128xf32> to vector<64xf32>
      %132 = vector.shape_cast %131 : vector<64xf32> to vector<64x1xf32>
      %cst_68 = arith.constant 1.280000e+02 : f32
      %133 = vector.broadcast %cst_68 : f32 to vector<64x1xf32>
      %134 = arith.divf %132, %133 : vector<64x1xf32>
      %135 = arith.mulf %127, %127 : vector<64x128xf32>
      %cst_69 = arith.constant dense<0.000000e+00> : vector<64xf32>
      %136 = vector.multi_reduction <add>, %135, %cst_69 [1] : vector<64x128xf32> to vector<64xf32>
      %137 = vector.shape_cast %136 : vector<64xf32> to vector<64x1xf32>
      %cst_70 = arith.constant 1.280000e+02 : f32
      %138 = vector.broadcast %cst_70 : f32 to vector<64x1xf32>
      %139 = arith.divf %137, %138 : vector<64x1xf32>
      %140 = arith.mulf %134, %134 : vector<64x1xf32>
      %141 = arith.subf %139, %140 : vector<64x1xf32>
      %142 = vector.broadcast %134 : vector<64x1xf32> to vector<64x128xf32>
      %143 = arith.subf %127, %142 : vector<64x128xf32>
      %cst_71 = arith.constant 9.99999974E-6 : f32
      %144 = vector.broadcast %cst_71 : f32 to vector<64x1xf32>
      %145 = arith.addf %141, %144 : vector<64x1xf32>
      %146 = math.rsqrt %145 : vector<64x1xf32>
      %147 = vector.broadcast %146 : vector<64x1xf32> to vector<64x128xf32>
      %148 = arith.mulf %143, %147 : vector<64x128xf32>
      %149 = vector.broadcast %129 : vector<1x128xf32> to vector<64x128xf32>
      %150 = arith.mulf %148, %149 : vector<64x128xf32>
      %151 = vector.broadcast %130 : vector<1x128xf32> to vector<64x128xf32>
      %152 = arith.addf %150, %151 : vector<64x128xf32>
      %c0_72 = arith.constant 0 : index
      %c0_73 = arith.constant 0 : index
      %153 = vector.load %arg15[%c0_72, %c0_73] : memref<128x128xbf16, #tpu.memory_space<vmem>>, vector<128x128xbf16>
      %154 = arith.truncf %152 : vector<64x128xf32> to vector<64x128xbf16>
      %cst_74 = arith.constant dense<0.000000e+00> : vector<64x128xf32>
      %155 = tpu.matmul %154, %153, %cst_74 {dimension_numbers = #tpu.dot_dimension_numbers<[1], [0], [0], [1], [0, 0, 1, 1], [], []>} : vector<64x128xbf16>, vector<128x128xbf16>, vector<64x128xf32> -> vector<64x128xf32>
      %c0_75 = arith.constant 0 : index
      %c0_76 = arith.constant 0 : index
      %156 = vector.load %arg28[%c0_75, %c0_76] : memref<64x128xf32, #tpu.memory_space<vmem>>, vector<64x128xf32>
      tpu.vector_store %arg28[%c0_75, %c0_76], %155 {strides = array<i32>} : memref<64x128xf32, #tpu.memory_space<vmem>>, vector<64x128xf32>,
      %cst_77 = arith.constant 0xFF800000 : f32
      %157 = vector.broadcast %cst_77 : f32 to vector<64x1xf32>
      %c0_78 = arith.constant 0 : index
      %c0_79 = arith.constant 0 : index
      %158 = vector.load %arg29[%c0_78, %c0_79] : memref<64x1xf32, #tpu.memory_space<vmem>>, vector<64x1xf32>
      tpu.vector_store %arg29[%c0_78, %c0_79], %157 {strides = array<i32>} : memref<64x1xf32, #tpu.memory_space<vmem>>, vector<64x1xf32>,
      %cst_80 = arith.constant 0.000000e+00 : f32
      %159 = vector.broadcast %cst_80 : f32 to vector<64x1xf32>
      %c0_81 = arith.constant 0 : index
      %c0_82 = arith.constant 0 : index
      %160 = vector.load %arg30[%c0_81, %c0_82] : memref<64x1xf32, #tpu.memory_space<vmem>>, vector<64x1xf32>
      tpu.vector_store %arg30[%c0_81, %c0_82], %159 {strides = array<i32>} : memref<64x1xf32, #tpu.memory_space<vmem>>, vector<64x1xf32>,
      %cst_83 = arith.constant 0.000000e+00 : f32
      %161 = vector.broadcast %cst_83 : f32 to vector<64x128xf32>
      %c0_84 = arith.constant 0 : index
      %c0_85 = arith.constant 0 : index
      %162 = vector.load %arg31[%c0_84, %c0_85] : memref<64x128xf32, #tpu.memory_space<vmem>>, vector<64x128xf32>
      tpu.vector_store %arg31[%c0_84, %c0_85], %161 {strides = array<i32>} : memref<64x128xf32, #tpu.memory_space<vmem>>, vector<64x128xf32>,
    } else {
    }
    %c0 = arith.constant 0 : index
    %c0_1 = arith.constant 0 : index
    %c0_2 = arith.constant 0 : index
    %3 = vector.load %arg5[%c0, %c0_1, %c0_2] : memref<1x64x128xbf16, #tpu.memory_space<vmem>>, vector<1x64x128xbf16>
    %4 = vector.shape_cast %3 : vector<1x64x128xbf16> to vector<64x128xbf16>
    %5 = arith.extf %4 : vector<64x128xbf16> to vector<64x128xf32>
    %c0_3 = arith.constant 0 : index
    %c0_4 = arith.constant 0 : index
    %6 = vector.load %arg13[%c0_3, %c0_4] : memref<1x128xf32, #tpu.memory_space<vmem>>, vector<1x128xf32>
    %c0_5 = arith.constant 0 : index
    %c0_6 = arith.constant 0 : index
    %7 = vector.load %arg14[%c0_5, %c0_6] : memref<1x128xf32, #tpu.memory_space<vmem>>, vector<1x128xf32>
    %cst = arith.constant dense<0.000000e+00> : vector<64xf32>
    %8 = vector.multi_reduction <add>, %5, %cst [1] : vector<64x128xf32> to vector<64xf32>
    %9 = vector.shape_cast %8 : vector<64xf32> to vector<64x1xf32>
    %cst_7 = arith.constant 1.280000e+02 : f32
    %10 = vector.broadcast %cst_7 : f32 to vector<64x1xf32>
    %11 = arith.divf %9, %10 : vector<64x1xf32>
    %12 = arith.mulf %5, %5 : vector<64x128xf32>
    %cst_8 = arith.constant dense<0.000000e+00> : vector<64xf32>
    %13 = vector.multi_reduction <add>, %12, %cst_8 [1] : vector<64x128xf32> to vector<64xf32>
    %14 = vector.shape_cast %13 : vector<64xf32> to vector<64x1xf32>
    %cst_9 = arith.constant 1.280000e+02 : f32
    %15 = vector.broadcast %cst_9 : f32 to vector<64x1xf32>
    %16 = arith.divf %14, %15 : vector<64x1xf32>
    %17 = arith.mulf %11, %11 : vector<64x1xf32>
    %18 = arith.subf %16, %17 : vector<64x1xf32>
    %19 = vector.broadcast %11 : vector<64x1xf32> to vector<64x128xf32>
    %20 = arith.subf %5, %19 : vector<64x128xf32>
    %cst_10 = arith.constant 9.99999974E-6 : f32
    %21 = vector.broadcast %cst_10 : f32 to vector<64x1xf32>
    %22 = arith.addf %18, %21 : vector<64x1xf32>
    %23 = math.rsqrt %22 : vector<64x1xf32>
    %24 = vector.broadcast %23 : vector<64x1xf32> to vector<64x128xf32>
    %25 = arith.mulf %20, %24 : vector<64x128xf32>
    %26 = vector.broadcast %6 : vector<1x128xf32> to vector<64x128xf32>
    %27 = arith.mulf %25, %26 : vector<64x128xf32>
    %28 = vector.broadcast %7 : vector<1x128xf32> to vector<64x128xf32>
    %29 = arith.addf %27, %28 : vector<64x128xf32>
    %c0_11 = arith.constant 0 : index
    %c0_12 = arith.constant 0 : index
    %30 = vector.load %arg16[%c0_11, %c0_12] : memref<128x256xbf16, #tpu.memory_space<vmem>>, vector<128x256xbf16>
    %31 = arith.truncf %29 : vector<64x128xf32> to vector<64x128xbf16>
    %cst_13 = arith.constant dense<0.000000e+00> : vector<64x256xf32>
    %32 = tpu.matmul %31, %30, %cst_13 {dimension_numbers = #tpu.dot_dimension_numbers<[1], [0], [0], [1], [0, 0, 1, 1], [], []>} : vector<64x128xbf16>, vector<128x256xbf16>, vector<64x256xf32> -> vector<64x256xf32>
    %33 = vector.extract_strided_slice %32 {offsets = [0, 0], sizes = [64, 128], strides = [1, 1]} : vector<64x256xf32> to vector<64x128xf32>
    %34 = vector.extract_strided_slice %32 {offsets = [0, 128], sizes = [64, 128], strides = [1, 1]} : vector<64x256xf32> to vector<64x128xf32>
    %c0_14 = arith.constant 0 : index
    %c0_15 = arith.constant 0 : index
    %35 = vector.load %arg28[%c0_14, %c0_15] : memref<64x128xf32, #tpu.memory_space<vmem>>, vector<64x128xf32>
    %36 = arith.truncf %35 : vector<64x128xf32> to vector<64x128xbf16>
    %37 = arith.truncf %33 : vector<64x128xf32> to vector<64x128xbf16>
    %cst_16 = arith.constant dense<0.000000e+00> : vector<64x64xf32>
    %38 = tpu.matmul %36, %37, %cst_16 {dimension_numbers = #tpu.dot_dimension_numbers<[1], [1], [0], [0], [0, 0, 1, 0], [], []>} : vector<64x128xbf16>, vector<64x128xbf16>, vector<64x64xf32> -> vector<64x64xf32>
    %cst_17 = arith.constant 0.0883883461 : f32
    %39 = vector.broadcast %cst_17 : f32 to vector<64x64xf32>
    %40 = arith.mulf %38, %39 : vector<64x64xf32>
    %c0_18 = arith.constant 0 : index
    %c0_19 = arith.constant 0 : index
    %41 = vector.load %arg29[%c0_18, %c0_19] : memref<64x1xf32, #tpu.memory_space<vmem>>, vector<64x1xf32>
    %cst_20 = arith.constant dense<0xFF800000> : vector<64xf32>
    %42 = vector.multi_reduction <maximumf>, %40, %cst_20 [1] : vector<64x64xf32> to vector<64xf32>
    %43 = vector.shape_cast %42 : vector<64xf32> to vector<64x1xf32>
    %44 = arith.maximumf %41, %43 : vector<64x1xf32>
    %c0_21 = arith.constant 0 : index
    %c0_22 = arith.constant 0 : index
    %45 = vector.load %arg29[%c0_21, %c0_22] : memref<64x1xf32, #tpu.memory_space<vmem>>, vector<64x1xf32>
    %46 = arith.subf %45, %44 : vector<64x1xf32>
    %47 = math.exp %46 : vector<64x1xf32>
    %48 = vector.broadcast %44 : vector<64x1xf32> to vector<64x64xf32>
    %49 = arith.subf %40, %48 : vector<64x64xf32>
    %50 = math.exp %49 : vector<64x64xf32>
    %c0_23 = arith.constant 0 : index
    %c0_24 = arith.constant 0 : index
    %51 = vector.load %arg30[%c0_23, %c0_24] : memref<64x1xf32, #tpu.memory_space<vmem>>, vector<64x1xf32>
    %52 = arith.mulf %47, %51 : vector<64x1xf32>
    %cst_25 = arith.constant dense<0.000000e+00> : vector<64xf32>
    %53 = vector.multi_reduction <add>, %50, %cst_25 [1] : vector<64x64xf32> to vector<64xf32>
    %54 = vector.shape_cast %53 : vector<64xf32> to vector<64x1xf32>
    %55 = arith.addf %52, %54 : vector<64x1xf32>
    %c0_26 = arith.constant 0 : index
    %c0_27 = arith.constant 0 : index
    %56 = vector.load %arg30[%c0_26, %c0_27] : memref<64x1xf32, #tpu.memory_space<vmem>>, vector<64x1xf32>
    tpu.vector_store %arg30[%c0_26, %c0_27], %55 {strides = array<i32>} : memref<64x1xf32, #tpu.memory_space<vmem>>, vector<64x1xf32>,
    %c0_28 = arith.constant 0 : index
    %c0_29 = arith.constant 0 : index
    %57 = vector.load %arg31[%c0_28, %c0_29] : memref<64x128xf32, #tpu.memory_space<vmem>>, vector<64x128xf32>
    %58 = vector.broadcast %47 : vector<64x1xf32> to vector<64x128xf32>
    %59 = arith.mulf %58, %57 : vector<64x128xf32>
    %60 = arith.truncf %50 : vector<64x64xf32> to vector<64x64xbf16>
    %61 = arith.truncf %34 : vector<64x128xf32> to vector<64x128xbf16>
    %cst_30 = arith.constant dense<0.000000e+00> : vector<64x128xf32>
    %62 = tpu.matmul %60, %61, %cst_30 {dimension_numbers = #tpu.dot_dimension_numbers<[1], [0], [0], [1], [0, 0, 1, 1], [], []>} : vector<64x64xbf16>, vector<64x128xbf16>, vector<64x128xf32> -> vector<64x128xf32>
    %63 = arith.addf %59, %62 : vector<64x128xf32>
    %c0_31 = arith.constant 0 : index
    %c0_32 = arith.constant 0 : index
    %64 = vector.load %arg31[%c0_31, %c0_32] : memref<64x128xf32, #tpu.memory_space<vmem>>, vector<64x128xf32>
    tpu.vector_store %arg31[%c0_31, %c0_32], %63 {strides = array<i32>} : memref<64x128xf32, #tpu.memory_space<vmem>>, vector<64x128xf32>,
    %c0_33 = arith.constant 0 : index
    %c0_34 = arith.constant 0 : index
    %65 = vector.load %arg29[%c0_33, %c0_34] : memref<64x1xf32, #tpu.memory_space<vmem>>, vector<64x1xf32>
    tpu.vector_store %arg29[%c0_33, %c0_34], %44 {strides = array<i32>} : memref<64x1xf32, #tpu.memory_space<vmem>>, vector<64x1xf32>,
    %c0_i32_35 = arith.constant 0 : i32
    %66 = arith.cmpi eq, %arg2, %c0_i32_35 : i32
    %67 = arith.extui %66 : i1 to i32
    %c0_i32_36 = arith.constant 0 : i32
    %68 = arith.cmpi ne, %67, %c0_i32_36 : i32
    scf.if %68 {
      %c0_37 = arith.constant 0 : index
      %c0_38 = arith.constant 0 : index
      %69 = vector.load %arg31[%c0_37, %c0_38] : memref<64x128xf32, #tpu.memory_space<vmem>>, vector<64x128xf32>
      %c0_39 = arith.constant 0 : index
      %c0_40 = arith.constant 0 : index
      %70 = vector.load %arg30[%c0_39, %c0_40] : memref<64x1xf32, #tpu.memory_space<vmem>>, vector<64x1xf32>
      %71 = vector.broadcast %70 : vector<64x1xf32> to vector<64x128xf32>
      %72 = arith.divf %69, %71 : vector<64x128xf32>
      %c0_41 = arith.constant 0 : index
      %c0_42 = arith.constant 0 : index
      %73 = vector.load %arg27[%c0_41, %c0_42] : memref<64x128xf32, #tpu.memory_space<vmem>>, vector<64x128xf32>
      %c0_43 = arith.constant 0 : index
      %c0_44 = arith.constant 0 : index
      %74 = vector.load %arg17[%c0_43, %c0_44] : memref<128x128xbf16, #tpu.memory_space<vmem>>, vector<128x128xbf16>
      %75 = arith.truncf %72 : vector<64x128xf32> to vector<64x128xbf16>
      %cst_45 = arith.constant dense<0.000000e+00> : vector<64x128xf32>
      %76 = tpu.matmul %75, %74, %cst_45 {dimension_numbers = #tpu.dot_dimension_numbers<[1], [0], [0], [1], [0, 0, 1, 1], [], []>} : vector<64x128xbf16>, vector<128x128xbf16>, vector<64x128xf32> -> vector<64x128xf32>
      %77 = arith.addf %73, %76 : vector<64x128xf32>
      %c0_46 = arith.constant 0 : index
      %c0_47 = arith.constant 0 : index
      %78 = vector.load %arg18[%c0_46, %c0_47] : memref<1x128xf32, #tpu.memory_space<vmem>>, vector<1x128xf32>
      %c0_48 = arith.constant 0 : index
      %c0_49 = arith.constant 0 : index
      %79 = vector.load %arg19[%c0_48, %c0_49] : memref<1x128xf32, #tpu.memory_space<vmem>>, vector<1x128xf32>
      %c0_50 = arith.constant 0 : index
      %c0_51 = arith.constant 0 : index
      %80 = vector.load %arg20[%c0_50, %c0_51] : memref<128x128xbf16, #tpu.memory_space<vmem>>, vector<128x128xbf16>
      %c0_52 = arith.constant 0 : index
      %c0_53 = arith.constant 0 : index
      %81 = vector.load %arg21[%c0_52, %c0_53] : memref<1x128xf32, #tpu.memory_space<vmem>>, vector<1x128xf32>
      %c0_54 = arith.constant 0 : index
      %c0_55 = arith.constant 0 : index
      %82 = vector.load %arg22[%c0_54, %c0_55] : memref<128x128xbf16, #tpu.memory_space<vmem>>, vector<128x128xbf16>
      %c0_56 = arith.constant 0 : index
      %c0_57 = arith.constant 0 : index
      %83 = vector.load %arg23[%c0_56, %c0_57] : memref<1x128xf32, #tpu.memory_space<vmem>>, vector<1x128xf32>
      %c0_58 = arith.constant 0 : index
      %c0_59 = arith.constant 0 : index
      %84 = vector.load %arg24[%c0_58, %c0_59] : memref<128x3xbf16, #tpu.memory_space<vmem>>, vector<128x3xbf16>
      %c0_60 = arith.constant 0 : index
      %c0_61 = arith.constant 0 : index
      %85 = vector.load %arg25[%c0_60, %c0_61] : memref<3x1xf32, #tpu.memory_space<vmem>>, vector<3x1xf32>
      %cst_62 = arith.constant dense<0.000000e+00> : vector<64xf32>
      %86 = vector.multi_reduction <add>, %77, %cst_62 [1] : vector<64x128xf32> to vector<64xf32>
      %87 = vector.shape_cast %86 : vector<64xf32> to vector<64x1xf32>
      %cst_63 = arith.constant 1.280000e+02 : f32
      %88 = vector.broadcast %cst_63 : f32 to vector<64x1xf32>
      %89 = arith.divf %87, %88 : vector<64x1xf32>
      %90 = arith.mulf %77, %77 : vector<64x128xf32>
      %cst_64 = arith.constant dense<0.000000e+00> : vector<64xf32>
      %91 = vector.multi_reduction <add>, %90, %cst_64 [1] : vector<64x128xf32> to vector<64xf32>
      %92 = vector.shape_cast %91 : vector<64xf32> to vector<64x1xf32>
      %cst_65 = arith.constant 1.280000e+02 : f32
      %93 = vector.broadcast %cst_65 : f32 to vector<64x1xf32>
      %94 = arith.divf %92, %93 : vector<64x1xf32>
      %95 = arith.mulf %89, %89 : vector<64x1xf32>
      %96 = arith.subf %94, %95 : vector<64x1xf32>
      %97 = vector.broadcast %89 : vector<64x1xf32> to vector<64x128xf32>
      %98 = arith.subf %77, %97 : vector<64x128xf32>
      %cst_66 = arith.constant 9.99999974E-6 : f32
      %99 = vector.broadcast %cst_66 : f32 to vector<64x1xf32>
      %100 = arith.addf %96, %99 : vector<64x1xf32>
      %101 = math.rsqrt %100 : vector<64x1xf32>
      %102 = vector.broadcast %101 : vector<64x1xf32> to vector<64x128xf32>
      %103 = arith.mulf %98, %102 : vector<64x128xf32>
      %104 = vector.broadcast %78 : vector<1x128xf32> to vector<64x128xf32>
      %105 = arith.mulf %103, %104 : vector<64x128xf32>
      %106 = vector.broadcast %79 : vector<1x128xf32> to vector<64x128xf32>
      %107 = arith.addf %105, %106 : vector<64x128xf32>
      %108 = arith.truncf %107 : vector<64x128xf32> to vector<64x128xbf16>
      %cst_67 = arith.constant dense<0.000000e+00> : vector<64x128xf32>
      %109 = tpu.matmul %108, %80, %cst_67 {dimension_numbers = #tpu.dot_dimension_numbers<[1], [0], [0], [1], [0, 0, 1, 1], [], []>} : vector<64x128xbf16>, vector<128x128xbf16>, vector<64x128xf32> -> vector<64x128xf32>
      %110 = vector.broadcast %81 : vector<1x128xf32> to vector<64x128xf32>
      %111 = arith.addf %109, %110 : vector<64x128xf32>
      %112 = arith.mulf %111, %111 : vector<64x128xf32>
      %113 = arith.mulf %111, %112 : vector<64x128xf32>
      %cst_68 = arith.constant 4.471500e-02 : f32
      %114 = vector.broadcast %cst_68 : f32 to vector<64x128xf32>
      %115 = arith.mulf %114, %113 : vector<64x128xf32>
      %116 = arith.addf %111, %115 : vector<64x128xf32>
      %cst_69 = arith.constant 0.797884583 : f32
      %117 = vector.broadcast %cst_69 : f32 to vector<64x128xf32>
      %118 = arith.mulf %117, %116 : vector<64x128xf32>
      %119 = math.tanh %118 : vector<64x128xf32>
      %cst_70 = arith.constant 1.000000e+00 : f32
      %120 = vector.broadcast %cst_70 : f32 to vector<64x128xf32>
      %121 = arith.addf %120, %119 : vector<64x128xf32>
      %cst_71 = arith.constant 5.000000e-01 : f32
      %122 = vector.broadcast %cst_71 : f32 to vector<64x128xf32>
      %123 = arith.mulf %122, %121 : vector<64x128xf32>
      %124 = arith.mulf %111, %123 : vector<64x128xf32>
      %125 = arith.truncf %124 : vector<64x128xf32> to vector<64x128xbf16>
      %cst_72 = arith.constant dense<0.000000e+00> : vector<64x128xf32>
      %126 = tpu.matmul %125, %82, %cst_72 {dimension_numbers = #tpu.dot_dimension_numbers<[1], [0], [0], [1], [0, 0, 1, 1], [], []>} : vector<64x128xbf16>, vector<128x128xbf16>, vector<64x128xf32> -> vector<64x128xf32>
      %127 = arith.addf %77, %126 : vector<64x128xf32>
      %128 = vector.broadcast %83 : vector<1x128xf32> to vector<64x128xf32>
      %129 = arith.addf %127, %128 : vector<64x128xf32>
      %130 = arith.truncf %129 : vector<64x128xf32> to vector<64x128xbf16>
      %cst_73 = arith.constant dense<0.000000e+00> : vector<3x64xf32>
      %131 = tpu.matmul %84, %130, %cst_73 {dimension_numbers = #tpu.dot_dimension_numbers<[0], [1], [1], [0], [0, 1, 1, 0], [], []>} : vector<128x3xbf16>, vector<64x128xbf16>, vector<3x64xf32> -> vector<3x64xf32>
      %132 = vector.broadcast %85 : vector<3x1xf32> to vector<3x64xf32>
      %133 = arith.addf %131, %132 : vector<3x64xf32>
      %c0_74 = arith.constant 0 : index
      %c0_75 = arith.constant 0 : index
      %c0_76 = arith.constant 0 : index
      %c0_77 = arith.constant 0 : index
      %134 = vector.load %arg26[%c0_74, %c0_75, %c0_76, %c0_77] : memref<1x2x3x64xf32, #tpu.memory_space<vmem>>, vector<1x1x3x64xf32>
      %135 = vector.shape_cast %134 : vector<1x1x3x64xf32> to vector<3x64xf32>
      %136 = vector.shape_cast %133 : vector<3x64xf32> to vector<1x1x3x64xf32>
      tpu.vector_store %arg26[%c0_74, %c0_75, %c0_76, %c0_77], %136 {strides = array<i32>} : memref<1x2x3x64xf32, #tpu.memory_space<vmem>>, vector<1x1x3x64xf32>,
      %cst_78 = arith.constant dense<0.000000e+00> : vector<64xf32>
      %137 = vector.multi_reduction <add>, %129, %cst_78 [1] : vector<64x128xf32> to vector<64xf32>
      %138 = vector.shape_cast %137 : vector<64xf32> to vector<64x1xf32>
      %cst_79 = arith.constant 1.280000e+02 : f32
      %139 = vector.broadcast %cst_79 : f32 to vector<64x1xf32>
      %140 = arith.divf %138, %139 : vector<64x1xf32>
      %141 = arith.mulf %129, %129 : vector<64x128xf32>
      %cst_80 = arith.constant dense<0.000000e+00> : vector<64xf32>
      %142 = vector.multi_reduction <add>, %141, %cst_80 [1] : vector<64x128xf32> to vector<64xf32>
      %143 = vector.shape_cast %142 : vector<64xf32> to vector<64x1xf32>
      %cst_81 = arith.constant 1.280000e+02 : f32
      %144 = vector.broadcast %cst_81 : f32 to vector<64x1xf32>
      %145 = arith.divf %143, %144 : vector<64x1xf32>
      %146 = arith.mulf %140, %140 : vector<64x1xf32>
      %147 = arith.subf %145, %146 : vector<64x1xf32>
      %148 = vector.broadcast %140 : vector<64x1xf32> to vector<64x128xf32>
      %149 = arith.subf %129, %148 : vector<64x128xf32>
      %cst_82 = arith.constant 9.99999974E-6 : f32
      %150 = vector.broadcast %cst_82 : f32 to vector<64x1xf32>
      %151 = arith.addf %147, %150 : vector<64x1xf32>
      %152 = math.rsqrt %151 : vector<64x1xf32>
      %153 = vector.broadcast %152 : vector<64x1xf32> to vector<64x128xf32>
      %154 = arith.mulf %149, %153 : vector<64x128xf32>
      %155 = vector.broadcast %78 : vector<1x128xf32> to vector<64x128xf32>
      %156 = arith.mulf %154, %155 : vector<64x128xf32>
      %157 = vector.broadcast %79 : vector<1x128xf32> to vector<64x128xf32>
      %158 = arith.addf %156, %157 : vector<64x128xf32>
      %159 = arith.truncf %158 : vector<64x128xf32> to vector<64x128xbf16>
      %cst_83 = arith.constant dense<0.000000e+00> : vector<64x128xf32>
      %160 = tpu.matmul %159, %80, %cst_83 {dimension_numbers = #tpu.dot_dimension_numbers<[1], [0], [0], [1], [0, 0, 1, 1], [], []>} : vector<64x128xbf16>, vector<128x128xbf16>, vector<64x128xf32> -> vector<64x128xf32>
      %161 = vector.broadcast %81 : vector<1x128xf32> to vector<64x128xf32>
      %162 = arith.addf %160, %161 : vector<64x128xf32>
      %163 = arith.mulf %162, %162 : vector<64x128xf32>
      %164 = arith.mulf %162, %163 : vector<64x128xf32>
      %cst_84 = arith.constant 4.471500e-02 : f32
      %165 = vector.broadcast %cst_84 : f32 to vector<64x128xf32>
      %166 = arith.mulf %165, %164 : vector<64x128xf32>
      %167 = arith.addf %162, %166 : vector<64x128xf32>
      %cst_85 = arith.constant 0.797884583 : f32
      %168 = vector.broadcast %cst_85 : f32 to vector<64x128xf32>
      %169 = arith.mulf %168, %167 : vector<64x128xf32>
      %170 = math.tanh %169 : vector<64x128xf32>
      %cst_86 = arith.constant 1.000000e+00 : f32
      %171 = vector.broadcast %cst_86 : f32 to vector<64x128xf32>
      %172 = arith.addf %171, %170 : vector<64x128xf32>
      %cst_87 = arith.constant 5.000000e-01 : f32
      %173 = vector.broadcast %cst_87 : f32 to vector<64x128xf32>
      %174 = arith.mulf %173, %172 : vector<64x128xf32>
      %175 = arith.mulf %162, %174 : vector<64x128xf32>
      %176 = arith.truncf %175 : vector<64x128xf32> to vector<64x128xbf16>
      %cst_88 = arith.constant dense<0.000000e+00> : vector<64x128xf32>
      %177 = tpu.matmul %176, %82, %cst_88 {dimension_numbers = #tpu.dot_dimension_numbers<[1], [0], [0], [1], [0, 0, 1, 1], [], []>} : vector<64x128xbf16>, vector<128x128xbf16>, vector<64x128xf32> -> vector<64x128xf32>
      %178 = arith.addf %129, %177 : vector<64x128xf32>
      %179 = vector.broadcast %83 : vector<1x128xf32> to vector<64x128xf32>
      %180 = arith.addf %178, %179 : vector<64x128xf32>
      %181 = arith.truncf %180 : vector<64x128xf32> to vector<64x128xbf16>
      %cst_89 = arith.constant dense<0.000000e+00> : vector<3x64xf32>
      %182 = tpu.matmul %84, %181, %cst_89 {dimension_numbers = #tpu.dot_dimension_numbers<[0], [1], [1], [0], [0, 1, 1, 0], [], []>} : vector<128x3xbf16>, vector<64x128xbf16>, vector<3x64xf32> -> vector<3x64xf32>
      %183 = vector.broadcast %85 : vector<3x1xf32> to vector<3x64xf32>
      %184 = arith.addf %182, %183 : vector<3x64xf32>
      %c0_90 = arith.constant 0 : index
      %c1 = arith.constant 1 : index
      %c0_91 = arith.constant 0 : index
      %c0_92 = arith.constant 0 : index
      %185 = vector.load %arg26[%c0_90, %c1, %c0_91, %c0_92] : memref<1x2x3x64xf32, #tpu.memory_space<vmem>>, vector<1x1x3x64xf32>
      %186 = vector.shape_cast %185 : vector<1x1x3x64xf32> to vector<3x64xf32>
      %187 = vector.shape_cast %184 : vector<3x64xf32> to vector<1x1x3x64xf32>
      tpu.vector_store %arg26[%c0_90, %c1, %c0_91, %c0_92], %187 {strides = array<i32>} : memref<1x2x3x64xf32, #tpu.memory_space<vmem>>, vector<1x1x3x64xf32>,
    } else {
    }
    return
  }
  func.func @transform_0(%arg0: i32, %arg1: i32, %arg2: i32) -> (i32, i32, i32) {
    %c0_i32 = arith.constant 0 : i32
    %c0_i32_0 = arith.constant 0 : i32
    return %arg0, %arg1, %c0_i32 : i32, i32, i32
  }
  func.func @transform_1(%arg0: i32, %arg1: i32, %arg2: i32) -> (i32, i32, i32) {
    %c0_i32 = arith.constant 0 : i32
    %c0_i32_0 = arith.constant 0 : i32
    return %arg0, %arg1, %c0_i32 : i32, i32, i32
  }
  func.func @transform_2(%arg0: i32, %arg1: i32, %arg2: i32) -> (i32, i32, i32) {
    %c0_i32 = arith.constant 0 : i32
    %c0_i32_0 = arith.constant 0 : i32
    return %arg0, %arg2, %c0_i32 : i32, i32, i32
  }
  func.func @transform_3(%arg0: i32, %arg1: i32, %arg2: i32) -> (i32, i32) {
    %c0_i32 = arith.constant 0 : i32
    %c0_i32_0 = arith.constant 0 : i32
    %c0_i32_1 = arith.constant 0 : i32
    return %c0_i32, %c0_i32_0 : i32, i32
  }
  func.func @transform_4(%arg0: i32, %arg1: i32, %arg2: i32) -> (i32, i32) {
    %c0_i32 = arith.constant 0 : i32
    %c0_i32_0 = arith.constant 0 : i32
    %c0_i32_1 = arith.constant 0 : i32
    return %c0_i32, %c0_i32_0 : i32, i32
  }
  func.func @transform_5(%arg0: i32, %arg1: i32, %arg2: i32) -> (i32, i32) {
    %c0_i32 = arith.constant 0 : i32
    %c0_i32_0 = arith.constant 0 : i32
    %c0_i32_1 = arith.constant 0 : i32
    return %c0_i32, %c0_i32_0 : i32, i32
  }
  func.func @transform_6(%arg0: i32, %arg1: i32, %arg2: i32) -> (i32, i32) {
    %c0_i32 = arith.constant 0 : i32
    %c0_i32_0 = arith.constant 0 : i32
    %c0_i32_1 = arith.constant 0 : i32
    return %c0_i32, %c0_i32_0 : i32, i32
  }
  func.func @transform_7(%arg0: i32, %arg1: i32, %arg2: i32) -> (i32, i32) {
    %c0_i32 = arith.constant 0 : i32
    %c0_i32_0 = arith.constant 0 : i32
    %c0_i32_1 = arith.constant 0 : i32
    return %c0_i32, %c0_i32_0 : i32, i32
  }
  func.func @transform_8(%arg0: i32, %arg1: i32, %arg2: i32) -> (i32, i32) {
    %c0_i32 = arith.constant 0 : i32
    %c0_i32_0 = arith.constant 0 : i32
    %c0_i32_1 = arith.constant 0 : i32
    return %c0_i32, %c0_i32_0 : i32, i32
  }
  func.func @transform_9(%arg0: i32, %arg1: i32, %arg2: i32) -> (i32, i32) {
    %c0_i32 = arith.constant 0 : i32
    %c0_i32_0 = arith.constant 0 : i32
    %c0_i32_1 = arith.constant 0 : i32
    return %c0_i32, %c0_i32_0 : i32, i32
  }
  func.func @transform_10(%arg0: i32, %arg1: i32, %arg2: i32) -> (i32, i32) {
    %c0_i32 = arith.constant 0 : i32
    %c0_i32_0 = arith.constant 0 : i32
    %c0_i32_1 = arith.constant 0 : i32
    return %c0_i32, %c0_i32_0 : i32, i32
  }
  func.func @transform_11(%arg0: i32, %arg1: i32, %arg2: i32) -> (i32, i32) {
    %c0_i32 = arith.constant 0 : i32
    %c0_i32_0 = arith.constant 0 : i32
    %c0_i32_1 = arith.constant 0 : i32
    return %c0_i32, %c0_i32_0 : i32, i32
  }
  func.func @transform_12(%arg0: i32, %arg1: i32, %arg2: i32) -> (i32, i32) {
    %c0_i32 = arith.constant 0 : i32
    %c0_i32_0 = arith.constant 0 : i32
    %c0_i32_1 = arith.constant 0 : i32
    return %c0_i32, %c0_i32_0 : i32, i32
  }
  func.func @transform_13(%arg0: i32, %arg1: i32, %arg2: i32) -> (i32, i32) {
    %c0_i32 = arith.constant 0 : i32
    %c0_i32_0 = arith.constant 0 : i32
    %c0_i32_1 = arith.constant 0 : i32
    return %c0_i32, %c0_i32_0 : i32, i32
  }
  func.func @transform_14(%arg0: i32, %arg1: i32, %arg2: i32) -> (i32, i32) {
    %c0_i32 = arith.constant 0 : i32
    %c0_i32_0 = arith.constant 0 : i32
    %c0_i32_1 = arith.constant 0 : i32
    return %c0_i32, %c0_i32_0 : i32, i32
  }
  func.func @transform_15(%arg0: i32, %arg1: i32, %arg2: i32) -> (i32, i32) {
    %c0_i32 = arith.constant 0 : i32
    %c0_i32_0 = arith.constant 0 : i32
    %c0_i32_1 = arith.constant 0 : i32
    return %c0_i32, %c0_i32_0 : i32, i32
  }
  func.func @transform_16(%arg0: i32, %arg1: i32, %arg2: i32) -> (i32, i32) {
    %c0_i32 = arith.constant 0 : i32
    %c0_i32_0 = arith.constant 0 : i32
    %c0_i32_1 = arith.constant 0 : i32
    return %c0_i32, %c0_i32_0 : i32, i32
  }
  func.func @transform_17(%arg0: i32, %arg1: i32, %arg2: i32) -> (i32, i32) {
    %c0_i32 = arith.constant 0 : i32
    %c0_i32_0 = arith.constant 0 : i32
    %c0_i32_1 = arith.constant 0 : i32
    return %c0_i32, %c0_i32_0 : i32, i32
  }
  func.func @transform_18(%arg0: i32, %arg1: i32, %arg2: i32) -> (i32, i32) {
    %c0_i32 = arith.constant 0 : i32
    %c0_i32_0 = arith.constant 0 : i32
    %c0_i32_1 = arith.constant 0 : i32
    return %c0_i32, %c0_i32_0 : i32, i32
  }
  func.func @transform_19(%arg0: i32, %arg1: i32, %arg2: i32) -> (i32, i32) {
    %c0_i32 = arith.constant 0 : i32
    %c0_i32_0 = arith.constant 0 : i32
    %c0_i32_1 = arith.constant 0 : i32
    return %c0_i32, %c0_i32_0 : i32, i32
  }
  func.func @transform_20(%arg0: i32, %arg1: i32, %arg2: i32) -> (i32, i32) {
    %c0_i32 = arith.constant 0 : i32
    %c0_i32_0 = arith.constant 0 : i32
    %c0_i32_1 = arith.constant 0 : i32
    return %c0_i32, %c0_i32_0 : i32, i32
  }
  func.func @transform_21(%arg0: i32, %arg1: i32, %arg2: i32) -> (i32, i32) {
    %c0_i32 = arith.constant 0 : i32
    %c0_i32_0 = arith.constant 0 : i32
    %c0_i32_1 = arith.constant 0 : i32
    return %c0_i32, %c0_i32_0 : i32, i32
  }
  func.func @transform_22(%arg0: i32, %arg1: i32, %arg2: i32) -> (i32, i32) {
    %c0_i32 = arith.constant 0 : i32
    %c0_i32_0 = arith.constant 0 : i32
    %c0_i32_1 = arith.constant 0 : i32
    return %c0_i32, %c0_i32_0 : i32, i32
  }
  func.func @transform_23(%arg0: i32, %arg1: i32, %arg2: i32) -> (i32, i32, i32, i32) {
    %c0_i32 = arith.constant 0 : i32
    %c0_i32_0 = arith.constant 0 : i32
    %c0_i32_1 = arith.constant 0 : i32
    return %arg0, %c0_i32, %c0_i32_0, %arg1 : i32, i32, i32, i32
  }
}

</mosaic_0001>

<llo_original>
// kernel: oformer_forward.2
$region0: #{oformer_forward.2}
  #allocation0 [shape = 'u32[]', space=smem, size = 0x4, offset = 0x4, fixed_abs, tag = 'smem constant byte address 0x4 - core index']
  #allocation1 [shape = 'u32[72,128]{1,0:T(1,128)}', space=vmem, size = 0x9000, scoped, tag = 'internal scratch']
  %s0 = inlined_call_operand.vmem [shape: f32[2,64,8], index: 0, kind: input, shape index: {}]
  %s1 = inlined_call_operand.vmem [shape: s32[2,64,1], index: 1, kind: input, shape index: {}]
  %s2 = inlined_call_operand.vmem [shape: f32[2,64,2], index: 2, kind: input, shape index: {}]
  %s3 = inlined_call_operand.vmem [shape: bf16[8,128], index: 3, kind: input, shape index: {}]
  %s4 = inlined_call_operand.vmem [shape: bf16[128,128], index: 4, kind: input, shape index: {}]
  %s5 = inlined_call_operand.vmem [shape: f32[3,128], index: 5, kind: input, shape index: {}]
  %s6 = inlined_call_operand.vmem [shape: bf16[128,128], index: 6, kind: input, shape index: {}]
  %s7 = inlined_call_operand.vmem [shape: bf16[128,128], index: 7, kind: input, shape index: {}]
  %s8 = inlined_call_operand.vmem [shape: f32[2,128], index: 8, kind: input, shape index: {}]
  %s9 = inlined_call_operand.vmem [shape: f32[4,1,128], index: 9, kind: input, shape index: {}]
  %s10 = inlined_call_operand.vmem [shape: f32[4,1,128], index: 10, kind: input, shape index: {}]
  %s11 = inlined_call_operand.hbm [shape: bf16[4,128,384], index: 11, kind: input, shape index: {}]
  %s12 = inlined_call_operand.hbm [shape: bf16[4,128,128], index: 12, kind: input, shape index: {}]
  %s13 = inlined_call_operand.vmem [shape: f32[4,1,128], index: 13, kind: input, shape index: {}]
  %s14 = inlined_call_operand.vmem [shape: f32[4,1,128], index: 14, kind: input, shape index: {}]
  %s15 = inlined_call_operand.hbm [shape: bf16[4,128,128], index: 15, kind: input, shape index: {}]
  %s16 = inlined_call_operand.vmem [shape: f32[4,1,128], index: 16, kind: input, shape index: {}]
  %s17 = inlined_call_operand.hbm [shape: bf16[4,128,128], index: 17, kind: input, shape index: {}]
  %s18 = inlined_call_operand.vmem [shape: f32[4,1,128], index: 18, kind: input, shape index: {}]
  %s19 = inlined_call_operand.vmem [shape: bf16[128,128], index: 19, kind: input, shape index: {}]
  %s20 = inlined_call_operand.vmem [shape: bf16[2,64,128], index: 20, kind: output, shape index: {}]
  %s21 = sld [smem:[#allocation0]]
  $region136: #{oformer_forward.2} parent=0
    _
  %s23 = ssub.s32 1, %s21
  %s24 = scalar_select 0, %s23, %s21
  $region1: #{oformer_forward.2} parent=0
    #allocation2 [shape = 'u8[393216]{0}', space=vmem, size = 0x60000, scoped, tag = 'input window, operand 11, single buffered']
    #allocation3 [shape = 's32[2]{0}', space=sflag, size = 0x8, scoped, tag = 'scoped memory for oformer_forward.2']
    #allocation4 [shape = 'u8[131072]{0}', space=vmem, size = 0x20000, scoped, tag = 'input window, operand 12, single buffered']
    #allocation5 [shape = 's32[1]{0}', space=sflag, size = 0x4, scoped, tag = 'scoped memory for oformer_forward.2']
    #allocation6 [shape = 'u8[131072]{0}', space=vmem, size = 0x20000, scoped, tag = 'input window, operand 15, single buffered']
    #allocation7 [shape = 'u8[131072]{0}', space=vmem, size = 0x20000, scoped, tag = 'input window, operand 17, single buffered']
    #allocation8 [shape = 's32[1]{0}', space=sflag, size = 0x4, scoped, tag = 'scoped memory for oformer_forward.2']
    %25 = vsyncpa [#allocation3], 0
    %26 = vsyncpa [#allocation5], 0
    %27 = vsyncpa [#allocation8], 0
    loop: start=0, step=1, limit=4
    $region2: #{oformer_forward.2} parent=1 // loop_pre_header
      _
    $region3: #{oformer_forward.2} parent=1 // loop_header
      %s29 = sphi 0, %s33
      %p30 = scmp.ge.s32.totalorder %s29, 4
      %s39 = sphi 0, %s41
      %s42 = sphi 0, %s39
      %s43 = sphi 0, %s42
      %s59 = sphi 0, %s43
      %s65 = sphi 0, %s67
      %s68 = sphi 0, %s65
      %s69 = sphi 0, %s68
      %s85 = sphi 0, %s69
      %s91 = sphi 0, %s93
      %s94 = sphi 0, %s91
      %s95 = sphi 0, %s94
      %s111 = sphi 0, %s95
      %s115 = sphi 0, %s115
      %s117 = sphi 0, %s115
      %s118 = sphi 0, %s117
      %s132 = sphi 0, %s118
      %s136 = sphi 0, %s136
      %s138 = sphi 0, %s136
      %s139 = sphi 0, %s138
      %s153 = sphi 0, %s139
      %s157 = sphi 0, %s157
      %s159 = sphi 0, %s157
      %s160 = sphi 0, %s159
      %s174 = sphi 0, %s160
      %s178 = sphi 0, %s178
      %s180 = sphi 0, %s178
      %s181 = sphi 0, %s180
      %s195 = sphi 0, %s181
      %s199 = sphi 0, %s199
      %s201 = sphi 0, %s199
      %s202 = sphi 0, %s201
      %s216 = sphi 0, %s202
      %s220 = sphi 0, %s220
      %s222 = sphi 0, %s220
      %s223 = sphi 0, %s222
      %s237 = sphi 0, %s223
      %s241 = sphi 0, %s241
      %s243 = sphi 0, %s241
      %s244 = sphi 0, %s243
      %s258 = sphi 0, %s244
      %s262 = sphi 0, %s262
      %s264 = sphi 0, %s262
      %s265 = sphi 0, %s264
      %s279 = sphi 0, %s265
      %s283 = sphi 0, %s283
      %s285 = sphi 0, %s283
      %s286 = sphi 0, %s285
      %s300 = sphi 0, %s286
      %s304 = sphi 0, %s304
      %s306 = sphi 0, %s304
      %s307 = sphi 0, %s306
      %s321 = sphi 0, %s307
      %s325 = sphi 0, %s325
      %s327 = sphi 0, %s325
      %s328 = sphi 0, %s327
      %s342 = sphi 0, %s328
      %s346 = sphi 0, %s346
      %s348 = sphi 0, %s346
      %s349 = sphi 0, %s348
      %s363 = sphi 0, %s349
      %s367 = sphi 0, %s367
      %s369 = sphi 0, %s367
      %s370 = sphi 0, %s369
      %s384 = sphi 0, %s370
      %s388 = sphi 0, %s388
      %s390 = sphi 0, %s388
      %s391 = sphi 0, %s390
      %s405 = sphi 0, %s391
      %s409 = sphi 0, %s409
      %s411 = sphi 0, %s409
      %s412 = sphi 0, %s411
      %s426 = sphi 0, %s412
      %s430 = sphi 0, %s430
      %s432 = sphi 0, %s430
      %s433 = sphi 0, %s432
      %s447 = sphi 0, %s433
      %s451 = sphi 0, %s451
      %s453 = sphi 0, %s451
      %s454 = sphi 0, %s453
      %s468 = sphi 0, %s454
      %s474 = sphi 0, %s476
      %s477 = sphi 0, %s474
      %s478 = sphi 0, %s477
      %s494 = sphi 0, %s478
    $region4: #{oformer_forward.2} parent=1 // loop_header_branch
      %32 = sbr.rel (%p30) target = $region8
    $region5: #{oformer_forward.2} parent=1 // loop_body
      %s34 = ssub.s32 %s29, 1
      %s35 = ssub.s32 %s29, 2
      %s36 = sadd.s32 %s29, 1
      %s37 = ssub.s32 %s29, %s36
      %p38 = scmp.eq.s32.totalorder %s37, 0
      %s40 = sadd.s32 %s39, 1
      %s41 = scalar_select %p38, %s39, %s40
      %p44 = pneg %p38
      %p45 = scmp.eq.s32.totalorder %s29, 1
      %p46 = por %p44, %p45
      %p47 = scmp.ne.s32.totalorder %s39, %s42
      %p48 = scmp.eq.s32.totalorder %s29, 0
      %p49 = por %p47, %p48
      %p50 = scmp.ne.s32.totalorder %s39, %s42
      %p51 = scmp.eq.s32.totalorder %s34, 1
      %p52 = por %p50, %p51
      %p53 = scmp.ne.s32.totalorder %s42, %s43
      %p54 = scmp.eq.s32.totalorder %s34, 0
      %p55 = por %p53, %p54
      %p56 = scmp.ne.s32.totalorder %s42, %s43
      %p57 = scmp.eq.s32.totalorder %s35, 1
      %p58 = por %p56, %p57
      %p60 = scmp.ne.s32.totalorder %s43, %s59
      %p61 = scmp.eq.s32.totalorder %s35, 0
      %p62 = por %p60, %p61
      %s63 = ssub.s32 %s29, %s36
      %p64 = scmp.eq.s32.totalorder %s63, 0
      %s66 = sadd.s32 %s65, 1
      %s67 = scalar_select %p64, %s65, %s66
      %p70 = pneg %p64
      %p71 = scmp.eq.s32.totalorder %s29, 1
      %p72 = por %p70, %p71
      %p73 = scmp.ne.s32.totalorder %s65, %s68
      %p74 = scmp.eq.s32.totalorder %s29, 0
      %p75 = por %p73, %p74
      %p76 = scmp.ne.s32.totalorder %s65, %s68
      %p77 = scmp.eq.s32.totalorder %s34, 1
      %p78 = por %p76, %p77
      %p79 = scmp.ne.s32.totalorder %s68, %s69
      %p80 = scmp.eq.s32.totalorder %s34, 0
      %p81 = por %p79, %p80
      %p82 = scmp.ne.s32.totalorder %s68, %s69
      %p83 = scmp.eq.s32.totalorder %s35, 1
      %p84 = por %p82, %p83
      %p86 = scmp.ne.s32.totalorder %s69, %s85
      %p87 = scmp.eq.s32.totalorder %s35, 0
      %p88 = por %p86, %p87
      %s89 = ssub.s32 %s29, %s36
      %p90 = scmp.eq.s32.totalorder %s89, 0
      %s92 = sadd.s32 %s91, 1
      %s93 = scalar_select %p90, %s91, %s92
      %p96 = pneg %p90
      %p97 = scmp.eq.s32.totalorder %s29, 1
      %p98 = por %p96, %p97
      %p99 = scmp.ne.s32.totalorder %s91, %s94
      %p100 = scmp.eq.s32.totalorder %s29, 0
      %p101 = por %p99, %p100
      %p102 = scmp.ne.s32.totalorder %s91, %s94
      %p103 = scmp.eq.s32.totalorder %s34, 1
      %p104 = por %p102, %p103
      %p105 = scmp.ne.s32.totalorder %s94, %s95
      %p106 = scmp.eq.s32.totalorder %s34, 0
      %p107 = por %p105, %p106
      %p108 = scmp.ne.s32.totalorder %s94, %s95
      %p109 = scmp.eq.s32.totalorder %s35, 1
      %p110 = por %p108, %p109
      %p112 = scmp.ne.s32.totalorder %s95, %s111
      %p113 = scmp.eq.s32.totalorder %s35, 0
      %p114 = por %p112, %p113
      %s116 = sadd.s32 %s115, 1
      %p119 = scmp.eq.s32.totalorder %s29, 1
      %p120 = scmp.ne.s32.totalorder %s115, %s117
      %p121 = scmp.eq.s32.totalorder %s29, 0
      %p122 = por %p120, %p121
      %p123 = scmp.ne.s32.totalorder %s115, %s117
      %p124 = scmp.eq.s32.totalorder %s34, 1
      %p125 = por %p123, %p124
      %p126 = scmp.ne.s32.totalorder %s117, %s118
      %p127 = scmp.eq.s32.totalorder %s34, 0
      %p128 = por %p126, %p127
      %p129 = scmp.ne.s32.totalorder %s117, %s118
      %p130 = scmp.eq.s32.totalorder %s35, 1
      %p131 = por %p129, %p130
      %p133 = scmp.ne.s32.totalorder %s118, %s132
      %p134 = scmp.eq.s32.totalorder %s35, 0
      %p135 = por %p133, %p134
      %s137 = sadd.s32 %s136, 1
      %p140 = scmp.eq.s32.totalorder %s29, 1
      %p141 = scmp.ne.s32.totalorder %s136, %s138
      %p142 = scmp.eq.s32.totalorder %s29, 0
      %p143 = por %p141, %p142
      %p144 = scmp.ne.s32.totalorder %s136, %s138
      %p145 = scmp.eq.s32.totalorder %s34, 1
      %p146 = por %p144, %p145
      %p147 = scmp.ne.s32.totalorder %s138, %s139
      %p148 = scmp.eq.s32.totalorder %s34, 0
      %p149 = por %p147, %p148
      %p150 = scmp.ne.s32.totalorder %s138, %s139
      %p151 = scmp.eq.s32.totalorder %s35, 1
      %p152 = por %p150, %p151
      %p154 = scmp.ne.s32.totalorder %s139, %s153
      %p155 = scmp.eq.s32.totalorder %s35, 0
      %p156 = por %p154, %p155
      %s158 = sadd.s32 %s157, 1
      %p161 = scmp.eq.s32.totalorder %s29, 1
      %p162 = scmp.ne.s32.totalorder %s157, %s159
      %p163 = scmp.eq.s32.totalorder %s29, 0
      %p164 = por %p162, %p163
      %p165 = scmp.ne.s32.totalorder %s157, %s159
      %p166 = scmp.eq.s32.totalorder %s34, 1
      %p167 = por %p165, %p166
      %p168 = scmp.ne.s32.totalorder %s159, %s160
      %p169 = scmp.eq.s32.totalorder %s34, 0
      %p170 = por %p168, %p169
      %p171 = scmp.ne.s32.totalorder %s159, %s160
      %p172 = scmp.eq.s32.totalorder %s35, 1
      %p173 = por %p171, %p172
      %p175 = scmp.ne.s32.totalorder %s160, %s174
      %p176 = scmp.eq.s32.totalorder %s35, 0
      %p177 = por %p175, %p176
      %s179 = sadd.s32 %s178, 1
      %p182 = scmp.eq.s32.totalorder %s29, 1
      %p183 = scmp.ne.s32.totalorder %s178, %s180
      %p184 = scmp.eq.s32.totalorder %s29, 0
      %p185 = por %p183, %p184
      %p186 = scmp.ne.s32.totalorder %s178, %s180
      %p187 = scmp.eq.s32.totalorder %s34, 1
      %p188 = por %p186, %p187
      %p189 = scmp.ne.s32.totalorder %s180, %s181
      %p190 = scmp.eq.s32.totalorder %s34, 0
      %p191 = por %p189, %p190
      %p192 = scmp.ne.s32.totalorder %s180, %s181
      %p193 = scmp.eq.s32.totalorder %s35, 1
      %p194 = por %p192, %p193
      %p196 = scmp.ne.s32.totalorder %s181, %s195
      %p197 = scmp.eq.s32.totalorder %s35, 0
      %p198 = por %p196, %p197
      %s200 = sadd.s32 %s199, 1
      %p203 = scmp.eq.s32.totalorder %s29, 1
      %p204 = scmp.ne.s32.totalorder %s199, %s201
      %p205 = scmp.eq.s32.totalorder %s29, 0
      %p206 = por %p204, %p205
      %p207 = scmp.ne.s32.totalorder %s199, %s201
      %p208 = scmp.eq.s32.totalorder %s34, 1
      %p209 = por %p207, %p208
      %p210 = scmp.ne.s32.totalorder %s201, %s202
      %p211 = scmp.eq.s32.totalorder %s34, 0
      %p212 = por %p210, %p211
      %p213 = scmp.ne.s32.totalorder %s201, %s202
      %p214 = scmp.eq.s32.totalorder %s35, 1
      %p215 = por %p213, %p214
      %p217 = scmp.ne.s32.totalorder %s202, %s216
      %p218 = scmp.eq.s32.totalorder %s35, 0
      %p219 = por %p217, %p218
      %s221 = sadd.s32 %s220, 1
      %p224 = scmp.eq.s32.totalorder %s29, 1
      %p225 = scmp.ne.s32.totalorder %s220, %s222
      %p226 = scmp.eq.s32.totalorder %s29, 0
      %p227 = por %p225, %p226
      %p228 = scmp.ne.s32.totalorder %s220, %s222
      %p229 = scmp.eq.s32.totalorder %s34, 1
      %p230 = por %p228, %p229
      %p231 = scmp.ne.s32.totalorder %s222, %s223
      %p232 = scmp.eq.s32.totalorder %s34, 0
      %p233 = por %p231, %p232
      %p234 = scmp.ne.s32.totalorder %s222, %s223
      %p235 = scmp.eq.s32.totalorder %s35, 1
      %p236 = por %p234, %p235
      %p238 = scmp.ne.s32.totalorder %s223, %s237
      %p239 = scmp.eq.s32.totalorder %s35, 0
      %p240 = por %p238, %p239
      %s242 = sadd.s32 %s241, 1
      %p245 = scmp.eq.s32.totalorder %s29, 1
      %p246 = scmp.ne.s32.totalorder %s241, %s243
      %p247 = scmp.eq.s32.totalorder %s29, 0
      %p248 = por %p246, %p247
      %p249 = scmp.ne.s32.totalorder %s241, %s243
      %p250 = scmp.eq.s32.totalorder %s34, 1
      %p251 = por %p249, %p250
      %p252 = scmp.ne.s32.totalorder %s243, %s244
      %p253 = scmp.eq.s32.totalorder %s34, 0
      %p254 = por %p252, %p253
      %p255 = scmp.ne.s32.totalorder %s243, %s244
      %p256 = scmp.eq.s32.totalorder %s35, 1
      %p257 = por %p255, %p256
      %p259 = scmp.ne.s32.totalorder %s244, %s258
      %p260 = scmp.eq.s32.totalorder %s35, 0
      %p261 = por %p259, %p260
      %s263 = sadd.s32 %s262, 1
      %p266 = scmp.eq.s32.totalorder %s29, 1
      %p267 = scmp.ne.s32.totalorder %s262, %s264
      %p268 = scmp.eq.s32.totalorder %s29, 0
      %p269 = por %p267, %p268
      %p270 = scmp.ne.s32.totalorder %s262, %s264
      %p271 = scmp.eq.s32.totalorder %s34, 1
      %p272 = por %p270, %p271
      %p273 = scmp.ne.s32.totalorder %s264, %s265
      %p274 = scmp.eq.s32.totalorder %s34, 0
      %p275 = por %p273, %p274
      %p276 = scmp.ne.s32.totalorder %s264, %s265
      %p277 = scmp.eq.s32.totalorder %s35, 1
      %p278 = por %p276, %p277
      %p280 = scmp.ne.s32.totalorder %s265, %s279
      %p281 = scmp.eq.s32.totalorder %s35, 0
      %p282 = por %p280, %p281
      %s284 = sadd.s32 %s283, 1
      %p287 = scmp.eq.s32.totalorder %s29, 1
      %p288 = scmp.ne.s32.totalorder %s283, %s285
      %p289 = scmp.eq.s32.totalorder %s29, 0
      %p290 = por %p288, %p289
      %p291 = scmp.ne.s32.totalorder %s283, %s285
      %p292 = scmp.eq.s32.totalorder %s34, 1
      %p293 = por %p291, %p292
      %p294 = scmp.ne.s32.totalorder %s285, %s286
      %p295 = scmp.eq.s32.totalorder %s34, 0
      %p296 = por %p294, %p295
      %p297 = scmp.ne.s32.totalorder %s285, %s286
      %p298 = scmp.eq.s32.totalorder %s35, 1
      %p299 = por %p297, %p298
      %p301 = scmp.ne.s32.totalorder %s286, %s300
      %p302 = scmp.eq.s32.totalorder %s35, 0
      %p303 = por %p301, %p302
      %s305 = sadd.s32 %s304, 1
      %p308 = scmp.eq.s32.totalorder %s29, 1
      %p309 = scmp.ne.s32.totalorder %s304, %s306
      %p310 = scmp.eq.s32.totalorder %s29, 0
      %p311 = por %p309, %p310
      %p312 = scmp.ne.s32.totalorder %s304, %s306
      %p313 = scmp.eq.s32.totalorder %s34, 1
      %p314 = por %p312, %p313
      %p315 = scmp.ne.s32.totalorder %s306, %s307
      %p316 = scmp.eq.s32.totalorder %s34, 0
      %p317 = por %p315, %p316
      %p318 = scmp.ne.s32.totalorder %s306, %s307
      %p319 = scmp.eq.s32.totalorder %s35, 1
      %p320 = por %p318, %p319
      %p322 = scmp.ne.s32.totalorder %s307, %s321
      %p323 = scmp.eq.s32.totalorder %s35, 0
      %p324 = por %p322, %p323
      %s326 = sadd.s32 %s325, 1
      %p329 = scmp.eq.s32.totalorder %s29, 1
      %p330 = scmp.ne.s32.totalorder %s325, %s327
      %p331 = scmp.eq.s32.totalorder %s29, 0
      %p332 = por %p330, %p331
      %p333 = scmp.ne.s32.totalorder %s325, %s327
      %p334 = scmp.eq.s32.totalorder %s34, 1
      %p335 = por %p333, %p334
      %p336 = scmp.ne.s32.totalorder %s327, %s328
      %p337 = scmp.eq.s32.totalorder %s34, 0
      %p338 = por %p336, %p337
      %p339 = scmp.ne.s32.totalorder %s327, %s328
      %p340 = scmp.eq.s32.totalorder %s35, 1
      %p341 = por %p339, %p340
      %p343 = scmp.ne.s32.totalorder %s328, %s342
      %p344 = scmp.eq.s32.totalorder %s35, 0
      %p345 = por %p343, %p344
      %s347 = sadd.s32 %s346, 1
      %p350 = scmp.eq.s32.totalorder %s29, 1
      %p351 = scmp.ne.s32.totalorder %s346, %s348
      %p352 = scmp.eq.s32.totalorder %s29, 0
      %p353 = por %p351, %p352
      %p354 = scmp.ne.s32.totalorder %s346, %s348
      %p355 = scmp.eq.s32.totalorder %s34, 1
      %p356 = por %p354, %p355
      %p357 = scmp.ne.s32.totalorder %s348, %s349
      %p358 = scmp.eq.s32.totalorder %s34, 0
      %p359 = por %p357, %p358
      %p360 = scmp.ne.s32.totalorder %s348, %s349
      %p361 = scmp.eq.s32.totalorder %s35, 1
      %p362 = por %p360, %p361
      %p364 = scmp.ne.s32.totalorder %s349, %s363
      %p365 = scmp.eq.s32.totalorder %s35, 0
      %p366 = por %p364, %p365
      %s368 = sadd.s32 %s367, 1
      %p371 = scmp.eq.s32.totalorder %s29, 1
      %p372 = scmp.ne.s32.totalorder %s367, %s369
      %p373 = scmp.eq.s32.totalorder %s29, 0
      %p374 = por %p372, %p373
      %p375 = scmp.ne.s32.totalorder %s367, %s369
      %p376 = scmp.eq.s32.totalorder %s34, 1
      %p377 = por %p375, %p376
      %p378 = scmp.ne.s32.totalorder %s369, %s370
      %p379 = scmp.eq.s32.totalorder %s34, 0
      %p380 = por %p378, %p379
      %p381 = scmp.ne.s32.totalorder %s369, %s370
      %p382 = scmp.eq.s32.totalorder %s35, 1
      %p383 = por %p381, %p382
      %p385 = scmp.ne.s32.totalorder %s370, %s384
      %p386 = scmp.eq.s32.totalorder %s35, 0
      %p387 = por %p385, %p386
      %s389 = sadd.s32 %s388, 1
      %p392 = scmp.eq.s32.totalorder %s29, 1
      %p393 = scmp.ne.s32.totalorder %s388, %s390
      %p394 = scmp.eq.s32.totalorder %s29, 0
      %p395 = por %p393, %p394
      %p396 = scmp.ne.s32.totalorder %s388, %s390
      %p397 = scmp.eq.s32.totalorder %s34, 1
      %p398 = por %p396, %p397
      %p399 = scmp.ne.s32.totalorder %s390, %s391
      %p400 = scmp.eq.s32.totalorder %s34, 0
      %p401 = por %p399, %p400
      %p402 = scmp.ne.s32.totalorder %s390, %s391
      %p403 = scmp.eq.s32.totalorder %s35, 1
      %p404 = por %p402, %p403
      %p406 = scmp.ne.s32.totalorder %s391, %s405
      %p407 = scmp.eq.s32.totalorder %s35, 0
      %p408 = por %p406, %p407
      %s410 = sadd.s32 %s409, 1
      %p413 = scmp.eq.s32.totalorder %s29, 1
      %p414 = scmp.ne.s32.totalorder %s409, %s411
      %p415 = scmp.eq.s32.totalorder %s29, 0
      %p416 = por %p414, %p415
      %p417 = scmp.ne.s32.totalorder %s409, %s411
      %p418 = scmp.eq.s32.totalorder %s34, 1
      %p419 = por %p417, %p418
      %p420 = scmp.ne.s32.totalorder %s411, %s412
      %p421 = scmp.eq.s32.totalorder %s34, 0
      %p422 = por %p420, %p421
      %p423 = scmp.ne.s32.totalorder %s411, %s412
      %p424 = scmp.eq.s32.totalorder %s35, 1
      %p425 = por %p423, %p424
      %p427 = scmp.ne.s32.totalorder %s412, %s426
      %p428 = scmp.eq.s32.totalorder %s35, 0
      %p429 = por %p427, %p428
      %s431 = sadd.s32 %s430, 1
      %p434 = scmp.eq.s32.totalorder %s29, 1
      %p435 = scmp.ne.s32.totalorder %s430, %s432
      %p436 = scmp.eq.s32.totalorder %s29, 0
      %p437 = por %p435, %p436
      %p438 = scmp.ne.s32.totalorder %s430, %s432
      %p439 = scmp.eq.s32.totalorder %s34, 1
      %p440 = por %p438, %p439
      %p441 = scmp.ne.s32.totalorder %s432, %s433
      %p442 = scmp.eq.s32.totalorder %s34, 0
      %p443 = por %p441, %p442
      %p444 = scmp.ne.s32.totalorder %s432, %s433
      %p445 = scmp.eq.s32.totalorder %s35, 1
      %p446 = por %p444, %p445
      %p448 = scmp.ne.s32.totalorder %s433, %s447
      %p449 = scmp.eq.s32.totalorder %s35, 0
      %p450 = por %p448, %p449
      %s452 = sadd.s32 %s451, 1
      %p455 = scmp.eq.s32.totalorder %s29, 1
      %p456 = scmp.ne.s32.totalorder %s451, %s453
      %p457 = scmp.eq.s32.totalorder %s29, 0
      %p458 = por %p456, %p457
      %p459 = scmp.ne.s32.totalorder %s451, %s453
      %p460 = scmp.eq.s32.totalorder %s34, 1
      %p461 = por %p459, %p460
      %p462 = scmp.ne.s32.totalorder %s453, %s454
      %p463 = scmp.eq.s32.totalorder %s34, 0
      %p464 = por %p462, %p463
      %p465 = scmp.ne.s32.totalorder %s453, %s454
      %p466 = scmp.eq.s32.totalorder %s35, 1
      %p467 = por %p465, %p466
      %p469 = scmp.ne.s32.totalorder %s454, %s468
      %p470 = scmp.eq.s32.totalorder %s35, 0
      %p471 = por %p469, %p470
      %s472 = ssub.s32 %s29, %s36
      %p473 = scmp.eq.s32.totalorder %s472, 0
      %s475 = sadd.s32 %s474, 1
      %s476 = scalar_select %p473, %s474, %s475
      %p479 = pneg %p473
      %p480 = scmp.eq.s32.totalorder %s29, 1
      %p481 = por %p479, %p480
      %p482 = scmp.ne.s32.totalorder %s474, %s477
      %p483 = scmp.eq.s32.totalorder %s29, 0
      %p484 = por %p482, %p483
      %p485 = scmp.ne.s32.totalorder %s474, %s477
      %p486 = scmp.eq.s32.totalorder %s34, 1
      %p487 = por %p485, %p486
      %p488 = scmp.ne.s32.totalorder %s477, %s478
      %p489 = scmp.eq.s32.totalorder %s34, 0
      %p490 = por %p488, %p489
      %p491 = scmp.ne.s32.totalorder %s477, %s478
      %p492 = scmp.eq.s32.totalorder %s35, 1
      %p493 = por %p491, %p492
      %p495 = scmp.ne.s32.totalorder %s478, %s494
      %p496 = scmp.eq.s32.totalorder %s35, 0
      %p497 = por %p495, %p496
      %p498 = scmp.le.s32.totalorder 1, %s29
      %p499 = scmp.lt.s32.totalorder %s29, 3
      %p500 = pnand %p498, %p499
      %p501 = pneg %p500
      // Predicated region
      $region9: #{oformer_forward.2} parent=5 // pred_check
        _
      $region10: #{oformer_forward.2} parent=5 // pred_check_branch
        %503 = sbr.rel (%p500) target = $region12
      $region11: #{oformer_forward.2} parent=5 // pred_region
        %s504 = ssub.s32 %s29, 1
        // Predicated region
        $region13: #{oformer_forward.2} parent=11 // pred_check
          %p505 = pneg %p128
        $region14: #{oformer_forward.2} parent=11 // pred_check_branch
          %507 = sbr.rel (%p505) target = $region16
        $region15: #{oformer_forward.2} parent=11 // pred_region
          _
        $region16: #{oformer_forward.2} parent=11 // pred_fallthru
          _
        // Predicated region
        $region17: #{oformer_forward.2} parent=11 // pred_check
          %p508 = pneg %p149
        $region18: #{oformer_forward.2} parent=11 // pred_check_branch
          %510 = sbr.rel (%p508) target = $region20
        $region19: #{oformer_forward.2} parent=11 // pred_region
          _
        $region20: #{oformer_forward.2} parent=11 // pred_fallthru
          _
        // Predicated region
        $region21: #{oformer_forward.2} parent=11 // pred_check
          %p511 = pneg %p170
        $region22: #{oformer_forward.2} parent=11 // pred_check_branch
          %513 = sbr.rel (%p511) target = $region24
        $region23: #{oformer_forward.2} parent=11 // pred_region
          _
        $region24: #{oformer_forward.2} parent=11 // pred_fallthru
          _
        // Predicated region
        $region25: #{oformer_forward.2} parent=11 // pred_check
          %p514 = pneg %p191
        $region26: #{oformer_forward.2} parent=11 // pred_check_branch
          %516 = sbr.rel (%p514) target = $region28
        $region27: #{oformer_forward.2} parent=11 // pred_region
          _
        $region28: #{oformer_forward.2} parent=11 // pred_fallthru
          _
        // Predicated region
        $region29: #{oformer_forward.2} parent=11 // pred_check
          %p517 = pneg %p212
        $region30: #{oformer_forward.2} parent=11 // pred_check_branch
          %519 = sbr.rel (%p517) target = $region32
        $region31: #{oformer_forward.2} parent=11 // pred_region
          _
        $region32: #{oformer_forward.2} parent=11 // pred_fallthru
          _
        // Predicated region
        $region33: #{oformer_forward.2} parent=11 // pred_check
          %p520 = pneg %p233
        $region34: #{oformer_forward.2} parent=11 // pred_check_branch
          %522 = sbr.rel (%p520) target = $region36
        $region35: #{oformer_forward.2} parent=11 // pred_region
          _
        $region36: #{oformer_forward.2} parent=11 // pred_fallthru
          _
        // Predicated region
        $region37: #{oformer_forward.2} parent=11 // pred_check
          %p523 = pneg %p254
        $region38: #{oformer_forward.2} parent=11 // pred_check_branch
          %525 = sbr.rel (%p523) target = $region40
        $region39: #{oformer_forward.2} parent=11 // pred_region
          _
        $region40: #{oformer_forward.2} parent=11 // pred_fallthru
          _
        // Predicated region
        $region41: #{oformer_forward.2} parent=11 // pred_check
          %p526 = pneg %p275
        $region42: #{oformer_forward.2} parent=11 // pred_check_branch
          %528 = sbr.rel (%p526) target = $region44
        $region43: #{oformer_forward.2} parent=11 // pred_region
          _
        $region44: #{oformer_forward.2} parent=11 // pred_fallthru
          _
        // Predicated region
        $region45: #{oformer_forward.2} parent=11 // pred_check
          %p529 = pneg %p296
        $region46: #{oformer_forward.2} parent=11 // pred_check_branch
          %531 = sbr.rel (%p529) target = $region48
        $region47: #{oformer_forward.2} parent=11 // pred_region
          %533 = vsyncadd [#allocation3], 0
          %s534 = sshll.u32 %s11, 4
          %s535 = int_to_ptr.hbm [resolvable:$true] %s534
          %s536 = sshll.u32 [#allocation2], 4
          %s537 = int_to_ptr.vmem [resolvable:$true] %s536
          %542 = dma.hbm_to_vmem [thread:$0]  %s535, 12288, %s537, [#allocation3], 192, 192, 12
        $region48: #{oformer_forward.2} parent=11 // pred_fallthru
          _
        // Predicated region
        $region49: #{oformer_forward.2} parent=11 // pred_check
          %p543 = pneg %p317
        $region50: #{oformer_forward.2} parent=11 // pred_check_branch
          %545 = sbr.rel (%p543) target = $region52
        $region51: #{oformer_forward.2} parent=11 // pred_region
          %547 = vsyncadd [#allocation5], 0
          %s548 = sshll.u32 %s12, 4
          %s549 = int_to_ptr.hbm [resolvable:$true] %s548
          %s550 = sshll.u32 [#allocation4], 4
          %s551 = int_to_ptr.vmem [resolvable:$true] %s550
          %556 = dma.hbm_to_vmem [thread:$0]  %s549, 4096, %s551, [#allocation5], 64, 64, 4
        $region52: #{oformer_forward.2} parent=11 // pred_fallthru
          _
        // Predicated region
        $region53: #{oformer_forward.2} parent=11 // pred_check
          %p557 = pneg %p338
        $region54: #{oformer_forward.2} parent=11 // pred_check_branch
          %559 = sbr.rel (%p557) target = $region56
        $region55: #{oformer_forward.2} parent=11 // pred_region
          _
        $region56: #{oformer_forward.2} parent=11 // pred_fallthru
          _
        // Predicated region
        $region57: #{oformer_forward.2} parent=11 // pred_check
          %p560 = pneg %p359
        $region58: #{oformer_forward.2} parent=11 // pred_check_branch
          %562 = sbr.rel (%p560) target = $region60
        $region59: #{oformer_forward.2} parent=11 // pred_region
          _
        $region60: #{oformer_forward.2} parent=11 // pred_fallthru
          _
        // Predicated region
        $region61: #{oformer_forward.2} parent=11 // pred_check
          %p563 = pneg %p380
        $region62: #{oformer_forward.2} parent=11 // pred_check_branch
          %565 = sbr.rel (%p563) target = $region64
        $region63: #{oformer_forward.2} parent=11 // pred_region
          %567 = vsyncadd [#allocation5], 0
          %s568 = sshll.u32 %s15, 4
          %s569 = int_to_ptr.hbm [resolvable:$true] %s568
          %s570 = sshll.u32 [#allocation6], 4
          %s571 = int_to_ptr.vmem [resolvable:$true] %s570
          %576 = dma.hbm_to_vmem [thread:$0]  %s569, 4096, %s571, [#allocation5], 64, 64, 4
        $region64: #{oformer_forward.2} parent=11 // pred_fallthru
          _
        // Predicated region
        $region65: #{oformer_forward.2} parent=11 // pred_check
          %p577 = pneg %p401
        $region66: #{oformer_forward.2} parent=11 // pred_check_branch
          %579 = sbr.rel (%p577) target = $region68
        $region67: #{oformer_forward.2} parent=11 // pred_region
          _
        $region68: #{oformer_forward.2} parent=11 // pred_fallthru
          _
        // Predicated region
        $region69: #{oformer_forward.2} parent=11 // pred_check
          %p580 = pneg %p422
        $region70: #{oformer_forward.2} parent=11 // pred_check_branch
          %582 = sbr.rel (%p580) target = $region72
        $region71: #{oformer_forward.2} parent=11 // pred_region
          %584 = vsyncadd [#allocation8], 0
          %s585 = sshll.u32 %s17, 4
          %s586 = int_to_ptr.hbm [resolvable:$true] %s585
          %s587 = sshll.u32 [#allocation7], 4
          %s588 = int_to_ptr.vmem [resolvable:$true] %s587
          %593 = dma.hbm_to_vmem [thread:$0]  %s586, 4096, %s588, [#allocation8], 64, 64, 4
        $region72: #{oformer_forward.2} parent=11 // pred_fallthru
          _
        // Predicated region
        $region73: #{oformer_forward.2} parent=11 // pred_check
          %p594 = pneg %p443
        $region74: #{oformer_forward.2} parent=11 // pred_check_branch
          %596 = sbr.rel (%p594) target = $region76
        $region75: #{oformer_forward.2} parent=11 // pred_region
          _
        $region76: #{oformer_forward.2} parent=11 // pred_fallthru
          _
        // Predicated region
        $region77: #{oformer_forward.2} parent=11 // pred_check
          %p597 = pneg %p464
        $region78: #{oformer_forward.2} parent=11 // pred_check_branch
          %599 = sbr.rel (%p597) target = $region80
        $region79: #{oformer_forward.2} parent=11 // pred_region
          _
        $region80: #{oformer_forward.2} parent=11 // pred_fallthru
          _
      $region12: #{oformer_forward.2} parent=5 // pred_fallthru
        _
      %p600 = scmp.lt.s32.totalorder %s29, 2
      // Predicated region
      $region81: #{oformer_forward.2} parent=5 // pred_check
        %p601 = pneg %p600
      $region82: #{oformer_forward.2} parent=5 // pred_check_branch
        %603 = sbr.rel (%p601) target = $region84
      $region83: #{oformer_forward.2} parent=5 // pred_region
        // Predicated region
        $region85: #{oformer_forward.2} parent=83 // pred_check
          %p604 = pneg %p49
        $region86: #{oformer_forward.2} parent=83 // pred_check_branch
          %606 = sbr.rel (%p604) target = $region88
        $region87: #{oformer_forward.2} parent=83 // pred_region
          %p607 = scmp.lt.s32.totalorder %s29, 1
          %s608 = scalar_select %p607, %s29, 1
          %s609 = smul.addr %s608, 8
          %s610 = smul.addr %s609, 8
          %s611 = scalar_lea.vmem %s0, %s610
        $region88: #{oformer_forward.2} parent=83 // pred_fallthru
          _
        // Predicated region
        $region89: #{oformer_forward.2} parent=83 // pred_check
          %p612 = pneg %p75
        $region90: #{oformer_forward.2} parent=83 // pred_check_branch
          %614 = sbr.rel (%p612) target = $region92
        $region91: #{oformer_forward.2} parent=83 // pred_region
          %p615 = scmp.lt.s32.totalorder %s29, 1
          %s616 = scalar_select %p615, %s29, 1
          %s617 = smul.addr %s616, 8
          %s618 = smul.addr %s617, 8
          %s619 = scalar_lea.vmem %s1, %s618
        $region92: #{oformer_forward.2} parent=83 // pred_fallthru
          _
        // Predicated region
        $region93: #{oformer_forward.2} parent=83 // pred_check
          %p620 = pneg %p101
        $region94: #{oformer_forward.2} parent=83 // pred_check_branch
          %622 = sbr.rel (%p620) target = $region96
        $region95: #{oformer_forward.2} parent=83 // pred_region
          %p623 = scmp.lt.s32.totalorder %s29, 1
          %s624 = scalar_select %p623, %s29, 1
          %s625 = smul.addr %s624, 8
          %s626 = smul.addr %s625, 8
          %s627 = scalar_lea.vmem %s2, %s626
        $region96: #{oformer_forward.2} parent=83 // pred_fallthru
          _
      $region84: #{oformer_forward.2} parent=5 // pred_fallthru
        _
      %p628 = scmp.le.s32.totalorder 1, %s29
      %p629 = scmp.lt.s32.totalorder %s29, 3
      %p630 = pnand %p628, %p629
      %p631 = pneg %p630
      // Predicated region
      $region97: #{oformer_forward.2} parent=5 // pred_check
        _
      $region98: #{oformer_forward.2} parent=5 // pred_check_branch
        %633 = sbr.rel (%p630) target = $region100
      $region99: #{oformer_forward.2} parent=5 // pred_region
        %s634 = ssub.s32 %s29, 1
        // Predicated region
        $region101: #{oformer_forward.2} parent=99 // pred_check
          %p635 = pneg %p296
        $region102: #{oformer_forward.2} parent=99 // pred_check_branch
          %637 = sbr.rel (%p635) target = $region104
        $region103: #{oformer_forward.2} parent=99 // pred_region
          %639 = dma.done [#allocation3], 12288
        $region104: #{oformer_forward.2} parent=99 // pred_fallthru
          _
        // Predicated region
        $region105: #{oformer_forward.2} parent=99 // pred_check
          %p640 = pneg %p317
        $region106: #{oformer_forward.2} parent=99 // pred_check_branch
          %642 = sbr.rel (%p640) target = $region108
        $region107: #{oformer_forward.2} parent=99 // pred_region
          %644 = dma.done [#allocation5], 4096
        $region108: #{oformer_forward.2} parent=99 // pred_fallthru
          _
        // Predicated region
        $region109: #{oformer_forward.2} parent=99 // pred_check
          %p645 = pneg %p380
        $region110: #{oformer_forward.2} parent=99 // pred_check_branch
          %647 = sbr.rel (%p645) target = $region112
        $region111: #{oformer_forward.2} parent=99 // pred_region
          %649 = dma.done [#allocation5], 4096
        $region112: #{oformer_forward.2} parent=99 // pred_fallthru
          _
        // Predicated region
        $region113: #{oformer_forward.2} parent=99 // pred_check
          %p650 = pneg %p422
        $region114: #{oformer_forward.2} parent=99 // pred_check_branch
          %652 = sbr.rel (%p650) target = $region116
        $region115: #{oformer_forward.2} parent=99 // pred_region
          %654 = dma.done [#allocation8], 4096
        $region116: #{oformer_forward.2} parent=99 // pred_fallthru
          _
        %p655 = scmp.lt.s32.totalorder %s34, 1
        %s656 = scalar_select %p655, %s34, 1
        %s657 = smul.addr %s656, 8
        %s658 = smul.addr %s657, 8
        %s659 = scalar_lea.vmem %s0, %s658
        %p660 = pneg %p55
        %p661 = pneg %p52
        %p662 = scmp.lt.s32.totalorder %s34, 1
        %s663 = scalar_select %p662, %s34, 1
        %s664 = smul.addr %s663, 8
        %s665 = smul.addr %s664, 8
        %s666 = scalar_lea.vmem %s1, %s665
        %p667 = pneg %p81
        %p668 = pneg %p78
        %p669 = scmp.lt.s32.totalorder %s34, 1
        %s670 = scalar_select %p669, %s34, 1
        %s671 = smul.addr %s670, 8
        %s672 = smul.addr %s671, 8
        %s673 = scalar_lea.vmem %s2, %s672
        %p674 = pneg %p107
        %p675 = pneg %p104
        %p676 = pneg %p128
        %p677 = pneg %p125
        %p678 = pneg %p149
        %p679 = pneg %p146
        %p680 = pneg %p170
        %p681 = pneg %p167
        %p682 = pneg %p191
        %p683 = pneg %p188
        %p684 = pneg %p212
        %p685 = pneg %p209
        %p686 = pneg %p233
        %p687 = pneg %p230
        %p688 = pneg %p254
        %p689 = pneg %p251
        %p690 = pneg %p275
        %p691 = pneg %p272
        %p692 = pneg %p296
        %p693 = pneg %p293
        %p694 = pneg %p317
        %p695 = pneg %p314
        %p696 = pneg %p338
        %p697 = pneg %p335
        %p698 = pneg %p359
        %p699 = pneg %p356
        %p700 = pneg %p380
        %p701 = pneg %p377
        %p702 = pneg %p401
        %p703 = pneg %p398
        %p704 = pneg %p422
        %p705 = pneg %p419
        %p706 = pneg %p443
        %p707 = pneg %p440
        %p708 = pneg %p464
        %p709 = pneg %p461
        %p710 = pneg %p490
        %p711 = pneg %p487
        %p712 = scmp.lt.s32.totalorder %s34, 1
        %s713 = scalar_select %p712, %s34, 1
        %s714 = smul.addr %s713, 8
        %s715 = smul.addr %s714, 4
        %s716 = scalar_lea.vmem %s20, %s715
        %p717 = scmp.lt.s32.totalorder %s34, 1
        %s718 = scalar_select %p717, %s34, 1
        %s719 = smul.addr %s718, 8
        %s720 = smul.addr %s719, 8
        %s721 = scalar_lea.vmem %s0, %s720
        %p722 = scmp.lt.s32.totalorder %s34, 1
        %s723 = scalar_select %p722, %s34, 1
        %s724 = smul.addr %s723, 8
        %s725 = smul.addr %s724, 8
        %s726 = scalar_lea.vmem %s1, %s725
        %p727 = scmp.lt.s32.totalorder %s34, 1
        %s728 = scalar_select %p727, %s34, 1
        %s729 = smul.addr %s728, 8
        %s730 = smul.addr %s729, 8
        %s731 = scalar_lea.vmem %s2, %s730
        %p732 = scmp.lt.s32.totalorder %s34, 1
        %s733 = scalar_select %p732, %s34, 1
        %s734 = smul.addr %s733, 8
        %s735 = smul.addr %s734, 4
        %s736 = scalar_lea.vmem %s20, %s735
        %v738 = vld [vmem:[%s721] sm:$0xff]
        %v739 = vld [vmem:[%s721 + $0x8] sm:$0xff]
        %v740 = vld [vmem:[%s721 + $0x10] sm:$0xff]
        %v741 = vld [vmem:[%s721 + $0x18] sm:$0xff]
        %v742 = vld [vmem:[%s721 + $0x20] sm:$0xff]
        %v743 = vld [vmem:[%s721 + $0x28] sm:$0xff]
        %v744 = vld [vmem:[%s721 + $0x30] sm:$0xff]
        %v745 = vld [vmem:[%s721 + $0x38] sm:$0xff]
        %v746 = vld [vmem:[%s726] sm:$0xff]
        %v747 = vld [vmem:[%s726 + $0x8] sm:$0xff]
        %v748 = vld [vmem:[%s726 + $0x10] sm:$0xff]
        %v749 = vld [vmem:[%s726 + $0x18] sm:$0xff]
        %v750 = vld [vmem:[%s726 + $0x20] sm:$0xff]
        %v751 = vld [vmem:[%s726 + $0x28] sm:$0xff]
        %v752 = vld [vmem:[%s726 + $0x30] sm:$0xff]
        %v753 = vld [vmem:[%s726 + $0x38] sm:$0xff]
        %v754 = vld [vmem:[%s731] sm:$0xff]
        %v755 = vld [vmem:[%s731 + $0x8] sm:$0xff]
        %v756 = vld [vmem:[%s731 + $0x10] sm:$0xff]
        %v757 = vld [vmem:[%s731 + $0x18] sm:$0xff]
        %v758 = vld [vmem:[%s731 + $0x20] sm:$0xff]
        %v759 = vld [vmem:[%s731 + $0x28] sm:$0xff]
        %v760 = vld [vmem:[%s731 + $0x30] sm:$0xff]
        %v761 = vld [vmem:[%s731 + $0x38] sm:$0xff]
        %v762 = vld [vmem:[%s3] sm:$0xf]
        %v763 = vpack.c.bf16 %v739, %v738
        %v764 = vpack.c.bf16 %v741, %v740
        %v765 = vpack.c.bf16 %v743, %v742
        %v766 = vpack.c.bf16 %v745, %v744
        %vm767 = vcmask 64512
        %v769 = vsel %vm767, %v763, 0
        %v772 = vsel %vm767, %v764, 0
        %v775 = vsel %vm767, %v765, 0
        %v778 = vsel %vm767, %v766, 0
        %vm780 = vcmask 1043456
        %v782 = vsel %vm780, %v762, 0
        %784 = vmatpush.bf16.msra.mxu0 0
        %785 = vmatpush.bf16.msra.mxu0 0
        %786 = vmatpush.bf16.msra.mxu0 0
        %787 = vmatpush.bf16.msra.mxu0 0
        %788 = vmatpush.bf16.msra.mxu0 0
        %789 = vmatpush.bf16.msra.mxu0 0
        %790 = vmatpush.bf16.msra.mxu0 0
        %791 = vmatpush.bf16.msra.mxu0 %v782
        %792 = vmatmul.bf16.gmra.mxu0 %v769
        %v793 = vpop.f32.mrf.mxu0
        %v794 = vadd.f32 0.0, %v793
        %v795 = vpop.f32.mrf.mxu0
        %v796 = vadd.f32 0.0, %v795
        %797 = vmatmul.bf16.gmra.mxu0 %v772
        %v798 = vpop.f32.mrf.mxu0
        %v799 = vadd.f32 0.0, %v798
        %v800 = vpop.f32.mrf.mxu0
        %v801 = vadd.f32 0.0, %v800
        %802 = vmatmul.bf16.gmra.mxu0 %v775
        %v803 = vpop.f32.mrf.mxu0
        %v804 = vadd.f32 0.0, %v803
        %v805 = vpop.f32.mrf.mxu0
        %v806 = vadd.f32 0.0, %v805
        %807 = vmatmul.bf16.gmra.mxu0 %v778
        %v808 = vpop.f32.mrf.mxu0
        %v809 = vadd.f32 0.0, %v808
        %v810 = vpop.f32.mrf.mxu0
        %v811 = vadd.f32 0.0, %v810
        %812 = vdwg.mxu0
        %v813 = vmul.f32 %v794, %v794
        %v814 = vmul.f32 %v796, %v796
        %v815 = vmul.f32 %v799, %v799
        %v816 = vmul.f32 %v801, %v801
        %v817 = vmul.f32 %v804, %v804
        %v818 = vmul.f32 %v806, %v806
        %v819 = vmul.f32 %v809, %v809
        %v820 = vmul.f32 %v811, %v811
        %v821 = vmul.f32 %v794, %v813
        %v822 = vmul.f32 %v796, %v814
        %v823 = vmul.f32 %v799, %v815
        %v824 = vmul.f32 %v801, %v816
        %v825 = vmul.f32 %v804, %v817
        %v826 = vmul.f32 %v806, %v818
        %v827 = vmul.f32 %v809, %v819
        %v828 = vmul.f32 %v811, %v820
        %v829 = vmul.f32 %v821, 0.044715
        %v830 = vmul.f32 %v822, 0.044715
        %v831 = vmul.f32 %v823, 0.044715
        %v832 = vmul.f32 %v824, 0.044715
        %v833 = vmul.f32 %v825, 0.044715
        %v834 = vmul.f32 %v826, 0.044715
        %v835 = vmul.f32 %v827, 0.044715
        %v836 = vmul.f32 %v828, 0.044715
        %v837 = vadd.f32 %v794, %v829
        %v838 = vadd.f32 %v796, %v830
        %v839 = vadd.f32 %v799, %v831
        %v840 = vadd.f32 %v801, %v832
        %v841 = vadd.f32 %v804, %v833
        %v842 = vadd.f32 %v806, %v834
        %v843 = vadd.f32 %v809, %v835
        %v844 = vadd.f32 %v811, %v836
        %v845 = vmul.f32 %v837, 0.7978846
        %v846 = vmul.f32 %v838, 0.7978846
        %v847 = vmul.f32 %v839, 0.7978846
        %v848 = vmul.f32 %v840, 0.7978846
        %v849 = vmul.f32 %v841, 0.7978846
        %v850 = vmul.f32 %v842, 0.7978846
        %v851 = vmul.f32 %v843, 0.7978846
        %v852 = vmul.f32 %v844, 0.7978846
        %v853 = vtanh.pop %v845
        %v854 = vtanh.pop %v846
        %v855 = vtanh.pop %v847
        %v856 = vtanh.pop %v848
        %v857 = vtanh.pop %v849
        %v858 = vtanh.pop %v850
        %v859 = vtanh.pop %v851
        %v860 = vtanh.pop %v852
        %v861 = vadd.f32 %v853, 1.0
        %v862 = vadd.f32 %v854, 1.0
        %v863 = vadd.f32 %v855, 1.0
        %v864 = vadd.f32 %v856, 1.0
        %v865 = vadd.f32 %v857, 1.0
        %v866 = vadd.f32 %v858, 1.0
        %v867 = vadd.f32 %v859, 1.0
        %v868 = vadd.f32 %v860, 1.0
        %v869 = vmul.f32 %v861, 0.5
        %v870 = vmul.f32 %v862, 0.5
        %v871 = vmul.f32 %v863, 0.5
        %v872 = vmul.f32 %v864, 0.5
        %v873 = vmul.f32 %v865, 0.5
        %v874 = vmul.f32 %v866, 0.5
        %v875 = vmul.f32 %v867, 0.5
        %v876 = vmul.f32 %v868, 0.5
        %v877 = vmul.f32 %v794, %v869
        %v878 = vmul.f32 %v796, %v870
        %v879 = vmul.f32 %v799, %v871
        %v880 = vmul.f32 %v801, %v872
        %v881 = vmul.f32 %v804, %v873
        %v882 = vmul.f32 %v806, %v874
        %v883 = vmul.f32 %v809, %v875
        %v884 = vmul.f32 %v811, %v876
        %v885 = vld [vmem:[%s4] sm:$0xf]
        %v886 = vld [vmem:[%s4 + $0x4] sm:$0xf]
        %v887 = vld [vmem:[%s4 + $0x8] sm:$0xf]
        %v888 = vld [vmem:[%s4 + $0xc] sm:$0xf]
        %v889 = vld [vmem:[%s4 + $0x10] sm:$0xf]
        %v890 = vld [vmem:[%s4 + $0x14] sm:$0xf]
        %v891 = vld [vmem:[%s4 + $0x18] sm:$0xf]
        %v892 = vld [vmem:[%s4 + $0x1c] sm:$0xf]
        %v893 = vld [vmem:[%s4 + $0x20] sm:$0xf]
        %v894 = vld [vmem:[%s4 + $0x24] sm:$0xf]
        %v895 = vld [vmem:[%s4 + $0x28] sm:$0xf]
        %v896 = vld [vmem:[%s4 + $0x2c] sm:$0xf]
        %v897 = vld [vmem:[%s4 + $0x30] sm:$0xf]
        %v898 = vld [vmem:[%s4 + $0x34] sm:$0xf]
        %v899 = vld [vmem:[%s4 + $0x38] sm:$0xf]
        %v900 = vld [vmem:[%s4 + $0x3c] sm:$0xf]
        %v901 = vpack.c.bf16 %v878, %v877
        %v902 = vpack.c.bf16 %v880, %v879
        %v903 = vpack.c.bf16 %v882, %v881
        %v904 = vpack.c.bf16 %v884, %v883
        %v921 = vunpack.c.l.b16 %v885
        %v922 = vunpack.c.l.b16 %v886
        %v923 = vunpack.c.l.b16 %v887
        %v924 = vunpack.c.l.b16 %v888
        %v925 = vunpack.c.l.b16 %v889
        %v926 = vunpack.c.l.b16 %v890
        %v927 = vunpack.c.l.b16 %v891
        %v928 = vunpack.c.l.b16 %v892
        %v929 = vunpack.c.l.b16 %v893
        %v930 = vunpack.c.l.b16 %v894
        %v931 = vunpack.c.l.b16 %v895
        %v932 = vunpack.c.l.b16 %v896
        %v933 = vunpack.c.l.b16 %v897
        %v934 = vunpack.c.l.b16 %v898
        %v935 = vunpack.c.l.b16 %v899
        %v936 = vunpack.c.l.b16 %v900
        %v937 = vpack.c.b16 %v922, %v921
        %v938 = vpack.c.b16 %v924, %v923
        %v939 = vpack.c.b16 %v926, %v925
        %v940 = vpack.c.b16 %v928, %v927
        %v941 = vpack.c.b16 %v930, %v929
        %v942 = vpack.c.b16 %v932, %v931
        %v943 = vpack.c.b16 %v934, %v933
        %v944 = vpack.c.b16 %v936, %v935
        %953 = vmatpush.bf16.msra.mxu0 %v944
        %954 = vmatpush.bf16.msra.mxu0 %v943
        %955 = vmatpush.bf16.msra.mxu0 %v942
        %956 = vmatpush.bf16.msra.mxu0 %v941
        %957 = vmatpush.bf16.msra.mxu0 %v940
        %958 = vmatpush.bf16.msra.mxu0 %v939
        %959 = vmatpush.bf16.msra.mxu0 %v938
        %960 = vmatpush.bf16.msra.mxu0 %v937
        %961 = vmatmul.bf16.gmra.mxu0 %v901
        %v962 = vpop.f32.mrf.mxu0
        %v963 = vadd.f32 0.0, %v962
        %v964 = vpop.f32.mrf.mxu0
        %v965 = vadd.f32 0.0, %v964
        %966 = vmatmul.bf16.gmra.mxu0 %v902
        %v967 = vpop.f32.mrf.mxu0
        %v968 = vadd.f32 0.0, %v967
        %v969 = vpop.f32.mrf.mxu0
        %v970 = vadd.f32 0.0, %v969
        %971 = vmatmul.bf16.gmra.mxu0 %v903
        %v972 = vpop.f32.mrf.mxu0
        %v973 = vadd.f32 0.0, %v972
        %v974 = vpop.f32.mrf.mxu0
        %v975 = vadd.f32 0.0, %v974
        %976 = vmatmul.bf16.gmra.mxu0 %v904
        %v977 = vpop.f32.mrf.mxu0
        %v978 = vadd.f32 0.0, %v977
        %v979 = vpop.f32.mrf.mxu0
        %v980 = vadd.f32 0.0, %v979
        %981 = vdwg.mxu0
        %v982 = vld [vmem:[%s5] sm:$0x7]
        %vm983 = vcmp.eq.s32.totalorder %v746, 0
        %vm984 = vcmp.eq.s32.totalorder %v747, 0
        %vm985 = vcmp.eq.s32.totalorder %v748, 0
        %vm986 = vcmp.eq.s32.totalorder %v749, 0
        %vm987 = vcmp.eq.s32.totalorder %v750, 0
        %vm988 = vcmp.eq.s32.totalorder %v751, 0
        %vm989 = vcmp.eq.s32.totalorder %v752, 0
        %vm990 = vcmp.eq.s32.totalorder %v753, 0
        %vm991 = vcmp.eq.s32.totalorder %v746, 1
        %vm992 = vcmp.eq.s32.totalorder %v747, 1
        %vm993 = vcmp.eq.s32.totalorder %v748, 1
        %vm994 = vcmp.eq.s32.totalorder %v749, 1
        %vm995 = vcmp.eq.s32.totalorder %v750, 1
        %vm996 = vcmp.eq.s32.totalorder %v751, 1
        %vm997 = vcmp.eq.s32.totalorder %v752, 1
        %vm998 = vcmp.eq.s32.totalorder %v753, 1
        %v999 = vsel %vm991, 1, 0
        %v1000 = vsel %vm992, 1, 0
        %v1001 = vsel %vm993, 1, 0
        %v1002 = vsel %vm994, 1, 0
        %v1003 = vsel %vm995, 1, 0
        %v1004 = vsel %vm996, 1, 0
        %v1005 = vsel %vm997, 1, 0
        %v1006 = vsel %vm998, 1, 0
        %1007 = vset.pattern.permute.xlu0 0
        %1008 = vperm.xlu0 %1007, %v999
        %v1009 = vpop.permute.xlu0 %1008
        %1010 = vset.pattern.permute.xlu0 0
        %1011 = vperm.xlu0 %1010, %v1000
        %v1012 = vpop.permute.xlu0 %1011
        %1013 = vset.pattern.permute.xlu0 0
        %1014 = vperm.xlu0 %1013, %v1001
        %v1015 = vpop.permute.xlu0 %1014
        %1016 = vset.pattern.permute.xlu0 0
        %1017 = vperm.xlu0 %1016, %v1002
        %v1018 = vpop.permute.xlu0 %1017
        %1019 = vset.pattern.permute.xlu0 0
        %1020 = vperm.xlu0 %1019, %v1003
        %v1021 = vpop.permute.xlu0 %1020
        %1022 = vset.pattern.permute.xlu0 0
        %1023 = vperm.xlu0 %1022, %v1004
        %v1024 = vpop.permute.xlu0 %1023
        %1025 = vset.pattern.permute.xlu0 0
        %1026 = vperm.xlu0 %1025, %v1005
        %v1027 = vpop.permute.xlu0 %1026
        %1028 = vset.pattern.permute.xlu0 0
        %1029 = vperm.xlu0 %1028, %v1006
        %v1030 = vpop.permute.xlu0 %1029
        %vm1031 = vcmp.eq.s32.totalorder %v1009, 1
        %vm1032 = vcmp.eq.s32.totalorder %v1012, 1
        %vm1033 = vcmp.eq.s32.totalorder %v1015, 1
        %vm1034 = vcmp.eq.s32.totalorder %v1018, 1
        %vm1035 = vcmp.eq.s32.totalorder %v1021, 1
        %vm1036 = vcmp.eq.s32.totalorder %v1024, 1
        %vm1037 = vcmp.eq.s32.totalorder %v1027, 1
        %vm1038 = vcmp.eq.s32.totalorder %v1030, 1
        %v1039 = vperm.slane %v982, 1
        %v1040 = vperm.slane %v982, 2
        %v1041 = vsel %vm1031, %v1039, %v1040
        %v1042 = vsel %vm1032, %v1039, %v1040
        %v1043 = vsel %vm1033, %v1039, %v1040
        %v1044 = vsel %vm1034, %v1039, %v1040
        %v1045 = vsel %vm1035, %v1039, %v1040
        %v1046 = vsel %vm1036, %v1039, %v1040
        %v1047 = vsel %vm1037, %v1039, %v1040
        %v1048 = vsel %vm1038, %v1039, %v1040
        %v1049 = vsel %vm983, 1, 0
        %v1050 = vsel %vm984, 1, 0
        %v1051 = vsel %vm985, 1, 0
        %v1052 = vsel %vm986, 1, 0
        %v1053 = vsel %vm987, 1, 0
        %v1054 = vsel %vm988, 1, 0
        %v1055 = vsel %vm989, 1, 0
        %v1056 = vsel %vm990, 1, 0
        %1057 = vset.pattern.permute.xlu0 0
        %1058 = vperm.xlu0 %1057, %v1049
        %v1059 = vpop.permute.xlu0 %1058
        %1060 = vset.pattern.permute.xlu0 0
        %1061 = vperm.xlu0 %1060, %v1050
        %v1062 = vpop.permute.xlu0 %1061
        %1063 = vset.pattern.permute.xlu0 0
        %1064 = vperm.xlu0 %1063, %v1051
        %v1065 = vpop.permute.xlu0 %1064
        %1066 = vset.pattern.permute.xlu0 0
        %1067 = vperm.xlu0 %1066, %v1052
        %v1068 = vpop.permute.xlu0 %1067
        %1069 = vset.pattern.permute.xlu0 0
        %1070 = vperm.xlu0 %1069, %v1053
        %v1071 = vpop.permute.xlu0 %1070
        %1072 = vset.pattern.permute.xlu0 0
        %1073 = vperm.xlu0 %1072, %v1054
        %v1074 = vpop.permute.xlu0 %1073
        %1075 = vset.pattern.permute.xlu0 0
        %1076 = vperm.xlu0 %1075, %v1055
        %v1077 = vpop.permute.xlu0 %1076
        %1078 = vset.pattern.permute.xlu0 0
        %1079 = vperm.xlu0 %1078, %v1056
        %v1080 = vpop.permute.xlu0 %1079
        %vm1081 = vcmp.eq.s32.totalorder %v1059, 1
        %vm1082 = vcmp.eq.s32.totalorder %v1062, 1
        %vm1083 = vcmp.eq.s32.totalorder %v1065, 1
        %vm1084 = vcmp.eq.s32.totalorder %v1068, 1
        %vm1085 = vcmp.eq.s32.totalorder %v1071, 1
        %vm1086 = vcmp.eq.s32.totalorder %v1074, 1
        %vm1087 = vcmp.eq.s32.totalorder %v1077, 1
        %vm1088 = vcmp.eq.s32.totalorder %v1080, 1
        %v1089 = vperm.slane %v982, 0
        %v1090 = vsel %vm1081, %v1089, %v1041
        %v1091 = vsel %vm1082, %v1089, %v1042
        %v1092 = vsel %vm1083, %v1089, %v1043
        %v1093 = vsel %vm1084, %v1089, %v1044
        %v1094 = vsel %vm1085, %v1089, %v1045
        %v1095 = vsel %vm1086, %v1089, %v1046
        %v1096 = vsel %vm1087, %v1089, %v1047
        %v1097 = vsel %vm1088, %v1089, %v1048
        %v1098 = vld [vmem:[%s8] sm:$0x3]
        %1100 = vset.pattern.permute.xlu0 0
        %1101 = vperm.xlu0 %1100, %v754
        %v1102 = vpop.permute.xlu0 %1101
        %1105 = vset.pattern.permute.xlu0 0
        %1106 = vperm.xlu0 %1105, %v755
        %v1107 = vpop.permute.xlu0 %1106
        %1110 = vset.pattern.permute.xlu0 0
        %1111 = vperm.xlu0 %1110, %v756
        %v1112 = vpop.permute.xlu0 %1111
        %1115 = vset.pattern.permute.xlu0 0
        %1116 = vperm.xlu0 %1115, %v757
        %v1117 = vpop.permute.xlu0 %1116
        %1120 = vset.pattern.permute.xlu0 0
        %1121 = vperm.xlu0 %1120, %v758
        %v1122 = vpop.permute.xlu0 %1121
        %1125 = vset.pattern.permute.xlu0 0
        %1126 = vperm.xlu0 %1125, %v759
        %v1127 = vpop.permute.xlu0 %1126
        %1130 = vset.pattern.permute.xlu0 0
        %1131 = vperm.xlu0 %1130, %v760
        %v1132 = vpop.permute.xlu0 %1131
        %1135 = vset.pattern.permute.xlu0 0
        %1136 = vperm.xlu0 %1135, %v761
        %v1137 = vpop.permute.xlu0 %1136
        %v1139 = vperm.slane %v1098, 0
        %v1140 = vmul.f32 %v1102, %v1139
        %v1141 = vmul.f32 %v1107, %v1139
        %v1142 = vmul.f32 %v1112, %v1139
        %v1143 = vmul.f32 %v1117, %v1139
        %v1144 = vmul.f32 %v1122, %v1139
        %v1145 = vmul.f32 %v1127, %v1139
        %v1146 = vmul.f32 %v1132, %v1139
        %v1147 = vmul.f32 %v1137, %v1139
        %1148 = vset.pattern.permute.xlu0 1
        %1149 = vperm.xlu0 %1148, %v754
        %v1150 = vpop.permute.xlu0 %1149
        %1152 = vset.pattern.permute.xlu0 1
        %1153 = vperm.xlu0 %1152, %v755
        %v1154 = vpop.permute.xlu0 %1153
        %1156 = vset.pattern.permute.xlu0 1
        %1157 = vperm.xlu0 %1156, %v756
        %v1158 = vpop.permute.xlu0 %1157
        %1160 = vset.pattern.permute.xlu0 1
        %1161 = vperm.xlu0 %1160, %v757
        %v1162 = vpop.permute.xlu0 %1161
        %1164 = vset.pattern.permute.xlu0 1
        %1165 = vperm.xlu0 %1164, %v758
        %v1166 = vpop.permute.xlu0 %1165
        %1168 = vset.pattern.permute.xlu0 1
        %1169 = vperm.xlu0 %1168, %v759
        %v1170 = vpop.permute.xlu0 %1169
        %1172 = vset.pattern.permute.xlu0 1
        %1173 = vperm.xlu0 %1172, %v760
        %v1174 = vpop.permute.xlu0 %1173
        %1176 = vset.pattern.permute.xlu0 1
        %1177 = vperm.xlu0 %1176, %v761
        %v1178 = vpop.permute.xlu0 %1177
        %v1180 = vperm.slane %v1098, 1
        %v1181 = vmul.f32 %v1150, %v1180
        %v1182 = vmul.f32 %v1154, %v1180
        %v1183 = vmul.f32 %v1158, %v1180
        %v1184 = vmul.f32 %v1162, %v1180
        %v1185 = vmul.f32 %v1166, %v1180
        %v1186 = vmul.f32 %v1170, %v1180
        %v1187 = vmul.f32 %v1174, %v1180
        %v1188 = vmul.f32 %v1178, %v1180
        %v1189 = vadd.f32 %v1140, %v1181
        %v1190 = vadd.f32 %v1141, %v1182
        %v1191 = vadd.f32 %v1142, %v1183
        %v1192 = vadd.f32 %v1143, %v1184
        %v1193 = vadd.f32 %v1144, %v1185
        %v1194 = vadd.f32 %v1145, %v1186
        %v1195 = vadd.f32 %v1146, %v1187
        %v1196 = vadd.f32 %v1147, %v1188
        %v1197 = vld [vmem:[%s6] sm:$0xf]
        %v1198 = vld [vmem:[%s6 + $0x4] sm:$0xf]
        %v1199 = vld [vmem:[%s6 + $0x8] sm:$0xf]
        %v1200 = vld [vmem:[%s6 + $0xc] sm:$0xf]
        %v1201 = vld [vmem:[%s6 + $0x10] sm:$0xf]
        %v1202 = vld [vmem:[%s6 + $0x14] sm:$0xf]
        %v1203 = vld [vmem:[%s6 + $0x18] sm:$0xf]
        %v1204 = vld [vmem:[%s6 + $0x1c] sm:$0xf]
        %v1205 = vld [vmem:[%s6 + $0x20] sm:$0xf]
        %v1206 = vld [vmem:[%s6 + $0x24] sm:$0xf]
        %v1207 = vld [vmem:[%s6 + $0x28] sm:$0xf]
        %v1208 = vld [vmem:[%s6 + $0x2c] sm:$0xf]
        %v1209 = vld [vmem:[%s6 + $0x30] sm:$0xf]
        %v1210 = vld [vmem:[%s6 + $0x34] sm:$0xf]
        %v1211 = vld [vmem:[%s6 + $0x38] sm:$0xf]
        %v1212 = vld [vmem:[%s6 + $0x3c] sm:$0xf]
        %v1213 = vpack.c.bf16 %v965, %v963
        %v1214 = vpack.c.bf16 %v970, %v968
        %v1215 = vpack.c.bf16 %v975, %v973
        %v1216 = vpack.c.bf16 %v980, %v978
        %v1217 = vld [vmem:[%s7] sm:$0xf]
        %v1218 = vld [vmem:[%s7 + $0x4] sm:$0xf]
        %v1219 = vld [vmem:[%s7 + $0x8] sm:$0xf]
        %v1220 = vld [vmem:[%s7 + $0xc] sm:$0xf]
        %v1221 = vld [vmem:[%s7 + $0x10] sm:$0xf]
        %v1222 = vld [vmem:[%s7 + $0x14] sm:$0xf]
        %v1223 = vld [vmem:[%s7 + $0x18] sm:$0xf]
        %v1224 = vld [vmem:[%s7 + $0x1c] sm:$0xf]
        %v1225 = vld [vmem:[%s7 + $0x20] sm:$0xf]
        %v1226 = vld [vmem:[%s7 + $0x24] sm:$0xf]
        %v1227 = vld [vmem:[%s7 + $0x28] sm:$0xf]
        %v1228 = vld [vmem:[%s7 + $0x2c] sm:$0xf]
        %v1229 = vld [vmem:[%s7 + $0x30] sm:$0xf]
        %v1230 = vld [vmem:[%s7 + $0x34] sm:$0xf]
        %v1231 = vld [vmem:[%s7 + $0x38] sm:$0xf]
        %v1232 = vld [vmem:[%s7 + $0x3c] sm:$0xf]
        %v1233 = vpack.c.bf16 %v1091, %v1090
        %v1234 = vpack.c.bf16 %v1093, %v1092
        %v1235 = vpack.c.bf16 %v1095, %v1094
        %v1236 = vpack.c.bf16 %v1097, %v1096
        %v1253 = vunpack.c.l.b16 %v1217
        %v1254 = vunpack.c.l.b16 %v1218
        %v1255 = vunpack.c.l.b16 %v1219
        %v1256 = vunpack.c.l.b16 %v1220
        %v1257 = vunpack.c.l.b16 %v1221
        %v1258 = vunpack.c.l.b16 %v1222
        %v1259 = vunpack.c.l.b16 %v1223
        %v1260 = vunpack.c.l.b16 %v1224
        %v1261 = vunpack.c.l.b16 %v1225
        %v1262 = vunpack.c.l.b16 %v1226
        %v1263 = vunpack.c.l.b16 %v1227
        %v1264 = vunpack.c.l.b16 %v1228
        %v1265 = vunpack.c.l.b16 %v1229
        %v1266 = vunpack.c.l.b16 %v1230
        %v1267 = vunpack.c.l.b16 %v1231
        %v1268 = vunpack.c.l.b16 %v1232
        %v1269 = vpack.c.b16 %v1254, %v1253
        %v1270 = vpack.c.b16 %v1256, %v1255
        %v1271 = vpack.c.b16 %v1258, %v1257
        %v1272 = vpack.c.b16 %v1260, %v1259
        %v1273 = vpack.c.b16 %v1262, %v1261
        %v1274 = vpack.c.b16 %v1264, %v1263
        %v1275 = vpack.c.b16 %v1266, %v1265
        %v1276 = vpack.c.b16 %v1268, %v1267
        %1285 = vmatpush.bf16.msra.mxu0 %v1276
        %1286 = vmatpush.bf16.msra.mxu0 %v1275
        %1287 = vmatpush.bf16.msra.mxu0 %v1274
        %1288 = vmatpush.bf16.msra.mxu0 %v1273
        %1289 = vmatpush.bf16.msra.mxu0 %v1272
        %1290 = vmatpush.bf16.msra.mxu0 %v1271
        %1291 = vmatpush.bf16.msra.mxu0 %v1270
        %1292 = vmatpush.bf16.msra.mxu0 %v1269
        %1293 = vmatmul.bf16.gmra.mxu0 %v1233
        %v1294 = vpop.f32.mrf.mxu0
        %v1295 = vadd.f32 0.0, %v1294
        %v1296 = vpop.f32.mrf.mxu0
        %v1297 = vadd.f32 0.0, %v1296
        %1298 = vmatmul.bf16.gmra.mxu0 %v1234
        %v1299 = vpop.f32.mrf.mxu0
        %v1300 = vadd.f32 0.0, %v1299
        %v1301 = vpop.f32.mrf.mxu0
        %v1302 = vadd.f32 0.0, %v1301
        %1303 = vmatmul.bf16.gmra.mxu0 %v1235
        %v1304 = vpop.f32.mrf.mxu0
        %v1305 = vadd.f32 0.0, %v1304
        %v1306 = vpop.f32.mrf.mxu0
        %v1307 = vadd.f32 0.0, %v1306
        %1308 = vmatmul.bf16.gmra.mxu0 %v1236
        %v1309 = vpop.f32.mrf.mxu0
        %v1310 = vadd.f32 0.0, %v1309
        %v1311 = vpop.f32.mrf.mxu0
        %v1312 = vadd.f32 0.0, %v1311
        %1313 = vdwg.mxu0
        %v1330 = vunpack.c.l.b16 %v1197
        %v1331 = vunpack.c.l.b16 %v1198
        %v1332 = vunpack.c.l.b16 %v1199
        %v1333 = vunpack.c.l.b16 %v1200
        %v1334 = vunpack.c.l.b16 %v1201
        %v1335 = vunpack.c.l.b16 %v1202
        %v1336 = vunpack.c.l.b16 %v1203
        %v1337 = vunpack.c.l.b16 %v1204
        %v1338 = vunpack.c.l.b16 %v1205
        %v1339 = vunpack.c.l.b16 %v1206
        %v1340 = vunpack.c.l.b16 %v1207
        %v1341 = vunpack.c.l.b16 %v1208
        %v1342 = vunpack.c.l.b16 %v1209
        %v1343 = vunpack.c.l.b16 %v1210
        %v1344 = vunpack.c.l.b16 %v1211
        %v1345 = vunpack.c.l.b16 %v1212
        %v1346 = vpack.c.b16 %v1331, %v1330
        %v1347 = vpack.c.b16 %v1333, %v1332
        %v1348 = vpack.c.b16 %v1335, %v1334
        %v1349 = vpack.c.b16 %v1337, %v1336
        %v1350 = vpack.c.b16 %v1339, %v1338
        %v1351 = vpack.c.b16 %v1341, %v1340
        %v1352 = vpack.c.b16 %v1343, %v1342
        %v1353 = vpack.c.b16 %v1345, %v1344
        %1362 = vmatpush.bf16.msra.mxu0 %v1353
        %1363 = vmatpush.bf16.msra.mxu0 %v1352
        %1364 = vmatpush.bf16.msra.mxu0 %v1351
        %1365 = vmatpush.bf16.msra.mxu0 %v1350
        %1366 = vmatpush.bf16.msra.mxu0 %v1349
        %1367 = vmatpush.bf16.msra.mxu0 %v1348
        %1368 = vmatpush.bf16.msra.mxu0 %v1347
        %1369 = vmatpush.bf16.msra.mxu0 %v1346
        %1370 = vmatmul.bf16.gmra.mxu0 %v1213
        %v1371 = vpop.f32.mrf.mxu0
        %v1372 = vadd.f32 %v1295, %v1371
        %v1373 = vpop.f32.mrf.mxu0
        %v1374 = vadd.f32 %v1297, %v1373
        %1375 = vmatmul.bf16.gmra.mxu0 %v1214
        %v1376 = vpop.f32.mrf.mxu0
        %v1377 = vadd.f32 %v1300, %v1376
        %v1378 = vpop.f32.mrf.mxu0
        %v1379 = vadd.f32 %v1302, %v1378
        %1380 = vmatmul.bf16.gmra.mxu0 %v1215
        %v1381 = vpop.f32.mrf.mxu0
        %v1382 = vadd.f32 %v1305, %v1381
        %v1383 = vpop.f32.mrf.mxu0
        %v1384 = vadd.f32 %v1307, %v1383
        %1385 = vmatmul.bf16.gmra.mxu0 %v1216
        %v1386 = vpop.f32.mrf.mxu0
        %v1387 = vadd.f32 %v1310, %v1386
        %v1388 = vpop.f32.mrf.mxu0
        %v1389 = vadd.f32 %v1312, %v1388
        %1390 = vdwg.mxu0
        %v1391 = vadd.f32 %v1372, %v1189
        %v1392 = vadd.f32 %v1374, %v1190
        %v1393 = vadd.f32 %v1377, %v1191
        %v1394 = vadd.f32 %v1379, %v1192
        %v1395 = vadd.f32 %v1382, %v1193
        %v1396 = vadd.f32 %v1384, %v1194
        %v1397 = vadd.f32 %v1387, %v1195
        %v1398 = vadd.f32 %v1389, %v1196
        loop: start=0, step=1, limit=4
        $region117: #{oformer_forward.2} parent=99 // loop_pre_header
          _
        $region118: #{oformer_forward.2} parent=99 // loop_header
          %s1400 = sphi 0, %s1404
          %p1401 = scmp.ge.s32.totalorder %s1400, 4
          %v1405 = vphi %v1391, %v2981
          %v1406 = vphi %v1392, %v2982
          %v1407 = vphi %v1393, %v2983
          %v1408 = vphi %v1394, %v2984
          %v1409 = vphi %v1395, %v2985
          %v1410 = vphi %v1396, %v2986
          %v1411 = vphi %v1397, %v2987
          %v1412 = vphi %v1398, %v2988
        $region119: #{oformer_forward.2} parent=99 // loop_header_branch
          %1403 = sbr.rel (%p1401) target = $region123
        $region120: #{oformer_forward.2} parent=99 // loop_body
          %s1413 = scalar_lea.vmem %s9, %s1400
          %v1414 = vld [vmem:[%s1413] sm:$0x1]
          %s1415 = scalar_lea.vmem %s10, %s1400
          %v1416 = vld [vmem:[%s1415] sm:$0x1]
          %1417 = vadd.xlane.f32.xlu0 %v1405
          %v1418 = vpop.xlane.xlu0 %1417
          %1419 = vadd.xlane.f32.xlu0 %v1406
          %v1420 = vpop.xlane.xlu0 %1419
          %1421 = vadd.xlane.f32.xlu0 %v1407
          %v1422 = vpop.xlane.xlu0 %1421
          %1423 = vadd.xlane.f32.xlu0 %v1408
          %v1424 = vpop.xlane.xlu0 %1423
          %1425 = vadd.xlane.f32.xlu0 %v1409
          %v1426 = vpop.xlane.xlu0 %1425
          %1427 = vadd.xlane.f32.xlu0 %v1410
          %v1428 = vpop.xlane.xlu0 %1427
          %1429 = vadd.xlane.f32.xlu0 %v1411
          %v1430 = vpop.xlane.xlu0 %1429
          %1431 = vadd.xlane.f32.xlu0 %v1412
          %v1432 = vpop.xlane.xlu0 %1431
          %v1433 = vrcp.pop 128.0
          %v1434 = vmul.f32 128.0, %v1433
          %v1435 = vsub.f32 1.0, %v1434
          %v1436 = vmul.f32 %v1433, %v1435
          %v1437 = vadd.f32 %v1433, %v1436
          %vm1438 = vweird.f32 %v1433
          %v1439 = vsel %vm1438, %v1433, %v1437
          %v1440 = vmul.f32 %v1418, %v1439
          %v1441 = vmul.f32 %v1420, %v1439
          %v1442 = vmul.f32 %v1422, %v1439
          %v1443 = vmul.f32 %v1424, %v1439
          %v1444 = vmul.f32 %v1426, %v1439
          %v1445 = vmul.f32 %v1428, %v1439
          %v1446 = vmul.f32 %v1430, %v1439
          %v1447 = vmul.f32 %v1432, %v1439
          %v1448 = vmul.f32 %v1405, %v1405
          %v1449 = vmul.f32 %v1406, %v1406
          %v1450 = vmul.f32 %v1407, %v1407
          %v1451 = vmul.f32 %v1408, %v1408
          %v1452 = vmul.f32 %v1409, %v1409
          %v1453 = vmul.f32 %v1410, %v1410
          %v1454 = vmul.f32 %v1411, %v1411
          %v1455 = vmul.f32 %v1412, %v1412
          %1456 = vadd.xlane.f32.xlu0 %v1448
          %v1457 = vpop.xlane.xlu0 %1456
          %1458 = vadd.xlane.f32.xlu0 %v1449
          %v1459 = vpop.xlane.xlu0 %1458
          %1460 = vadd.xlane.f32.xlu0 %v1450
          %v1461 = vpop.xlane.xlu0 %1460
          %1462 = vadd.xlane.f32.xlu0 %v1451
          %v1463 = vpop.xlane.xlu0 %1462
          %1464 = vadd.xlane.f32.xlu0 %v1452
          %v1465 = vpop.xlane.xlu0 %1464
          %1466 = vadd.xlane.f32.xlu0 %v1453
          %v1467 = vpop.xlane.xlu0 %1466
          %1468 = vadd.xlane.f32.xlu0 %v1454
          %v1469 = vpop.xlane.xlu0 %1468
          %1470 = vadd.xlane.f32.xlu0 %v1455
          %v1471 = vpop.xlane.xlu0 %1470
          %v1472 = vmul.f32 %v1457, %v1439
          %v1473 = vmul.f32 %v1459, %v1439
          %v1474 = vmul.f32 %v1461, %v1439
          %v1475 = vmul.f32 %v1463, %v1439
          %v1476 = vmul.f32 %v1465, %v1439
          %v1477 = vmul.f32 %v1467, %v1439
          %v1478 = vmul.f32 %v1469, %v1439
          %v1479 = vmul.f32 %v1471, %v1439
          %v1480 = vmul.f32 %v1440, %v1440
          %v1481 = vmul.f32 %v1441, %v1441
          %v1482 = vmul.f32 %v1442, %v1442
          %v1483 = vmul.f32 %v1443, %v1443
          %v1484 = vmul.f32 %v1444, %v1444
          %v1485 = vmul.f32 %v1445, %v1445
          %v1486 = vmul.f32 %v1446, %v1446
          %v1487 = vmul.f32 %v1447, %v1447
          %v1488 = vsub.f32 %v1472, %v1480
          %v1489 = vsub.f32 %v1473, %v1481
          %v1490 = vsub.f32 %v1474, %v1482
          %v1491 = vsub.f32 %v1475, %v1483
          %v1492 = vsub.f32 %v1476, %v1484
          %v1493 = vsub.f32 %v1477, %v1485
          %v1494 = vsub.f32 %v1478, %v1486
          %v1495 = vsub.f32 %v1479, %v1487
          %v1496 = vsub.f32 %v1405, %v1440
          %v1497 = vsub.f32 %v1406, %v1441
          %v1498 = vsub.f32 %v1407, %v1442
          %v1499 = vsub.f32 %v1408, %v1443
          %v1500 = vsub.f32 %v1409, %v1444
          %v1501 = vsub.f32 %v1410, %v1445
          %v1502 = vsub.f32 %v1411, %v1446
          %v1503 = vsub.f32 %v1412, %v1447
          %v1504 = vadd.f32 %v1488, 1e-05
          %v1505 = vadd.f32 %v1489, 1e-05
          %v1506 = vadd.f32 %v1490, 1e-05
          %v1507 = vadd.f32 %v1491, 1e-05
          %v1508 = vadd.f32 %v1492, 1e-05
          %v1509 = vadd.f32 %v1493, 1e-05
          %v1510 = vadd.f32 %v1494, 1e-05
          %v1511 = vadd.f32 %v1495, 1e-05
          %v1512 = vrsqrt.pop %v1504
          %v1513 = vmul.f32 %v1512, %v1504
          %v1514 = vmul.f32 %v1513, %v1512
          %v1515 = vmul.f32 0.5, %v1514
          %v1516 = vsub.f32 1.5, %v1515
          %v1517 = vmul.f32 %v1512, %v1516
          %vm1518 = vweird.f32 %v1504
          %vm1519 = vweird.f32 %v1512
          %vm1520 = vmor %vm1518, %vm1519
          %v1521 = vsel %vm1520, %v1512, %v1517
          %v1522 = vrsqrt.pop %v1505
          %v1523 = vmul.f32 %v1522, %v1505
          %v1524 = vmul.f32 %v1523, %v1522
          %v1525 = vmul.f32 0.5, %v1524
          %v1526 = vsub.f32 1.5, %v1525
          %v1527 = vmul.f32 %v1522, %v1526
          %vm1528 = vweird.f32 %v1505
          %vm1529 = vweird.f32 %v1522
          %vm1530 = vmor %vm1528, %vm1529
          %v1531 = vsel %vm1530, %v1522, %v1527
          %v1532 = vrsqrt.pop %v1506
          %v1533 = vmul.f32 %v1532, %v1506
          %v1534 = vmul.f32 %v1533, %v1532
          %v1535 = vmul.f32 0.5, %v1534
          %v1536 = vsub.f32 1.5, %v1535
          %v1537 = vmul.f32 %v1532, %v1536
          %vm1538 = vweird.f32 %v1506
          %vm1539 = vweird.f32 %v1532
          %vm1540 = vmor %vm1538, %vm1539
          %v1541 = vsel %vm1540, %v1532, %v1537
          %v1542 = vrsqrt.pop %v1507
          %v1543 = vmul.f32 %v1542, %v1507
          %v1544 = vmul.f32 %v1543, %v1542
          %v1545 = vmul.f32 0.5, %v1544
          %v1546 = vsub.f32 1.5, %v1545
          %v1547 = vmul.f32 %v1542, %v1546
          %vm1548 = vweird.f32 %v1507
          %vm1549 = vweird.f32 %v1542
          %vm1550 = vmor %vm1548, %vm1549
          %v1551 = vsel %vm1550, %v1542, %v1547
          %v1552 = vrsqrt.pop %v1508
          %v1553 = vmul.f32 %v1552, %v1508
          %v1554 = vmul.f32 %v1553, %v1552
          %v1555 = vmul.f32 0.5, %v1554
          %v1556 = vsub.f32 1.5, %v1555
          %v1557 = vmul.f32 %v1552, %v1556
          %vm1558 = vweird.f32 %v1508
          %vm1559 = vweird.f32 %v1552
          %vm1560 = vmor %vm1558, %vm1559
          %v1561 = vsel %vm1560, %v1552, %v1557
          %v1562 = vrsqrt.pop %v1509
          %v1563 = vmul.f32 %v1562, %v1509
          %v1564 = vmul.f32 %v1563, %v1562
          %v1565 = vmul.f32 0.5, %v1564
          %v1566 = vsub.f32 1.5, %v1565
          %v1567 = vmul.f32 %v1562, %v1566
          %vm1568 = vweird.f32 %v1509
          %vm1569 = vweird.f32 %v1562
          %vm1570 = vmor %vm1568, %vm1569
          %v1571 = vsel %vm1570, %v1562, %v1567
          %v1572 = vrsqrt.pop %v1510
          %v1573 = vmul.f32 %v1572, %v1510
          %v1574 = vmul.f32 %v1573, %v1572
          %v1575 = vmul.f32 0.5, %v1574
          %v1576 = vsub.f32 1.5, %v1575
          %v1577 = vmul.f32 %v1572, %v1576
          %vm1578 = vweird.f32 %v1510
          %vm1579 = vweird.f32 %v1572
          %vm1580 = vmor %vm1578, %vm1579
          %v1581 = vsel %vm1580, %v1572, %v1577
          %v1582 = vrsqrt.pop %v1511
          %v1583 = vmul.f32 %v1582, %v1511
          %v1584 = vmul.f32 %v1583, %v1582
          %v1585 = vmul.f32 0.5, %v1584
          %v1586 = vsub.f32 1.5, %v1585
          %v1587 = vmul.f32 %v1582, %v1586
          %vm1588 = vweird.f32 %v1511
          %vm1589 = vweird.f32 %v1582
          %vm1590 = vmor %vm1588, %vm1589
          %v1591 = vsel %vm1590, %v1582, %v1587
          %v1592 = vmul.f32 %v1496, %v1521
          %v1593 = vmul.f32 %v1497, %v1531
          %v1594 = vmul.f32 %v1498, %v1541
          %v1595 = vmul.f32 %v1499, %v1551
          %v1596 = vmul.f32 %v1500, %v1561
          %v1597 = vmul.f32 %v1501, %v1571
          %v1598 = vmul.f32 %v1502, %v1581
          %v1599 = vmul.f32 %v1503, %v1591
          %v1601 = vperm.slane %v1414, 0
          %v1603 = vmul.f32 %v1592, %v1601
          %v1604 = vmul.f32 %v1593, %v1601
          %v1605 = vmul.f32 %v1594, %v1601
          %v1606 = vmul.f32 %v1595, %v1601
          %v1607 = vmul.f32 %v1596, %v1601
          %v1608 = vmul.f32 %v1597, %v1601
          %v1609 = vmul.f32 %v1598, %v1601
          %v1610 = vmul.f32 %v1599, %v1601
          %v1612 = vperm.slane %v1416, 0
          %v1614 = vadd.f32 %v1603, %v1612
          %v1615 = vadd.f32 %v1604, %v1612
          %v1616 = vadd.f32 %v1605, %v1612
          %v1617 = vadd.f32 %v1606, %v1612
          %v1618 = vadd.f32 %v1607, %v1612
          %v1619 = vadd.f32 %v1608, %v1612
          %v1620 = vadd.f32 %v1609, %v1612
          %v1621 = vadd.f32 %v1610, %v1612
          %s1622 = smul.u32 %s1400, 48
          %s1623 = smul.addr %s1622, 4
          %s1624 = scalar_lea.vmem [#allocation2], %s1623
          %v1625 = vld [vmem:[%s1624] sm:$0xff]
          %v1626 = vld [vmem:[%s1624 + $0x8] sm:$0xf]
          %v1627 = vld [vmem:[%s1624 + $0xc] sm:$0xff]
          %v1628 = vld [vmem:[%s1624 + $0x14] sm:$0xf]
          %v1629 = vld [vmem:[%s1624 + $0x18] sm:$0xff]
          %v1630 = vld [vmem:[%s1624 + $0x20] sm:$0xf]
          %v1631 = vld [vmem:[%s1624 + $0x24] sm:$0xff]
          %v1632 = vld [vmem:[%s1624 + $0x2c] sm:$0xf]
          %v1633 = vld [vmem:[%s1624 + $0x30] sm:$0xff]
          %v1634 = vld [vmem:[%s1624 + $0x38] sm:$0xf]
          %v1635 = vld [vmem:[%s1624 + $0x3c] sm:$0xff]
          %v1636 = vld [vmem:[%s1624 + $0x44] sm:$0xf]
          %v1637 = vld [vmem:[%s1624 + $0x48] sm:$0xff]
          %v1638 = vld [vmem:[%s1624 + $0x50] sm:$0xf]
          %v1639 = vld [vmem:[%s1624 + $0x54] sm:$0xff]
          %v1640 = vld [vmem:[%s1624 + $0x5c] sm:$0xf]
          %v1641 = vld [vmem:[%s1624 + $0x60] sm:$0xff]
          %v1642 = vld [vmem:[%s1624 + $0x68] sm:$0xf]
          %v1643 = vld [vmem:[%s1624 + $0x6c] sm:$0xff]
          %v1644 = vld [vmem:[%s1624 + $0x74] sm:$0xf]
          %v1645 = vld [vmem:[%s1624 + $0x78] sm:$0xff]
          %v1646 = vld [vmem:[%s1624 + $0x80] sm:$0xf]
          %v1647 = vld [vmem:[%s1624 + $0x84] sm:$0xff]
          %v1648 = vld [vmem:[%s1624 + $0x8c] sm:$0xf]
          %v1649 = vld [vmem:[%s1624 + $0x90] sm:$0xff]
          %v1650 = vld [vmem:[%s1624 + $0x98] sm:$0xf]
          %v1651 = vld [vmem:[%s1624 + $0x9c] sm:$0xff]
          %v1652 = vld [vmem:[%s1624 + $0xa4] sm:$0xf]
          %v1653 = vld [vmem:[%s1624 + $0xa8] sm:$0xff]
          %v1654 = vld [vmem:[%s1624 + $0xb0] sm:$0xf]
          %v1655 = vld [vmem:[%s1624 + $0xb4] sm:$0xff]
          %v1656 = vld [vmem:[%s1624 + $0xbc] sm:$0xf]
          %v1657 = vpack.c.bf16 %v1615, %v1614
          %v1658 = vpack.c.bf16 %v1617, %v1616
          %v1659 = vpack.c.bf16 %v1619, %v1618
          %v1660 = vpack.c.bf16 %v1621, %v1620
          %v1693 = vunpack.c.l.b16 %v1625
          %v1694 = vunpack.c.h.b16 %v1625
          %v1695 = vunpack.c.l.b16 %v1626
          %v1696 = vunpack.c.l.b16 %v1627
          %v1697 = vunpack.c.h.b16 %v1627
          %v1698 = vunpack.c.l.b16 %v1628
          %v1699 = vunpack.c.l.b16 %v1629
          %v1700 = vunpack.c.h.b16 %v1629
          %v1701 = vunpack.c.l.b16 %v1630
          %v1702 = vunpack.c.l.b16 %v1631
          %v1703 = vunpack.c.h.b16 %v1631
          %v1704 = vunpack.c.l.b16 %v1632
          %v1705 = vunpack.c.l.b16 %v1633
          %v1706 = vunpack.c.h.b16 %v1633
          %v1707 = vunpack.c.l.b16 %v1634
          %v1708 = vunpack.c.l.b16 %v1635
          %v1709 = vunpack.c.h.b16 %v1635
          %v1710 = vunpack.c.l.b16 %v1636
          %v1711 = vunpack.c.l.b16 %v1637
          %v1712 = vunpack.c.h.b16 %v1637
          %v1713 = vunpack.c.l.b16 %v1638
          %v1714 = vunpack.c.l.b16 %v1639
          %v1715 = vunpack.c.h.b16 %v1639
          %v1716 = vunpack.c.l.b16 %v1640
          %v1717 = vunpack.c.l.b16 %v1641
          %v1718 = vunpack.c.h.b16 %v1641
          %v1719 = vunpack.c.l.b16 %v1642
          %v1720 = vunpack.c.l.b16 %v1643
          %v1721 = vunpack.c.h.b16 %v1643
          %v1722 = vunpack.c.l.b16 %v1644
          %v1723 = vunpack.c.l.b16 %v1645
          %v1724 = vunpack.c.h.b16 %v1645
          %v1725 = vunpack.c.l.b16 %v1646
          %v1726 = vunpack.c.l.b16 %v1647
          %v1727 = vunpack.c.h.b16 %v1647
          %v1728 = vunpack.c.l.b16 %v1648
          %v1729 = vunpack.c.l.b16 %v1649
          %v1730 = vunpack.c.h.b16 %v1649
          %v1731 = vunpack.c.l.b16 %v1650
          %v1732 = vunpack.c.l.b16 %v1651
          %v1733 = vunpack.c.h.b16 %v1651
          %v1734 = vunpack.c.l.b16 %v1652
          %v1735 = vunpack.c.l.b16 %v1653
          %v1736 = vunpack.c.h.b16 %v1653
          %v1737 = vunpack.c.l.b16 %v1654
          %v1738 = vunpack.c.l.b16 %v1655
          %v1739 = vunpack.c.h.b16 %v1655
          %v1740 = vunpack.c.l.b16 %v1656
          %v1741 = vpack.c.b16 %v1696, %v1693
          %v1742 = vpack.c.b16 %v1697, %v1694
          %v1743 = vpack.c.b16 %v1698, %v1695
          %v1744 = vpack.c.b16 %v1702, %v1699
          %v1745 = vpack.c.b16 %v1703, %v1700
          %v1746 = vpack.c.b16 %v1704, %v1701
          %v1747 = vpack.c.b16 %v1708, %v1705
          %v1748 = vpack.c.b16 %v1709, %v1706
          %v1749 = vpack.c.b16 %v1710, %v1707
          %v1750 = vpack.c.b16 %v1714, %v1711
          %v1751 = vpack.c.b16 %v1715, %v1712
          %v1752 = vpack.c.b16 %v1716, %v1713
          %v1753 = vpack.c.b16 %v1720, %v1717
          %v1754 = vpack.c.b16 %v1721, %v1718
          %v1755 = vpack.c.b16 %v1722, %v1719
          %v1756 = vpack.c.b16 %v1726, %v1723
          %v1757 = vpack.c.b16 %v1727, %v1724
          %v1758 = vpack.c.b16 %v1728, %v1725
          %v1759 = vpack.c.b16 %v1732, %v1729
          %v1760 = vpack.c.b16 %v1733, %v1730
          %v1761 = vpack.c.b16 %v1734, %v1731
          %v1762 = vpack.c.b16 %v1738, %v1735
          %v1763 = vpack.c.b16 %v1739, %v1736
          %v1764 = vpack.c.b16 %v1740, %v1737
          %1789 = vmatpush.bf16.msra.mxu0 %v1762
          %1790 = vmatpush.bf16.msra.mxu0 %v1759
          %1791 = vmatpush.bf16.msra.mxu0 %v1756
          %1792 = vmatpush.bf16.msra.mxu0 %v1753
          %1793 = vmatpush.bf16.msra.mxu0 %v1750
          %1794 = vmatpush.bf16.msra.mxu0 %v1747
          %1795 = vmatpush.bf16.msra.mxu0 %v1744
          %1796 = vmatpush.bf16.msra.mxu0 %v1741
          %1797 = vmatmul.bf16.gmra.mxu0 %v1657
          %v1798 = vpop.f32.mrf.mxu0
          %v1799 = vadd.f32 0.0, %v1798
          %v1800 = vpop.f32.mrf.mxu0
          %v1801 = vadd.f32 0.0, %v1800
          %1802 = vmatmul.bf16.gmra.mxu0 %v1658
          %v1803 = vpop.f32.mrf.mxu0
          %v1804 = vadd.f32 0.0, %v1803
          %v1805 = vpop.f32.mrf.mxu0
          %v1806 = vadd.f32 0.0, %v1805
          %1807 = vmatmul.bf16.gmra.mxu0 %v1659
          %v1808 = vpop.f32.mrf.mxu0
          %v1809 = vadd.f32 0.0, %v1808
          %v1810 = vpop.f32.mrf.mxu0
          %v1811 = vadd.f32 0.0, %v1810
          %1812 = vmatmul.bf16.gmra.mxu0 %v1660
          %v1813 = vpop.f32.mrf.mxu0
          %v1814 = vadd.f32 0.0, %v1813
          %v1815 = vpop.f32.mrf.mxu0
          %v1816 = vadd.f32 0.0, %v1815
          %1817 = vdwg.mxu0
          %1818 = vmatpush.bf16.msra.mxu0 %v1763
          %1819 = vmatpush.bf16.msra.mxu0 %v1760
          %1820 = vmatpush.bf16.msra.mxu0 %v1757
          %1821 = vmatpush.bf16.msra.mxu0 %v1754
          %1822 = vmatpush.bf16.msra.mxu0 %v1751
          %1823 = vmatpush.bf16.msra.mxu0 %v1748
          %1824 = vmatpush.bf16.msra.mxu0 %v1745
          %1825 = vmatpush.bf16.msra.mxu0 %v1742
          %1826 = vmatmul.bf16.gmra.mxu0 %v1657
          %v1827 = vpop.f32.mrf.mxu0
          %v1828 = vadd.f32 0.0, %v1827
          %v1829 = vpop.f32.mrf.mxu0
          %v1830 = vadd.f32 0.0, %v1829
          %1831 = vmatmul.bf16.gmra.mxu0 %v1658
          %v1832 = vpop.f32.mrf.mxu0
          %v1833 = vadd.f32 0.0, %v1832
          %v1834 = vpop.f32.mrf.mxu0
          %v1835 = vadd.f32 0.0, %v1834
          %1836 = vmatmul.bf16.gmra.mxu0 %v1659
          %v1837 = vpop.f32.mrf.mxu0
          %v1838 = vadd.f32 0.0, %v1837
          %v1839 = vpop.f32.mrf.mxu0
          %v1840 = vadd.f32 0.0, %v1839
          %1841 = vmatmul.bf16.gmra.mxu0 %v1660
          %v1842 = vpop.f32.mrf.mxu0
          %v1843 = vadd.f32 0.0, %v1842
          %v1844 = vpop.f32.mrf.mxu0
          %v1845 = vadd.f32 0.0, %v1844
          %1846 = vdwg.mxu0
          %1847 = vmatpush.bf16.msra.mxu0 %v1764
          %1848 = vmatpush.bf16.msra.mxu0 %v1761
          %1849 = vmatpush.bf16.msra.mxu0 %v1758
          %1850 = vmatpush.bf16.msra.mxu0 %v1755
          %1851 = vmatpush.bf16.msra.mxu0 %v1752
          %1852 = vmatpush.bf16.msra.mxu0 %v1749
          %1853 = vmatpush.bf16.msra.mxu0 %v1746
          %1854 = vmatpush.bf16.msra.mxu0 %v1743
          %1855 = vmatmul.bf16.gmra.mxu0 %v1657
          %v1856 = vpop.f32.mrf.mxu0
          %v1857 = vadd.f32 0.0, %v1856
          %v1858 = vpop.f32.mrf.mxu0
          %v1859 = vadd.f32 0.0, %v1858
          %1860 = vmatmul.bf16.gmra.mxu0 %v1658
          %v1861 = vpop.f32.mrf.mxu0
          %v1862 = vadd.f32 0.0, %v1861
          %v1863 = vpop.f32.mrf.mxu0
          %v1864 = vadd.f32 0.0, %v1863
          %1865 = vmatmul.bf16.gmra.mxu0 %v1659
          %v1866 = vpop.f32.mrf.mxu0
          %v1867 = vadd.f32 0.0, %v1866
          %v1868 = vpop.f32.mrf.mxu0
          %v1869 = vadd.f32 0.0, %v1868
          %1870 = vmatmul.bf16.gmra.mxu0 %v1660
          %v1871 = vpop.f32.mrf.mxu0
          %v1872 = vadd.f32 0.0, %v1871
          %v1873 = vpop.f32.mrf.mxu0
          %v1874 = vadd.f32 0.0, %v1873
          %1875 = vdwg.mxu0
          %1876 = vadd.xlane.f32.xlu0 %v1828
          %v1877 = vpop.xlane.xlu0 %1876
          %1878 = vadd.xlane.f32.xlu0 %v1830
          %v1879 = vpop.xlane.xlu0 %1878
          %1880 = vadd.xlane.f32.xlu0 %v1833
          %v1881 = vpop.xlane.xlu0 %1880
          %1882 = vadd.xlane.f32.xlu0 %v1835
          %v1883 = vpop.xlane.xlu0 %1882
          %1884 = vadd.xlane.f32.xlu0 %v1838
          %v1885 = vpop.xlane.xlu0 %1884
          %1886 = vadd.xlane.f32.xlu0 %v1840
          %v1887 = vpop.xlane.xlu0 %1886
          %1888 = vadd.xlane.f32.xlu0 %v1843
          %v1889 = vpop.xlane.xlu0 %1888
          %1890 = vadd.xlane.f32.xlu0 %v1845
          %v1891 = vpop.xlane.xlu0 %1890
          %v1892 = vmul.f32 %v1877, %v1439
          %v1893 = vmul.f32 %v1879, %v1439
          %v1894 = vmul.f32 %v1881, %v1439
          %v1895 = vmul.f32 %v1883, %v1439
          %v1896 = vmul.f32 %v1885, %v1439
          %v1897 = vmul.f32 %v1887, %v1439
          %v1898 = vmul.f32 %v1889, %v1439
          %v1899 = vmul.f32 %v1891, %v1439
          %v1900 = vmul.f32 %v1828, %v1828
          %v1901 = vmul.f32 %v1830, %v1830
          %v1902 = vmul.f32 %v1833, %v1833
          %v1903 = vmul.f32 %v1835, %v1835
          %v1904 = vmul.f32 %v1838, %v1838
          %v1905 = vmul.f32 %v1840, %v1840
          %v1906 = vmul.f32 %v1843, %v1843
          %v1907 = vmul.f32 %v1845, %v1845
          %1908 = vadd.xlane.f32.xlu0 %v1900
          %v1909 = vpop.xlane.xlu0 %1908
          %1910 = vadd.xlane.f32.xlu0 %v1901
          %v1911 = vpop.xlane.xlu0 %1910
          %1912 = vadd.xlane.f32.xlu0 %v1902
          %v1913 = vpop.xlane.xlu0 %1912
          %1914 = vadd.xlane.f32.xlu0 %v1903
          %v1915 = vpop.xlane.xlu0 %1914
          %1916 = vadd.xlane.f32.xlu0 %v1904
          %v1917 = vpop.xlane.xlu0 %1916
          %1918 = vadd.xlane.f32.xlu0 %v1905
          %v1919 = vpop.xlane.xlu0 %1918
          %1920 = vadd.xlane.f32.xlu0 %v1906
          %v1921 = vpop.xlane.xlu0 %1920
          %1922 = vadd.xlane.f32.xlu0 %v1907
          %v1923 = vpop.xlane.xlu0 %1922
          %v1924 = vmul.f32 %v1909, %v1439
          %v1925 = vmul.f32 %v1911, %v1439
          %v1926 = vmul.f32 %v1913, %v1439
          %v1927 = vmul.f32 %v1915, %v1439
          %v1928 = vmul.f32 %v1917, %v1439
          %v1929 = vmul.f32 %v1919, %v1439
          %v1930 = vmul.f32 %v1921, %v1439
          %v1931 = vmul.f32 %v1923, %v1439
          %v1932 = vmul.f32 %v1892, %v1892
          %v1933 = vmul.f32 %v1893, %v1893
          %v1934 = vmul.f32 %v1894, %v1894
          %v1935 = vmul.f32 %v1895, %v1895
          %v1936 = vmul.f32 %v1896, %v1896
          %v1937 = vmul.f32 %v1897, %v1897
          %v1938 = vmul.f32 %v1898, %v1898
          %v1939 = vmul.f32 %v1899, %v1899
          %v1940 = vsub.f32 %v1924, %v1932
          %v1941 = vsub.f32 %v1925, %v1933
          %v1942 = vsub.f32 %v1926, %v1934
          %v1943 = vsub.f32 %v1927, %v1935
          %v1944 = vsub.f32 %v1928, %v1936
          %v1945 = vsub.f32 %v1929, %v1937
          %v1946 = vsub.f32 %v1930, %v1938
          %v1947 = vsub.f32 %v1931, %v1939
          %v1948 = vsub.f32 %v1828, %v1892
          %v1949 = vsub.f32 %v1830, %v1893
          %v1950 = vsub.f32 %v1833, %v1894
          %v1951 = vsub.f32 %v1835, %v1895
          %v1952 = vsub.f32 %v1838, %v1896
          %v1953 = vsub.f32 %v1840, %v1897
          %v1954 = vsub.f32 %v1843, %v1898
          %v1955 = vsub.f32 %v1845, %v1899
          %v1956 = vadd.f32 %v1940, 1e-05
          %v1957 = vadd.f32 %v1941, 1e-05
          %v1958 = vadd.f32 %v1942, 1e-05
          %v1959 = vadd.f32 %v1943, 1e-05
          %v1960 = vadd.f32 %v1944, 1e-05
          %v1961 = vadd.f32 %v1945, 1e-05
          %v1962 = vadd.f32 %v1946, 1e-05
          %v1963 = vadd.f32 %v1947, 1e-05
          %v1964 = vrsqrt.pop %v1956
          %v1965 = vmul.f32 %v1964, %v1956
          %v1966 = vmul.f32 %v1965, %v1964
          %v1967 = vmul.f32 0.5, %v1966
          %v1968 = vsub.f32 1.5, %v1967
          %v1969 = vmul.f32 %v1964, %v1968
          %vm1970 = vweird.f32 %v1956
          %vm1971 = vweird.f32 %v1964
          %vm1972 = vmor %vm1970, %vm1971
          %v1973 = vsel %vm1972, %v1964, %v1969
          %v1974 = vrsqrt.pop %v1957
          %v1975 = vmul.f32 %v1974, %v1957
          %v1976 = vmul.f32 %v1975, %v1974
          %v1977 = vmul.f32 0.5, %v1976
          %v1978 = vsub.f32 1.5, %v1977
          %v1979 = vmul.f32 %v1974, %v1978
          %vm1980 = vweird.f32 %v1957
          %vm1981 = vweird.f32 %v1974
          %vm1982 = vmor %vm1980, %vm1981
          %v1983 = vsel %vm1982, %v1974, %v1979
          %v1984 = vrsqrt.pop %v1958
          %v1985 = vmul.f32 %v1984, %v1958
          %v1986 = vmul.f32 %v1985, %v1984
          %v1987 = vmul.f32 0.5, %v1986
          %v1988 = vsub.f32 1.5, %v1987
          %v1989 = vmul.f32 %v1984, %v1988
          %vm1990 = vweird.f32 %v1958
          %vm1991 = vweird.f32 %v1984
          %vm1992 = vmor %vm1990, %vm1991
          %v1993 = vsel %vm1992, %v1984, %v1989
          %v1994 = vrsqrt.pop %v1959
          %v1995 = vmul.f32 %v1994, %v1959
          %v1996 = vmul.f32 %v1995, %v1994
          %v1997 = vmul.f32 0.5, %v1996
          %v1998 = vsub.f32 1.5, %v1997
          %v1999 = vmul.f32 %v1994, %v1998
          %vm2000 = vweird.f32 %v1959
          %vm2001 = vweird.f32 %v1994
          %vm2002 = vmor %vm2000, %vm2001
          %v2003 = vsel %vm2002, %v1994, %v1999
          %v2004 = vrsqrt.pop %v1960
          %v2005 = vmul.f32 %v2004, %v1960
          %v2006 = vmul.f32 %v2005, %v2004
          %v2007 = vmul.f32 0.5, %v2006
          %v2008 = vsub.f32 1.5, %v2007
          %v2009 = vmul.f32 %v2004, %v2008
          %vm2010 = vweird.f32 %v1960
          %vm2011 = vweird.f32 %v2004
          %vm2012 = vmor %vm2010, %vm2011
          %v2013 = vsel %vm2012, %v2004, %v2009
          %v2014 = vrsqrt.pop %v1961
          %v2015 = vmul.f32 %v2014, %v1961
          %v2016 = vmul.f32 %v2015, %v2014
          %v2017 = vmul.f32 0.5, %v2016
          %v2018 = vsub.f32 1.5, %v2017
          %v2019 = vmul.f32 %v2014, %v2018
          %vm2020 = vweird.f32 %v1961
          %vm2021 = vweird.f32 %v2014
          %vm2022 = vmor %vm2020, %vm2021
          %v2023 = vsel %vm2022, %v2014, %v2019
          %v2024 = vrsqrt.pop %v1962
          %v2025 = vmul.f32 %v2024, %v1962
          %v2026 = vmul.f32 %v2025, %v2024
          %v2027 = vmul.f32 0.5, %v2026
          %v2028 = vsub.f32 1.5, %v2027
          %v2029 = vmul.f32 %v2024, %v2028
          %vm2030 = vweird.f32 %v1962
          %vm2031 = vweird.f32 %v2024
          %vm2032 = vmor %vm2030, %vm2031
          %v2033 = vsel %vm2032, %v2024, %v2029
          %v2034 = vrsqrt.pop %v1963
          %v2035 = vmul.f32 %v2034, %v1963
          %v2036 = vmul.f32 %v2035, %v2034
          %v2037 = vmul.f32 0.5, %v2036
          %v2038 = vsub.f32 1.5, %v2037
          %v2039 = vmul.f32 %v2034, %v2038
          %vm2040 = vweird.f32 %v1963
          %vm2041 = vweird.f32 %v2034
          %vm2042 = vmor %vm2040, %vm2041
          %v2043 = vsel %vm2042, %v2034, %v2039
          %v2044 = vmul.f32 %v1948, %v1973
          %v2045 = vmul.f32 %v1949, %v1983
          %v2046 = vmul.f32 %v1950, %v1993
          %v2047 = vmul.f32 %v1951, %v2003
          %v2048 = vmul.f32 %v1952, %v2013
          %v2049 = vmul.f32 %v1953, %v2023
          %v2050 = vmul.f32 %v1954, %v2033
          %v2051 = vmul.f32 %v1955, %v2043
          %2052 = vadd.xlane.f32.xlu0 %v1857
          %v2053 = vpop.xlane.xlu0 %2052
          %2054 = vadd.xlane.f32.xlu0 %v1859
          %v2055 = vpop.xlane.xlu0 %2054
          %2056 = vadd.xlane.f32.xlu0 %v1862
          %v2057 = vpop.xlane.xlu0 %2056
          %2058 = vadd.xlane.f32.xlu0 %v1864
          %v2059 = vpop.xlane.xlu0 %2058
          %2060 = vadd.xlane.f32.xlu0 %v1867
          %v2061 = vpop.xlane.xlu0 %2060
          %2062 = vadd.xlane.f32.xlu0 %v1869
          %v2063 = vpop.xlane.xlu0 %2062
          %2064 = vadd.xlane.f32.xlu0 %v1872
          %v2065 = vpop.xlane.xlu0 %2064
          %2066 = vadd.xlane.f32.xlu0 %v1874
          %v2067 = vpop.xlane.xlu0 %2066
          %v2068 = vmul.f32 %v2053, %v1439
          %v2069 = vmul.f32 %v2055, %v1439
          %v2070 = vmul.f32 %v2057, %v1439
          %v2071 = vmul.f32 %v2059, %v1439
          %v2072 = vmul.f32 %v2061, %v1439
          %v2073 = vmul.f32 %v2063, %v1439
          %v2074 = vmul.f32 %v2065, %v1439
          %v2075 = vmul.f32 %v2067, %v1439
          %v2076 = vmul.f32 %v1857, %v1857
          %v2077 = vmul.f32 %v1859, %v1859
          %v2078 = vmul.f32 %v1862, %v1862
          %v2079 = vmul.f32 %v1864, %v1864
          %v2080 = vmul.f32 %v1867, %v1867
          %v2081 = vmul.f32 %v1869, %v1869
          %v2082 = vmul.f32 %v1872, %v1872
          %v2083 = vmul.f32 %v1874, %v1874
          %2084 = vadd.xlane.f32.xlu0 %v2076
          %v2085 = vpop.xlane.xlu0 %2084
          %2086 = vadd.xlane.f32.xlu0 %v2077
          %v2087 = vpop.xlane.xlu0 %2086
          %2088 = vadd.xlane.f32.xlu0 %v2078
          %v2089 = vpop.xlane.xlu0 %2088
          %2090 = vadd.xlane.f32.xlu0 %v2079
          %v2091 = vpop.xlane.xlu0 %2090
          %2092 = vadd.xlane.f32.xlu0 %v2080
          %v2093 = vpop.xlane.xlu0 %2092
          %2094 = vadd.xlane.f32.xlu0 %v2081
          %v2095 = vpop.xlane.xlu0 %2094
          %2096 = vadd.xlane.f32.xlu0 %v2082
          %v2097 = vpop.xlane.xlu0 %2096
          %2098 = vadd.xlane.f32.xlu0 %v2083
          %v2099 = vpop.xlane.xlu0 %2098
          %v2100 = vmul.f32 %v2085, %v1439
          %v2101 = vmul.f32 %v2087, %v1439
          %v2102 = vmul.f32 %v2089, %v1439
          %v2103 = vmul.f32 %v2091, %v1439
          %v2104 = vmul.f32 %v2093, %v1439
          %v2105 = vmul.f32 %v2095, %v1439
          %v2106 = vmul.f32 %v2097, %v1439
          %v2107 = vmul.f32 %v2099, %v1439
          %v2108 = vmul.f32 %v2068, %v2068
          %v2109 = vmul.f32 %v2069, %v2069
          %v2110 = vmul.f32 %v2070, %v2070
          %v2111 = vmul.f32 %v2071, %v2071
          %v2112 = vmul.f32 %v2072, %v2072
          %v2113 = vmul.f32 %v2073, %v2073
          %v2114 = vmul.f32 %v2074, %v2074
          %v2115 = vmul.f32 %v2075, %v2075
          %v2116 = vsub.f32 %v2100, %v2108
          %v2117 = vsub.f32 %v2101, %v2109
          %v2118 = vsub.f32 %v2102, %v2110
          %v2119 = vsub.f32 %v2103, %v2111
          %v2120 = vsub.f32 %v2104, %v2112
          %v2121 = vsub.f32 %v2105, %v2113
          %v2122 = vsub.f32 %v2106, %v2114
          %v2123 = vsub.f32 %v2107, %v2115
          %v2124 = vsub.f32 %v1857, %v2068
          %v2125 = vsub.f32 %v1859, %v2069
          %v2126 = vsub.f32 %v1862, %v2070
          %v2127 = vsub.f32 %v1864, %v2071
          %v2128 = vsub.f32 %v1867, %v2072
          %v2129 = vsub.f32 %v1869, %v2073
          %v2130 = vsub.f32 %v1872, %v2074
          %v2131 = vsub.f32 %v1874, %v2075
          %v2132 = vadd.f32 %v2116, 1e-05
          %v2133 = vadd.f32 %v2117, 1e-05
          %v2134 = vadd.f32 %v2118, 1e-05
          %v2135 = vadd.f32 %v2119, 1e-05
          %v2136 = vadd.f32 %v2120, 1e-05
          %v2137 = vadd.f32 %v2121, 1e-05
          %v2138 = vadd.f32 %v2122, 1e-05
          %v2139 = vadd.f32 %v2123, 1e-05
          %v2140 = vrsqrt.pop %v2132
          %v2141 = vmul.f32 %v2140, %v2132
          %v2142 = vmul.f32 %v2141, %v2140
          %v2143 = vmul.f32 0.5, %v2142
          %v2144 = vsub.f32 1.5, %v2143
          %v2145 = vmul.f32 %v2140, %v2144
          %vm2146 = vweird.f32 %v2132
          %vm2147 = vweird.f32 %v2140
          %vm2148 = vmor %vm2146, %vm2147
          %v2149 = vsel %vm2148, %v2140, %v2145
          %v2150 = vrsqrt.pop %v2133
          %v2151 = vmul.f32 %v2150, %v2133
          %v2152 = vmul.f32 %v2151, %v2150
          %v2153 = vmul.f32 0.5, %v2152
          %v2154 = vsub.f32 1.5, %v2153
          %v2155 = vmul.f32 %v2150, %v2154
          %vm2156 = vweird.f32 %v2133
          %vm2157 = vweird.f32 %v2150
          %vm2158 = vmor %vm2156, %vm2157
          %v2159 = vsel %vm2158, %v2150, %v2155
          %v2160 = vrsqrt.pop %v2134
          %v2161 = vmul.f32 %v2160, %v2134
          %v2162 = vmul.f32 %v2161, %v2160
          %v2163 = vmul.f32 0.5, %v2162
          %v2164 = vsub.f32 1.5, %v2163
          %v2165 = vmul.f32 %v2160, %v2164
          %vm2166 = vweird.f32 %v2134
          %vm2167 = vweird.f32 %v2160
          %vm2168 = vmor %vm2166, %vm2167
          %v2169 = vsel %vm2168, %v2160, %v2165
          %v2170 = vrsqrt.pop %v2135
          %v2171 = vmul.f32 %v2170, %v2135
          %v2172 = vmul.f32 %v2171, %v2170
          %v2173 = vmul.f32 0.5, %v2172
          %v2174 = vsub.f32 1.5, %v2173
          %v2175 = vmul.f32 %v2170, %v2174
          %vm2176 = vweird.f32 %v2135
          %vm2177 = vweird.f32 %v2170
          %vm2178 = vmor %vm2176, %vm2177
          %v2179 = vsel %vm2178, %v2170, %v2175
          %v2180 = vrsqrt.pop %v2136
          %v2181 = vmul.f32 %v2180, %v2136
          %v2182 = vmul.f32 %v2181, %v2180
          %v2183 = vmul.f32 0.5, %v2182
          %v2184 = vsub.f32 1.5, %v2183
          %v2185 = vmul.f32 %v2180, %v2184
          %vm2186 = vweird.f32 %v2136
          %vm2187 = vweird.f32 %v2180
          %vm2188 = vmor %vm2186, %vm2187
          %v2189 = vsel %vm2188, %v2180, %v2185
          %v2190 = vrsqrt.pop %v2137
          %v2191 = vmul.f32 %v2190, %v2137
          %v2192 = vmul.f32 %v2191, %v2190
          %v2193 = vmul.f32 0.5, %v2192
          %v2194 = vsub.f32 1.5, %v2193
          %v2195 = vmul.f32 %v2190, %v2194
          %vm2196 = vweird.f32 %v2137
          %vm2197 = vweird.f32 %v2190
          %vm2198 = vmor %vm2196, %vm2197
          %v2199 = vsel %vm2198, %v2190, %v2195
          %v2200 = vrsqrt.pop %v2138
          %v2201 = vmul.f32 %v2200, %v2138
          %v2202 = vmul.f32 %v2201, %v2200
          %v2203 = vmul.f32 0.5, %v2202
          %v2204 = vsub.f32 1.5, %v2203
          %v2205 = vmul.f32 %v2200, %v2204
          %vm2206 = vweird.f32 %v2138
          %vm2207 = vweird.f32 %v2200
          %vm2208 = vmor %vm2206, %vm2207
          %v2209 = vsel %vm2208, %v2200, %v2205
          %v2210 = vrsqrt.pop %v2139
          %v2211 = vmul.f32 %v2210, %v2139
          %v2212 = vmul.f32 %v2211, %v2210
          %v2213 = vmul.f32 0.5, %v2212
          %v2214 = vsub.f32 1.5, %v2213
          %v2215 = vmul.f32 %v2210, %v2214
          %vm2216 = vweird.f32 %v2139
          %vm2217 = vweird.f32 %v2210
          %vm2218 = vmor %vm2216, %vm2217
          %v2219 = vsel %vm2218, %v2210, %v2215
          %v2220 = vmul.f32 %v2124, %v2149
          %v2221 = vmul.f32 %v2125, %v2159
          %v2222 = vmul.f32 %v2126, %v2169
          %v2223 = vmul.f32 %v2127, %v2179
          %v2224 = vmul.f32 %v2128, %v2189
          %v2225 = vmul.f32 %v2129, %v2199
          %v2226 = vmul.f32 %v2130, %v2209
          %v2227 = vmul.f32 %v2131, %v2219
          %v2228 = vpack.c.bf16 %v2045, %v2044
          %v2229 = vpack.c.bf16 %v2047, %v2046
          %v2230 = vpack.c.bf16 %v2049, %v2048
          %v2231 = vpack.c.bf16 %v2051, %v2050
          %v2232 = vpack.c.bf16 %v2221, %v2220
          %v2233 = vpack.c.bf16 %v2223, %v2222
          %v2234 = vpack.c.bf16 %v2225, %v2224
          %v2235 = vpack.c.bf16 %v2227, %v2226
          %2236 = vxpose.xlu0.c.b16.start [1/8] %v2228, 128
          %2237 = vxpose.xlu0.c.b16.cont [2/8] %v2229, 128
          %2238 = vxpose.xlu0.c.b16.cont [3/8] %v2230, 128
          %2239 = vxpose.xlu0.c.b16.cont [4/8] %v2231, 128
          %2240 = vxpose.xlu0.c.b16.cont [5/8] 0, 128
          %2241 = vxpose.xlu0.c.b16.cont [6/8] 0, 128
          %2242 = vxpose.xlu0.c.b16.cont [7/8] 0, 128
          %2243 = vxpose.xlu0.c.b16.end [8/8] 0, 128
          %v2244 = vpop.trf.xlu0
          %v2245 = vpop.trf.xlu0
          %v2246 = vpop.trf.xlu0
          %v2247 = vpop.trf.xlu0
          %v2248 = vpop.trf.xlu0
          %v2249 = vpop.trf.xlu0
          %v2250 = vpop.trf.xlu0
          %v2251 = vpop.trf.xlu0
          %vm2252 = vcmask 523264
          %v2254 = vsel %vm2252, %v2244, 0
          %v2257 = vsel %vm2252, %v2245, 0
          %v2260 = vsel %vm2252, %v2246, 0
          %v2263 = vsel %vm2252, %v2247, 0
          %v2266 = vsel %vm2252, %v2248, 0
          %v2269 = vsel %vm2252, %v2249, 0
          %v2272 = vsel %vm2252, %v2250, 0
          %v2275 = vsel %vm2252, %v2251, 0
          %2277 = vmatpush.bf16.msra.mxu0 0
          %2278 = vmatpush.bf16.msra.mxu0 0
          %2279 = vmatpush.bf16.msra.mxu0 0
          %2280 = vmatpush.bf16.msra.mxu0 0
          %2281 = vmatpush.bf16.msra.mxu0 %v2235
          %2282 = vmatpush.bf16.msra.mxu0 %v2234
          %2283 = vmatpush.bf16.msra.mxu0 %v2233
          %2284 = vmatpush.bf16.msra.mxu0 %v2232
          %2285 = vmatmul.bf16.gmra.mxu0 %v2254
          %v2286 = vpop.f32.mrf.mxu0
          %v2287 = vadd.f32 0.0, %v2286
          %v2288 = vpop.f32.mrf.mxu0
          %v2289 = vadd.f32 0.0, %v2288
          %2290 = vmatmul.bf16.gmra.mxu0 %v2257
          %v2291 = vpop.f32.mrf.mxu0
          %v2292 = vadd.f32 0.0, %v2291
          %v2293 = vpop.f32.mrf.mxu0
          %v2294 = vadd.f32 0.0, %v2293
          %2295 = vmatmul.bf16.gmra.mxu0 %v2260
          %v2296 = vpop.f32.mrf.mxu0
          %v2297 = vadd.f32 0.0, %v2296
          %v2298 = vpop.f32.mrf.mxu0
          %v2299 = vadd.f32 0.0, %v2298
          %2300 = vmatmul.bf16.gmra.mxu0 %v2263
          %v2301 = vpop.f32.mrf.mxu0
          %v2302 = vadd.f32 0.0, %v2301
          %v2303 = vpop.f32.mrf.mxu0
          %v2304 = vadd.f32 0.0, %v2303
          %2305 = vmatmul.bf16.gmra.mxu0 %v2266
          %v2306 = vpop.f32.mrf.mxu0
          %v2307 = vadd.f32 0.0, %v2306
          %v2308 = vpop.f32.mrf.mxu0
          %v2309 = vadd.f32 0.0, %v2308
          %2310 = vmatmul.bf16.gmra.mxu0 %v2269
          %v2311 = vpop.f32.mrf.mxu0
          %v2312 = vadd.f32 0.0, %v2311
          %v2313 = vpop.f32.mrf.mxu0
          %v2314 = vadd.f32 0.0, %v2313
          %2315 = vmatmul.bf16.gmra.mxu0 %v2272
          %v2316 = vpop.f32.mrf.mxu0
          %v2317 = vadd.f32 0.0, %v2316
          %v2318 = vpop.f32.mrf.mxu0
          %v2319 = vadd.f32 0.0, %v2318
          %2320 = vmatmul.bf16.gmra.mxu0 %v2275
          %v2321 = vpop.f32.mrf.mxu0
          %v2322 = vadd.f32 0.0, %v2321
          %v2323 = vpop.f32.mrf.mxu0
          %v2324 = vadd.f32 0.0, %v2323
          %2325 = vdwg.mxu0
          %v2326 = vmul.f32 %v2287, 0.015625
          %v2327 = vmul.f32 %v2289, 0.015625
          %v2328 = vmul.f32 %v2292, 0.015625
          %v2329 = vmul.f32 %v2294, 0.015625
          %v2330 = vmul.f32 %v2297, 0.015625
          %v2331 = vmul.f32 %v2299, 0.015625
          %v2332 = vmul.f32 %v2302, 0.015625
          %v2333 = vmul.f32 %v2304, 0.015625
          %v2334 = vmul.f32 %v2307, 0.015625
          %v2335 = vmul.f32 %v2309, 0.015625
          %v2336 = vmul.f32 %v2312, 0.015625
          %v2337 = vmul.f32 %v2314, 0.015625
          %v2338 = vmul.f32 %v2317, 0.015625
          %v2339 = vmul.f32 %v2319, 0.015625
          %v2340 = vmul.f32 %v2322, 0.015625
          %v2341 = vmul.f32 %v2324, 0.015625
          %v2342 = vpack.c.bf16 %v1801, %v1799
          %v2343 = vpack.c.bf16 %v1806, %v1804
          %v2344 = vpack.c.bf16 %v1811, %v1809
          %v2345 = vpack.c.bf16 %v1816, %v1814
          %v2346 = vpack.c.bf16 %v2327, %v2326
          %v2347 = vpack.c.bf16 %v2329, %v2328
          %v2348 = vpack.c.bf16 %v2331, %v2330
          %v2349 = vpack.c.bf16 %v2333, %v2332
          %v2350 = vpack.c.bf16 %v2335, %v2334
          %v2351 = vpack.c.bf16 %v2337, %v2336
          %v2352 = vpack.c.bf16 %v2339, %v2338
          %v2353 = vpack.c.bf16 %v2341, %v2340
          %2354 = vmatpush.bf16.msra.mxu0 %v2353
          %2355 = vmatpush.bf16.msra.mxu0 %v2352
          %2356 = vmatpush.bf16.msra.mxu0 %v2351
          %2357 = vmatpush.bf16.msra.mxu0 %v2350
          %2358 = vmatpush.bf16.msra.mxu0 %v2349
          %2359 = vmatpush.bf16.msra.mxu0 %v2348
          %2360 = vmatpush.bf16.msra.mxu0 %v2347
          %2361 = vmatpush.bf16.msra.mxu0 %v2346
          %2362 = vmatmul.bf16.gmra.mxu0 %v2342
          %v2363 = vpop.f32.mrf.mxu0
          %v2364 = vadd.f32 0.0, %v2363
          %v2365 = vpop.f32.mrf.mxu0
          %v2366 = vadd.f32 0.0, %v2365
          %2367 = vmatmul.bf16.gmra.mxu0 %v2343
          %v2368 = vpop.f32.mrf.mxu0
          %v2369 = vadd.f32 0.0, %v2368
          %v2370 = vpop.f32.mrf.mxu0
          %v2371 = vadd.f32 0.0, %v2370
          %2372 = vmatmul.bf16.gmra.mxu0 %v2344
          %v2373 = vpop.f32.mrf.mxu0
          %v2374 = vadd.f32 0.0, %v2373
          %v2375 = vpop.f32.mrf.mxu0
          %v2376 = vadd.f32 0.0, %v2375
          %2377 = vmatmul.bf16.gmra.mxu0 %v2345
          %v2378 = vpop.f32.mrf.mxu0
          %v2379 = vadd.f32 0.0, %v2378
          %v2380 = vpop.f32.mrf.mxu0
          %v2381 = vadd.f32 0.0, %v2380
          %2382 = vdwg.mxu0
          %s2383 = smul.u32 %s1400, 16
          %s2384 = smul.addr %s2383, 4
          %s2385 = scalar_lea.vmem [#allocation4], %s2384
          %v2386 = vld [vmem:[%s2385] sm:$0xf]
          %v2387 = vld [vmem:[%s2385 + $0x4] sm:$0xf]
          %v2388 = vld [vmem:[%s2385 + $0x8] sm:$0xf]
          %v2389 = vld [vmem:[%s2385 + $0xc] sm:$0xf]
          %v2390 = vld [vmem:[%s2385 + $0x10] sm:$0xf]
          %v2391 = vld [vmem:[%s2385 + $0x14] sm:$0xf]
          %v2392 = vld [vmem:[%s2385 + $0x18] sm:$0xf]
          %v2393 = vld [vmem:[%s2385 + $0x1c] sm:$0xf]
          %v2394 = vld [vmem:[%s2385 + $0x20] sm:$0xf]
          %v2395 = vld [vmem:[%s2385 + $0x24] sm:$0xf]
          %v2396 = vld [vmem:[%s2385 + $0x28] sm:$0xf]
          %v2397 = vld [vmem:[%s2385 + $0x2c] sm:$0xf]
          %v2398 = vld [vmem:[%s2385 + $0x30] sm:$0xf]
          %v2399 = vld [vmem:[%s2385 + $0x34] sm:$0xf]
          %v2400 = vld [vmem:[%s2385 + $0x38] sm:$0xf]
          %v2401 = vld [vmem:[%s2385 + $0x3c] sm:$0xf]
          %v2402 = vpack.c.bf16 %v2366, %v2364
          %v2403 = vpack.c.bf16 %v2371, %v2369
          %v2404 = vpack.c.bf16 %v2376, %v2374
          %v2405 = vpack.c.bf16 %v2381, %v2379
          %v2422 = vunpack.c.l.b16 %v2386
          %v2423 = vunpack.c.l.b16 %v2387
          %v2424 = vunpack.c.l.b16 %v2388
          %v2425 = vunpack.c.l.b16 %v2389
          %v2426 = vunpack.c.l.b16 %v2390
          %v2427 = vunpack.c.l.b16 %v2391
          %v2428 = vunpack.c.l.b16 %v2392
          %v2429 = vunpack.c.l.b16 %v2393
          %v2430 = vunpack.c.l.b16 %v2394
          %v2431 = vunpack.c.l.b16 %v2395
          %v2432 = vunpack.c.l.b16 %v2396
          %v2433 = vunpack.c.l.b16 %v2397
          %v2434 = vunpack.c.l.b16 %v2398
          %v2435 = vunpack.c.l.b16 %v2399
          %v2436 = vunpack.c.l.b16 %v2400
          %v2437 = vunpack.c.l.b16 %v2401
          %v2438 = vpack.c.b16 %v2423, %v2422
          %v2439 = vpack.c.b16 %v2425, %v2424
          %v2440 = vpack.c.b16 %v2427, %v2426
          %v2441 = vpack.c.b16 %v2429, %v2428
          %v2442 = vpack.c.b16 %v2431, %v2430
          %v2443 = vpack.c.b16 %v2433, %v2432
          %v2444 = vpack.c.b16 %v2435, %v2434
          %v2445 = vpack.c.b16 %v2437, %v2436
          %2454 = vmatpush.bf16.msra.mxu0 %v2445
          %2455 = vmatpush.bf16.msra.mxu0 %v2444
          %2456 = vmatpush.bf16.msra.mxu0 %v2443
          %2457 = vmatpush.bf16.msra.mxu0 %v2442
          %2458 = vmatpush.bf16.msra.mxu0 %v2441
          %2459 = vmatpush.bf16.msra.mxu0 %v2440
          %2460 = vmatpush.bf16.msra.mxu0 %v2439
          %2461 = vmatpush.bf16.msra.mxu0 %v2438
          %2462 = vmatmul.bf16.gmra.mxu0 %v2402
          %v2463 = vpop.f32.mrf.mxu0
          %v2464 = vadd.f32 0.0, %v2463
          %v2465 = vpop.f32.mrf.mxu0
          %v2466 = vadd.f32 0.0, %v2465
          %2467 = vmatmul.bf16.gmra.mxu0 %v2403
          %v2468 = vpop.f32.mrf.mxu0
          %v2469 = vadd.f32 0.0, %v2468
          %v2470 = vpop.f32.mrf.mxu0
          %v2471 = vadd.f32 0.0, %v2470
          %2472 = vmatmul.bf16.gmra.mxu0 %v2404
          %v2473 = vpop.f32.mrf.mxu0
          %v2474 = vadd.f32 0.0, %v2473
          %v2475 = vpop.f32.mrf.mxu0
          %v2476 = vadd.f32 0.0, %v2475
          %2477 = vmatmul.bf16.gmra.mxu0 %v2405
          %v2478 = vpop.f32.mrf.mxu0
          %v2479 = vadd.f32 0.0, %v2478
          %v2480 = vpop.f32.mrf.mxu0
          %v2481 = vadd.f32 0.0, %v2480
          %2482 = vdwg.mxu0
          %v2483 = vadd.f32 %v1405, %v2464
          %v2484 = vadd.f32 %v1406, %v2466
          %v2485 = vadd.f32 %v1407, %v2469
          %v2486 = vadd.f32 %v1408, %v2471
          %v2487 = vadd.f32 %v1409, %v2474
          %v2488 = vadd.f32 %v1410, %v2476
          %v2489 = vadd.f32 %v1411, %v2479
          %v2490 = vadd.f32 %v1412, %v2481
          %s2491 = scalar_lea.vmem %s13, %s1400
          %v2492 = vld [vmem:[%s2491] sm:$0x1]
          %s2493 = scalar_lea.vmem %s14, %s1400
          %v2494 = vld [vmem:[%s2493] sm:$0x1]
          %2495 = vadd.xlane.f32.xlu0 %v2483
          %v2496 = vpop.xlane.xlu0 %2495
          %2497 = vadd.xlane.f32.xlu0 %v2484
          %v2498 = vpop.xlane.xlu0 %2497
          %2499 = vadd.xlane.f32.xlu0 %v2485
          %v2500 = vpop.xlane.xlu0 %2499
          %2501 = vadd.xlane.f32.xlu0 %v2486
          %v2502 = vpop.xlane.xlu0 %2501
          %2503 = vadd.xlane.f32.xlu0 %v2487
          %v2504 = vpop.xlane.xlu0 %2503
          %2505 = vadd.xlane.f32.xlu0 %v2488
          %v2506 = vpop.xlane.xlu0 %2505
          %2507 = vadd.xlane.f32.xlu0 %v2489
          %v2508 = vpop.xlane.xlu0 %2507
          %2509 = vadd.xlane.f32.xlu0 %v2490
          %v2510 = vpop.xlane.xlu0 %2509
          %v2511 = vmul.f32 %v2496, %v1439
          %v2512 = vmul.f32 %v2498, %v1439
          %v2513 = vmul.f32 %v2500, %v1439
          %v2514 = vmul.f32 %v2502, %v1439
          %v2515 = vmul.f32 %v2504, %v1439
          %v2516 = vmul.f32 %v2506, %v1439
          %v2517 = vmul.f32 %v2508, %v1439
          %v2518 = vmul.f32 %v2510, %v1439
          %v2519 = vmul.f32 %v2483, %v2483
          %v2520 = vmul.f32 %v2484, %v2484
          %v2521 = vmul.f32 %v2485, %v2485
          %v2522 = vmul.f32 %v2486, %v2486
          %v2523 = vmul.f32 %v2487, %v2487
          %v2524 = vmul.f32 %v2488, %v2488
          %v2525 = vmul.f32 %v2489, %v2489
          %v2526 = vmul.f32 %v2490, %v2490
          %2527 = vadd.xlane.f32.xlu0 %v2519
          %v2528 = vpop.xlane.xlu0 %2527
          %2529 = vadd.xlane.f32.xlu0 %v2520
          %v2530 = vpop.xlane.xlu0 %2529
          %2531 = vadd.xlane.f32.xlu0 %v2521
          %v2532 = vpop.xlane.xlu0 %2531
          %2533 = vadd.xlane.f32.xlu0 %v2522
          %v2534 = vpop.xlane.xlu0 %2533
          %2535 = vadd.xlane.f32.xlu0 %v2523
          %v2536 = vpop.xlane.xlu0 %2535
          %2537 = vadd.xlane.f32.xlu0 %v2524
          %v2538 = vpop.xlane.xlu0 %2537
          %2539 = vadd.xlane.f32.xlu0 %v2525
          %v2540 = vpop.xlane.xlu0 %2539
          %2541 = vadd.xlane.f32.xlu0 %v2526
          %v2542 = vpop.xlane.xlu0 %2541
          %v2543 = vmul.f32 %v2528, %v1439
          %v2544 = vmul.f32 %v2530, %v1439
          %v2545 = vmul.f32 %v2532, %v1439
          %v2546 = vmul.f32 %v2534, %v1439
          %v2547 = vmul.f32 %v2536, %v1439
          %v2548 = vmul.f32 %v2538, %v1439
          %v2549 = vmul.f32 %v2540, %v1439
          %v2550 = vmul.f32 %v2542, %v1439
          %v2551 = vmul.f32 %v2511, %v2511
          %v2552 = vmul.f32 %v2512, %v2512
          %v2553 = vmul.f32 %v2513, %v2513
          %v2554 = vmul.f32 %v2514, %v2514
          %v2555 = vmul.f32 %v2515, %v2515
          %v2556 = vmul.f32 %v2516, %v2516
          %v2557 = vmul.f32 %v2517, %v2517
          %v2558 = vmul.f32 %v2518, %v2518
          %v2559 = vsub.f32 %v2543, %v2551
          %v2560 = vsub.f32 %v2544, %v2552
          %v2561 = vsub.f32 %v2545, %v2553
          %v2562 = vsub.f32 %v2546, %v2554
          %v2563 = vsub.f32 %v2547, %v2555
          %v2564 = vsub.f32 %v2548, %v2556
          %v2565 = vsub.f32 %v2549, %v2557
          %v2566 = vsub.f32 %v2550, %v2558
          %v2567 = vsub.f32 %v2483, %v2511
          %v2568 = vsub.f32 %v2484, %v2512
          %v2569 = vsub.f32 %v2485, %v2513
          %v2570 = vsub.f32 %v2486, %v2514
          %v2571 = vsub.f32 %v2487, %v2515
          %v2572 = vsub.f32 %v2488, %v2516
          %v2573 = vsub.f32 %v2489, %v2517
          %v2574 = vsub.f32 %v2490, %v2518
          %v2575 = vadd.f32 %v2559, 1e-05
          %v2576 = vadd.f32 %v2560, 1e-05
          %v2577 = vadd.f32 %v2561, 1e-05
          %v2578 = vadd.f32 %v2562, 1e-05
          %v2579 = vadd.f32 %v2563, 1e-05
          %v2580 = vadd.f32 %v2564, 1e-05
          %v2581 = vadd.f32 %v2565, 1e-05
          %v2582 = vadd.f32 %v2566, 1e-05
          %v2583 = vrsqrt.pop %v2575
          %v2584 = vmul.f32 %v2583, %v2575
          %v2585 = vmul.f32 %v2584, %v2583
          %v2586 = vmul.f32 0.5, %v2585
          %v2587 = vsub.f32 1.5, %v2586
          %v2588 = vmul.f32 %v2583, %v2587
          %vm2589 = vweird.f32 %v2575
          %vm2590 = vweird.f32 %v2583
          %vm2591 = vmor %vm2589, %vm2590
          %v2592 = vsel %vm2591, %v2583, %v2588
          %v2593 = vrsqrt.pop %v2576
          %v2594 = vmul.f32 %v2593, %v2576
          %v2595 = vmul.f32 %v2594, %v2593
          %v2596 = vmul.f32 0.5, %v2595
          %v2597 = vsub.f32 1.5, %v2596
          %v2598 = vmul.f32 %v2593, %v2597
          %vm2599 = vweird.f32 %v2576
          %vm2600 = vweird.f32 %v2593
          %vm2601 = vmor %vm2599, %vm2600
          %v2602 = vsel %vm2601, %v2593, %v2598
          %v2603 = vrsqrt.pop %v2577
          %v2604 = vmul.f32 %v2603, %v2577
          %v2605 = vmul.f32 %v2604, %v2603
          %v2606 = vmul.f32 0.5, %v2605
          %v2607 = vsub.f32 1.5, %v2606
          %v2608 = vmul.f32 %v2603, %v2607
          %vm2609 = vweird.f32 %v2577
          %vm2610 = vweird.f32 %v2603
          %vm2611 = vmor %vm2609, %vm2610
          %v2612 = vsel %vm2611, %v2603, %v2608
          %v2613 = vrsqrt.pop %v2578
          %v2614 = vmul.f32 %v2613, %v2578
          %v2615 = vmul.f32 %v2614, %v2613
          %v2616 = vmul.f32 0.5, %v2615
          %v2617 = vsub.f32 1.5, %v2616
          %v2618 = vmul.f32 %v2613, %v2617
          %vm2619 = vweird.f32 %v2578
          %vm2620 = vweird.f32 %v2613
          %vm2621 = vmor %vm2619, %vm2620
          %v2622 = vsel %vm2621, %v2613, %v2618
          %v2623 = vrsqrt.pop %v2579
          %v2624 = vmul.f32 %v2623, %v2579
          %v2625 = vmul.f32 %v2624, %v2623
          %v2626 = vmul.f32 0.5, %v2625
          %v2627 = vsub.f32 1.5, %v2626
          %v2628 = vmul.f32 %v2623, %v2627
          %vm2629 = vweird.f32 %v2579
          %vm2630 = vweird.f32 %v2623
          %vm2631 = vmor %vm2629, %vm2630
          %v2632 = vsel %vm2631, %v2623, %v2628
          %v2633 = vrsqrt.pop %v2580
          %v2634 = vmul.f32 %v2633, %v2580
          %v2635 = vmul.f32 %v2634, %v2633
          %v2636 = vmul.f32 0.5, %v2635
          %v2637 = vsub.f32 1.5, %v2636
          %v2638 = vmul.f32 %v2633, %v2637
          %vm2639 = vweird.f32 %v2580
          %vm2640 = vweird.f32 %v2633
          %vm2641 = vmor %vm2639, %vm2640
          %v2642 = vsel %vm2641, %v2633, %v2638
          %v2643 = vrsqrt.pop %v2581
          %v2644 = vmul.f32 %v2643, %v2581
          %v2645 = vmul.f32 %v2644, %v2643
          %v2646 = vmul.f32 0.5, %v2645
          %v2647 = vsub.f32 1.5, %v2646
          %v2648 = vmul.f32 %v2643, %v2647
          %vm2649 = vweird.f32 %v2581
          %vm2650 = vweird.f32 %v2643
          %vm2651 = vmor %vm2649, %vm2650
          %v2652 = vsel %vm2651, %v2643, %v2648
          %v2653 = vrsqrt.pop %v2582
          %v2654 = vmul.f32 %v2653, %v2582
          %v2655 = vmul.f32 %v2654, %v2653
          %v2656 = vmul.f32 0.5, %v2655
          %v2657 = vsub.f32 1.5, %v2656
          %v2658 = vmul.f32 %v2653, %v2657
          %vm2659 = vweird.f32 %v2582
          %vm2660 = vweird.f32 %v2653
          %vm2661 = vmor %vm2659, %vm2660
          %v2662 = vsel %vm2661, %v2653, %v2658
          %v2663 = vmul.f32 %v2567, %v2592
          %v2664 = vmul.f32 %v2568, %v2602
          %v2665 = vmul.f32 %v2569, %v2612
          %v2666 = vmul.f32 %v2570, %v2622
          %v2667 = vmul.f32 %v2571, %v2632
          %v2668 = vmul.f32 %v2572, %v2642
          %v2669 = vmul.f32 %v2573, %v2652
          %v2670 = vmul.f32 %v2574, %v2662
          %v2672 = vperm.slane %v2492, 0
          %v2674 = vmul.f32 %v2663, %v2672
          %v2675 = vmul.f32 %v2664, %v2672
          %v2676 = vmul.f32 %v2665, %v2672
          %v2677 = vmul.f32 %v2666, %v2672
          %v2678 = vmul.f32 %v2667, %v2672
          %v2679 = vmul.f32 %v2668, %v2672
          %v2680 = vmul.f32 %v2669, %v2672
          %v2681 = vmul.f32 %v2670, %v2672
          %v2683 = vperm.slane %v2494, 0
          %v2685 = vadd.f32 %v2674, %v2683
          %v2686 = vadd.f32 %v2675, %v2683
          %v2687 = vadd.f32 %v2676, %v2683
          %v2688 = vadd.f32 %v2677, %v2683
          %v2689 = vadd.f32 %v2678, %v2683
          %v2690 = vadd.f32 %v2679, %v2683
          %v2691 = vadd.f32 %v2680, %v2683
          %v2692 = vadd.f32 %v2681, %v2683
          %s2693 = smul.addr %s2383, 4
          %s2694 = scalar_lea.vmem [#allocation6], %s2693
          %v2695 = vld [vmem:[%s2694] sm:$0xf]
          %v2696 = vld [vmem:[%s2694 + $0x4] sm:$0xf]
          %v2697 = vld [vmem:[%s2694 + $0x8] sm:$0xf]
          %v2698 = vld [vmem:[%s2694 + $0xc] sm:$0xf]
          %v2699 = vld [vmem:[%s2694 + $0x10] sm:$0xf]
          %v2700 = vld [vmem:[%s2694 + $0x14] sm:$0xf]
          %v2701 = vld [vmem:[%s2694 + $0x18] sm:$0xf]
          %v2702 = vld [vmem:[%s2694 + $0x1c] sm:$0xf]
          %v2703 = vld [vmem:[%s2694 + $0x20] sm:$0xf]
          %v2704 = vld [vmem:[%s2694 + $0x24] sm:$0xf]
          %v2705 = vld [vmem:[%s2694 + $0x28] sm:$0xf]
          %v2706 = vld [vmem:[%s2694 + $0x2c] sm:$0xf]
          %v2707 = vld [vmem:[%s2694 + $0x30] sm:$0xf]
          %v2708 = vld [vmem:[%s2694 + $0x34] sm:$0xf]
          %v2709 = vld [vmem:[%s2694 + $0x38] sm:$0xf]
          %v2710 = vld [vmem:[%s2694 + $0x3c] sm:$0xf]
          %v2711 = vpack.c.bf16 %v2686, %v2685
          %v2712 = vpack.c.bf16 %v2688, %v2687
          %v2713 = vpack.c.bf16 %v2690, %v2689
          %v2714 = vpack.c.bf16 %v2692, %v2691
          %s2715 = scalar_lea.vmem %s16, %s1400
          %v2716 = vld [vmem:[%s2715] sm:$0x1]
          %v2718 = vperm.slane %v2716, 0
          %v2736 = vunpack.c.l.b16 %v2695
          %v2737 = vunpack.c.l.b16 %v2696
          %v2738 = vunpack.c.l.b16 %v2697
          %v2739 = vunpack.c.l.b16 %v2698
          %v2740 = vunpack.c.l.b16 %v2699
          %v2741 = vunpack.c.l.b16 %v2700
          %v2742 = vunpack.c.l.b16 %v2701
          %v2743 = vunpack.c.l.b16 %v2702
          %v2744 = vunpack.c.l.b16 %v2703
          %v2745 = vunpack.c.l.b16 %v2704
          %v2746 = vunpack.c.l.b16 %v2705
          %v2747 = vunpack.c.l.b16 %v2706
          %v2748 = vunpack.c.l.b16 %v2707
          %v2749 = vunpack.c.l.b16 %v2708
          %v2750 = vunpack.c.l.b16 %v2709
          %v2751 = vunpack.c.l.b16 %v2710
          %v2752 = vpack.c.b16 %v2737, %v2736
          %v2753 = vpack.c.b16 %v2739, %v2738
          %v2754 = vpack.c.b16 %v2741, %v2740
          %v2755 = vpack.c.b16 %v2743, %v2742
          %v2756 = vpack.c.b16 %v2745, %v2744
          %v2757 = vpack.c.b16 %v2747, %v2746
          %v2758 = vpack.c.b16 %v2749, %v2748
          %v2759 = vpack.c.b16 %v2751, %v2750
          %2768 = vmatpush.bf16.msra.mxu0 %v2759
          %2769 = vmatpush.bf16.msra.mxu0 %v2758
          %2770 = vmatpush.bf16.msra.mxu0 %v2757
          %2771 = vmatpush.bf16.msra.mxu0 %v2756
          %2772 = vmatpush.bf16.msra.mxu0 %v2755
          %2773 = vmatpush.bf16.msra.mxu0 %v2754
          %2774 = vmatpush.bf16.msra.mxu0 %v2753
          %2775 = vmatpush.bf16.msra.mxu0 %v2752
          %2776 = vmatmul.bf16.gmra.mxu0 %v2711
          %v2777 = vpop.f32.mrf.mxu0
          %v2778 = vadd.f32 %v2718, %v2777
          %v2779 = vpop.f32.mrf.mxu0
          %v2780 = vadd.f32 %v2718, %v2779
          %2781 = vmatmul.bf16.gmra.mxu0 %v2712
          %v2782 = vpop.f32.mrf.mxu0
          %v2783 = vadd.f32 %v2718, %v2782
          %v2784 = vpop.f32.mrf.mxu0
          %v2785 = vadd.f32 %v2718, %v2784
          %2786 = vmatmul.bf16.gmra.mxu0 %v2713
          %v2787 = vpop.f32.mrf.mxu0
          %v2788 = vadd.f32 %v2718, %v2787
          %v2789 = vpop.f32.mrf.mxu0
          %v2790 = vadd.f32 %v2718, %v2789
          %2791 = vmatmul.bf16.gmra.mxu0 %v2714
          %v2792 = vpop.f32.mrf.mxu0
          %v2793 = vadd.f32 %v2718, %v2792
          %v2794 = vpop.f32.mrf.mxu0
          %v2795 = vadd.f32 %v2718, %v2794
          %2796 = vdwg.mxu0
          %v2797 = vmul.f32 %v2778, %v2778
          %v2798 = vmul.f32 %v2780, %v2780
          %v2799 = vmul.f32 %v2783, %v2783
          %v2800 = vmul.f32 %v2785, %v2785
          %v2801 = vmul.f32 %v2788, %v2788
          %v2802 = vmul.f32 %v2790, %v2790
          %v2803 = vmul.f32 %v2793, %v2793
          %v2804 = vmul.f32 %v2795, %v2795
          %v2805 = vmul.f32 %v2778, %v2797
          %v2806 = vmul.f32 %v2780, %v2798
          %v2807 = vmul.f32 %v2783, %v2799
          %v2808 = vmul.f32 %v2785, %v2800
          %v2809 = vmul.f32 %v2788, %v2801
          %v2810 = vmul.f32 %v2790, %v2802
          %v2811 = vmul.f32 %v2793, %v2803
          %v2812 = vmul.f32 %v2795, %v2804
          %v2813 = vmul.f32 %v2805, 0.044715
          %v2814 = vmul.f32 %v2806, 0.044715
          %v2815 = vmul.f32 %v2807, 0.044715
          %v2816 = vmul.f32 %v2808, 0.044715
          %v2817 = vmul.f32 %v2809, 0.044715
          %v2818 = vmul.f32 %v2810, 0.044715
          %v2819 = vmul.f32 %v2811, 0.044715
          %v2820 = vmul.f32 %v2812, 0.044715
          %v2821 = vadd.f32 %v2778, %v2813
          %v2822 = vadd.f32 %v2780, %v2814
          %v2823 = vadd.f32 %v2783, %v2815
          %v2824 = vadd.f32 %v2785, %v2816
          %v2825 = vadd.f32 %v2788, %v2817
          %v2826 = vadd.f32 %v2790, %v2818
          %v2827 = vadd.f32 %v2793, %v2819
          %v2828 = vadd.f32 %v2795, %v2820
          %v2829 = vmul.f32 %v2821, 0.7978846
          %v2830 = vmul.f32 %v2822, 0.7978846
          %v2831 = vmul.f32 %v2823, 0.7978846
          %v2832 = vmul.f32 %v2824, 0.7978846
          %v2833 = vmul.f32 %v2825, 0.7978846
          %v2834 = vmul.f32 %v2826, 0.7978846
          %v2835 = vmul.f32 %v2827, 0.7978846
          %v2836 = vmul.f32 %v2828, 0.7978846
          %v2837 = vtanh.pop %v2829
          %v2838 = vtanh.pop %v2830
          %v2839 = vtanh.pop %v2831
          %v2840 = vtanh.pop %v2832
          %v2841 = vtanh.pop %v2833
          %v2842 = vtanh.pop %v2834
          %v2843 = vtanh.pop %v2835
          %v2844 = vtanh.pop %v2836
          %v2845 = vadd.f32 %v2837, 1.0
          %v2846 = vadd.f32 %v2838, 1.0
          %v2847 = vadd.f32 %v2839, 1.0
          %v2848 = vadd.f32 %v2840, 1.0
          %v2849 = vadd.f32 %v2841, 1.0
          %v2850 = vadd.f32 %v2842, 1.0
          %v2851 = vadd.f32 %v2843, 1.0
          %v2852 = vadd.f32 %v2844, 1.0
          %v2853 = vmul.f32 %v2845, 0.5
          %v2854 = vmul.f32 %v2846, 0.5
          %v2855 = vmul.f32 %v2847, 0.5
          %v2856 = vmul.f32 %v2848, 0.5
          %v2857 = vmul.f32 %v2849, 0.5
          %v2858 = vmul.f32 %v2850, 0.5
          %v2859 = vmul.f32 %v2851, 0.5
          %v2860 = vmul.f32 %v2852, 0.5
          %v2861 = vmul.f32 %v2778, %v2853
          %v2862 = vmul.f32 %v2780, %v2854
          %v2863 = vmul.f32 %v2783, %v2855
          %v2864 = vmul.f32 %v2785, %v2856
          %v2865 = vmul.f32 %v2788, %v2857
          %v2866 = vmul.f32 %v2790, %v2858
          %v2867 = vmul.f32 %v2793, %v2859
          %v2868 = vmul.f32 %v2795, %v2860
          %s2869 = smul.addr %s2383, 4
          %s2870 = scalar_lea.vmem [#allocation7], %s2869
          %v2871 = vld [vmem:[%s2870] sm:$0xf]
          %v2872 = vld [vmem:[%s2870 + $0x4] sm:$0xf]
          %v2873 = vld [vmem:[%s2870 + $0x8] sm:$0xf]
          %v2874 = vld [vmem:[%s2870 + $0xc] sm:$0xf]
          %v2875 = vld [vmem:[%s2870 + $0x10] sm:$0xf]
          %v2876 = vld [vmem:[%s2870 + $0x14] sm:$0xf]
          %v2877 = vld [vmem:[%s2870 + $0x18] sm:$0xf]
          %v2878 = vld [vmem:[%s2870 + $0x1c] sm:$0xf]
          %v2879 = vld [vmem:[%s2870 + $0x20] sm:$0xf]
          %v2880 = vld [vmem:[%s2870 + $0x24] sm:$0xf]
          %v2881 = vld [vmem:[%s2870 + $0x28] sm:$0xf]
          %v2882 = vld [vmem:[%s2870 + $0x2c] sm:$0xf]
          %v2883 = vld [vmem:[%s2870 + $0x30] sm:$0xf]
          %v2884 = vld [vmem:[%s2870 + $0x34] sm:$0xf]
          %v2885 = vld [vmem:[%s2870 + $0x38] sm:$0xf]
          %v2886 = vld [vmem:[%s2870 + $0x3c] sm:$0xf]
          %v2887 = vpack.c.bf16 %v2862, %v2861
          %v2888 = vpack.c.bf16 %v2864, %v2863
          %v2889 = vpack.c.bf16 %v2866, %v2865
          %v2890 = vpack.c.bf16 %v2868, %v2867
          %v2907 = vunpack.c.l.b16 %v2871
          %v2908 = vunpack.c.l.b16 %v2872
          %v2909 = vunpack.c.l.b16 %v2873
          %v2910 = vunpack.c.l.b16 %v2874
          %v2911 = vunpack.c.l.b16 %v2875
          %v2912 = vunpack.c.l.b16 %v2876
          %v2913 = vunpack.c.l.b16 %v2877
          %v2914 = vunpack.c.l.b16 %v2878
          %v2915 = vunpack.c.l.b16 %v2879
          %v2916 = vunpack.c.l.b16 %v2880
          %v2917 = vunpack.c.l.b16 %v2881
          %v2918 = vunpack.c.l.b16 %v2882
          %v2919 = vunpack.c.l.b16 %v2883
          %v2920 = vunpack.c.l.b16 %v2884
          %v2921 = vunpack.c.l.b16 %v2885
          %v2922 = vunpack.c.l.b16 %v2886
          %v2923 = vpack.c.b16 %v2908, %v2907
          %v2924 = vpack.c.b16 %v2910, %v2909
          %v2925 = vpack.c.b16 %v2912, %v2911
          %v2926 = vpack.c.b16 %v2914, %v2913
          %v2927 = vpack.c.b16 %v2916, %v2915
          %v2928 = vpack.c.b16 %v2918, %v2917
          %v2929 = vpack.c.b16 %v2920, %v2919
          %v2930 = vpack.c.b16 %v2922, %v2921
          %2939 = vmatpush.bf16.msra.mxu0 %v2930
          %2940 = vmatpush.bf16.msra.mxu0 %v2929
          %2941 = vmatpush.bf16.msra.mxu0 %v2928
          %2942 = vmatpush.bf16.msra.mxu0 %v2927
          %2943 = vmatpush.bf16.msra.mxu0 %v2926
          %2944 = vmatpush.bf16.msra.mxu0 %v2925
          %2945 = vmatpush.bf16.msra.mxu0 %v2924
          %2946 = vmatpush.bf16.msra.mxu0 %v2923
          %2947 = vmatmul.bf16.gmra.mxu0 %v2887
          %v2948 = vpop.f32.mrf.mxu0
          %v2949 = vadd.f32 0.0, %v2948
          %v2950 = vpop.f32.mrf.mxu0
          %v2951 = vadd.f32 0.0, %v2950
          %2952 = vmatmul.bf16.gmra.mxu0 %v2888
          %v2953 = vpop.f32.mrf.mxu0
          %v2954 = vadd.f32 0.0, %v2953
          %v2955 = vpop.f32.mrf.mxu0
          %v2956 = vadd.f32 0.0, %v2955
          %2957 = vmatmul.bf16.gmra.mxu0 %v2889
          %v2958 = vpop.f32.mrf.mxu0
          %v2959 = vadd.f32 0.0, %v2958
          %v2960 = vpop.f32.mrf.mxu0
          %v2961 = vadd.f32 0.0, %v2960
          %2962 = vmatmul.bf16.gmra.mxu0 %v2890
          %v2963 = vpop.f32.mrf.mxu0
          %v2964 = vadd.f32 0.0, %v2963
          %v2965 = vpop.f32.mrf.mxu0
          %v2966 = vadd.f32 0.0, %v2965
          %2967 = vdwg.mxu0
          %v2968 = vadd.f32 %v2483, %v2949
          %v2969 = vadd.f32 %v2484, %v2951
          %v2970 = vadd.f32 %v2485, %v2954
          %v2971 = vadd.f32 %v2486, %v2956
          %v2972 = vadd.f32 %v2487, %v2959
          %v2973 = vadd.f32 %v2488, %v2961
          %v2974 = vadd.f32 %v2489, %v2964
          %v2975 = vadd.f32 %v2490, %v2966
          %s2976 = scalar_lea.vmem %s18, %s1400
          %v2977 = vld [vmem:[%s2976] sm:$0x1]
          %v2979 = vperm.slane %v2977, 0
          %v2981 = vadd.f32 %v2968, %v2979
          %v2982 = vadd.f32 %v2969, %v2979
          %v2983 = vadd.f32 %v2970, %v2979
          %v2984 = vadd.f32 %v2971, %v2979
          %v2985 = vadd.f32 %v2972, %v2979
          %v2986 = vadd.f32 %v2973, %v2979
          %v2987 = vadd.f32 %v2974, %v2979
          %v2988 = vadd.f32 %v2975, %v2979
        $region121: #{oformer_forward.2} parent=99 // loop_footer
          %s1404 = sadd.s32 1, %s1400
        $region122: #{oformer_forward.2} parent=99 // loop_footer_branch
          %1399 = sbr.rel target = $region118
        $region123: #{oformer_forward.2} parent=99 // loop_exit
          _
        %v2989 = vld [vmem:[%s19] sm:$0xf]
        %v2990 = vld [vmem:[%s19 + $0x4] sm:$0xf]
        %v2991 = vld [vmem:[%s19 + $0x8] sm:$0xf]
        %v2992 = vld [vmem:[%s19 + $0xc] sm:$0xf]
        %v2993 = vld [vmem:[%s19 + $0x10] sm:$0xf]
        %v2994 = vld [vmem:[%s19 + $0x14] sm:$0xf]
        %v2995 = vld [vmem:[%s19 + $0x18] sm:$0xf]
        %v2996 = vld [vmem:[%s19 + $0x1c] sm:$0xf]
        %v2997 = vld [vmem:[%s19 + $0x20] sm:$0xf]
        %v2998 = vld [vmem:[%s19 + $0x24] sm:$0xf]
        %v2999 = vld [vmem:[%s19 + $0x28] sm:$0xf]
        %v3000 = vld [vmem:[%s19 + $0x2c] sm:$0xf]
        %v3001 = vld [vmem:[%s19 + $0x30] sm:$0xf]
        %v3002 = vld [vmem:[%s19 + $0x34] sm:$0xf]
        %v3003 = vld [vmem:[%s19 + $0x38] sm:$0xf]
        %v3004 = vld [vmem:[%s19 + $0x3c] sm:$0xf]
        %v3005 = vpack.c.bf16 %v1406, %v1405
        %v3006 = vpack.c.bf16 %v1408, %v1407
        %v3007 = vpack.c.bf16 %v1410, %v1409
        %v3008 = vpack.c.bf16 %v1412, %v1411
        %v3025 = vunpack.c.l.b16 %v2989
        %v3026 = vunpack.c.l.b16 %v2990
        %v3027 = vunpack.c.l.b16 %v2991
        %v3028 = vunpack.c.l.b16 %v2992
        %v3029 = vunpack.c.l.b16 %v2993
        %v3030 = vunpack.c.l.b16 %v2994
        %v3031 = vunpack.c.l.b16 %v2995
        %v3032 = vunpack.c.l.b16 %v2996
        %v3033 = vunpack.c.l.b16 %v2997
        %v3034 = vunpack.c.l.b16 %v2998
        %v3035 = vunpack.c.l.b16 %v2999
        %v3036 = vunpack.c.l.b16 %v3000
        %v3037 = vunpack.c.l.b16 %v3001
        %v3038 = vunpack.c.l.b16 %v3002
        %v3039 = vunpack.c.l.b16 %v3003
        %v3040 = vunpack.c.l.b16 %v3004
        %v3041 = vpack.c.b16 %v3026, %v3025
        %v3042 = vpack.c.b16 %v3028, %v3027
        %v3043 = vpack.c.b16 %v3030, %v3029
        %v3044 = vpack.c.b16 %v3032, %v3031
        %v3045 = vpack.c.b16 %v3034, %v3033
        %v3046 = vpack.c.b16 %v3036, %v3035
        %v3047 = vpack.c.b16 %v3038, %v3037
        %v3048 = vpack.c.b16 %v3040, %v3039
        %3057 = vmatpush.bf16.msra.mxu0 %v3048
        %3058 = vmatpush.bf16.msra.mxu0 %v3047
        %3059 = vmatpush.bf16.msra.mxu0 %v3046
        %3060 = vmatpush.bf16.msra.mxu0 %v3045
        %3061 = vmatpush.bf16.msra.mxu0 %v3044
        %3062 = vmatpush.bf16.msra.mxu0 %v3043
        %3063 = vmatpush.bf16.msra.mxu0 %v3042
        %3064 = vmatpush.bf16.msra.mxu0 %v3041
        %3065 = vmatmul.bf16.gmra.mxu0 %v3005
        %v3066 = vpop.f32.mrf.mxu0
        %v3067 = vadd.f32 0.0, %v3066
        %v3068 = vpop.f32.mrf.mxu0
        %v3069 = vadd.f32 0.0, %v3068
        %3070 = vmatmul.bf16.gmra.mxu0 %v3006
        %v3071 = vpop.f32.mrf.mxu0
        %v3072 = vadd.f32 0.0, %v3071
        %v3073 = vpop.f32.mrf.mxu0
        %v3074 = vadd.f32 0.0, %v3073
        %3075 = vmatmul.bf16.gmra.mxu0 %v3007
        %v3076 = vpop.f32.mrf.mxu0
        %v3077 = vadd.f32 0.0, %v3076
        %v3078 = vpop.f32.mrf.mxu0
        %v3079 = vadd.f32 0.0, %v3078
        %3080 = vmatmul.bf16.gmra.mxu0 %v3008
        %v3081 = vpop.f32.mrf.mxu0
        %v3082 = vadd.f32 0.0, %v3081
        %v3083 = vpop.f32.mrf.mxu0
        %v3084 = vadd.f32 0.0, %v3083
        %3085 = vdwg.mxu0
        %v3086 = vpack.c.bf16 %v3067, %v3067
        %v3087 = vpack.c.bf16 %v3069, %v3069
        %v3088 = vpack.c.bf16 %v3072, %v3072
        %v3089 = vpack.c.bf16 %v3074, %v3074
        %v3090 = vpack.c.bf16 %v3077, %v3077
        %v3091 = vpack.c.bf16 %v3079, %v3079
        %v3092 = vpack.c.bf16 %v3082, %v3082
        %v3093 = vpack.c.bf16 %v3084, %v3084
        %3094 = vst [vmem:[%s736] sm:$0xf] %v3086
        %3095 = vst [vmem:[%s736 + $0x4] sm:$0xf] %v3087
        %3096 = vst [vmem:[%s736 + $0x8] sm:$0xf] %v3088
        %3097 = vst [vmem:[%s736 + $0xc] sm:$0xf] %v3089
        %3098 = vst [vmem:[%s736 + $0x10] sm:$0xf] %v3090
        %3099 = vst [vmem:[%s736 + $0x14] sm:$0xf] %v3091
        %3100 = vst [vmem:[%s736 + $0x18] sm:$0xf] %v3092
        %3101 = vst [vmem:[%s736 + $0x1c] sm:$0xf] %v3093
        %p3102 = scmp.lt.s32.totalorder %s34, 1
        %s3103 = scalar_select %p3102, %s34, 1
        %s3104 = smul.addr %s3103, 8
        %s3105 = smul.addr %s3104, 4
        %s3106 = scalar_lea.vmem %s20, %s3105
        // Predicated region
        $region124: #{oformer_forward.2} parent=99 // pred_check
          %p3107 = pneg %p487
        $region125: #{oformer_forward.2} parent=99 // pred_check_branch
          %3109 = sbr.rel (%p3107) target = $region127
        $region126: #{oformer_forward.2} parent=99 // pred_region
          _
        $region127: #{oformer_forward.2} parent=99 // pred_fallthru
          _
      $region100: #{oformer_forward.2} parent=5 // pred_fallthru
        _
      %p3110 = scmp.le.s32.totalorder 2, %s29
      // Predicated region
      $region128: #{oformer_forward.2} parent=5 // pred_check
        %p3111 = pneg %p3110
      $region129: #{oformer_forward.2} parent=5 // pred_check_branch
        %3113 = sbr.rel (%p3111) target = $region131
      $region130: #{oformer_forward.2} parent=5 // pred_region
        %s3114 = ssub.s32 %s29, 2
        // Predicated region
        $region132: #{oformer_forward.2} parent=130 // pred_check
          %p3115 = pneg %p493
        $region133: #{oformer_forward.2} parent=130 // pred_check_branch
          %3117 = sbr.rel (%p3115) target = $region135
        $region134: #{oformer_forward.2} parent=130 // pred_region
          %p3118 = scmp.lt.s32.totalorder %s35, 1
          %s3119 = scalar_select %p3118, %s35, 1
          %s3120 = smul.addr %s3119, 8
          %s3121 = smul.addr %s3120, 4
          %s3122 = scalar_lea.vmem %s20, %s3121
        $region135: #{oformer_forward.2} parent=130 // pred_fallthru
          _
      $region131: #{oformer_forward.2} parent=5 // pred_fallthru
        _
    $region6: #{oformer_forward.2} parent=1 // loop_footer
      %s33 = sadd.s32 1, %s29
    $region7: #{oformer_forward.2} parent=1 // loop_footer_branch
      %28 = sbr.rel target = $region3
    $region8: #{oformer_forward.2} parent=1 // loop_exit
      _
    %3123 = vsyncpa [#allocation3], 1
    %s3124 = scalar_lea.sflag [#allocation3], 1
    %3125 = vsyncpa %s3124, 1
    %3126 = vsyncpa [#allocation5], 1
    %3127 = vsyncpa [#allocation8], 1

// kernel: oformer_forward.3
$region0: #{oformer_forward.3}
  #allocation0 [shape = 'u32[]', space=smem, size = 0x4, offset = 0x4, fixed_abs, tag = 'smem constant byte address 0x4 - core index']
  #allocation1 [shape = 'u32[72,128]{1,0:T(1,128)}', space=vmem, size = 0x9000, scoped, tag = 'internal scratch']
  #allocation2 [shape = 'f32[64,128]{1,0:T(8,128)}', space=vmem, size = 0x8000, scoped, tag = 'scratch operand']
  #allocation3 [shape = 'f32[64,128]{1,0:T(8,128)}', space=vmem, size = 0x8000, scoped, tag = 'scratch operand']
  #allocation4 [shape = 'f32[64,1]{1,0:T(8,128)}', space=vmem, size = 0x8000, scoped, tag = 'scratch operand']
  #allocation5 [shape = 'f32[64,1]{1,0:T(8,128)}', space=vmem, size = 0x8000, scoped, tag = 'scratch operand']
  #allocation6 [shape = 'f32[64,128]{1,0:T(8,128)}', space=vmem, size = 0x8000, scoped, tag = 'scratch operand']
  %s0 = inlined_call_operand.vmem [shape: f32[2,64,2], index: 0, kind: input, shape index: {}]
  %s1 = inlined_call_operand.vmem [shape: s32[2,64,1], index: 1, kind: input, shape index: {}]
  %s2 = inlined_call_operand.vmem [shape: bf16[2,64,128], index: 2, kind: input, shape index: {}]
  %s3 = inlined_call_operand.vmem [shape: f32[2,128], index: 3, kind: input, shape index: {}]
  %s4 = inlined_call_operand.vmem [shape: bf16[128,128], index: 4, kind: input, shape index: {}]
  %s5 = inlined_call_operand.vmem [shape: f32[3,128], index: 5, kind: input, shape index: {}]
  %s6 = inlined_call_operand.vmem [shape: bf16[128,128], index: 6, kind: input, shape index: {}]
  %s7 = inlined_call_operand.hbm [shape: bf16[128,128], index: 7, kind: input, shape index: {}]
  %s8 = inlined_call_operand.vmem [shape: f32[1,128], index: 8, kind: input, shape index: {}]
  %s9 = inlined_call_operand.vmem [shape: f32[1,128], index: 9, kind: input, shape index: {}]
  %s10 = inlined_call_operand.hbm [shape: f32[1,128], index: 10, kind: input, shape index: {}]
  %s11 = inlined_call_operand.hbm [shape: f32[1,128], index: 11, kind: input, shape index: {}]
  %s12 = inlined_call_operand.hbm [shape: bf16[128,128], index: 12, kind: input, shape index: {}]
  %s13 = inlined_call_operand.vmem [shape: bf16[128,256], index: 13, kind: input, shape index: {}]
  %s14 = inlined_call_operand.hbm [shape: bf16[128,128], index: 14, kind: input, shape index: {}]
  %s15 = inlined_call_operand.hbm [shape: f32[1,128], index: 15, kind: input, shape index: {}]
  %s16 = inlined_call_operand.hbm [shape: f32[1,128], index: 16, kind: input, shape index: {}]
  %s17 = inlined_call_operand.hbm [shape: bf16[128,128], index: 17, kind: input, shape index: {}]
  %s18 = inlined_call_operand.hbm [shape: f32[1,128], index: 18, kind: input, shape index: {}]
  %s19 = inlined_call_operand.hbm [shape: bf16[128,128], index: 19, kind: input, shape index: {}]
  %s20 = inlined_call_operand.hbm [shape: f32[1,128], index: 20, kind: input, shape index: {}]
  %s21 = inlined_call_operand.vmem [shape: bf16[128,3], index: 21, kind: input, shape index: {}]
  %s22 = inlined_call_operand.vmem [shape: f32[3,1], index: 22, kind: input, shape index: {}]
  %s23 = inlined_call_operand.vmem [shape: f32[2,2,3,64], index: 23, kind: output, shape index: {}]
  %s24 = sld [smem:[#allocation0]]
  $region177: #{oformer_forward.3} parent=0
    _
  %s26 = ssub.s32 1, %s24
  %s27 = scalar_select 0, %s26, %s24
  $region1: #{oformer_forward.3} parent=0
    #allocation7 [shape = 'u8[32768]{0}', space=vmem, size = 0x8000, scoped, tag = 'input window, operand 7, single buffered']
    #allocation8 [shape = 's32[2]{0}', space=sflag, size = 0x8, scoped, tag = 'scoped memory for oformer_forward.3']
    #allocation9 [shape = 'u8[512]{0}', space=vmem, size = 0x400, scoped, tag = 'input window, operand 10, single buffered']
    #allocation10 [shape = 's32[1]{0}', space=sflag, size = 0x4, scoped, tag = 'scoped memory for oformer_forward.3']
    #allocation11 [shape = 'u8[512]{0}', space=vmem, size = 0x400, scoped, tag = 'input window, operand 11, single buffered']
    #allocation12 [shape = 'u8[32768]{0}', space=vmem, size = 0x8000, scoped, tag = 'input window, operand 12, single buffered']
    #allocation13 [shape = 's32[1]{0}', space=sflag, size = 0x4, scoped, tag = 'scoped memory for oformer_forward.3']
    #allocation14 [shape = 'u8[32768]{0}', space=vmem, size = 0x8000, scoped, tag = 'input window, operand 14, single buffered']
    #allocation15 [shape = 'u8[512]{0}', space=vmem, size = 0x400, scoped, tag = 'input window, operand 15, single buffered']
    #allocation16 [shape = 's32[1]{0}', space=sflag, size = 0x4, scoped, tag = 'scoped memory for oformer_forward.3']
    #allocation17 [shape = 'u8[512]{0}', space=vmem, size = 0x400, scoped, tag = 'input window, operand 16, single buffered']
    #allocation18 [shape = 'u8[32768]{0}', space=vmem, size = 0x8000, scoped, tag = 'input window, operand 17, single buffered']
    #allocation19 [shape = 's32[1]{0}', space=sflag, size = 0x4, scoped, tag = 'scoped memory for oformer_forward.3']
    #allocation20 [shape = 'u8[512]{0}', space=vmem, size = 0x400, scoped, tag = 'input window, operand 18, single buffered']
    #allocation21 [shape = 'u8[32768]{0}', space=vmem, size = 0x8000, scoped, tag = 'input window, operand 19, single buffered']
    #allocation22 [shape = 's32[1]{0}', space=sflag, size = 0x4, scoped, tag = 'scoped memory for oformer_forward.3']
    #allocation23 [shape = 'u8[512]{0}', space=vmem, size = 0x400, scoped, tag = 'input window, operand 20, single buffered']
    %28 = vsyncpa [#allocation8], 0
    %29 = vsyncpa [#allocation10], 0
    %30 = vsyncpa [#allocation13], 0
    %31 = vsyncpa [#allocation16], 0
    %32 = vsyncpa [#allocation19], 0
    %33 = vsyncpa [#allocation22], 0
    loop: start=0, step=1, limit=4
    $region2: #{oformer_forward.3} parent=1 // loop_pre_header
      _
    $region3: #{oformer_forward.3} parent=1 // loop_header
      %s35 = sphi 0, %s39
      %p36 = scmp.ge.s32.totalorder %s35, 4
      %s42 = sphi 0, %s61
      %s43 = sphi 0, %s57
      %s44 = sphi 0, %s53
      %s45 = sphi 0, %s42
      %s46 = sphi 0, %s43
      %s47 = sphi 0, %s44
      %s48 = sphi 0, %s45
      %s49 = sphi 0, %s46
      %s50 = sphi 0, %s47
      %s66 = sphi 0, %s68
      %s69 = sphi 0, %s66
      %s70 = sphi 0, %s69
      %s86 = sphi 0, %s70
      %s94 = sphi 0, %s96
      %s97 = sphi 0, %s94
      %s98 = sphi 0, %s97
      %s114 = sphi 0, %s98
      %s122 = sphi 0, %s124
      %s125 = sphi 0, %s122
      %s126 = sphi 0, %s125
      %s142 = sphi 0, %s126
      %s146 = sphi 0, %s146
      %s148 = sphi 0, %s146
      %s149 = sphi 0, %s148
      %s163 = sphi 0, %s149
      %s167 = sphi 0, %s167
      %s169 = sphi 0, %s167
      %s170 = sphi 0, %s169
      %s184 = sphi 0, %s170
      %s188 = sphi 0, %s188
      %s190 = sphi 0, %s188
      %s191 = sphi 0, %s190
      %s205 = sphi 0, %s191
      %s209 = sphi 0, %s209
      %s211 = sphi 0, %s209
      %s212 = sphi 0, %s211
      %s226 = sphi 0, %s212
      %s230 = sphi 0, %s230
      %s232 = sphi 0, %s230
      %s233 = sphi 0, %s232
      %s247 = sphi 0, %s233
      %s251 = sphi 0, %s251
      %s253 = sphi 0, %s251
      %s254 = sphi 0, %s253
      %s268 = sphi 0, %s254
      %s272 = sphi 0, %s272
      %s274 = sphi 0, %s272
      %s275 = sphi 0, %s274
      %s289 = sphi 0, %s275
      %s293 = sphi 0, %s293
      %s295 = sphi 0, %s293
      %s296 = sphi 0, %s295
      %s310 = sphi 0, %s296
      %s314 = sphi 0, %s314
      %s316 = sphi 0, %s314
      %s317 = sphi 0, %s316
      %s331 = sphi 0, %s317
      %s335 = sphi 0, %s335
      %s337 = sphi 0, %s335
      %s338 = sphi 0, %s337
      %s352 = sphi 0, %s338
      %s356 = sphi 0, %s356
      %s358 = sphi 0, %s356
      %s359 = sphi 0, %s358
      %s373 = sphi 0, %s359
      %s377 = sphi 0, %s377
      %s379 = sphi 0, %s377
      %s380 = sphi 0, %s379
      %s394 = sphi 0, %s380
      %s398 = sphi 0, %s398
      %s400 = sphi 0, %s398
      %s401 = sphi 0, %s400
      %s415 = sphi 0, %s401
      %s419 = sphi 0, %s419
      %s421 = sphi 0, %s419
      %s422 = sphi 0, %s421
      %s436 = sphi 0, %s422
      %s440 = sphi 0, %s440
      %s442 = sphi 0, %s440
      %s443 = sphi 0, %s442
      %s457 = sphi 0, %s443
      %s461 = sphi 0, %s461
      %s463 = sphi 0, %s461
      %s464 = sphi 0, %s463
      %s478 = sphi 0, %s464
      %s482 = sphi 0, %s482
      %s484 = sphi 0, %s482
      %s485 = sphi 0, %s484
      %s499 = sphi 0, %s485
      %s503 = sphi 0, %s503
      %s505 = sphi 0, %s503
      %s506 = sphi 0, %s505
      %s520 = sphi 0, %s506
      %s524 = sphi 0, %s524
      %s526 = sphi 0, %s524
      %s527 = sphi 0, %s526
      %s541 = sphi 0, %s527
      %s545 = sphi 0, %s545
      %s547 = sphi 0, %s545
      %s548 = sphi 0, %s547
      %s562 = sphi 0, %s548
      %s570 = sphi 0, %s572
      %s573 = sphi 0, %s570
      %s574 = sphi 0, %s573
      %s590 = sphi 0, %s574
    $region4: #{oformer_forward.3} parent=1 // loop_header_branch
      %38 = sbr.rel (%p36) target = $region8
    $region5: #{oformer_forward.3} parent=1 // loop_body
      %s40 = ssub.s32 %s35, 1
      %s41 = ssub.s32 %s35, 2
      %s51 = sadd.s32 1, %s44
      %p52 = scmp.ge.s32.totalorder %s51, 1
      %s53 = scalar_select %p52, 0, %s51
      %s54 = sadd.s32 1, %s43
      %s55 = scalar_select %p52, %s54, %s43
      %p56 = scmp.ge.s32.totalorder %s55, 1
      %s57 = scalar_select %p56, 0, %s55
      %s58 = sadd.s32 1, %s42
      %s59 = scalar_select %p56, %s58, %s42
      %p60 = scmp.ge.s32.totalorder %s59, 2
      %s61 = scalar_select %p60, 0, %s59
      %s62 = ssub.s32 %s42, %s61
      %s63 = ssub.s32 %s43, %s57
      %s64 = sor.u32 %s62, %s63
      %p65 = scmp.eq.s32.totalorder %s64, 0
      %s67 = sadd.s32 %s66, 1
      %s68 = scalar_select %p65, %s66, %s67
      %p71 = pneg %p65
      %p72 = scmp.eq.s32.totalorder %s35, 1
      %p73 = por %p71, %p72
      %p74 = scmp.ne.s32.totalorder %s66, %s69
      %p75 = scmp.eq.s32.totalorder %s35, 0
      %p76 = por %p74, %p75
      %p77 = scmp.ne.s32.totalorder %s66, %s69
      %p78 = scmp.eq.s32.totalorder %s40, 1
      %p79 = por %p77, %p78
      %p80 = scmp.ne.s32.totalorder %s69, %s70
      %p81 = scmp.eq.s32.totalorder %s40, 0
      %p82 = por %p80, %p81
      %p83 = scmp.ne.s32.totalorder %s69, %s70
      %p84 = scmp.eq.s32.totalorder %s41, 1
      %p85 = por %p83, %p84
      %p87 = scmp.ne.s32.totalorder %s70, %s86
      %p88 = scmp.eq.s32.totalorder %s41, 0
      %p89 = por %p87, %p88
      %s90 = ssub.s32 %s42, %s61
      %s91 = ssub.s32 %s43, %s57
      %s92 = sor.u32 %s90, %s91
      %p93 = scmp.eq.s32.totalorder %s92, 0
      %s95 = sadd.s32 %s94, 1
      %s96 = scalar_select %p93, %s94, %s95
      %p99 = pneg %p93
      %p100 = scmp.eq.s32.totalorder %s35, 1
      %p101 = por %p99, %p100
      %p102 = scmp.ne.s32.totalorder %s94, %s97
      %p103 = scmp.eq.s32.totalorder %s35, 0
      %p104 = por %p102, %p103
      %p105 = scmp.ne.s32.totalorder %s94, %s97
      %p106 = scmp.eq.s32.totalorder %s40, 1
      %p107 = por %p105, %p106
      %p108 = scmp.ne.s32.totalorder %s97, %s98
      %p109 = scmp.eq.s32.totalorder %s40, 0
      %p110 = por %p108, %p109
      %p111 = scmp.ne.s32.totalorder %s97, %s98
      %p112 = scmp.eq.s32.totalorder %s41, 1
      %p113 = por %p111, %p112
      %p115 = scmp.ne.s32.totalorder %s98, %s114
      %p116 = scmp.eq.s32.totalorder %s41, 0
      %p117 = por %p115, %p116
      %s118 = ssub.s32 %s42, %s61
      %s119 = ssub.s32 %s44, %s53
      %s120 = sor.u32 %s118, %s119
      %p121 = scmp.eq.s32.totalorder %s120, 0
      %s123 = sadd.s32 %s122, 1
      %s124 = scalar_select %p121, %s122, %s123
      %p127 = pneg %p121
      %p128 = scmp.eq.s32.totalorder %s35, 1
      %p129 = por %p127, %p128
      %p130 = scmp.ne.s32.totalorder %s122, %s125
      %p131 = scmp.eq.s32.totalorder %s35, 0
      %p132 = por %p130, %p131
      %p133 = scmp.ne.s32.totalorder %s122, %s125
      %p134 = scmp.eq.s32.totalorder %s40, 1
      %p135 = por %p133, %p134
      %p136 = scmp.ne.s32.totalorder %s125, %s126
      %p137 = scmp.eq.s32.totalorder %s40, 0
      %p138 = por %p136, %p137
      %p139 = scmp.ne.s32.totalorder %s125, %s126
      %p140 = scmp.eq.s32.totalorder %s41, 1
      %p141 = por %p139, %p140
      %p143 = scmp.ne.s32.totalorder %s126, %s142
      %p144 = scmp.eq.s32.totalorder %s41, 0
      %p145 = por %p143, %p144
      %s147 = sadd.s32 %s146, 1
      %p150 = scmp.eq.s32.totalorder %s35, 1
      %p151 = scmp.ne.s32.totalorder %s146, %s148
      %p152 = scmp.eq.s32.totalorder %s35, 0
      %p153 = por %p151, %p152
      %p154 = scmp.ne.s32.totalorder %s146, %s148
      %p155 = scmp.eq.s32.totalorder %s40, 1
      %p156 = por %p154, %p155
      %p157 = scmp.ne.s32.totalorder %s148, %s149
      %p158 = scmp.eq.s32.totalorder %s40, 0
      %p159 = por %p157, %p158
      %p160 = scmp.ne.s32.totalorder %s148, %s149
      %p161 = scmp.eq.s32.totalorder %s41, 1
      %p162 = por %p160, %p161
      %p164 = scmp.ne.s32.totalorder %s149, %s163
      %p165 = scmp.eq.s32.totalorder %s41, 0
      %p166 = por %p164, %p165
      %s168 = sadd.s32 %s167, 1
      %p171 = scmp.eq.s32.totalorder %s35, 1
      %p172 = scmp.ne.s32.totalorder %s167, %s169
      %p173 = scmp.eq.s32.totalorder %s35, 0
      %p174 = por %p172, %p173
      %p175 = scmp.ne.s32.totalorder %s167, %s169
      %p176 = scmp.eq.s32.totalorder %s40, 1
      %p177 = por %p175, %p176
      %p178 = scmp.ne.s32.totalorder %s169, %s170
      %p179 = scmp.eq.s32.totalorder %s40, 0
      %p180 = por %p178, %p179
      %p181 = scmp.ne.s32.totalorder %s169, %s170
      %p182 = scmp.eq.s32.totalorder %s41, 1
      %p183 = por %p181, %p182
      %p185 = scmp.ne.s32.totalorder %s170, %s184
      %p186 = scmp.eq.s32.totalorder %s41, 0
      %p187 = por %p185, %p186
      %s189 = sadd.s32 %s188, 1
      %p192 = scmp.eq.s32.totalorder %s35, 1
      %p193 = scmp.ne.s32.totalorder %s188, %s190
      %p194 = scmp.eq.s32.totalorder %s35, 0
      %p195 = por %p193, %p194
      %p196 = scmp.ne.s32.totalorder %s188, %s190
      %p197 = scmp.eq.s32.totalorder %s40, 1
      %p198 = por %p196, %p197
      %p199 = scmp.ne.s32.totalorder %s190, %s191
      %p200 = scmp.eq.s32.totalorder %s40, 0
      %p201 = por %p199, %p200
      %p202 = scmp.ne.s32.totalorder %s190, %s191
      %p203 = scmp.eq.s32.totalorder %s41, 1
      %p204 = por %p202, %p203
      %p206 = scmp.ne.s32.totalorder %s191, %s205
      %p207 = scmp.eq.s32.totalorder %s41, 0
      %p208 = por %p206, %p207
      %s210 = sadd.s32 %s209, 1
      %p213 = scmp.eq.s32.totalorder %s35, 1
      %p214 = scmp.ne.s32.totalorder %s209, %s211
      %p215 = scmp.eq.s32.totalorder %s35, 0
      %p216 = por %p214, %p215
      %p217 = scmp.ne.s32.totalorder %s209, %s211
      %p218 = scmp.eq.s32.totalorder %s40, 1
      %p219 = por %p217, %p218
      %p220 = scmp.ne.s32.totalorder %s211, %s212
      %p221 = scmp.eq.s32.totalorder %s40, 0
      %p222 = por %p220, %p221
      %p223 = scmp.ne.s32.totalorder %s211, %s212
      %p224 = scmp.eq.s32.totalorder %s41, 1
      %p225 = por %p223, %p224
      %p227 = scmp.ne.s32.totalorder %s212, %s226
      %p228 = scmp.eq.s32.totalorder %s41, 0
      %p229 = por %p227, %p228
      %s231 = sadd.s32 %s230, 1
      %p234 = scmp.eq.s32.totalorder %s35, 1
      %p235 = scmp.ne.s32.totalorder %s230, %s232
      %p236 = scmp.eq.s32.totalorder %s35, 0
      %p237 = por %p235, %p236
      %p238 = scmp.ne.s32.totalorder %s230, %s232
      %p239 = scmp.eq.s32.totalorder %s40, 1
      %p240 = por %p238, %p239
      %p241 = scmp.ne.s32.totalorder %s232, %s233
      %p242 = scmp.eq.s32.totalorder %s40, 0
      %p243 = por %p241, %p242
      %p244 = scmp.ne.s32.totalorder %s232, %s233
      %p245 = scmp.eq.s32.totalorder %s41, 1
      %p246 = por %p244, %p245
      %p248 = scmp.ne.s32.totalorder %s233, %s247
      %p249 = scmp.eq.s32.totalorder %s41, 0
      %p250 = por %p248, %p249
      %s252 = sadd.s32 %s251, 1
      %p255 = scmp.eq.s32.totalorder %s35, 1
      %p256 = scmp.ne.s32.totalorder %s251, %s253
      %p257 = scmp.eq.s32.totalorder %s35, 0
      %p258 = por %p256, %p257
      %p259 = scmp.ne.s32.totalorder %s251, %s253
      %p260 = scmp.eq.s32.totalorder %s40, 1
      %p261 = por %p259, %p260
      %p262 = scmp.ne.s32.totalorder %s253, %s254
      %p263 = scmp.eq.s32.totalorder %s40, 0
      %p264 = por %p262, %p263
      %p265 = scmp.ne.s32.totalorder %s253, %s254
      %p266 = scmp.eq.s32.totalorder %s41, 1
      %p267 = por %p265, %p266
      %p269 = scmp.ne.s32.totalorder %s254, %s268
      %p270 = scmp.eq.s32.totalorder %s41, 0
      %p271 = por %p269, %p270
      %s273 = sadd.s32 %s272, 1
      %p276 = scmp.eq.s32.totalorder %s35, 1
      %p277 = scmp.ne.s32.totalorder %s272, %s274
      %p278 = scmp.eq.s32.totalorder %s35, 0
      %p279 = por %p277, %p278
      %p280 = scmp.ne.s32.totalorder %s272, %s274
      %p281 = scmp.eq.s32.totalorder %s40, 1
      %p282 = por %p280, %p281
      %p283 = scmp.ne.s32.totalorder %s274, %s275
      %p284 = scmp.eq.s32.totalorder %s40, 0
      %p285 = por %p283, %p284
      %p286 = scmp.ne.s32.totalorder %s274, %s275
      %p287 = scmp.eq.s32.totalorder %s41, 1
      %p288 = por %p286, %p287
      %p290 = scmp.ne.s32.totalorder %s275, %s289
      %p291 = scmp.eq.s32.totalorder %s41, 0
      %p292 = por %p290, %p291
      %s294 = sadd.s32 %s293, 1
      %p297 = scmp.eq.s32.totalorder %s35, 1
      %p298 = scmp.ne.s32.totalorder %s293, %s295
      %p299 = scmp.eq.s32.totalorder %s35, 0
      %p300 = por %p298, %p299
      %p301 = scmp.ne.s32.totalorder %s293, %s295
      %p302 = scmp.eq.s32.totalorder %s40, 1
      %p303 = por %p301, %p302
      %p304 = scmp.ne.s32.totalorder %s295, %s296
      %p305 = scmp.eq.s32.totalorder %s40, 0
      %p306 = por %p304, %p305
      %p307 = scmp.ne.s32.totalorder %s295, %s296
      %p308 = scmp.eq.s32.totalorder %s41, 1
      %p309 = por %p307, %p308
      %p311 = scmp.ne.s32.totalorder %s296, %s310
      %p312 = scmp.eq.s32.totalorder %s41, 0
      %p313 = por %p311, %p312
      %s315 = sadd.s32 %s314, 1
      %p318 = scmp.eq.s32.totalorder %s35, 1
      %p319 = scmp.ne.s32.totalorder %s314, %s316
      %p320 = scmp.eq.s32.totalorder %s35, 0
      %p321 = por %p319, %p320
      %p322 = scmp.ne.s32.totalorder %s314, %s316
      %p323 = scmp.eq.s32.totalorder %s40, 1
      %p324 = por %p322, %p323
      %p325 = scmp.ne.s32.totalorder %s316, %s317
      %p326 = scmp.eq.s32.totalorder %s40, 0
      %p327 = por %p325, %p326
      %p328 = scmp.ne.s32.totalorder %s316, %s317
      %p329 = scmp.eq.s32.totalorder %s41, 1
      %p330 = por %p328, %p329
      %p332 = scmp.ne.s32.totalorder %s317, %s331
      %p333 = scmp.eq.s32.totalorder %s41, 0
      %p334 = por %p332, %p333
      %s336 = sadd.s32 %s335, 1
      %p339 = scmp.eq.s32.totalorder %s35, 1
      %p340 = scmp.ne.s32.totalorder %s335, %s337
      %p341 = scmp.eq.s32.totalorder %s35, 0
      %p342 = por %p340, %p341
      %p343 = scmp.ne.s32.totalorder %s335, %s337
      %p344 = scmp.eq.s32.totalorder %s40, 1
      %p345 = por %p343, %p344
      %p346 = scmp.ne.s32.totalorder %s337, %s338
      %p347 = scmp.eq.s32.totalorder %s40, 0
      %p348 = por %p346, %p347
      %p349 = scmp.ne.s32.totalorder %s337, %s338
      %p350 = scmp.eq.s32.totalorder %s41, 1
      %p351 = por %p349, %p350
      %p353 = scmp.ne.s32.totalorder %s338, %s352
      %p354 = scmp.eq.s32.totalorder %s41, 0
      %p355 = por %p353, %p354
      %s357 = sadd.s32 %s356, 1
      %p360 = scmp.eq.s32.totalorder %s35, 1
      %p361 = scmp.ne.s32.totalorder %s356, %s358
      %p362 = scmp.eq.s32.totalorder %s35, 0
      %p363 = por %p361, %p362
      %p364 = scmp.ne.s32.totalorder %s356, %s358
      %p365 = scmp.eq.s32.totalorder %s40, 1
      %p366 = por %p364, %p365
      %p367 = scmp.ne.s32.totalorder %s358, %s359
      %p368 = scmp.eq.s32.totalorder %s40, 0
      %p369 = por %p367, %p368
      %p370 = scmp.ne.s32.totalorder %s358, %s359
      %p371 = scmp.eq.s32.totalorder %s41, 1
      %p372 = por %p370, %p371
      %p374 = scmp.ne.s32.totalorder %s359, %s373
      %p375 = scmp.eq.s32.totalorder %s41, 0
      %p376 = por %p374, %p375
      %s378 = sadd.s32 %s377, 1
      %p381 = scmp.eq.s32.totalorder %s35, 1
      %p382 = scmp.ne.s32.totalorder %s377, %s379
      %p383 = scmp.eq.s32.totalorder %s35, 0
      %p384 = por %p382, %p383
      %p385 = scmp.ne.s32.totalorder %s377, %s379
      %p386 = scmp.eq.s32.totalorder %s40, 1
      %p387 = por %p385, %p386
      %p388 = scmp.ne.s32.totalorder %s379, %s380
      %p389 = scmp.eq.s32.totalorder %s40, 0
      %p390 = por %p388, %p389
      %p391 = scmp.ne.s32.totalorder %s379, %s380
      %p392 = scmp.eq.s32.totalorder %s41, 1
      %p393 = por %p391, %p392
      %p395 = scmp.ne.s32.totalorder %s380, %s394
      %p396 = scmp.eq.s32.totalorder %s41, 0
      %p397 = por %p395, %p396
      %s399 = sadd.s32 %s398, 1
      %p402 = scmp.eq.s32.totalorder %s35, 1
      %p403 = scmp.ne.s32.totalorder %s398, %s400
      %p404 = scmp.eq.s32.totalorder %s35, 0
      %p405 = por %p403, %p404
      %p406 = scmp.ne.s32.totalorder %s398, %s400
      %p407 = scmp.eq.s32.totalorder %s40, 1
      %p408 = por %p406, %p407
      %p409 = scmp.ne.s32.totalorder %s400, %s401
      %p410 = scmp.eq.s32.totalorder %s40, 0
      %p411 = por %p409, %p410
      %p412 = scmp.ne.s32.totalorder %s400, %s401
      %p413 = scmp.eq.s32.totalorder %s41, 1
      %p414 = por %p412, %p413
      %p416 = scmp.ne.s32.totalorder %s401, %s415
      %p417 = scmp.eq.s32.totalorder %s41, 0
      %p418 = por %p416, %p417
      %s420 = sadd.s32 %s419, 1
      %p423 = scmp.eq.s32.totalorder %s35, 1
      %p424 = scmp.ne.s32.totalorder %s419, %s421
      %p425 = scmp.eq.s32.totalorder %s35, 0
      %p426 = por %p424, %p425
      %p427 = scmp.ne.s32.totalorder %s419, %s421
      %p428 = scmp.eq.s32.totalorder %s40, 1
      %p429 = por %p427, %p428
      %p430 = scmp.ne.s32.totalorder %s421, %s422
      %p431 = scmp.eq.s32.totalorder %s40, 0
      %p432 = por %p430, %p431
      %p433 = scmp.ne.s32.totalorder %s421, %s422
      %p434 = scmp.eq.s32.totalorder %s41, 1
      %p435 = por %p433, %p434
      %p437 = scmp.ne.s32.totalorder %s422, %s436
      %p438 = scmp.eq.s32.totalorder %s41, 0
      %p439 = por %p437, %p438
      %s441 = sadd.s32 %s440, 1
      %p444 = scmp.eq.s32.totalorder %s35, 1
      %p445 = scmp.ne.s32.totalorder %s440, %s442
      %p446 = scmp.eq.s32.totalorder %s35, 0
      %p447 = por %p445, %p446
      %p448 = scmp.ne.s32.totalorder %s440, %s442
      %p449 = scmp.eq.s32.totalorder %s40, 1
      %p450 = por %p448, %p449
      %p451 = scmp.ne.s32.totalorder %s442, %s443
      %p452 = scmp.eq.s32.totalorder %s40, 0
      %p453 = por %p451, %p452
      %p454 = scmp.ne.s32.totalorder %s442, %s443
      %p455 = scmp.eq.s32.totalorder %s41, 1
      %p456 = por %p454, %p455
      %p458 = scmp.ne.s32.totalorder %s443, %s457
      %p459 = scmp.eq.s32.totalorder %s41, 0
      %p460 = por %p458, %p459
      %s462 = sadd.s32 %s461, 1
      %p465 = scmp.eq.s32.totalorder %s35, 1
      %p466 = scmp.ne.s32.totalorder %s461, %s463
      %p467 = scmp.eq.s32.totalorder %s35, 0
      %p468 = por %p466, %p467
      %p469 = scmp.ne.s32.totalorder %s461, %s463
      %p470 = scmp.eq.s32.totalorder %s40, 1
      %p471 = por %p469, %p470
      %p472 = scmp.ne.s32.totalorder %s463, %s464
      %p473 = scmp.eq.s32.totalorder %s40, 0
      %p474 = por %p472, %p473
      %p475 = scmp.ne.s32.totalorder %s463, %s464
      %p476 = scmp.eq.s32.totalorder %s41, 1
      %p477 = por %p475, %p476
      %p479 = scmp.ne.s32.totalorder %s464, %s478
      %p480 = scmp.eq.s32.totalorder %s41, 0
      %p481 = por %p479, %p480
      %s483 = sadd.s32 %s482, 1
      %p486 = scmp.eq.s32.totalorder %s35, 1
      %p487 = scmp.ne.s32.totalorder %s482, %s484
      %p488 = scmp.eq.s32.totalorder %s35, 0
      %p489 = por %p487, %p488
      %p490 = scmp.ne.s32.totalorder %s482, %s484
      %p491 = scmp.eq.s32.totalorder %s40, 1
      %p492 = por %p490, %p491
      %p493 = scmp.ne.s32.totalorder %s484, %s485
      %p494 = scmp.eq.s32.totalorder %s40, 0
      %p495 = por %p493, %p494
      %p496 = scmp.ne.s32.totalorder %s484, %s485
      %p497 = scmp.eq.s32.totalorder %s41, 1
      %p498 = por %p496, %p497
      %p500 = scmp.ne.s32.totalorder %s485, %s499
      %p501 = scmp.eq.s32.totalorder %s41, 0
      %p502 = por %p500, %p501
      %s504 = sadd.s32 %s503, 1
      %p507 = scmp.eq.s32.totalorder %s35, 1
      %p508 = scmp.ne.s32.totalorder %s503, %s505
      %p509 = scmp.eq.s32.totalorder %s35, 0
      %p510 = por %p508, %p509
      %p511 = scmp.ne.s32.totalorder %s503, %s505
      %p512 = scmp.eq.s32.totalorder %s40, 1
      %p513 = por %p511, %p512
      %p514 = scmp.ne.s32.totalorder %s505, %s506
      %p515 = scmp.eq.s32.totalorder %s40, 0
      %p516 = por %p514, %p515
      %p517 = scmp.ne.s32.totalorder %s505, %s506
      %p518 = scmp.eq.s32.totalorder %s41, 1
      %p519 = por %p517, %p518
      %p521 = scmp.ne.s32.totalorder %s506, %s520
      %p522 = scmp.eq.s32.totalorder %s41, 0
      %p523 = por %p521, %p522
      %s525 = sadd.s32 %s524, 1
      %p528 = scmp.eq.s32.totalorder %s35, 1
      %p529 = scmp.ne.s32.totalorder %s524, %s526
      %p530 = scmp.eq.s32.totalorder %s35, 0
      %p531 = por %p529, %p530
      %p532 = scmp.ne.s32.totalorder %s524, %s526
      %p533 = scmp.eq.s32.totalorder %s40, 1
      %p534 = por %p532, %p533
      %p535 = scmp.ne.s32.totalorder %s526, %s527
      %p536 = scmp.eq.s32.totalorder %s40, 0
      %p537 = por %p535, %p536
      %p538 = scmp.ne.s32.totalorder %s526, %s527
      %p539 = scmp.eq.s32.totalorder %s41, 1
      %p540 = por %p538, %p539
      %p542 = scmp.ne.s32.totalorder %s527, %s541
      %p543 = scmp.eq.s32.totalorder %s41, 0
      %p544 = por %p542, %p543
      %s546 = sadd.s32 %s545, 1
      %p549 = scmp.eq.s32.totalorder %s35, 1
      %p550 = scmp.ne.s32.totalorder %s545, %s547
      %p551 = scmp.eq.s32.totalorder %s35, 0
      %p552 = por %p550, %p551
      %p553 = scmp.ne.s32.totalorder %s545, %s547
      %p554 = scmp.eq.s32.totalorder %s40, 1
      %p555 = por %p553, %p554
      %p556 = scmp.ne.s32.totalorder %s547, %s548
      %p557 = scmp.eq.s32.totalorder %s40, 0
      %p558 = por %p556, %p557
      %p559 = scmp.ne.s32.totalorder %s547, %s548
      %p560 = scmp.eq.s32.totalorder %s41, 1
      %p561 = por %p559, %p560
      %p563 = scmp.ne.s32.totalorder %s548, %s562
      %p564 = scmp.eq.s32.totalorder %s41, 0
      %p565 = por %p563, %p564
      %s566 = ssub.s32 %s42, %s61
      %s567 = ssub.s32 %s43, %s57
      %s568 = sor.u32 %s566, %s567
      %p569 = scmp.eq.s32.totalorder %s568, 0
      %s571 = sadd.s32 %s570, 1
      %s572 = scalar_select %p569, %s570, %s571
      %p575 = pneg %p569
      %p576 = scmp.eq.s32.totalorder %s35, 1
      %p577 = por %p575, %p576
      %p578 = scmp.ne.s32.totalorder %s570, %s573
      %p579 = scmp.eq.s32.totalorder %s35, 0
      %p580 = por %p578, %p579
      %p581 = scmp.ne.s32.totalorder %s570, %s573
      %p582 = scmp.eq.s32.totalorder %s40, 1
      %p583 = por %p581, %p582
      %p584 = scmp.ne.s32.totalorder %s573, %s574
      %p585 = scmp.eq.s32.totalorder %s40, 0
      %p586 = por %p584, %p585
      %p587 = scmp.ne.s32.totalorder %s573, %s574
      %p588 = scmp.eq.s32.totalorder %s41, 1
      %p589 = por %p587, %p588
      %p591 = scmp.ne.s32.totalorder %s574, %s590
      %p592 = scmp.eq.s32.totalorder %s41, 0
      %p593 = por %p591, %p592
      %p594 = scmp.le.s32.totalorder 1, %s35
      %p595 = scmp.lt.s32.totalorder %s35, 3
      %p596 = pnand %p594, %p595
      %p597 = pneg %p596
      // Predicated region
      $region9: #{oformer_forward.3} parent=5 // pred_check
        _
      $region10: #{oformer_forward.3} parent=5 // pred_check_branch
        %599 = sbr.rel (%p596) target = $region12
      $region11: #{oformer_forward.3} parent=5 // pred_region
        %s600 = ssub.s32 %s35, 1
        // Predicated region
        $region13: #{oformer_forward.3} parent=11 // pred_check
          %p601 = pneg %p159
        $region14: #{oformer_forward.3} parent=11 // pred_check_branch
          %603 = sbr.rel (%p601) target = $region16
        $region15: #{oformer_forward.3} parent=11 // pred_region
          _
        $region16: #{oformer_forward.3} parent=11 // pred_fallthru
          _
        // Predicated region
        $region17: #{oformer_forward.3} parent=11 // pred_check
          %p604 = pneg %p180
        $region18: #{oformer_forward.3} parent=11 // pred_check_branch
          %606 = sbr.rel (%p604) target = $region20
        $region19: #{oformer_forward.3} parent=11 // pred_region
          _
        $region20: #{oformer_forward.3} parent=11 // pred_fallthru
          _
        // Predicated region
        $region21: #{oformer_forward.3} parent=11 // pred_check
          %p607 = pneg %p201
        $region22: #{oformer_forward.3} parent=11 // pred_check_branch
          %609 = sbr.rel (%p607) target = $region24
        $region23: #{oformer_forward.3} parent=11 // pred_region
          _
        $region24: #{oformer_forward.3} parent=11 // pred_fallthru
          _
        // Predicated region
        $region25: #{oformer_forward.3} parent=11 // pred_check
          %p610 = pneg %p222
        $region26: #{oformer_forward.3} parent=11 // pred_check_branch
          %612 = sbr.rel (%p610) target = $region28
        $region27: #{oformer_forward.3} parent=11 // pred_region
          _
        $region28: #{oformer_forward.3} parent=11 // pred_fallthru
          _
        // Predicated region
        $region29: #{oformer_forward.3} parent=11 // pred_check
          %p613 = pneg %p243
        $region30: #{oformer_forward.3} parent=11 // pred_check_branch
          %615 = sbr.rel (%p613) target = $region32
        $region31: #{oformer_forward.3} parent=11 // pred_region
          %617 = vsyncadd [#allocation8], 0
          %s618 = sshll.u32 %s7, 4
          %s619 = int_to_ptr.hbm [resolvable:$true] %s618
          %s620 = sshll.u32 [#allocation7], 4
          %s621 = int_to_ptr.vmem [resolvable:$true] %s620
          %626 = dma.hbm_to_vmem [thread:$0]  %s619, 1024, %s621, [#allocation8], 64, 64, 4
        $region32: #{oformer_forward.3} parent=11 // pred_fallthru
          _
        // Predicated region
        $region33: #{oformer_forward.3} parent=11 // pred_check
          %p627 = pneg %p264
        $region34: #{oformer_forward.3} parent=11 // pred_check_branch
          %629 = sbr.rel (%p627) target = $region36
        $region35: #{oformer_forward.3} parent=11 // pred_region
          _
        $region36: #{oformer_forward.3} parent=11 // pred_fallthru
          _
        // Predicated region
        $region37: #{oformer_forward.3} parent=11 // pred_check
          %p630 = pneg %p285
        $region38: #{oformer_forward.3} parent=11 // pred_check_branch
          %632 = sbr.rel (%p630) target = $region40
        $region39: #{oformer_forward.3} parent=11 // pred_region
          _
        $region40: #{oformer_forward.3} parent=11 // pred_fallthru
          _
        // Predicated region
        $region41: #{oformer_forward.3} parent=11 // pred_check
          %p633 = pneg %p306
        $region42: #{oformer_forward.3} parent=11 // pred_check_branch
          %635 = sbr.rel (%p633) target = $region44
        $region43: #{oformer_forward.3} parent=11 // pred_region
          %637 = vsyncadd [#allocation10], 0
          %s639 = sshll.u32 %s10, 4
          %s640 = int_to_ptr.hbm [resolvable:$true] %s639
          %s641 = sshll.u32 [#allocation9], 4
          %s642 = int_to_ptr.vmem [resolvable:$true] %s641
          %644 = dma.hbm_to_vmem [thread:$0]  %s640, 16, %s642, [#allocation10]
        $region44: #{oformer_forward.3} parent=11 // pred_fallthru
          _
        // Predicated region
        $region45: #{oformer_forward.3} parent=11 // pred_check
          %p645 = pneg %p327
        $region46: #{oformer_forward.3} parent=11 // pred_check_branch
          %647 = sbr.rel (%p645) target = $region48
        $region47: #{oformer_forward.3} parent=11 // pred_region
          %649 = vsyncadd [#allocation10], 0
          %s651 = sshll.u32 %s11, 4
          %s652 = int_to_ptr.hbm [resolvable:$true] %s651
          %s653 = sshll.u32 [#allocation11], 4
          %s654 = int_to_ptr.vmem [resolvable:$true] %s653
          %656 = dma.hbm_to_vmem [thread:$0]  %s652, 16, %s654, [#allocation10]
        $region48: #{oformer_forward.3} parent=11 // pred_fallthru
          _
        // Predicated region
        $region49: #{oformer_forward.3} parent=11 // pred_check
          %p657 = pneg %p348
        $region50: #{oformer_forward.3} parent=11 // pred_check_branch
          %659 = sbr.rel (%p657) target = $region52
        $region51: #{oformer_forward.3} parent=11 // pred_region
          %661 = vsyncadd [#allocation13], 0
          %s662 = sshll.u32 %s12, 4
          %s663 = int_to_ptr.hbm [resolvable:$true] %s662
          %s664 = sshll.u32 [#allocation12], 4
          %s665 = int_to_ptr.vmem [resolvable:$true] %s664
          %670 = dma.hbm_to_vmem [thread:$0]  %s663, 1024, %s665, [#allocation13], 64, 64, 4
        $region52: #{oformer_forward.3} parent=11 // pred_fallthru
          _
        // Predicated region
        $region53: #{oformer_forward.3} parent=11 // pred_check
          %p671 = pneg %p369
        $region54: #{oformer_forward.3} parent=11 // pred_check_branch
          %673 = sbr.rel (%p671) target = $region56
        $region55: #{oformer_forward.3} parent=11 // pred_region
          _
        $region56: #{oformer_forward.3} parent=11 // pred_fallthru
          _
        // Predicated region
        $region57: #{oformer_forward.3} parent=11 // pred_check
          %p674 = pneg %p390
        $region58: #{oformer_forward.3} parent=11 // pred_check_branch
          %676 = sbr.rel (%p674) target = $region60
        $region59: #{oformer_forward.3} parent=11 // pred_region
          %678 = vsyncadd [#allocation13], 0
          %s679 = sshll.u32 %s14, 4
          %s680 = int_to_ptr.hbm [resolvable:$true] %s679
          %s681 = sshll.u32 [#allocation14], 4
          %s682 = int_to_ptr.vmem [resolvable:$true] %s681
          %687 = dma.hbm_to_vmem [thread:$0]  %s680, 1024, %s682, [#allocation13], 64, 64, 4
        $region60: #{oformer_forward.3} parent=11 // pred_fallthru
          _
        // Predicated region
        $region61: #{oformer_forward.3} parent=11 // pred_check
          %p688 = pneg %p411
        $region62: #{oformer_forward.3} parent=11 // pred_check_branch
          %690 = sbr.rel (%p688) target = $region64
        $region63: #{oformer_forward.3} parent=11 // pred_region
          %692 = vsyncadd [#allocation16], 0
          %s694 = sshll.u32 %s15, 4
          %s695 = int_to_ptr.hbm [resolvable:$true] %s694
          %s696 = sshll.u32 [#allocation15], 4
          %s697 = int_to_ptr.vmem [resolvable:$true] %s696
          %699 = dma.hbm_to_vmem [thread:$0]  %s695, 16, %s697, [#allocation16]
        $region64: #{oformer_forward.3} parent=11 // pred_fallthru
          _
        // Predicated region
        $region65: #{oformer_forward.3} parent=11 // pred_check
          %p700 = pneg %p432
        $region66: #{oformer_forward.3} parent=11 // pred_check_branch
          %702 = sbr.rel (%p700) target = $region68
        $region67: #{oformer_forward.3} parent=11 // pred_region
          %704 = vsyncadd [#allocation16], 0
          %s706 = sshll.u32 %s16, 4
          %s707 = int_to_ptr.hbm [resolvable:$true] %s706
          %s708 = sshll.u32 [#allocation17], 4
          %s709 = int_to_ptr.vmem [resolvable:$true] %s708
          %711 = dma.hbm_to_vmem [thread:$0]  %s707, 16, %s709, [#allocation16]
        $region68: #{oformer_forward.3} parent=11 // pred_fallthru
          _
        // Predicated region
        $region69: #{oformer_forward.3} parent=11 // pred_check
          %p712 = pneg %p453
        $region70: #{oformer_forward.3} parent=11 // pred_check_branch
          %714 = sbr.rel (%p712) target = $region72
        $region71: #{oformer_forward.3} parent=11 // pred_region
          %716 = vsyncadd [#allocation19], 0
          %s717 = sshll.u32 %s17, 4
          %s718 = int_to_ptr.hbm [resolvable:$true] %s717
          %s719 = sshll.u32 [#allocation18], 4
          %s720 = int_to_ptr.vmem [resolvable:$true] %s719
          %725 = dma.hbm_to_vmem [thread:$0]  %s718, 1024, %s720, [#allocation19], 64, 64, 4
        $region72: #{oformer_forward.3} parent=11 // pred_fallthru
          _
        // Predicated region
        $region73: #{oformer_forward.3} parent=11 // pred_check
          %p726 = pneg %p474
        $region74: #{oformer_forward.3} parent=11 // pred_check_branch
          %728 = sbr.rel (%p726) target = $region76
        $region75: #{oformer_forward.3} parent=11 // pred_region
          %730 = vsyncadd [#allocation19], 0
          %s732 = sshll.u32 %s18, 4
          %s733 = int_to_ptr.hbm [resolvable:$true] %s732
          %s734 = sshll.u32 [#allocation20], 4
          %s735 = int_to_ptr.vmem [resolvable:$true] %s734
          %737 = dma.hbm_to_vmem [thread:$0]  %s733, 16, %s735, [#allocation19]
        $region76: #{oformer_forward.3} parent=11 // pred_fallthru
          _
        // Predicated region
        $region77: #{oformer_forward.3} parent=11 // pred_check
          %p738 = pneg %p495
        $region78: #{oformer_forward.3} parent=11 // pred_check_branch
          %740 = sbr.rel (%p738) target = $region80
        $region79: #{oformer_forward.3} parent=11 // pred_region
          %742 = vsyncadd [#allocation22], 0
          %s743 = sshll.u32 %s19, 4
          %s744 = int_to_ptr.hbm [resolvable:$true] %s743
          %s745 = sshll.u32 [#allocation21], 4
          %s746 = int_to_ptr.vmem [resolvable:$true] %s745
          %751 = dma.hbm_to_vmem [thread:$0]  %s744, 1024, %s746, [#allocation22], 64, 64, 4
        $region80: #{oformer_forward.3} parent=11 // pred_fallthru
          _
        // Predicated region
        $region81: #{oformer_forward.3} parent=11 // pred_check
          %p752 = pneg %p516
        $region82: #{oformer_forward.3} parent=11 // pred_check_branch
          %754 = sbr.rel (%p752) target = $region84
        $region83: #{oformer_forward.3} parent=11 // pred_region
          %756 = vsyncadd [#allocation22], 0
          %s758 = sshll.u32 %s20, 4
          %s759 = int_to_ptr.hbm [resolvable:$true] %s758
          %s760 = sshll.u32 [#allocation23], 4
          %s761 = int_to_ptr.vmem [resolvable:$true] %s760
          %763 = dma.hbm_to_vmem [thread:$0]  %s759, 16, %s761, [#allocation22]
        $region84: #{oformer_forward.3} parent=11 // pred_fallthru
          _
        // Predicated region
        $region85: #{oformer_forward.3} parent=11 // pred_check
          %p764 = pneg %p537
        $region86: #{oformer_forward.3} parent=11 // pred_check_branch
          %766 = sbr.rel (%p764) target = $region88
        $region87: #{oformer_forward.3} parent=11 // pred_region
          _
        $region88: #{oformer_forward.3} parent=11 // pred_fallthru
          _
        // Predicated region
        $region89: #{oformer_forward.3} parent=11 // pred_check
          %p767 = pneg %p558
        $region90: #{oformer_forward.3} parent=11 // pred_check_branch
          %769 = sbr.rel (%p767) target = $region92
        $region91: #{oformer_forward.3} parent=11 // pred_region
          _
        $region92: #{oformer_forward.3} parent=11 // pred_fallthru
          _
      $region12: #{oformer_forward.3} parent=5 // pred_fallthru
        _
      %p770 = scmp.lt.s32.totalorder %s35, 2
      // Predicated region
      $region93: #{oformer_forward.3} parent=5 // pred_check
        %p771 = pneg %p770
      $region94: #{oformer_forward.3} parent=5 // pred_check_branch
        %773 = sbr.rel (%p771) target = $region96
      $region95: #{oformer_forward.3} parent=5 // pred_region
        // Predicated region
        $region97: #{oformer_forward.3} parent=95 // pred_check
          %p774 = pneg %p76
        $region98: #{oformer_forward.3} parent=95 // pred_check_branch
          %776 = sbr.rel (%p774) target = $region100
        $region99: #{oformer_forward.3} parent=95 // pred_region
          %s777 = smul.u32 8, %s43
          %p778 = scmp.lt.s32.totalorder %s42, 1
          %s779 = scalar_select %p778, %s42, 1
          %p780 = scmp.lt.s32.totalorder %s777, 7
          %s781 = scalar_select %p780, %s777, 7
          %s782 = smul.addr %s779, 8
          %s783 = sadd.s32 %s781, %s782
          %s784 = smul.addr %s783, 8
          %s785 = scalar_lea.vmem %s0, %s784
          %s786 = smul.u32 8, %s43
        $region100: #{oformer_forward.3} parent=95 // pred_fallthru
          _
        // Predicated region
        $region101: #{oformer_forward.3} parent=95 // pred_check
          %p787 = pneg %p104
        $region102: #{oformer_forward.3} parent=95 // pred_check_branch
          %789 = sbr.rel (%p787) target = $region104
        $region103: #{oformer_forward.3} parent=95 // pred_region
          %s790 = smul.u32 8, %s43
          %p791 = scmp.lt.s32.totalorder %s42, 1
          %s792 = scalar_select %p791, %s42, 1
          %p793 = scmp.lt.s32.totalorder %s790, 7
          %s794 = scalar_select %p793, %s790, 7
          %s795 = smul.addr %s792, 8
          %s796 = sadd.s32 %s794, %s795
          %s797 = smul.addr %s796, 8
          %s798 = scalar_lea.vmem %s1, %s797
          %s799 = smul.u32 8, %s43
        $region104: #{oformer_forward.3} parent=95 // pred_fallthru
          _
        // Predicated region
        $region105: #{oformer_forward.3} parent=95 // pred_check
          %p800 = pneg %p132
        $region106: #{oformer_forward.3} parent=95 // pred_check_branch
          %802 = sbr.rel (%p800) target = $region108
        $region107: #{oformer_forward.3} parent=95 // pred_region
          %s803 = smul.u32 8, %s44
          %p804 = scmp.lt.s32.totalorder %s42, 1
          %s805 = scalar_select %p804, %s42, 1
          %p806 = scmp.lt.s32.totalorder %s803, 7
          %s807 = scalar_select %p806, %s803, 7
          %s808 = smul.addr %s805, 8
          %s809 = sadd.s32 %s807, %s808
          %s810 = smul.addr %s809, 4
          %s811 = scalar_lea.vmem %s2, %s810
          %s812 = smul.u32 8, %s44
        $region108: #{oformer_forward.3} parent=95 // pred_fallthru
          _
      $region96: #{oformer_forward.3} parent=5 // pred_fallthru
        _
      %p813 = scmp.le.s32.totalorder 1, %s35
      %p814 = scmp.lt.s32.totalorder %s35, 3
      %p815 = pnand %p813, %p814
      %p816 = pneg %p815
      // Predicated region
      $region109: #{oformer_forward.3} parent=5 // pred_check
        _
      $region110: #{oformer_forward.3} parent=5 // pred_check_branch
        %818 = sbr.rel (%p815) target = $region112
      $region111: #{oformer_forward.3} parent=5 // pred_region
        %s819 = ssub.s32 %s35, 1
        // Predicated region
        $region113: #{oformer_forward.3} parent=111 // pred_check
          %p820 = pneg %p243
        $region114: #{oformer_forward.3} parent=111 // pred_check_branch
          %822 = sbr.rel (%p820) target = $region116
        $region115: #{oformer_forward.3} parent=111 // pred_region
          %824 = dma.done [#allocation8], 1024
        $region116: #{oformer_forward.3} parent=111 // pred_fallthru
          _
        // Predicated region
        $region117: #{oformer_forward.3} parent=111 // pred_check
          %p825 = pneg %p306
        $region118: #{oformer_forward.3} parent=111 // pred_check_branch
          %827 = sbr.rel (%p825) target = $region120
        $region119: #{oformer_forward.3} parent=111 // pred_region
          %829 = dma.done [#allocation10], 16
        $region120: #{oformer_forward.3} parent=111 // pred_fallthru
          _
        // Predicated region
        $region121: #{oformer_forward.3} parent=111 // pred_check
          %p830 = pneg %p327
        $region122: #{oformer_forward.3} parent=111 // pred_check_branch
          %832 = sbr.rel (%p830) target = $region124
        $region123: #{oformer_forward.3} parent=111 // pred_region
          %834 = dma.done [#allocation10], 16
        $region124: #{oformer_forward.3} parent=111 // pred_fallthru
          _
        // Predicated region
        $region125: #{oformer_forward.3} parent=111 // pred_check
          %p835 = pneg %p348
        $region126: #{oformer_forward.3} parent=111 // pred_check_branch
          %837 = sbr.rel (%p835) target = $region128
        $region127: #{oformer_forward.3} parent=111 // pred_region
          %839 = dma.done [#allocation13], 1024
        $region128: #{oformer_forward.3} parent=111 // pred_fallthru
          _
        // Predicated region
        $region129: #{oformer_forward.3} parent=111 // pred_check
          %p840 = pneg %p390
        $region130: #{oformer_forward.3} parent=111 // pred_check_branch
          %842 = sbr.rel (%p840) target = $region132
        $region131: #{oformer_forward.3} parent=111 // pred_region
          %844 = dma.done [#allocation13], 1024
        $region132: #{oformer_forward.3} parent=111 // pred_fallthru
          _
        // Predicated region
        $region133: #{oformer_forward.3} parent=111 // pred_check
          %p845 = pneg %p411
        $region134: #{oformer_forward.3} parent=111 // pred_check_branch
          %847 = sbr.rel (%p845) target = $region136
        $region135: #{oformer_forward.3} parent=111 // pred_region
          %849 = dma.done [#allocation16], 16
        $region136: #{oformer_forward.3} parent=111 // pred_fallthru
          _
        // Predicated region
        $region137: #{oformer_forward.3} parent=111 // pred_check
          %p850 = pneg %p432
        $region138: #{oformer_forward.3} parent=111 // pred_check_branch
          %852 = sbr.rel (%p850) target = $region140
        $region139: #{oformer_forward.3} parent=111 // pred_region
          %854 = dma.done [#allocation16], 16
        $region140: #{oformer_forward.3} parent=111 // pred_fallthru
          _
        // Predicated region
        $region141: #{oformer_forward.3} parent=111 // pred_check
          %p855 = pneg %p453
        $region142: #{oformer_forward.3} parent=111 // pred_check_branch
          %857 = sbr.rel (%p855) target = $region144
        $region143: #{oformer_forward.3} parent=111 // pred_region
          %859 = dma.done [#allocation19], 1024
        $region144: #{oformer_forward.3} parent=111 // pred_fallthru
          _
        // Predicated region
        $region145: #{oformer_forward.3} parent=111 // pred_check
          %p860 = pneg %p474
        $region146: #{oformer_forward.3} parent=111 // pred_check_branch
          %862 = sbr.rel (%p860) target = $region148
        $region147: #{oformer_forward.3} parent=111 // pred_region
          %864 = dma.done [#allocation19], 16
        $region148: #{oformer_forward.3} parent=111 // pred_fallthru
          _
        // Predicated region
        $region149: #{oformer_forward.3} parent=111 // pred_check
          %p865 = pneg %p495
        $region150: #{oformer_forward.3} parent=111 // pred_check_branch
          %867 = sbr.rel (%p865) target = $region152
        $region151: #{oformer_forward.3} parent=111 // pred_region
          %869 = dma.done [#allocation22], 1024
        $region152: #{oformer_forward.3} parent=111 // pred_fallthru
          _
        // Predicated region
        $region153: #{oformer_forward.3} parent=111 // pred_check
          %p870 = pneg %p516
        $region154: #{oformer_forward.3} parent=111 // pred_check_branch
          %872 = sbr.rel (%p870) target = $region156
        $region155: #{oformer_forward.3} parent=111 // pred_region
          %874 = dma.done [#allocation22], 16
        $region156: #{oformer_forward.3} parent=111 // pred_fallthru
          _
        %s875 = smul.u32 8, %s46
        %p876 = scmp.lt.s32.totalorder %s45, 1
        %s877 = scalar_select %p876, %s45, 1
        %p878 = scmp.lt.s32.totalorder %s875, 7
        %s879 = scalar_select %p878, %s875, 7
        %s880 = smul.addr %s877, 8
        %s881 = sadd.s32 %s879, %s880
        %s882 = smul.addr %s881, 8
        %s883 = scalar_lea.vmem %s0, %s882
        %p884 = pneg %p82
        %p885 = pneg %p79
        %s886 = smul.u32 8, %s46
        %p887 = scmp.lt.s32.totalorder %s45, 1
        %s888 = scalar_select %p887, %s45, 1
        %p889 = scmp.lt.s32.totalorder %s886, 7
        %s890 = scalar_select %p889, %s886, 7
        %s891 = smul.addr %s888, 8
        %s892 = sadd.s32 %s890, %s891
        %s893 = smul.addr %s892, 8
        %s894 = scalar_lea.vmem %s1, %s893
        %p895 = pneg %p110
        %p896 = pneg %p107
        %s897 = smul.u32 8, %s47
        %p898 = scmp.lt.s32.totalorder %s45, 1
        %s899 = scalar_select %p898, %s45, 1
        %p900 = scmp.lt.s32.totalorder %s897, 7
        %s901 = scalar_select %p900, %s897, 7
        %s902 = smul.addr %s899, 8
        %s903 = sadd.s32 %s901, %s902
        %s904 = smul.addr %s903, 4
        %s905 = scalar_lea.vmem %s2, %s904
        %p906 = pneg %p138
        %p907 = pneg %p135
        %p908 = pneg %p159
        %p909 = pneg %p156
        %p910 = pneg %p180
        %p911 = pneg %p177
        %p912 = pneg %p201
        %p913 = pneg %p198
        %p914 = pneg %p222
        %p915 = pneg %p219
        %p916 = pneg %p243
        %p917 = pneg %p240
        %p918 = pneg %p264
        %p919 = pneg %p261
        %p920 = pneg %p285
        %p921 = pneg %p282
        %p922 = pneg %p306
        %p923 = pneg %p303
        %p924 = pneg %p327
        %p925 = pneg %p324
        %p926 = pneg %p348
        %p927 = pneg %p345
        %p928 = pneg %p369
        %p929 = pneg %p366
        %p930 = pneg %p390
        %p931 = pneg %p387
        %p932 = pneg %p411
        %p933 = pneg %p408
        %p934 = pneg %p432
        %p935 = pneg %p429
        %p936 = pneg %p453
        %p937 = pneg %p450
        %p938 = pneg %p474
        %p939 = pneg %p471
        %p940 = pneg %p495
        %p941 = pneg %p492
        %p942 = pneg %p516
        %p943 = pneg %p513
        %p944 = pneg %p537
        %p945 = pneg %p534
        %p946 = pneg %p558
        %p947 = pneg %p555
        %p948 = pneg %p586
        %p949 = pneg %p583
        %p950 = scmp.lt.s32.totalorder %s45, 1
        %s951 = scalar_select %p950, %s45, 1
        %p952 = scmp.lt.s32.totalorder %s46, 0
        %s953 = scalar_select %p952, %s46, 0
        %s954 = smul.addr %s951, 2
        %s955 = sadd.s32 %s953, %s954
        %s956 = smul.addr %s955, 4
        %s957 = scalar_lea.vmem %s23, %s956
        %s958 = smul.u32 8, %s46
        %p959 = scmp.lt.s32.totalorder %s45, 1
        %s960 = scalar_select %p959, %s45, 1
        %p961 = scmp.lt.s32.totalorder %s958, 7
        %s962 = scalar_select %p961, %s958, 7
        %s963 = smul.addr %s960, 8
        %s964 = sadd.s32 %s962, %s963
        %s965 = smul.addr %s964, 8
        %s966 = scalar_lea.vmem %s0, %s965
        %s967 = smul.u32 8, %s46
        %s968 = smul.u32 8, %s46
        %p969 = scmp.lt.s32.totalorder %s45, 1
        %s970 = scalar_select %p969, %s45, 1
        %p971 = scmp.lt.s32.totalorder %s968, 7
        %s972 = scalar_select %p971, %s968, 7
        %s973 = smul.addr %s970, 8
        %s974 = sadd.s32 %s972, %s973
        %s975 = smul.addr %s974, 8
        %s976 = scalar_lea.vmem %s1, %s975
        %s977 = smul.u32 8, %s46
        %s978 = smul.u32 8, %s47
        %p979 = scmp.lt.s32.totalorder %s45, 1
        %s980 = scalar_select %p979, %s45, 1
        %p981 = scmp.lt.s32.totalorder %s978, 7
        %s982 = scalar_select %p981, %s978, 7
        %s983 = smul.addr %s980, 8
        %s984 = sadd.s32 %s982, %s983
        %s985 = smul.addr %s984, 4
        %s986 = scalar_lea.vmem %s2, %s985
        %s987 = smul.u32 8, %s47
        %p988 = scmp.lt.s32.totalorder %s45, 1
        %s989 = scalar_select %p988, %s45, 1
        %p990 = scmp.lt.s32.totalorder %s46, 0
        %s991 = scalar_select %p990, %s46, 0
        %s992 = smul.addr %s989, 2
        %s993 = sadd.s32 %s991, %s992
        %s994 = smul.addr %s993, 4
        %s995 = scalar_lea.vmem %s23, %s994
        %p997 = scmp.eq.s32.totalorder %s47, 0
        // Predicated region
        $region157: #{oformer_forward.3} parent=111 // pred_check
          %p998 = pneg %p997
        $region158: #{oformer_forward.3} parent=111 // pred_check_branch
          %1000 = sbr.rel (%p998) target = $region160
        $region159: #{oformer_forward.3} parent=111 // pred_region
          %v1001 = vld [vmem:[%s966] sm:$0xff]
          %v1002 = vld [vmem:[%s966 + $0x8] sm:$0xff]
          %v1003 = vld [vmem:[%s966 + $0x10] sm:$0xff]
          %v1004 = vld [vmem:[%s966 + $0x18] sm:$0xff]
          %v1005 = vld [vmem:[%s966 + $0x20] sm:$0xff]
          %v1006 = vld [vmem:[%s966 + $0x28] sm:$0xff]
          %v1007 = vld [vmem:[%s966 + $0x30] sm:$0xff]
          %v1008 = vld [vmem:[%s966 + $0x38] sm:$0xff]
          %v1009 = vld [vmem:[%s976] sm:$0xff]
          %v1010 = vld [vmem:[%s976 + $0x8] sm:$0xff]
          %v1011 = vld [vmem:[%s976 + $0x10] sm:$0xff]
          %v1012 = vld [vmem:[%s976 + $0x18] sm:$0xff]
          %v1013 = vld [vmem:[%s976 + $0x20] sm:$0xff]
          %v1014 = vld [vmem:[%s976 + $0x28] sm:$0xff]
          %v1015 = vld [vmem:[%s976 + $0x30] sm:$0xff]
          %v1016 = vld [vmem:[%s976 + $0x38] sm:$0xff]
          %v1017 = vld [vmem:[%s3] sm:$0x3]
          %1019 = vset.pattern.permute.xlu0 0
          %1020 = vperm.xlu0 %1019, %v1001
          %v1021 = vpop.permute.xlu0 %1020
          %1024 = vset.pattern.permute.xlu0 0
          %1025 = vperm.xlu0 %1024, %v1002
          %v1026 = vpop.permute.xlu0 %1025
          %1029 = vset.pattern.permute.xlu0 0
          %1030 = vperm.xlu0 %1029, %v1003
          %v1031 = vpop.permute.xlu0 %1030
          %1034 = vset.pattern.permute.xlu0 0
          %1035 = vperm.xlu0 %1034, %v1004
          %v1036 = vpop.permute.xlu0 %1035
          %1039 = vset.pattern.permute.xlu0 0
          %1040 = vperm.xlu0 %1039, %v1005
          %v1041 = vpop.permute.xlu0 %1040
          %1044 = vset.pattern.permute.xlu0 0
          %1045 = vperm.xlu0 %1044, %v1006
          %v1046 = vpop.permute.xlu0 %1045
          %1049 = vset.pattern.permute.xlu0 0
          %1050 = vperm.xlu0 %1049, %v1007
          %v1051 = vpop.permute.xlu0 %1050
          %1054 = vset.pattern.permute.xlu0 0
          %1055 = vperm.xlu0 %1054, %v1008
          %v1056 = vpop.permute.xlu0 %1055
          %v1058 = vperm.slane %v1017, 0
          %v1059 = vmul.f32 %v1021, %v1058
          %v1060 = vmul.f32 %v1026, %v1058
          %v1061 = vmul.f32 %v1031, %v1058
          %v1062 = vmul.f32 %v1036, %v1058
          %v1063 = vmul.f32 %v1041, %v1058
          %v1064 = vmul.f32 %v1046, %v1058
          %v1065 = vmul.f32 %v1051, %v1058
          %v1066 = vmul.f32 %v1056, %v1058
          %1067 = vset.pattern.permute.xlu0 1
          %1068 = vperm.xlu0 %1067, %v1001
          %v1069 = vpop.permute.xlu0 %1068
          %1071 = vset.pattern.permute.xlu0 1
          %1072 = vperm.xlu0 %1071, %v1002
          %v1073 = vpop.permute.xlu0 %1072
          %1075 = vset.pattern.permute.xlu0 1
          %1076 = vperm.xlu0 %1075, %v1003
          %v1077 = vpop.permute.xlu0 %1076
          %1079 = vset.pattern.permute.xlu0 1
          %1080 = vperm.xlu0 %1079, %v1004
          %v1081 = vpop.permute.xlu0 %1080
          %1083 = vset.pattern.permute.xlu0 1
          %1084 = vperm.xlu0 %1083, %v1005
          %v1085 = vpop.permute.xlu0 %1084
          %1087 = vset.pattern.permute.xlu0 1
          %1088 = vperm.xlu0 %1087, %v1006
          %v1089 = vpop.permute.xlu0 %1088
          %1091 = vset.pattern.permute.xlu0 1
          %1092 = vperm.xlu0 %1091, %v1007
          %v1093 = vpop.permute.xlu0 %1092
          %1095 = vset.pattern.permute.xlu0 1
          %1096 = vperm.xlu0 %1095, %v1008
          %v1097 = vpop.permute.xlu0 %1096
          %v1099 = vperm.slane %v1017, 1
          %v1100 = vmul.f32 %v1069, %v1099
          %v1101 = vmul.f32 %v1073, %v1099
          %v1102 = vmul.f32 %v1077, %v1099
          %v1103 = vmul.f32 %v1081, %v1099
          %v1104 = vmul.f32 %v1085, %v1099
          %v1105 = vmul.f32 %v1089, %v1099
          %v1106 = vmul.f32 %v1093, %v1099
          %v1107 = vmul.f32 %v1097, %v1099
          %v1108 = vadd.f32 %v1059, %v1100
          %v1109 = vadd.f32 %v1060, %v1101
          %v1110 = vadd.f32 %v1061, %v1102
          %v1111 = vadd.f32 %v1062, %v1103
          %v1112 = vadd.f32 %v1063, %v1104
          %v1113 = vadd.f32 %v1064, %v1105
          %v1114 = vadd.f32 %v1065, %v1106
          %v1115 = vadd.f32 %v1066, %v1107
          %v1116 = vmul.f32 %v1108, %v1108
          %v1117 = vmul.f32 %v1109, %v1109
          %v1118 = vmul.f32 %v1110, %v1110
          %v1119 = vmul.f32 %v1111, %v1111
          %v1120 = vmul.f32 %v1112, %v1112
          %v1121 = vmul.f32 %v1113, %v1113
          %v1122 = vmul.f32 %v1114, %v1114
          %v1123 = vmul.f32 %v1115, %v1115
          %v1124 = vmul.f32 %v1108, %v1116
          %v1125 = vmul.f32 %v1109, %v1117
          %v1126 = vmul.f32 %v1110, %v1118
          %v1127 = vmul.f32 %v1111, %v1119
          %v1128 = vmul.f32 %v1112, %v1120
          %v1129 = vmul.f32 %v1113, %v1121
          %v1130 = vmul.f32 %v1114, %v1122
          %v1131 = vmul.f32 %v1115, %v1123
          %v1132 = vmul.f32 %v1124, 0.044715
          %v1133 = vmul.f32 %v1125, 0.044715
          %v1134 = vmul.f32 %v1126, 0.044715
          %v1135 = vmul.f32 %v1127, 0.044715
          %v1136 = vmul.f32 %v1128, 0.044715
          %v1137 = vmul.f32 %v1129, 0.044715
          %v1138 = vmul.f32 %v1130, 0.044715
          %v1139 = vmul.f32 %v1131, 0.044715
          %v1140 = vadd.f32 %v1108, %v1132
          %v1141 = vadd.f32 %v1109, %v1133
          %v1142 = vadd.f32 %v1110, %v1134
          %v1143 = vadd.f32 %v1111, %v1135
          %v1144 = vadd.f32 %v1112, %v1136
          %v1145 = vadd.f32 %v1113, %v1137
          %v1146 = vadd.f32 %v1114, %v1138
          %v1147 = vadd.f32 %v1115, %v1139
          %v1148 = vmul.f32 %v1140, 0.7978846
          %v1149 = vmul.f32 %v1141, 0.7978846
          %v1150 = vmul.f32 %v1142, 0.7978846
          %v1151 = vmul.f32 %v1143, 0.7978846
          %v1152 = vmul.f32 %v1144, 0.7978846
          %v1153 = vmul.f32 %v1145, 0.7978846
          %v1154 = vmul.f32 %v1146, 0.7978846
          %v1155 = vmul.f32 %v1147, 0.7978846
          %v1156 = vtanh.pop %v1148
          %v1157 = vtanh.pop %v1149
          %v1158 = vtanh.pop %v1150
          %v1159 = vtanh.pop %v1151
          %v1160 = vtanh.pop %v1152
          %v1161 = vtanh.pop %v1153
          %v1162 = vtanh.pop %v1154
          %v1163 = vtanh.pop %v1155
          %v1164 = vadd.f32 %v1156, 1.0
          %v1165 = vadd.f32 %v1157, 1.0
          %v1166 = vadd.f32 %v1158, 1.0
          %v1167 = vadd.f32 %v1159, 1.0
          %v1168 = vadd.f32 %v1160, 1.0
          %v1169 = vadd.f32 %v1161, 1.0
          %v1170 = vadd.f32 %v1162, 1.0
          %v1171 = vadd.f32 %v1163, 1.0
          %v1172 = vmul.f32 %v1164, 0.5
          %v1173 = vmul.f32 %v1165, 0.5
          %v1174 = vmul.f32 %v1166, 0.5
          %v1175 = vmul.f32 %v1167, 0.5
          %v1176 = vmul.f32 %v1168, 0.5
          %v1177 = vmul.f32 %v1169, 0.5
          %v1178 = vmul.f32 %v1170, 0.5
          %v1179 = vmul.f32 %v1171, 0.5
          %v1180 = vmul.f32 %v1108, %v1172
          %v1181 = vmul.f32 %v1109, %v1173
          %v1182 = vmul.f32 %v1110, %v1174
          %v1183 = vmul.f32 %v1111, %v1175
          %v1184 = vmul.f32 %v1112, %v1176
          %v1185 = vmul.f32 %v1113, %v1177
          %v1186 = vmul.f32 %v1114, %v1178
          %v1187 = vmul.f32 %v1115, %v1179
          %v1188 = vld [vmem:[%s4] sm:$0xf]
          %v1189 = vld [vmem:[%s4 + $0x4] sm:$0xf]
          %v1190 = vld [vmem:[%s4 + $0x8] sm:$0xf]
          %v1191 = vld [vmem:[%s4 + $0xc] sm:$0xf]
          %v1192 = vld [vmem:[%s4 + $0x10] sm:$0xf]
          %v1193 = vld [vmem:[%s4 + $0x14] sm:$0xf]
          %v1194 = vld [vmem:[%s4 + $0x18] sm:$0xf]
          %v1195 = vld [vmem:[%s4 + $0x1c] sm:$0xf]
          %v1196 = vld [vmem:[%s4 + $0x20] sm:$0xf]
          %v1197 = vld [vmem:[%s4 + $0x24] sm:$0xf]
          %v1198 = vld [vmem:[%s4 + $0x28] sm:$0xf]
          %v1199 = vld [vmem:[%s4 + $0x2c] sm:$0xf]
          %v1200 = vld [vmem:[%s4 + $0x30] sm:$0xf]
          %v1201 = vld [vmem:[%s4 + $0x34] sm:$0xf]
          %v1202 = vld [vmem:[%s4 + $0x38] sm:$0xf]
          %v1203 = vld [vmem:[%s4 + $0x3c] sm:$0xf]
          %v1204 = vpack.c.bf16 %v1181, %v1180
          %v1205 = vpack.c.bf16 %v1183, %v1182
          %v1206 = vpack.c.bf16 %v1185, %v1184
          %v1207 = vpack.c.bf16 %v1187, %v1186
          %v1224 = vunpack.c.l.b16 %v1188
          %v1225 = vunpack.c.l.b16 %v1189
          %v1226 = vunpack.c.l.b16 %v1190
          %v1227 = vunpack.c.l.b16 %v1191
          %v1228 = vunpack.c.l.b16 %v1192
          %v1229 = vunpack.c.l.b16 %v1193
          %v1230 = vunpack.c.l.b16 %v1194
          %v1231 = vunpack.c.l.b16 %v1195
          %v1232 = vunpack.c.l.b16 %v1196
          %v1233 = vunpack.c.l.b16 %v1197
          %v1234 = vunpack.c.l.b16 %v1198
          %v1235 = vunpack.c.l.b16 %v1199
          %v1236 = vunpack.c.l.b16 %v1200
          %v1237 = vunpack.c.l.b16 %v1201
          %v1238 = vunpack.c.l.b16 %v1202
          %v1239 = vunpack.c.l.b16 %v1203
          %v1240 = vpack.c.b16 %v1225, %v1224
          %v1241 = vpack.c.b16 %v1227, %v1226
          %v1242 = vpack.c.b16 %v1229, %v1228
          %v1243 = vpack.c.b16 %v1231, %v1230
          %v1244 = vpack.c.b16 %v1233, %v1232
          %v1245 = vpack.c.b16 %v1235, %v1234
          %v1246 = vpack.c.b16 %v1237, %v1236
          %v1247 = vpack.c.b16 %v1239, %v1238
          %1256 = vmatpush.bf16.msra.mxu0 %v1247
          %1257 = vmatpush.bf16.msra.mxu0 %v1246
          %1258 = vmatpush.bf16.msra.mxu0 %v1245
          %1259 = vmatpush.bf16.msra.mxu0 %v1244
          %1260 = vmatpush.bf16.msra.mxu0 %v1243
          %1261 = vmatpush.bf16.msra.mxu0 %v1242
          %1262 = vmatpush.bf16.msra.mxu0 %v1241
          %1263 = vmatpush.bf16.msra.mxu0 %v1240
          %1264 = vmatmul.bf16.gmra.mxu0 %v1204
          %v1265 = vpop.f32.mrf.mxu0
          %v1266 = vadd.f32 0.0, %v1265
          %v1267 = vpop.f32.mrf.mxu0
          %v1268 = vadd.f32 0.0, %v1267
          %1269 = vmatmul.bf16.gmra.mxu0 %v1205
          %v1270 = vpop.f32.mrf.mxu0
          %v1271 = vadd.f32 0.0, %v1270
          %v1272 = vpop.f32.mrf.mxu0
          %v1273 = vadd.f32 0.0, %v1272
          %1274 = vmatmul.bf16.gmra.mxu0 %v1206
          %v1275 = vpop.f32.mrf.mxu0
          %v1276 = vadd.f32 0.0, %v1275
          %v1277 = vpop.f32.mrf.mxu0
          %v1278 = vadd.f32 0.0, %v1277
          %1279 = vmatmul.bf16.gmra.mxu0 %v1207
          %v1280 = vpop.f32.mrf.mxu0
          %v1281 = vadd.f32 0.0, %v1280
          %v1282 = vpop.f32.mrf.mxu0
          %v1283 = vadd.f32 0.0, %v1282
          %1284 = vdwg.mxu0
          %v1285 = vld [vmem:[%s5] sm:$0x7]
          %vm1286 = vcmp.eq.s32.totalorder %v1009, 0
          %vm1287 = vcmp.eq.s32.totalorder %v1010, 0
          %vm1288 = vcmp.eq.s32.totalorder %v1011, 0
          %vm1289 = vcmp.eq.s32.totalorder %v1012, 0
          %vm1290 = vcmp.eq.s32.totalorder %v1013, 0
          %vm1291 = vcmp.eq.s32.totalorder %v1014, 0
          %vm1292 = vcmp.eq.s32.totalorder %v1015, 0
          %vm1293 = vcmp.eq.s32.totalorder %v1016, 0
          %vm1294 = vcmp.eq.s32.totalorder %v1009, 1
          %vm1295 = vcmp.eq.s32.totalorder %v1010, 1
          %vm1296 = vcmp.eq.s32.totalorder %v1011, 1
          %vm1297 = vcmp.eq.s32.totalorder %v1012, 1
          %vm1298 = vcmp.eq.s32.totalorder %v1013, 1
          %vm1299 = vcmp.eq.s32.totalorder %v1014, 1
          %vm1300 = vcmp.eq.s32.totalorder %v1015, 1
          %vm1301 = vcmp.eq.s32.totalorder %v1016, 1
          %v1302 = vsel %vm1294, 1, 0
          %v1303 = vsel %vm1295, 1, 0
          %v1304 = vsel %vm1296, 1, 0
          %v1305 = vsel %vm1297, 1, 0
          %v1306 = vsel %vm1298, 1, 0
          %v1307 = vsel %vm1299, 1, 0
          %v1308 = vsel %vm1300, 1, 0
          %v1309 = vsel %vm1301, 1, 0
          %1310 = vset.pattern.permute.xlu0 0
          %1311 = vperm.xlu0 %1310, %v1302
          %v1312 = vpop.permute.xlu0 %1311
          %1313 = vset.pattern.permute.xlu0 0
          %1314 = vperm.xlu0 %1313, %v1303
          %v1315 = vpop.permute.xlu0 %1314
          %1316 = vset.pattern.permute.xlu0 0
          %1317 = vperm.xlu0 %1316, %v1304
          %v1318 = vpop.permute.xlu0 %1317
          %1319 = vset.pattern.permute.xlu0 0
          %1320 = vperm.xlu0 %1319, %v1305
          %v1321 = vpop.permute.xlu0 %1320
          %1322 = vset.pattern.permute.xlu0 0
          %1323 = vperm.xlu0 %1322, %v1306
          %v1324 = vpop.permute.xlu0 %1323
          %1325 = vset.pattern.permute.xlu0 0
          %1326 = vperm.xlu0 %1325, %v1307
          %v1327 = vpop.permute.xlu0 %1326
          %1328 = vset.pattern.permute.xlu0 0
          %1329 = vperm.xlu0 %1328, %v1308
          %v1330 = vpop.permute.xlu0 %1329
          %1331 = vset.pattern.permute.xlu0 0
          %1332 = vperm.xlu0 %1331, %v1309
          %v1333 = vpop.permute.xlu0 %1332
          %vm1334 = vcmp.eq.s32.totalorder %v1312, 1
          %vm1335 = vcmp.eq.s32.totalorder %v1315, 1
          %vm1336 = vcmp.eq.s32.totalorder %v1318, 1
          %vm1337 = vcmp.eq.s32.totalorder %v1321, 1
          %vm1338 = vcmp.eq.s32.totalorder %v1324, 1
          %vm1339 = vcmp.eq.s32.totalorder %v1327, 1
          %vm1340 = vcmp.eq.s32.totalorder %v1330, 1
          %vm1341 = vcmp.eq.s32.totalorder %v1333, 1
          %v1342 = vperm.slane %v1285, 1
          %v1343 = vperm.slane %v1285, 2
          %v1344 = vsel %vm1334, %v1342, %v1343
          %v1345 = vsel %vm1335, %v1342, %v1343
          %v1346 = vsel %vm1336, %v1342, %v1343
          %v1347 = vsel %vm1337, %v1342, %v1343
          %v1348 = vsel %vm1338, %v1342, %v1343
          %v1349 = vsel %vm1339, %v1342, %v1343
          %v1350 = vsel %vm1340, %v1342, %v1343
          %v1351 = vsel %vm1341, %v1342, %v1343
          %v1352 = vsel %vm1286, 1, 0
          %v1353 = vsel %vm1287, 1, 0
          %v1354 = vsel %vm1288, 1, 0
          %v1355 = vsel %vm1289, 1, 0
          %v1356 = vsel %vm1290, 1, 0
          %v1357 = vsel %vm1291, 1, 0
          %v1358 = vsel %vm1292, 1, 0
          %v1359 = vsel %vm1293, 1, 0
          %1360 = vset.pattern.permute.xlu0 0
          %1361 = vperm.xlu0 %1360, %v1352
          %v1362 = vpop.permute.xlu0 %1361
          %1363 = vset.pattern.permute.xlu0 0
          %1364 = vperm.xlu0 %1363, %v1353
          %v1365 = vpop.permute.xlu0 %1364
          %1366 = vset.pattern.permute.xlu0 0
          %1367 = vperm.xlu0 %1366, %v1354
          %v1368 = vpop.permute.xlu0 %1367
          %1369 = vset.pattern.permute.xlu0 0
          %1370 = vperm.xlu0 %1369, %v1355
          %v1371 = vpop.permute.xlu0 %1370
          %1372 = vset.pattern.permute.xlu0 0
          %1373 = vperm.xlu0 %1372, %v1356
          %v1374 = vpop.permute.xlu0 %1373
          %1375 = vset.pattern.permute.xlu0 0
          %1376 = vperm.xlu0 %1375, %v1357
          %v1377 = vpop.permute.xlu0 %1376
          %1378 = vset.pattern.permute.xlu0 0
          %1379 = vperm.xlu0 %1378, %v1358
          %v1380 = vpop.permute.xlu0 %1379
          %1381 = vset.pattern.permute.xlu0 0
          %1382 = vperm.xlu0 %1381, %v1359
          %v1383 = vpop.permute.xlu0 %1382
          %vm1384 = vcmp.eq.s32.totalorder %v1362, 1
          %vm1385 = vcmp.eq.s32.totalorder %v1365, 1
          %vm1386 = vcmp.eq.s32.totalorder %v1368, 1
          %vm1387 = vcmp.eq.s32.totalorder %v1371, 1
          %vm1388 = vcmp.eq.s32.totalorder %v1374, 1
          %vm1389 = vcmp.eq.s32.totalorder %v1377, 1
          %vm1390 = vcmp.eq.s32.totalorder %v1380, 1
          %vm1391 = vcmp.eq.s32.totalorder %v1383, 1
          %v1392 = vperm.slane %v1285, 0
          %v1393 = vsel %vm1384, %v1392, %v1344
          %v1394 = vsel %vm1385, %v1392, %v1345
          %v1395 = vsel %vm1386, %v1392, %v1346
          %v1396 = vsel %vm1387, %v1392, %v1347
          %v1397 = vsel %vm1388, %v1392, %v1348
          %v1398 = vsel %vm1389, %v1392, %v1349
          %v1399 = vsel %vm1390, %v1392, %v1350
          %v1400 = vsel %vm1391, %v1392, %v1351
          %v1401 = vld [vmem:[%s6] sm:$0xf]
          %v1402 = vld [vmem:[%s6 + $0x4] sm:$0xf]
          %v1403 = vld [vmem:[%s6 + $0x8] sm:$0xf]
          %v1404 = vld [vmem:[%s6 + $0xc] sm:$0xf]
          %v1405 = vld [vmem:[%s6 + $0x10] sm:$0xf]
          %v1406 = vld [vmem:[%s6 + $0x14] sm:$0xf]
          %v1407 = vld [vmem:[%s6 + $0x18] sm:$0xf]
          %v1408 = vld [vmem:[%s6 + $0x1c] sm:$0xf]
          %v1409 = vld [vmem:[%s6 + $0x20] sm:$0xf]
          %v1410 = vld [vmem:[%s6 + $0x24] sm:$0xf]
          %v1411 = vld [vmem:[%s6 + $0x28] sm:$0xf]
          %v1412 = vld [vmem:[%s6 + $0x2c] sm:$0xf]
          %v1413 = vld [vmem:[%s6 + $0x30] sm:$0xf]
          %v1414 = vld [vmem:[%s6 + $0x34] sm:$0xf]
          %v1415 = vld [vmem:[%s6 + $0x38] sm:$0xf]
          %v1416 = vld [vmem:[%s6 + $0x3c] sm:$0xf]
          %v1417 = vpack.c.bf16 %v1268, %v1266
          %v1418 = vpack.c.bf16 %v1273, %v1271
          %v1419 = vpack.c.bf16 %v1278, %v1276
          %v1420 = vpack.c.bf16 %v1283, %v1281
          %v1421 = vld [vmem:[#allocation7] sm:$0xf]
          %v1422 = vld [vmem:[#allocation7 + $0x4] sm:$0xf]
          %v1423 = vld [vmem:[#allocation7 + $0x8] sm:$0xf]
          %v1424 = vld [vmem:[#allocation7 + $0xc] sm:$0xf]
          %v1425 = vld [vmem:[#allocation7 + $0x10] sm:$0xf]
          %v1426 = vld [vmem:[#allocation7 + $0x14] sm:$0xf]
          %v1427 = vld [vmem:[#allocation7 + $0x18] sm:$0xf]
          %v1428 = vld [vmem:[#allocation7 + $0x1c] sm:$0xf]
          %v1429 = vld [vmem:[#allocation7 + $0x20] sm:$0xf]
          %v1430 = vld [vmem:[#allocation7 + $0x24] sm:$0xf]
          %v1431 = vld [vmem:[#allocation7 + $0x28] sm:$0xf]
          %v1432 = vld [vmem:[#allocation7 + $0x2c] sm:$0xf]
          %v1433 = vld [vmem:[#allocation7 + $0x30] sm:$0xf]
          %v1434 = vld [vmem:[#allocation7 + $0x34] sm:$0xf]
          %v1435 = vld [vmem:[#allocation7 + $0x38] sm:$0xf]
          %v1436 = vld [vmem:[#allocation7 + $0x3c] sm:$0xf]
          %v1437 = vpack.c.bf16 %v1394, %v1393
          %v1438 = vpack.c.bf16 %v1396, %v1395
          %v1439 = vpack.c.bf16 %v1398, %v1397
          %v1440 = vpack.c.bf16 %v1400, %v1399
          %v1457 = vunpack.c.l.b16 %v1421
          %v1458 = vunpack.c.l.b16 %v1422
          %v1459 = vunpack.c.l.b16 %v1423
          %v1460 = vunpack.c.l.b16 %v1424
          %v1461 = vunpack.c.l.b16 %v1425
          %v1462 = vunpack.c.l.b16 %v1426
          %v1463 = vunpack.c.l.b16 %v1427
          %v1464 = vunpack.c.l.b16 %v1428
          %v1465 = vunpack.c.l.b16 %v1429
          %v1466 = vunpack.c.l.b16 %v1430
          %v1467 = vunpack.c.l.b16 %v1431
          %v1468 = vunpack.c.l.b16 %v1432
          %v1469 = vunpack.c.l.b16 %v1433
          %v1470 = vunpack.c.l.b16 %v1434
          %v1471 = vunpack.c.l.b16 %v1435
          %v1472 = vunpack.c.l.b16 %v1436
          %v1473 = vpack.c.b16 %v1458, %v1457
          %v1474 = vpack.c.b16 %v1460, %v1459
          %v1475 = vpack.c.b16 %v1462, %v1461
          %v1476 = vpack.c.b16 %v1464, %v1463
          %v1477 = vpack.c.b16 %v1466, %v1465
          %v1478 = vpack.c.b16 %v1468, %v1467
          %v1479 = vpack.c.b16 %v1470, %v1469
          %v1480 = vpack.c.b16 %v1472, %v1471
          %1489 = vmatpush.bf16.msra.mxu0 %v1480
          %1490 = vmatpush.bf16.msra.mxu0 %v1479
          %1491 = vmatpush.bf16.msra.mxu0 %v1478
          %1492 = vmatpush.bf16.msra.mxu0 %v1477
          %1493 = vmatpush.bf16.msra.mxu0 %v1476
          %1494 = vmatpush.bf16.msra.mxu0 %v1475
          %1495 = vmatpush.bf16.msra.mxu0 %v1474
          %1496 = vmatpush.bf16.msra.mxu0 %v1473
          %1497 = vmatmul.bf16.gmra.mxu0 %v1437
          %v1498 = vpop.f32.mrf.mxu0
          %v1499 = vadd.f32 0.0, %v1498
          %v1500 = vpop.f32.mrf.mxu0
          %v1501 = vadd.f32 0.0, %v1500
          %1502 = vmatmul.bf16.gmra.mxu0 %v1438
          %v1503 = vpop.f32.mrf.mxu0
          %v1504 = vadd.f32 0.0, %v1503
          %v1505 = vpop.f32.mrf.mxu0
          %v1506 = vadd.f32 0.0, %v1505
          %1507 = vmatmul.bf16.gmra.mxu0 %v1439
          %v1508 = vpop.f32.mrf.mxu0
          %v1509 = vadd.f32 0.0, %v1508
          %v1510 = vpop.f32.mrf.mxu0
          %v1511 = vadd.f32 0.0, %v1510
          %1512 = vmatmul.bf16.gmra.mxu0 %v1440
          %v1513 = vpop.f32.mrf.mxu0
          %v1514 = vadd.f32 0.0, %v1513
          %v1515 = vpop.f32.mrf.mxu0
          %v1516 = vadd.f32 0.0, %v1515
          %1517 = vdwg.mxu0
          %v1534 = vunpack.c.l.b16 %v1401
          %v1535 = vunpack.c.l.b16 %v1402
          %v1536 = vunpack.c.l.b16 %v1403
          %v1537 = vunpack.c.l.b16 %v1404
          %v1538 = vunpack.c.l.b16 %v1405
          %v1539 = vunpack.c.l.b16 %v1406
          %v1540 = vunpack.c.l.b16 %v1407
          %v1541 = vunpack.c.l.b16 %v1408
          %v1542 = vunpack.c.l.b16 %v1409
          %v1543 = vunpack.c.l.b16 %v1410
          %v1544 = vunpack.c.l.b16 %v1411
          %v1545 = vunpack.c.l.b16 %v1412
          %v1546 = vunpack.c.l.b16 %v1413
          %v1547 = vunpack.c.l.b16 %v1414
          %v1548 = vunpack.c.l.b16 %v1415
          %v1549 = vunpack.c.l.b16 %v1416
          %v1550 = vpack.c.b16 %v1535, %v1534
          %v1551 = vpack.c.b16 %v1537, %v1536
          %v1552 = vpack.c.b16 %v1539, %v1538
          %v1553 = vpack.c.b16 %v1541, %v1540
          %v1554 = vpack.c.b16 %v1543, %v1542
          %v1555 = vpack.c.b16 %v1545, %v1544
          %v1556 = vpack.c.b16 %v1547, %v1546
          %v1557 = vpack.c.b16 %v1549, %v1548
          %1566 = vmatpush.bf16.msra.mxu0 %v1557
          %1567 = vmatpush.bf16.msra.mxu0 %v1556
          %1568 = vmatpush.bf16.msra.mxu0 %v1555
          %1569 = vmatpush.bf16.msra.mxu0 %v1554
          %1570 = vmatpush.bf16.msra.mxu0 %v1553
          %1571 = vmatpush.bf16.msra.mxu0 %v1552
          %1572 = vmatpush.bf16.msra.mxu0 %v1551
          %1573 = vmatpush.bf16.msra.mxu0 %v1550
          %1574 = vmatmul.bf16.gmra.mxu0 %v1417
          %v1575 = vpop.f32.mrf.mxu0
          %v1576 = vadd.f32 %v1499, %v1575
          %v1577 = vpop.f32.mrf.mxu0
          %v1578 = vadd.f32 %v1501, %v1577
          %1579 = vmatmul.bf16.gmra.mxu0 %v1418
          %v1580 = vpop.f32.mrf.mxu0
          %v1581 = vadd.f32 %v1504, %v1580
          %v1582 = vpop.f32.mrf.mxu0
          %v1583 = vadd.f32 %v1506, %v1582
          %1584 = vmatmul.bf16.gmra.mxu0 %v1419
          %v1585 = vpop.f32.mrf.mxu0
          %v1586 = vadd.f32 %v1509, %v1585
          %v1587 = vpop.f32.mrf.mxu0
          %v1588 = vadd.f32 %v1511, %v1587
          %1589 = vmatmul.bf16.gmra.mxu0 %v1420
          %v1590 = vpop.f32.mrf.mxu0
          %v1591 = vadd.f32 %v1514, %v1590
          %v1592 = vpop.f32.mrf.mxu0
          %v1593 = vadd.f32 %v1516, %v1592
          %1594 = vdwg.mxu0
          %1595 = vst [vmem:[#allocation2] sm:$0xff] %v1576
          %1596 = vst [vmem:[#allocation2 + $0x8] sm:$0xff] %v1578
          %1597 = vst [vmem:[#allocation2 + $0x10] sm:$0xff] %v1581
          %1598 = vst [vmem:[#allocation2 + $0x18] sm:$0xff] %v1583
          %1599 = vst [vmem:[#allocation2 + $0x20] sm:$0xff] %v1586
          %1600 = vst [vmem:[#allocation2 + $0x28] sm:$0xff] %v1588
          %1601 = vst [vmem:[#allocation2 + $0x30] sm:$0xff] %v1591
          %1602 = vst [vmem:[#allocation2 + $0x38] sm:$0xff] %v1593
          %v1603 = vld [vmem:[%s8] sm:$0x1]
          %v1604 = vld [vmem:[%s9] sm:$0x1]
          %1605 = vadd.xlane.f32.xlu0 %v1576
          %v1606 = vpop.xlane.xlu0 %1605
          %1607 = vadd.xlane.f32.xlu0 %v1578
          %v1608 = vpop.xlane.xlu0 %1607
          %1609 = vadd.xlane.f32.xlu0 %v1581
          %v1610 = vpop.xlane.xlu0 %1609
          %1611 = vadd.xlane.f32.xlu0 %v1583
          %v1612 = vpop.xlane.xlu0 %1611
          %1613 = vadd.xlane.f32.xlu0 %v1586
          %v1614 = vpop.xlane.xlu0 %1613
          %1615 = vadd.xlane.f32.xlu0 %v1588
          %v1616 = vpop.xlane.xlu0 %1615
          %1617 = vadd.xlane.f32.xlu0 %v1591
          %v1618 = vpop.xlane.xlu0 %1617
          %1619 = vadd.xlane.f32.xlu0 %v1593
          %v1620 = vpop.xlane.xlu0 %1619
          %v1621 = vrcp.pop 128.0
          %v1622 = vmul.f32 128.0, %v1621
          %v1623 = vsub.f32 1.0, %v1622
          %v1624 = vmul.f32 %v1621, %v1623
          %v1625 = vadd.f32 %v1621, %v1624
          %vm1626 = vweird.f32 %v1621
          %v1627 = vsel %vm1626, %v1621, %v1625
          %v1628 = vmul.f32 %v1606, %v1627
          %v1629 = vmul.f32 %v1608, %v1627
          %v1630 = vmul.f32 %v1610, %v1627
          %v1631 = vmul.f32 %v1612, %v1627
          %v1632 = vmul.f32 %v1614, %v1627
          %v1633 = vmul.f32 %v1616, %v1627
          %v1634 = vmul.f32 %v1618, %v1627
          %v1635 = vmul.f32 %v1620, %v1627
          %v1636 = vmul.f32 %v1576, %v1576
          %v1637 = vmul.f32 %v1578, %v1578
          %v1638 = vmul.f32 %v1581, %v1581
          %v1639 = vmul.f32 %v1583, %v1583
          %v1640 = vmul.f32 %v1586, %v1586
          %v1641 = vmul.f32 %v1588, %v1588
          %v1642 = vmul.f32 %v1591, %v1591
          %v1643 = vmul.f32 %v1593, %v1593
          %1644 = vadd.xlane.f32.xlu0 %v1636
          %v1645 = vpop.xlane.xlu0 %1644
          %1646 = vadd.xlane.f32.xlu0 %v1637
          %v1647 = vpop.xlane.xlu0 %1646
          %1648 = vadd.xlane.f32.xlu0 %v1638
          %v1649 = vpop.xlane.xlu0 %1648
          %1650 = vadd.xlane.f32.xlu0 %v1639
          %v1651 = vpop.xlane.xlu0 %1650
          %1652 = vadd.xlane.f32.xlu0 %v1640
          %v1653 = vpop.xlane.xlu0 %1652
          %1654 = vadd.xlane.f32.xlu0 %v1641
          %v1655 = vpop.xlane.xlu0 %1654
          %1656 = vadd.xlane.f32.xlu0 %v1642
          %v1657 = vpop.xlane.xlu0 %1656
          %1658 = vadd.xlane.f32.xlu0 %v1643
          %v1659 = vpop.xlane.xlu0 %1658
          %v1660 = vmul.f32 %v1645, %v1627
          %v1661 = vmul.f32 %v1647, %v1627
          %v1662 = vmul.f32 %v1649, %v1627
          %v1663 = vmul.f32 %v1651, %v1627
          %v1664 = vmul.f32 %v1653, %v1627
          %v1665 = vmul.f32 %v1655, %v1627
          %v1666 = vmul.f32 %v1657, %v1627
          %v1667 = vmul.f32 %v1659, %v1627
          %v1668 = vmul.f32 %v1628, %v1628
          %v1669 = vmul.f32 %v1629, %v1629
          %v1670 = vmul.f32 %v1630, %v1630
          %v1671 = vmul.f32 %v1631, %v1631
          %v1672 = vmul.f32 %v1632, %v1632
          %v1673 = vmul.f32 %v1633, %v1633
          %v1674 = vmul.f32 %v1634, %v1634
          %v1675 = vmul.f32 %v1635, %v1635
          %v1676 = vsub.f32 %v1660, %v1668
          %v1677 = vsub.f32 %v1661, %v1669
          %v1678 = vsub.f32 %v1662, %v1670
          %v1679 = vsub.f32 %v1663, %v1671
          %v1680 = vsub.f32 %v1664, %v1672
          %v1681 = vsub.f32 %v1665, %v1673
          %v1682 = vsub.f32 %v1666, %v1674
          %v1683 = vsub.f32 %v1667, %v1675
          %v1684 = vsub.f32 %v1576, %v1628
          %v1685 = vsub.f32 %v1578, %v1629
          %v1686 = vsub.f32 %v1581, %v1630
          %v1687 = vsub.f32 %v1583, %v1631
          %v1688 = vsub.f32 %v1586, %v1632
          %v1689 = vsub.f32 %v1588, %v1633
          %v1690 = vsub.f32 %v1591, %v1634
          %v1691 = vsub.f32 %v1593, %v1635
          %v1692 = vadd.f32 %v1676, 1e-05
          %v1693 = vadd.f32 %v1677, 1e-05
          %v1694 = vadd.f32 %v1678, 1e-05
          %v1695 = vadd.f32 %v1679, 1e-05
          %v1696 = vadd.f32 %v1680, 1e-05
          %v1697 = vadd.f32 %v1681, 1e-05
          %v1698 = vadd.f32 %v1682, 1e-05
          %v1699 = vadd.f32 %v1683, 1e-05
          %v1700 = vrsqrt.pop %v1692
          %v1701 = vmul.f32 %v1700, %v1692
          %v1702 = vmul.f32 %v1701, %v1700
          %v1703 = vmul.f32 0.5, %v1702
          %v1704 = vsub.f32 1.5, %v1703
          %v1705 = vmul.f32 %v1700, %v1704
          %vm1706 = vweird.f32 %v1692
          %vm1707 = vweird.f32 %v1700
          %vm1708 = vmor %vm1706, %vm1707
          %v1709 = vsel %vm1708, %v1700, %v1705
          %v1710 = vrsqrt.pop %v1693
          %v1711 = vmul.f32 %v1710, %v1693
          %v1712 = vmul.f32 %v1711, %v1710
          %v1713 = vmul.f32 0.5, %v1712
          %v1714 = vsub.f32 1.5, %v1713
          %v1715 = vmul.f32 %v1710, %v1714
          %vm1716 = vweird.f32 %v1693
          %vm1717 = vweird.f32 %v1710
          %vm1718 = vmor %vm1716, %vm1717
          %v1719 = vsel %vm1718, %v1710, %v1715
          %v1720 = vrsqrt.pop %v1694
          %v1721 = vmul.f32 %v1720, %v1694
          %v1722 = vmul.f32 %v1721, %v1720
          %v1723 = vmul.f32 0.5, %v1722
          %v1724 = vsub.f32 1.5, %v1723
          %v1725 = vmul.f32 %v1720, %v1724
          %vm1726 = vweird.f32 %v1694
          %vm1727 = vweird.f32 %v1720
          %vm1728 = vmor %vm1726, %vm1727
          %v1729 = vsel %vm1728, %v1720, %v1725
          %v1730 = vrsqrt.pop %v1695
          %v1731 = vmul.f32 %v1730, %v1695
          %v1732 = vmul.f32 %v1731, %v1730
          %v1733 = vmul.f32 0.5, %v1732
          %v1734 = vsub.f32 1.5, %v1733
          %v1735 = vmul.f32 %v1730, %v1734
          %vm1736 = vweird.f32 %v1695
          %vm1737 = vweird.f32 %v1730
          %vm1738 = vmor %vm1736, %vm1737
          %v1739 = vsel %vm1738, %v1730, %v1735
          %v1740 = vrsqrt.pop %v1696
          %v1741 = vmul.f32 %v1740, %v1696
          %v1742 = vmul.f32 %v1741, %v1740
          %v1743 = vmul.f32 0.5, %v1742
          %v1744 = vsub.f32 1.5, %v1743
          %v1745 = vmul.f32 %v1740, %v1744
          %vm1746 = vweird.f32 %v1696
          %vm1747 = vweird.f32 %v1740
          %vm1748 = vmor %vm1746, %vm1747
          %v1749 = vsel %vm1748, %v1740, %v1745
          %v1750 = vrsqrt.pop %v1697
          %v1751 = vmul.f32 %v1750, %v1697
          %v1752 = vmul.f32 %v1751, %v1750
          %v1753 = vmul.f32 0.5, %v1752
          %v1754 = vsub.f32 1.5, %v1753
          %v1755 = vmul.f32 %v1750, %v1754
          %vm1756 = vweird.f32 %v1697
          %vm1757 = vweird.f32 %v1750
          %vm1758 = vmor %vm1756, %vm1757
          %v1759 = vsel %vm1758, %v1750, %v1755
          %v1760 = vrsqrt.pop %v1698
          %v1761 = vmul.f32 %v1760, %v1698
          %v1762 = vmul.f32 %v1761, %v1760
          %v1763 = vmul.f32 0.5, %v1762
          %v1764 = vsub.f32 1.5, %v1763
          %v1765 = vmul.f32 %v1760, %v1764
          %vm1766 = vweird.f32 %v1698
          %vm1767 = vweird.f32 %v1760
          %vm1768 = vmor %vm1766, %vm1767
          %v1769 = vsel %vm1768, %v1760, %v1765
          %v1770 = vrsqrt.pop %v1699
          %v1771 = vmul.f32 %v1770, %v1699
          %v1772 = vmul.f32 %v1771, %v1770
          %v1773 = vmul.f32 0.5, %v1772
          %v1774 = vsub.f32 1.5, %v1773
          %v1775 = vmul.f32 %v1770, %v1774
          %vm1776 = vweird.f32 %v1699
          %vm1777 = vweird.f32 %v1770
          %vm1778 = vmor %vm1776, %vm1777
          %v1779 = vsel %vm1778, %v1770, %v1775
          %v1780 = vmul.f32 %v1684, %v1709
          %v1781 = vmul.f32 %v1685, %v1719
          %v1782 = vmul.f32 %v1686, %v1729
          %v1783 = vmul.f32 %v1687, %v1739
          %v1784 = vmul.f32 %v1688, %v1749
          %v1785 = vmul.f32 %v1689, %v1759
          %v1786 = vmul.f32 %v1690, %v1769
          %v1787 = vmul.f32 %v1691, %v1779
          %v1789 = vperm.slane %v1603, 0
          %v1791 = vmul.f32 %v1780, %v1789
          %v1792 = vmul.f32 %v1781, %v1789
          %v1793 = vmul.f32 %v1782, %v1789
          %v1794 = vmul.f32 %v1783, %v1789
          %v1795 = vmul.f32 %v1784, %v1789
          %v1796 = vmul.f32 %v1785, %v1789
          %v1797 = vmul.f32 %v1786, %v1789
          %v1798 = vmul.f32 %v1787, %v1789
          %v1800 = vperm.slane %v1604, 0
          %v1802 = vadd.f32 %v1791, %v1800
          %v1803 = vadd.f32 %v1792, %v1800
          %v1804 = vadd.f32 %v1793, %v1800
          %v1805 = vadd.f32 %v1794, %v1800
          %v1806 = vadd.f32 %v1795, %v1800
          %v1807 = vadd.f32 %v1796, %v1800
          %v1808 = vadd.f32 %v1797, %v1800
          %v1809 = vadd.f32 %v1798, %v1800
          %v1810 = vld [vmem:[#allocation12] sm:$0xf]
          %v1811 = vld [vmem:[#allocation12 + $0x4] sm:$0xf]
          %v1812 = vld [vmem:[#allocation12 + $0x8] sm:$0xf]
          %v1813 = vld [vmem:[#allocation12 + $0xc] sm:$0xf]
          %v1814 = vld [vmem:[#allocation12 + $0x10] sm:$0xf]
          %v1815 = vld [vmem:[#allocation12 + $0x14] sm:$0xf]
          %v1816 = vld [vmem:[#allocation12 + $0x18] sm:$0xf]
          %v1817 = vld [vmem:[#allocation12 + $0x1c] sm:$0xf]
          %v1818 = vld [vmem:[#allocation12 + $0x20] sm:$0xf]
          %v1819 = vld [vmem:[#allocation12 + $0x24] sm:$0xf]
          %v1820 = vld [vmem:[#allocation12 + $0x28] sm:$0xf]
          %v1821 = vld [vmem:[#allocation12 + $0x2c] sm:$0xf]
          %v1822 = vld [vmem:[#allocation12 + $0x30] sm:$0xf]
          %v1823 = vld [vmem:[#allocation12 + $0x34] sm:$0xf]
          %v1824 = vld [vmem:[#allocation12 + $0x38] sm:$0xf]
          %v1825 = vld [vmem:[#allocation12 + $0x3c] sm:$0xf]
          %v1826 = vpack.c.bf16 %v1803, %v1802
          %v1827 = vpack.c.bf16 %v1805, %v1804
          %v1828 = vpack.c.bf16 %v1807, %v1806
          %v1829 = vpack.c.bf16 %v1809, %v1808
          %v1846 = vunpack.c.l.b16 %v1810
          %v1847 = vunpack.c.l.b16 %v1811
          %v1848 = vunpack.c.l.b16 %v1812
          %v1849 = vunpack.c.l.b16 %v1813
          %v1850 = vunpack.c.l.b16 %v1814
          %v1851 = vunpack.c.l.b16 %v1815
          %v1852 = vunpack.c.l.b16 %v1816
          %v1853 = vunpack.c.l.b16 %v1817
          %v1854 = vunpack.c.l.b16 %v1818
          %v1855 = vunpack.c.l.b16 %v1819
          %v1856 = vunpack.c.l.b16 %v1820
          %v1857 = vunpack.c.l.b16 %v1821
          %v1858 = vunpack.c.l.b16 %v1822
          %v1859 = vunpack.c.l.b16 %v1823
          %v1860 = vunpack.c.l.b16 %v1824
          %v1861 = vunpack.c.l.b16 %v1825
          %v1862 = vpack.c.b16 %v1847, %v1846
          %v1863 = vpack.c.b16 %v1849, %v1848
          %v1864 = vpack.c.b16 %v1851, %v1850
          %v1865 = vpack.c.b16 %v1853, %v1852
          %v1866 = vpack.c.b16 %v1855, %v1854
          %v1867 = vpack.c.b16 %v1857, %v1856
          %v1868 = vpack.c.b16 %v1859, %v1858
          %v1869 = vpack.c.b16 %v1861, %v1860
          %1878 = vmatpush.bf16.msra.mxu0 %v1869
          %1879 = vmatpush.bf16.msra.mxu0 %v1868
          %1880 = vmatpush.bf16.msra.mxu0 %v1867
          %1881 = vmatpush.bf16.msra.mxu0 %v1866
          %1882 = vmatpush.bf16.msra.mxu0 %v1865
          %1883 = vmatpush.bf16.msra.mxu0 %v1864
          %1884 = vmatpush.bf16.msra.mxu0 %v1863
          %1885 = vmatpush.bf16.msra.mxu0 %v1862
          %1886 = vmatmul.bf16.gmra.mxu0 %v1826
          %v1887 = vpop.f32.mrf.mxu0
          %v1888 = vadd.f32 0.0, %v1887
          %v1889 = vpop.f32.mrf.mxu0
          %v1890 = vadd.f32 0.0, %v1889
          %1891 = vmatmul.bf16.gmra.mxu0 %v1827
          %v1892 = vpop.f32.mrf.mxu0
          %v1893 = vadd.f32 0.0, %v1892
          %v1894 = vpop.f32.mrf.mxu0
          %v1895 = vadd.f32 0.0, %v1894
          %1896 = vmatmul.bf16.gmra.mxu0 %v1828
          %v1897 = vpop.f32.mrf.mxu0
          %v1898 = vadd.f32 0.0, %v1897
          %v1899 = vpop.f32.mrf.mxu0
          %v1900 = vadd.f32 0.0, %v1899
          %1901 = vmatmul.bf16.gmra.mxu0 %v1829
          %v1902 = vpop.f32.mrf.mxu0
          %v1903 = vadd.f32 0.0, %v1902
          %v1904 = vpop.f32.mrf.mxu0
          %v1905 = vadd.f32 0.0, %v1904
          %1906 = vdwg.mxu0
          %1907 = vst [vmem:[#allocation3] sm:$0xff] %v1888
          %1908 = vst [vmem:[#allocation3 + $0x8] sm:$0xff] %v1890
          %1909 = vst [vmem:[#allocation3 + $0x10] sm:$0xff] %v1893
          %1910 = vst [vmem:[#allocation3 + $0x18] sm:$0xff] %v1895
          %1911 = vst [vmem:[#allocation3 + $0x20] sm:$0xff] %v1898
          %1912 = vst [vmem:[#allocation3 + $0x28] sm:$0xff] %v1900
          %1913 = vst [vmem:[#allocation3 + $0x30] sm:$0xff] %v1903
          %1914 = vst [vmem:[#allocation3 + $0x38] sm:$0xff] %v1905
          %vm1915 = vcmask 7168
          %1916 = vst.msk [vmem:[#allocation4] sm:$0xff] %vm1915, -inf
          %1917 = vst.msk [vmem:[#allocation4 + $0x8] sm:$0xff] %vm1915, -inf
          %1918 = vst.msk [vmem:[#allocation4 + $0x10] sm:$0xff] %vm1915, -inf
          %1919 = vst.msk [vmem:[#allocation4 + $0x18] sm:$0xff] %vm1915, -inf
          %1920 = vst.msk [vmem:[#allocation4 + $0x20] sm:$0xff] %vm1915, -inf
          %1921 = vst.msk [vmem:[#allocation4 + $0x28] sm:$0xff] %vm1915, -inf
          %1922 = vst.msk [vmem:[#allocation4 + $0x30] sm:$0xff] %vm1915, -inf
          %1923 = vst.msk [vmem:[#allocation4 + $0x38] sm:$0xff] %vm1915, -inf
          %1924 = vst.msk [vmem:[#allocation5] sm:$0xff] %vm1915, 0.0
          %1925 = vst.msk [vmem:[#allocation5 + $0x8] sm:$0xff] %vm1915, 0.0
          %1926 = vst.msk [vmem:[#allocation5 + $0x10] sm:$0xff] %vm1915, 0.0
          %1927 = vst.msk [vmem:[#allocation5 + $0x18] sm:$0xff] %vm1915, 0.0
          %1928 = vst.msk [vmem:[#allocation5 + $0x20] sm:$0xff] %vm1915, 0.0
          %1929 = vst.msk [vmem:[#allocation5 + $0x28] sm:$0xff] %vm1915, 0.0
          %1930 = vst.msk [vmem:[#allocation5 + $0x30] sm:$0xff] %vm1915, 0.0
          %1931 = vst.msk [vmem:[#allocation5 + $0x38] sm:$0xff] %vm1915, 0.0
          %1932 = vst [vmem:[#allocation6] sm:$0xff] 0.0
          %1933 = vst [vmem:[#allocation6 + $0x8] sm:$0xff] 0.0
          %1934 = vst [vmem:[#allocation6 + $0x10] sm:$0xff] 0.0
          %1935 = vst [vmem:[#allocation6 + $0x18] sm:$0xff] 0.0
          %1936 = vst [vmem:[#allocation6 + $0x20] sm:$0xff] 0.0
          %1937 = vst [vmem:[#allocation6 + $0x28] sm:$0xff] 0.0
          %1938 = vst [vmem:[#allocation6 + $0x30] sm:$0xff] 0.0
          %1939 = vst [vmem:[#allocation6 + $0x38] sm:$0xff] 0.0
        $region160: #{oformer_forward.3} parent=111 // pred_fallthru
          _
        %v1940 = vld [vmem:[%s986] sm:$0xf]
        %v1941 = vld [vmem:[%s986 + $0x4] sm:$0xf]
        %v1942 = vld [vmem:[%s986 + $0x8] sm:$0xf]
        %v1943 = vld [vmem:[%s986 + $0xc] sm:$0xf]
        %v1944 = vld [vmem:[%s986 + $0x10] sm:$0xf]
        %v1945 = vld [vmem:[%s986 + $0x14] sm:$0xf]
        %v1946 = vld [vmem:[%s986 + $0x18] sm:$0xf]
        %v1947 = vld [vmem:[%s986 + $0x1c] sm:$0xf]
        %v1948 = vunpack.c.l.bf16 %v1940
        %v1949 = vunpack.c.l.bf16 %v1941
        %v1950 = vunpack.c.l.bf16 %v1942
        %v1951 = vunpack.c.l.bf16 %v1943
        %v1952 = vunpack.c.l.bf16 %v1944
        %v1953 = vunpack.c.l.bf16 %v1945
        %v1954 = vunpack.c.l.bf16 %v1946
        %v1955 = vunpack.c.l.bf16 %v1947
        %v1956 = vld [vmem:[#allocation9] sm:$0x1]
        %v1957 = vld [vmem:[#allocation11] sm:$0x1]
        %1958 = vadd.xlane.f32.xlu0 %v1948
        %v1959 = vpop.xlane.xlu0 %1958
        %1960 = vadd.xlane.f32.xlu0 %v1949
        %v1961 = vpop.xlane.xlu0 %1960
        %1962 = vadd.xlane.f32.xlu0 %v1950
        %v1963 = vpop.xlane.xlu0 %1962
        %1964 = vadd.xlane.f32.xlu0 %v1951
        %v1965 = vpop.xlane.xlu0 %1964
        %1966 = vadd.xlane.f32.xlu0 %v1952
        %v1967 = vpop.xlane.xlu0 %1966
        %1968 = vadd.xlane.f32.xlu0 %v1953
        %v1969 = vpop.xlane.xlu0 %1968
        %1970 = vadd.xlane.f32.xlu0 %v1954
        %v1971 = vpop.xlane.xlu0 %1970
        %1972 = vadd.xlane.f32.xlu0 %v1955
        %v1973 = vpop.xlane.xlu0 %1972
        %v1974 = vrcp.pop 128.0
        %v1975 = vmul.f32 128.0, %v1974
        %v1976 = vsub.f32 1.0, %v1975
        %v1977 = vmul.f32 %v1974, %v1976
        %v1978 = vadd.f32 %v1974, %v1977
        %vm1979 = vweird.f32 %v1974
        %v1980 = vsel %vm1979, %v1974, %v1978
        %v1981 = vmul.f32 %v1959, %v1980
        %v1982 = vmul.f32 %v1961, %v1980
        %v1983 = vmul.f32 %v1963, %v1980
        %v1984 = vmul.f32 %v1965, %v1980
        %v1985 = vmul.f32 %v1967, %v1980
        %v1986 = vmul.f32 %v1969, %v1980
        %v1987 = vmul.f32 %v1971, %v1980
        %v1988 = vmul.f32 %v1973, %v1980
        %v1989 = vmul.f32 %v1948, %v1948
        %v1990 = vmul.f32 %v1949, %v1949
        %v1991 = vmul.f32 %v1950, %v1950
        %v1992 = vmul.f32 %v1951, %v1951
        %v1993 = vmul.f32 %v1952, %v1952
        %v1994 = vmul.f32 %v1953, %v1953
        %v1995 = vmul.f32 %v1954, %v1954
        %v1996 = vmul.f32 %v1955, %v1955
        %1997 = vadd.xlane.f32.xlu0 %v1989
        %v1998 = vpop.xlane.xlu0 %1997
        %1999 = vadd.xlane.f32.xlu0 %v1990
        %v2000 = vpop.xlane.xlu0 %1999
        %2001 = vadd.xlane.f32.xlu0 %v1991
        %v2002 = vpop.xlane.xlu0 %2001
        %2003 = vadd.xlane.f32.xlu0 %v1992
        %v2004 = vpop.xlane.xlu0 %2003
        %2005 = vadd.xlane.f32.xlu0 %v1993
        %v2006 = vpop.xlane.xlu0 %2005
        %2007 = vadd.xlane.f32.xlu0 %v1994
        %v2008 = vpop.xlane.xlu0 %2007
        %2009 = vadd.xlane.f32.xlu0 %v1995
        %v2010 = vpop.xlane.xlu0 %2009
        %2011 = vadd.xlane.f32.xlu0 %v1996
        %v2012 = vpop.xlane.xlu0 %2011
        %v2013 = vmul.f32 %v1998, %v1980
        %v2014 = vmul.f32 %v2000, %v1980
        %v2015 = vmul.f32 %v2002, %v1980
        %v2016 = vmul.f32 %v2004, %v1980
        %v2017 = vmul.f32 %v2006, %v1980
        %v2018 = vmul.f32 %v2008, %v1980
        %v2019 = vmul.f32 %v2010, %v1980
        %v2020 = vmul.f32 %v2012, %v1980
        %v2021 = vmul.f32 %v1981, %v1981
        %v2022 = vmul.f32 %v1982, %v1982
        %v2023 = vmul.f32 %v1983, %v1983
        %v2024 = vmul.f32 %v1984, %v1984
        %v2025 = vmul.f32 %v1985, %v1985
        %v2026 = vmul.f32 %v1986, %v1986
        %v2027 = vmul.f32 %v1987, %v1987
        %v2028 = vmul.f32 %v1988, %v1988
        %v2029 = vsub.f32 %v2013, %v2021
        %v2030 = vsub.f32 %v2014, %v2022
        %v2031 = vsub.f32 %v2015, %v2023
        %v2032 = vsub.f32 %v2016, %v2024
        %v2033 = vsub.f32 %v2017, %v2025
        %v2034 = vsub.f32 %v2018, %v2026
        %v2035 = vsub.f32 %v2019, %v2027
        %v2036 = vsub.f32 %v2020, %v2028
        %v2037 = vsub.f32 %v1948, %v1981
        %v2038 = vsub.f32 %v1949, %v1982
        %v2039 = vsub.f32 %v1950, %v1983
        %v2040 = vsub.f32 %v1951, %v1984
        %v2041 = vsub.f32 %v1952, %v1985
        %v2042 = vsub.f32 %v1953, %v1986
        %v2043 = vsub.f32 %v1954, %v1987
        %v2044 = vsub.f32 %v1955, %v1988
        %v2045 = vadd.f32 %v2029, 1e-05
        %v2046 = vadd.f32 %v2030, 1e-05
        %v2047 = vadd.f32 %v2031, 1e-05
        %v2048 = vadd.f32 %v2032, 1e-05
        %v2049 = vadd.f32 %v2033, 1e-05
        %v2050 = vadd.f32 %v2034, 1e-05
        %v2051 = vadd.f32 %v2035, 1e-05
        %v2052 = vadd.f32 %v2036, 1e-05
        %v2053 = vrsqrt.pop %v2045
        %v2054 = vmul.f32 %v2053, %v2045
        %v2055 = vmul.f32 %v2054, %v2053
        %v2056 = vmul.f32 0.5, %v2055
        %v2057 = vsub.f32 1.5, %v2056
        %v2058 = vmul.f32 %v2053, %v2057
        %vm2059 = vweird.f32 %v2045
        %vm2060 = vweird.f32 %v2053
        %vm2061 = vmor %vm2059, %vm2060
        %v2062 = vsel %vm2061, %v2053, %v2058
        %v2063 = vrsqrt.pop %v2046
        %v2064 = vmul.f32 %v2063, %v2046
        %v2065 = vmul.f32 %v2064, %v2063
        %v2066 = vmul.f32 0.5, %v2065
        %v2067 = vsub.f32 1.5, %v2066
        %v2068 = vmul.f32 %v2063, %v2067
        %vm2069 = vweird.f32 %v2046
        %vm2070 = vweird.f32 %v2063
        %vm2071 = vmor %vm2069, %vm2070
        %v2072 = vsel %vm2071, %v2063, %v2068
        %v2073 = vrsqrt.pop %v2047
        %v2074 = vmul.f32 %v2073, %v2047
        %v2075 = vmul.f32 %v2074, %v2073
        %v2076 = vmul.f32 0.5, %v2075
        %v2077 = vsub.f32 1.5, %v2076
        %v2078 = vmul.f32 %v2073, %v2077
        %vm2079 = vweird.f32 %v2047
        %vm2080 = vweird.f32 %v2073
        %vm2081 = vmor %vm2079, %vm2080
        %v2082 = vsel %vm2081, %v2073, %v2078
        %v2083 = vrsqrt.pop %v2048
        %v2084 = vmul.f32 %v2083, %v2048
        %v2085 = vmul.f32 %v2084, %v2083
        %v2086 = vmul.f32 0.5, %v2085
        %v2087 = vsub.f32 1.5, %v2086
        %v2088 = vmul.f32 %v2083, %v2087
        %vm2089 = vweird.f32 %v2048
        %vm2090 = vweird.f32 %v2083
        %vm2091 = vmor %vm2089, %vm2090
        %v2092 = vsel %vm2091, %v2083, %v2088
        %v2093 = vrsqrt.pop %v2049
        %v2094 = vmul.f32 %v2093, %v2049
        %v2095 = vmul.f32 %v2094, %v2093
        %v2096 = vmul.f32 0.5, %v2095
        %v2097 = vsub.f32 1.5, %v2096
        %v2098 = vmul.f32 %v2093, %v2097
        %vm2099 = vweird.f32 %v2049
        %vm2100 = vweird.f32 %v2093
        %vm2101 = vmor %vm2099, %vm2100
        %v2102 = vsel %vm2101, %v2093, %v2098
        %v2103 = vrsqrt.pop %v2050
        %v2104 = vmul.f32 %v2103, %v2050
        %v2105 = vmul.f32 %v2104, %v2103
        %v2106 = vmul.f32 0.5, %v2105
        %v2107 = vsub.f32 1.5, %v2106
        %v2108 = vmul.f32 %v2103, %v2107
        %vm2109 = vweird.f32 %v2050
        %vm2110 = vweird.f32 %v2103
        %vm2111 = vmor %vm2109, %vm2110
        %v2112 = vsel %vm2111, %v2103, %v2108
        %v2113 = vrsqrt.pop %v2051
        %v2114 = vmul.f32 %v2113, %v2051
        %v2115 = vmul.f32 %v2114, %v2113
        %v2116 = vmul.f32 0.5, %v2115
        %v2117 = vsub.f32 1.5, %v2116
        %v2118 = vmul.f32 %v2113, %v2117
        %vm2119 = vweird.f32 %v2051
        %vm2120 = vweird.f32 %v2113
        %vm2121 = vmor %vm2119, %vm2120
        %v2122 = vsel %vm2121, %v2113, %v2118
        %v2123 = vrsqrt.pop %v2052
        %v2124 = vmul.f32 %v2123, %v2052
        %v2125 = vmul.f32 %v2124, %v2123
        %v2126 = vmul.f32 0.5, %v2125
        %v2127 = vsub.f32 1.5, %v2126
        %v2128 = vmul.f32 %v2123, %v2127
        %vm2129 = vweird.f32 %v2052
        %vm2130 = vweird.f32 %v2123
        %vm2131 = vmor %vm2129, %vm2130
        %v2132 = vsel %vm2131, %v2123, %v2128
        %v2133 = vmul.f32 %v2037, %v2062
        %v2134 = vmul.f32 %v2038, %v2072
        %v2135 = vmul.f32 %v2039, %v2082
        %v2136 = vmul.f32 %v2040, %v2092
        %v2137 = vmul.f32 %v2041, %v2102
        %v2138 = vmul.f32 %v2042, %v2112
        %v2139 = vmul.f32 %v2043, %v2122
        %v2140 = vmul.f32 %v2044, %v2132
        %v2142 = vperm.slane %v1956, 0
        %v2144 = vmul.f32 %v2133, %v2142
        %v2145 = vmul.f32 %v2134, %v2142
        %v2146 = vmul.f32 %v2135, %v2142
        %v2147 = vmul.f32 %v2136, %v2142
        %v2148 = vmul.f32 %v2137, %v2142
        %v2149 = vmul.f32 %v2138, %v2142
        %v2150 = vmul.f32 %v2139, %v2142
        %v2151 = vmul.f32 %v2140, %v2142
        %v2153 = vperm.slane %v1957, 0
        %v2155 = vadd.f32 %v2144, %v2153
        %v2156 = vadd.f32 %v2145, %v2153
        %v2157 = vadd.f32 %v2146, %v2153
        %v2158 = vadd.f32 %v2147, %v2153
        %v2159 = vadd.f32 %v2148, %v2153
        %v2160 = vadd.f32 %v2149, %v2153
        %v2161 = vadd.f32 %v2150, %v2153
        %v2162 = vadd.f32 %v2151, %v2153
        %v2163 = vld [vmem:[%s13] sm:$0xff]
        %v2164 = vld [vmem:[%s13 + $0x8] sm:$0xff]
        %v2165 = vld [vmem:[%s13 + $0x10] sm:$0xff]
        %v2166 = vld [vmem:[%s13 + $0x18] sm:$0xff]
        %v2167 = vld [vmem:[%s13 + $0x20] sm:$0xff]
        %v2168 = vld [vmem:[%s13 + $0x28] sm:$0xff]
        %v2169 = vld [vmem:[%s13 + $0x30] sm:$0xff]
        %v2170 = vld [vmem:[%s13 + $0x38] sm:$0xff]
        %v2171 = vld [vmem:[%s13 + $0x40] sm:$0xff]
        %v2172 = vld [vmem:[%s13 + $0x48] sm:$0xff]
        %v2173 = vld [vmem:[%s13 + $0x50] sm:$0xff]
        %v2174 = vld [vmem:[%s13 + $0x58] sm:$0xff]
        %v2175 = vld [vmem:[%s13 + $0x60] sm:$0xff]
        %v2176 = vld [vmem:[%s13 + $0x68] sm:$0xff]
        %v2177 = vld [vmem:[%s13 + $0x70] sm:$0xff]
        %v2178 = vld [vmem:[%s13 + $0x78] sm:$0xff]
        %v2179 = vpack.c.bf16 %v2156, %v2155
        %v2180 = vpack.c.bf16 %v2158, %v2157
        %v2181 = vpack.c.bf16 %v2160, %v2159
        %v2182 = vpack.c.bf16 %v2162, %v2161
        %v2199 = vunpack.c.l.b16 %v2163
        %v2200 = vunpack.c.h.b16 %v2163
        %v2201 = vunpack.c.l.b16 %v2164
        %v2202 = vunpack.c.h.b16 %v2164
        %v2203 = vunpack.c.l.b16 %v2165
        %v2204 = vunpack.c.h.b16 %v2165
        %v2205 = vunpack.c.l.b16 %v2166
        %v2206 = vunpack.c.h.b16 %v2166
        %v2207 = vunpack.c.l.b16 %v2167
        %v2208 = vunpack.c.h.b16 %v2167
        %v2209 = vunpack.c.l.b16 %v2168
        %v2210 = vunpack.c.h.b16 %v2168
        %v2211 = vunpack.c.l.b16 %v2169
        %v2212 = vunpack.c.h.b16 %v2169
        %v2213 = vunpack.c.l.b16 %v2170
        %v2214 = vunpack.c.h.b16 %v2170
        %v2215 = vunpack.c.l.b16 %v2171
        %v2216 = vunpack.c.h.b16 %v2171
        %v2217 = vunpack.c.l.b16 %v2172
        %v2218 = vunpack.c.h.b16 %v2172
        %v2219 = vunpack.c.l.b16 %v2173
        %v2220 = vunpack.c.h.b16 %v2173
        %v2221 = vunpack.c.l.b16 %v2174
        %v2222 = vunpack.c.h.b16 %v2174
        %v2223 = vunpack.c.l.b16 %v2175
        %v2224 = vunpack.c.h.b16 %v2175
        %v2225 = vunpack.c.l.b16 %v2176
        %v2226 = vunpack.c.h.b16 %v2176
        %v2227 = vunpack.c.l.b16 %v2177
        %v2228 = vunpack.c.h.b16 %v2177
        %v2229 = vunpack.c.l.b16 %v2178
        %v2230 = vunpack.c.h.b16 %v2178
        %v2231 = vpack.c.b16 %v2201, %v2199
        %v2232 = vpack.c.b16 %v2202, %v2200
        %v2233 = vpack.c.b16 %v2205, %v2203
        %v2234 = vpack.c.b16 %v2206, %v2204
        %v2235 = vpack.c.b16 %v2209, %v2207
        %v2236 = vpack.c.b16 %v2210, %v2208
        %v2237 = vpack.c.b16 %v2213, %v2211
        %v2238 = vpack.c.b16 %v2214, %v2212
        %v2239 = vpack.c.b16 %v2217, %v2215
        %v2240 = vpack.c.b16 %v2218, %v2216
        %v2241 = vpack.c.b16 %v2221, %v2219
        %v2242 = vpack.c.b16 %v2222, %v2220
        %v2243 = vpack.c.b16 %v2225, %v2223
        %v2244 = vpack.c.b16 %v2226, %v2224
        %v2245 = vpack.c.b16 %v2229, %v2227
        %v2246 = vpack.c.b16 %v2230, %v2228
        %2263 = vmatpush.bf16.msra.mxu0 %v2245
        %2264 = vmatpush.bf16.msra.mxu0 %v2243
        %2265 = vmatpush.bf16.msra.mxu0 %v2241
        %2266 = vmatpush.bf16.msra.mxu0 %v2239
        %2267 = vmatpush.bf16.msra.mxu0 %v2237
        %2268 = vmatpush.bf16.msra.mxu0 %v2235
        %2269 = vmatpush.bf16.msra.mxu0 %v2233
        %2270 = vmatpush.bf16.msra.mxu0 %v2231
        %2271 = vmatmul.bf16.gmra.mxu0 %v2179
        %v2272 = vpop.f32.mrf.mxu0
        %v2273 = vadd.f32 0.0, %v2272
        %v2274 = vpop.f32.mrf.mxu0
        %v2275 = vadd.f32 0.0, %v2274
        %2276 = vmatmul.bf16.gmra.mxu0 %v2180
        %v2277 = vpop.f32.mrf.mxu0
        %v2278 = vadd.f32 0.0, %v2277
        %v2279 = vpop.f32.mrf.mxu0
        %v2280 = vadd.f32 0.0, %v2279
        %2281 = vmatmul.bf16.gmra.mxu0 %v2181
        %v2282 = vpop.f32.mrf.mxu0
        %v2283 = vadd.f32 0.0, %v2282
        %v2284 = vpop.f32.mrf.mxu0
        %v2285 = vadd.f32 0.0, %v2284
        %2286 = vmatmul.bf16.gmra.mxu0 %v2182
        %v2287 = vpop.f32.mrf.mxu0
        %v2288 = vadd.f32 0.0, %v2287
        %v2289 = vpop.f32.mrf.mxu0
        %v2290 = vadd.f32 0.0, %v2289
        %2291 = vdwg.mxu0
        %2292 = vmatpush.bf16.msra.mxu0 %v2246
        %2293 = vmatpush.bf16.msra.mxu0 %v2244
        %2294 = vmatpush.bf16.msra.mxu0 %v2242
        %2295 = vmatpush.bf16.msra.mxu0 %v2240
        %2296 = vmatpush.bf16.msra.mxu0 %v2238
        %2297 = vmatpush.bf16.msra.mxu0 %v2236
        %2298 = vmatpush.bf16.msra.mxu0 %v2234
        %2299 = vmatpush.bf16.msra.mxu0 %v2232
        %2300 = vmatmul.bf16.gmra.mxu0 %v2179
        %v2301 = vpop.f32.mrf.mxu0
        %v2302 = vadd.f32 0.0, %v2301
        %v2303 = vpop.f32.mrf.mxu0
        %v2304 = vadd.f32 0.0, %v2303
        %2305 = vmatmul.bf16.gmra.mxu0 %v2180
        %v2306 = vpop.f32.mrf.mxu0
        %v2307 = vadd.f32 0.0, %v2306
        %v2308 = vpop.f32.mrf.mxu0
        %v2309 = vadd.f32 0.0, %v2308
        %2310 = vmatmul.bf16.gmra.mxu0 %v2181
        %v2311 = vpop.f32.mrf.mxu0
        %v2312 = vadd.f32 0.0, %v2311
        %v2313 = vpop.f32.mrf.mxu0
        %v2314 = vadd.f32 0.0, %v2313
        %2315 = vmatmul.bf16.gmra.mxu0 %v2182
        %v2316 = vpop.f32.mrf.mxu0
        %v2317 = vadd.f32 0.0, %v2316
        %v2318 = vpop.f32.mrf.mxu0
        %v2319 = vadd.f32 0.0, %v2318
        %2320 = vdwg.mxu0
        %v2321 = vld [vmem:[#allocation3] sm:$0xff]
        %v2322 = vld [vmem:[#allocation3 + $0x8] sm:$0xff]
        %v2323 = vld [vmem:[#allocation3 + $0x10] sm:$0xff]
        %v2324 = vld [vmem:[#allocation3 + $0x18] sm:$0xff]
        %v2325 = vld [vmem:[#allocation3 + $0x20] sm:$0xff]
        %v2326 = vld [vmem:[#allocation3 + $0x28] sm:$0xff]
        %v2327 = vld [vmem:[#allocation3 + $0x30] sm:$0xff]
        %v2328 = vld [vmem:[#allocation3 + $0x38] sm:$0xff]
        %v2329 = vpack.c.bf16 %v2322, %v2321
        %v2330 = vpack.c.bf16 %v2324, %v2323
        %v2331 = vpack.c.bf16 %v2326, %v2325
        %v2332 = vpack.c.bf16 %v2328, %v2327
        %v2333 = vpack.c.bf16 %v2275, %v2273
        %v2334 = vpack.c.bf16 %v2280, %v2278
        %v2335 = vpack.c.bf16 %v2285, %v2283
        %v2336 = vpack.c.bf16 %v2290, %v2288
        %2337 = vmatpush.bf16.xpose.msra.mxu0 0
        %2338 = vmatpush.bf16.xpose.msra.mxu0 0
        %2339 = vmatpush.bf16.xpose.msra.mxu0 0
        %2340 = vmatpush.bf16.xpose.msra.mxu0 0
        %2341 = vmatpush.bf16.xpose.msra.mxu0 %v2336
        %2342 = vmatpush.bf16.xpose.msra.mxu0 %v2335
        %2343 = vmatpush.bf16.xpose.msra.mxu0 %v2334
        %2344 = vmatpush.bf16.xpose.msra.mxu0 %v2333
        %2345 = vmatmul.bf16.gmra.mxu0 %v2329
        %v2346 = vpop.f32.mrf.mxu0
        %v2347 = vadd.f32 0.0, %v2346
        %v2348 = vpop.f32.mrf.mxu0
        %v2349 = vadd.f32 0.0, %v2348
        %2350 = vmatmul.bf16.gmra.mxu0 %v2330
        %v2351 = vpop.f32.mrf.mxu0
        %v2352 = vadd.f32 0.0, %v2351
        %v2353 = vpop.f32.mrf.mxu0
        %v2354 = vadd.f32 0.0, %v2353
        %2355 = vmatmul.bf16.gmra.mxu0 %v2331
        %v2356 = vpop.f32.mrf.mxu0
        %v2357 = vadd.f32 0.0, %v2356
        %v2358 = vpop.f32.mrf.mxu0
        %v2359 = vadd.f32 0.0, %v2358
        %2360 = vmatmul.bf16.gmra.mxu0 %v2332
        %v2361 = vpop.f32.mrf.mxu0
        %v2362 = vadd.f32 0.0, %v2361
        %v2363 = vpop.f32.mrf.mxu0
        %v2364 = vadd.f32 0.0, %v2363
        %2365 = vdwg.mxu0
        %v2366 = vmul.f32 %v2347, 0.088388346
        %v2367 = vmul.f32 %v2349, 0.088388346
        %v2368 = vmul.f32 %v2352, 0.088388346
        %v2369 = vmul.f32 %v2354, 0.088388346
        %v2370 = vmul.f32 %v2357, 0.088388346
        %v2371 = vmul.f32 %v2359, 0.088388346
        %v2372 = vmul.f32 %v2362, 0.088388346
        %v2373 = vmul.f32 %v2364, 0.088388346
        %v2374 = vld [vmem:[#allocation4] sm:$0xff]
        %v2375 = vld [vmem:[#allocation4 + $0x8] sm:$0xff]
        %v2376 = vld [vmem:[#allocation4 + $0x10] sm:$0xff]
        %v2377 = vld [vmem:[#allocation4 + $0x18] sm:$0xff]
        %v2378 = vld [vmem:[#allocation4 + $0x20] sm:$0xff]
        %v2379 = vld [vmem:[#allocation4 + $0x28] sm:$0xff]
        %v2380 = vld [vmem:[#allocation4 + $0x30] sm:$0xff]
        %v2381 = vld [vmem:[#allocation4 + $0x38] sm:$0xff]
        %vm2382 = vcmask 523264
        %v2383 = vsel %vm2382, %v2366, -inf
        %2384 = vmax.xlane.f32.xlu0 %v2383
        %v2385 = vpop.xlane.xlu0 %2384
        %v2386 = vsel %vm2382, %v2367, -inf
        %2387 = vmax.xlane.f32.xlu0 %v2386
        %v2388 = vpop.xlane.xlu0 %2387
        %v2389 = vsel %vm2382, %v2368, -inf
        %2390 = vmax.xlane.f32.xlu0 %v2389
        %v2391 = vpop.xlane.xlu0 %2390
        %v2392 = vsel %vm2382, %v2369, -inf
        %2393 = vmax.xlane.f32.xlu0 %v2392
        %v2394 = vpop.xlane.xlu0 %2393
        %v2395 = vsel %vm2382, %v2370, -inf
        %2396 = vmax.xlane.f32.xlu0 %v2395
        %v2397 = vpop.xlane.xlu0 %2396
        %v2398 = vsel %vm2382, %v2371, -inf
        %2399 = vmax.xlane.f32.xlu0 %v2398
        %v2400 = vpop.xlane.xlu0 %2399
        %v2401 = vsel %vm2382, %v2372, -inf
        %2402 = vmax.xlane.f32.xlu0 %v2401
        %v2403 = vpop.xlane.xlu0 %2402
        %v2404 = vsel %vm2382, %v2373, -inf
        %2405 = vmax.xlane.f32.xlu0 %v2404
        %v2406 = vpop.xlane.xlu0 %2405
        %v2407 = vmax.f32 %v2374, %v2385
        %v2408 = vmax.f32 %v2375, %v2388
        %v2409 = vmax.f32 %v2376, %v2391
        %v2410 = vmax.f32 %v2377, %v2394
        %v2411 = vmax.f32 %v2378, %v2397
        %v2412 = vmax.f32 %v2379, %v2400
        %v2413 = vmax.f32 %v2380, %v2403
        %v2414 = vmax.f32 %v2381, %v2406
        %v2415 = vsub.f32 %v2374, %v2407
        %v2416 = vsub.f32 %v2375, %v2408
        %v2417 = vsub.f32 %v2376, %v2409
        %v2418 = vsub.f32 %v2377, %v2410
        %v2419 = vsub.f32 %v2378, %v2411
        %v2420 = vsub.f32 %v2379, %v2412
        %v2421 = vsub.f32 %v2380, %v2413
        %v2422 = vsub.f32 %v2381, %v2414
        %v2423 = vmul.f32 %v2415, 1.442695
        %v2424 = vpow.pop %v2423
        %v2425 = vmul.f32 %v2416, 1.442695
        %v2426 = vpow.pop %v2425
        %v2427 = vmul.f32 %v2417, 1.442695
        %v2428 = vpow.pop %v2427
        %v2429 = vmul.f32 %v2418, 1.442695
        %v2430 = vpow.pop %v2429
        %v2431 = vmul.f32 %v2419, 1.442695
        %v2432 = vpow.pop %v2431
        %v2433 = vmul.f32 %v2420, 1.442695
        %v2434 = vpow.pop %v2433
        %v2435 = vmul.f32 %v2421, 1.442695
        %v2436 = vpow.pop %v2435
        %v2437 = vmul.f32 %v2422, 1.442695
        %v2438 = vpow.pop %v2437
        %2440 = vset.pattern.permute.xlu0 0
        %2441 = vperm.xlu0 %2440, %v2407
        %v2442 = vpop.permute.xlu0 %2441
        %2445 = vset.pattern.permute.xlu0 0
        %2446 = vperm.xlu0 %2445, %v2408
        %v2447 = vpop.permute.xlu0 %2446
        %2450 = vset.pattern.permute.xlu0 0
        %2451 = vperm.xlu0 %2450, %v2409
        %v2452 = vpop.permute.xlu0 %2451
        %2455 = vset.pattern.permute.xlu0 0
        %2456 = vperm.xlu0 %2455, %v2410
        %v2457 = vpop.permute.xlu0 %2456
        %2460 = vset.pattern.permute.xlu0 0
        %2461 = vperm.xlu0 %2460, %v2411
        %v2462 = vpop.permute.xlu0 %2461
        %2465 = vset.pattern.permute.xlu0 0
        %2466 = vperm.xlu0 %2465, %v2412
        %v2467 = vpop.permute.xlu0 %2466
        %2470 = vset.pattern.permute.xlu0 0
        %2471 = vperm.xlu0 %2470, %v2413
        %v2472 = vpop.permute.xlu0 %2471
        %2475 = vset.pattern.permute.xlu0 0
        %2476 = vperm.xlu0 %2475, %v2414
        %v2477 = vpop.permute.xlu0 %2476
        %v2479 = vsub.f32 %v2366, %v2442
        %v2480 = vsub.f32 %v2367, %v2447
        %v2481 = vsub.f32 %v2368, %v2452
        %v2482 = vsub.f32 %v2369, %v2457
        %v2483 = vsub.f32 %v2370, %v2462
        %v2484 = vsub.f32 %v2371, %v2467
        %v2485 = vsub.f32 %v2372, %v2472
        %v2486 = vsub.f32 %v2373, %v2477
        %v2487 = vmul.f32 %v2479, 1.442695
        %v2488 = vpow.pop %v2487
        %v2489 = vmul.f32 %v2480, 1.442695
        %v2490 = vpow.pop %v2489
        %v2491 = vmul.f32 %v2481, 1.442695
        %v2492 = vpow.pop %v2491
        %v2493 = vmul.f32 %v2482, 1.442695
        %v2494 = vpow.pop %v2493
        %v2495 = vmul.f32 %v2483, 1.442695
        %v2496 = vpow.pop %v2495
        %v2497 = vmul.f32 %v2484, 1.442695
        %v2498 = vpow.pop %v2497
        %v2499 = vmul.f32 %v2485, 1.442695
        %v2500 = vpow.pop %v2499
        %v2501 = vmul.f32 %v2486, 1.442695
        %v2502 = vpow.pop %v2501
        %v2503 = vld [vmem:[#allocation5] sm:$0xff]
        %v2504 = vld [vmem:[#allocation5 + $0x8] sm:$0xff]
        %v2505 = vld [vmem:[#allocation5 + $0x10] sm:$0xff]
        %v2506 = vld [vmem:[#allocation5 + $0x18] sm:$0xff]
        %v2507 = vld [vmem:[#allocation5 + $0x20] sm:$0xff]
        %v2508 = vld [vmem:[#allocation5 + $0x28] sm:$0xff]
        %v2509 = vld [vmem:[#allocation5 + $0x30] sm:$0xff]
        %v2510 = vld [vmem:[#allocation5 + $0x38] sm:$0xff]
        %v2511 = vmul.f32 %v2424, %v2503
        %v2512 = vmul.f32 %v2426, %v2504
        %v2513 = vmul.f32 %v2428, %v2505
        %v2514 = vmul.f32 %v2430, %v2506
        %v2515 = vmul.f32 %v2432, %v2507
        %v2516 = vmul.f32 %v2434, %v2508
        %v2517 = vmul.f32 %v2436, %v2509
        %v2518 = vmul.f32 %v2438, %v2510
        %v2519 = vsel %vm2382, %v2488, 0.0
        %2520 = vadd.xlane.f32.xlu0 %v2519
        %v2521 = vpop.xlane.xlu0 %2520
        %v2522 = vsel %vm2382, %v2490, 0.0
        %2523 = vadd.xlane.f32.xlu0 %v2522
        %v2524 = vpop.xlane.xlu0 %2523
        %v2525 = vsel %vm2382, %v2492, 0.0
        %2526 = vadd.xlane.f32.xlu0 %v2525
        %v2527 = vpop.xlane.xlu0 %2526
        %v2528 = vsel %vm2382, %v2494, 0.0
        %2529 = vadd.xlane.f32.xlu0 %v2528
        %v2530 = vpop.xlane.xlu0 %2529
        %v2531 = vsel %vm2382, %v2496, 0.0
        %2532 = vadd.xlane.f32.xlu0 %v2531
        %v2533 = vpop.xlane.xlu0 %2532
        %v2534 = vsel %vm2382, %v2498, 0.0
        %2535 = vadd.xlane.f32.xlu0 %v2534
        %v2536 = vpop.xlane.xlu0 %2535
        %v2537 = vsel %vm2382, %v2500, 0.0
        %2538 = vadd.xlane.f32.xlu0 %v2537
        %v2539 = vpop.xlane.xlu0 %2538
        %v2540 = vsel %vm2382, %v2502, 0.0
        %2541 = vadd.xlane.f32.xlu0 %v2540
        %v2542 = vpop.xlane.xlu0 %2541
        %v2543 = vadd.f32 %v2511, %v2521
        %v2544 = vadd.f32 %v2512, %v2524
        %v2545 = vadd.f32 %v2513, %v2527
        %v2546 = vadd.f32 %v2514, %v2530
        %v2547 = vadd.f32 %v2515, %v2533
        %v2548 = vadd.f32 %v2516, %v2536
        %v2549 = vadd.f32 %v2517, %v2539
        %v2550 = vadd.f32 %v2518, %v2542
        %vm2551 = vcmask 7168
        %2552 = vst.msk [vmem:[#allocation5] sm:$0xff] %vm2551, %v2543
        %2553 = vst.msk [vmem:[#allocation5 + $0x8] sm:$0xff] %vm2551, %v2544
        %2554 = vst.msk [vmem:[#allocation5 + $0x10] sm:$0xff] %vm2551, %v2545
        %2555 = vst.msk [vmem:[#allocation5 + $0x18] sm:$0xff] %vm2551, %v2546
        %2556 = vst.msk [vmem:[#allocation5 + $0x20] sm:$0xff] %vm2551, %v2547
        %2557 = vst.msk [vmem:[#allocation5 + $0x28] sm:$0xff] %vm2551, %v2548
        %2558 = vst.msk [vmem:[#allocation5 + $0x30] sm:$0xff] %vm2551, %v2549
        %2559 = vst.msk [vmem:[#allocation5 + $0x38] sm:$0xff] %vm2551, %v2550
        %v2560 = vld [vmem:[#allocation6] sm:$0xff]
        %v2561 = vld [vmem:[#allocation6 + $0x8] sm:$0xff]
        %v2562 = vld [vmem:[#allocation6 + $0x10] sm:$0xff]
        %v2563 = vld [vmem:[#allocation6 + $0x18] sm:$0xff]
        %v2564 = vld [vmem:[#allocation6 + $0x20] sm:$0xff]
        %v2565 = vld [vmem:[#allocation6 + $0x28] sm:$0xff]
        %v2566 = vld [vmem:[#allocation6 + $0x30] sm:$0xff]
        %v2567 = vld [vmem:[#allocation6 + $0x38] sm:$0xff]
        %2569 = vset.pattern.permute.xlu0 0
        %2570 = vperm.xlu0 %2569, %v2424
        %v2571 = vpop.permute.xlu0 %2570
        %2574 = vset.pattern.permute.xlu0 0
        %2575 = vperm.xlu0 %2574, %v2426
        %v2576 = vpop.permute.xlu0 %2575
        %2579 = vset.pattern.permute.xlu0 0
        %2580 = vperm.xlu0 %2579, %v2428
        %v2581 = vpop.permute.xlu0 %2580
        %2584 = vset.pattern.permute.xlu0 0
        %2585 = vperm.xlu0 %2584, %v2430
        %v2586 = vpop.permute.xlu0 %2585
        %2589 = vset.pattern.permute.xlu0 0
        %2590 = vperm.xlu0 %2589, %v2432
        %v2591 = vpop.permute.xlu0 %2590
        %2594 = vset.pattern.permute.xlu0 0
        %2595 = vperm.xlu0 %2594, %v2434
        %v2596 = vpop.permute.xlu0 %2595
        %2599 = vset.pattern.permute.xlu0 0
        %2600 = vperm.xlu0 %2599, %v2436
        %v2601 = vpop.permute.xlu0 %2600
        %2604 = vset.pattern.permute.xlu0 0
        %2605 = vperm.xlu0 %2604, %v2438
        %v2606 = vpop.permute.xlu0 %2605
        %v2608 = vmul.f32 %v2571, %v2560
        %v2609 = vmul.f32 %v2576, %v2561
        %v2610 = vmul.f32 %v2581, %v2562
        %v2611 = vmul.f32 %v2586, %v2563
        %v2612 = vmul.f32 %v2591, %v2564
        %v2613 = vmul.f32 %v2596, %v2565
        %v2614 = vmul.f32 %v2601, %v2566
        %v2615 = vmul.f32 %v2606, %v2567
        %v2616 = vpack.c.bf16 %v2490, %v2488
        %v2617 = vpack.c.bf16 %v2494, %v2492
        %v2618 = vpack.c.bf16 %v2498, %v2496
        %v2619 = vpack.c.bf16 %v2502, %v2500
        %v2620 = vpack.c.bf16 %v2304, %v2302
        %v2621 = vpack.c.bf16 %v2309, %v2307
        %v2622 = vpack.c.bf16 %v2314, %v2312
        %v2623 = vpack.c.bf16 %v2319, %v2317
        %v2625 = vsel %vm2382, %v2616, 0
        %v2628 = vsel %vm2382, %v2617, 0
        %v2631 = vsel %vm2382, %v2618, 0
        %v2634 = vsel %vm2382, %v2619, 0
        %2636 = vmatpush.bf16.msra.mxu0 0
        %2637 = vmatpush.bf16.msra.mxu0 0
        %2638 = vmatpush.bf16.msra.mxu0 0
        %2639 = vmatpush.bf16.msra.mxu0 0
        %2640 = vmatpush.bf16.msra.mxu0 %v2623
        %2641 = vmatpush.bf16.msra.mxu0 %v2622
        %2642 = vmatpush.bf16.msra.mxu0 %v2621
        %2643 = vmatpush.bf16.msra.mxu0 %v2620
        %2644 = vmatmul.bf16.gmra.mxu0 %v2625
        %v2645 = vpop.f32.mrf.mxu0
        %v2646 = vadd.f32 0.0, %v2645
        %v2647 = vpop.f32.mrf.mxu0
        %v2648 = vadd.f32 0.0, %v2647
        %2649 = vmatmul.bf16.gmra.mxu0 %v2628
        %v2650 = vpop.f32.mrf.mxu0
        %v2651 = vadd.f32 0.0, %v2650
        %v2652 = vpop.f32.mrf.mxu0
        %v2653 = vadd.f32 0.0, %v2652
        %2654 = vmatmul.bf16.gmra.mxu0 %v2631
        %v2655 = vpop.f32.mrf.mxu0
        %v2656 = vadd.f32 0.0, %v2655
        %v2657 = vpop.f32.mrf.mxu0
        %v2658 = vadd.f32 0.0, %v2657
        %2659 = vmatmul.bf16.gmra.mxu0 %v2634
        %v2660 = vpop.f32.mrf.mxu0
        %v2661 = vadd.f32 0.0, %v2660
        %v2662 = vpop.f32.mrf.mxu0
        %v2663 = vadd.f32 0.0, %v2662
        %2664 = vdwg.mxu0
        %v2665 = vadd.f32 %v2608, %v2646
        %v2666 = vadd.f32 %v2609, %v2648
        %v2667 = vadd.f32 %v2610, %v2651
        %v2668 = vadd.f32 %v2611, %v2653
        %v2669 = vadd.f32 %v2612, %v2656
        %v2670 = vadd.f32 %v2613, %v2658
        %v2671 = vadd.f32 %v2614, %v2661
        %v2672 = vadd.f32 %v2615, %v2663
        %2673 = vst [vmem:[#allocation6] sm:$0xff] %v2665
        %2674 = vst [vmem:[#allocation6 + $0x8] sm:$0xff] %v2666
        %2675 = vst [vmem:[#allocation6 + $0x10] sm:$0xff] %v2667
        %2676 = vst [vmem:[#allocation6 + $0x18] sm:$0xff] %v2668
        %2677 = vst [vmem:[#allocation6 + $0x20] sm:$0xff] %v2669
        %2678 = vst [vmem:[#allocation6 + $0x28] sm:$0xff] %v2670
        %2679 = vst [vmem:[#allocation6 + $0x30] sm:$0xff] %v2671
        %2680 = vst [vmem:[#allocation6 + $0x38] sm:$0xff] %v2672
        %2681 = vst.msk [vmem:[#allocation4] sm:$0xff] %vm2551, %v2407
        %2682 = vst.msk [vmem:[#allocation4 + $0x8] sm:$0xff] %vm2551, %v2408
        %2683 = vst.msk [vmem:[#allocation4 + $0x10] sm:$0xff] %vm2551, %v2409
        %2684 = vst.msk [vmem:[#allocation4 + $0x18] sm:$0xff] %vm2551, %v2410
        %2685 = vst.msk [vmem:[#allocation4 + $0x20] sm:$0xff] %vm2551, %v2411
        %2686 = vst.msk [vmem:[#allocation4 + $0x28] sm:$0xff] %vm2551, %v2412
        %2687 = vst.msk [vmem:[#allocation4 + $0x30] sm:$0xff] %vm2551, %v2413
        %2688 = vst.msk [vmem:[#allocation4 + $0x38] sm:$0xff] %vm2551, %v2414
        // Predicated region
        $region161: #{oformer_forward.3} parent=111 // pred_check
          %p2689 = pneg %p997
        $region162: #{oformer_forward.3} parent=111 // pred_check_branch
          %2691 = sbr.rel (%p2689) target = $region164
        $region163: #{oformer_forward.3} parent=111 // pred_region
          %v2692 = vld [vmem:[#allocation6] sm:$0xff]
          %v2693 = vld [vmem:[#allocation6 + $0x8] sm:$0xff]
          %v2694 = vld [vmem:[#allocation6 + $0x10] sm:$0xff]
          %v2695 = vld [vmem:[#allocation6 + $0x18] sm:$0xff]
          %v2696 = vld [vmem:[#allocation6 + $0x20] sm:$0xff]
          %v2697 = vld [vmem:[#allocation6 + $0x28] sm:$0xff]
          %v2698 = vld [vmem:[#allocation6 + $0x30] sm:$0xff]
          %v2699 = vld [vmem:[#allocation6 + $0x38] sm:$0xff]
          %v2700 = vld [vmem:[#allocation5] sm:$0xff]
          %v2701 = vld [vmem:[#allocation5 + $0x8] sm:$0xff]
          %v2702 = vld [vmem:[#allocation5 + $0x10] sm:$0xff]
          %v2703 = vld [vmem:[#allocation5 + $0x18] sm:$0xff]
          %v2704 = vld [vmem:[#allocation5 + $0x20] sm:$0xff]
          %v2705 = vld [vmem:[#allocation5 + $0x28] sm:$0xff]
          %v2706 = vld [vmem:[#allocation5 + $0x30] sm:$0xff]
          %v2707 = vld [vmem:[#allocation5 + $0x38] sm:$0xff]
          %2709 = vset.pattern.permute.xlu0 0
          %2710 = vperm.xlu0 %2709, %v2700
          %v2711 = vpop.permute.xlu0 %2710
          %2714 = vset.pattern.permute.xlu0 0
          %2715 = vperm.xlu0 %2714, %v2701
          %v2716 = vpop.permute.xlu0 %2715
          %2719 = vset.pattern.permute.xlu0 0
          %2720 = vperm.xlu0 %2719, %v2702
          %v2721 = vpop.permute.xlu0 %2720
          %2724 = vset.pattern.permute.xlu0 0
          %2725 = vperm.xlu0 %2724, %v2703
          %v2726 = vpop.permute.xlu0 %2725
          %2729 = vset.pattern.permute.xlu0 0
          %2730 = vperm.xlu0 %2729, %v2704
          %v2731 = vpop.permute.xlu0 %2730
          %2734 = vset.pattern.permute.xlu0 0
          %2735 = vperm.xlu0 %2734, %v2705
          %v2736 = vpop.permute.xlu0 %2735
          %2739 = vset.pattern.permute.xlu0 0
          %2740 = vperm.xlu0 %2739, %v2706
          %v2741 = vpop.permute.xlu0 %2740
          %2744 = vset.pattern.permute.xlu0 0
          %2745 = vperm.xlu0 %2744, %v2707
          %v2746 = vpop.permute.xlu0 %2745
          %v2748 = vrcp.pop %v2711
          %v2749 = vmul.f32 %v2711, %v2748
          %v2750 = vsub.f32 1.0, %v2749
          %v2751 = vmul.f32 %v2748, %v2750
          %v2752 = vadd.f32 %v2748, %v2751
          %vm2753 = vweird.f32 %v2711
          %vm2754 = vweird.f32 %v2748
          %vm2755 = vmor %vm2753, %vm2754
          %v2756 = vsel %vm2755, %v2748, %v2752
          %v2757 = vand.u32 2147483647, %v2711
          %vm2758 = vcmp.eq.f32.partialorder %v2757, 8.507059e+37
          %v2759 = vand.u32 %v2711, 2147483648
          %v2760 = vor.u32 1.1754944e-38, %v2759
          %v2761 = vsel %vm2758, %v2760, %v2756
          %v2762 = vmul.f32 %v2692, %v2761
          %v2763 = vrcp.pop %v2716
          %v2764 = vmul.f32 %v2716, %v2763
          %v2765 = vsub.f32 1.0, %v2764
          %v2766 = vmul.f32 %v2763, %v2765
          %v2767 = vadd.f32 %v2763, %v2766
          %vm2768 = vweird.f32 %v2716
          %vm2769 = vweird.f32 %v2763
          %vm2770 = vmor %vm2768, %vm2769
          %v2771 = vsel %vm2770, %v2763, %v2767
          %v2772 = vand.u32 2147483647, %v2716
          %vm2773 = vcmp.eq.f32.partialorder %v2772, 8.507059e+37
          %v2774 = vand.u32 %v2716, 2147483648
          %v2775 = vor.u32 1.1754944e-38, %v2774
          %v2776 = vsel %vm2773, %v2775, %v2771
          %v2777 = vmul.f32 %v2693, %v2776
          %v2778 = vrcp.pop %v2721
          %v2779 = vmul.f32 %v2721, %v2778
          %v2780 = vsub.f32 1.0, %v2779
          %v2781 = vmul.f32 %v2778, %v2780
          %v2782 = vadd.f32 %v2778, %v2781
          %vm2783 = vweird.f32 %v2721
          %vm2784 = vweird.f32 %v2778
          %vm2785 = vmor %vm2783, %vm2784
          %v2786 = vsel %vm2785, %v2778, %v2782
          %v2787 = vand.u32 2147483647, %v2721
          %vm2788 = vcmp.eq.f32.partialorder %v2787, 8.507059e+37
          %v2789 = vand.u32 %v2721, 2147483648
          %v2790 = vor.u32 1.1754944e-38, %v2789
          %v2791 = vsel %vm2788, %v2790, %v2786
          %v2792 = vmul.f32 %v2694, %v2791
          %v2793 = vrcp.pop %v2726
          %v2794 = vmul.f32 %v2726, %v2793
          %v2795 = vsub.f32 1.0, %v2794
          %v2796 = vmul.f32 %v2793, %v2795
          %v2797 = vadd.f32 %v2793, %v2796
          %vm2798 = vweird.f32 %v2726
          %vm2799 = vweird.f32 %v2793
          %vm2800 = vmor %vm2798, %vm2799
          %v2801 = vsel %vm2800, %v2793, %v2797
          %v2802 = vand.u32 2147483647, %v2726
          %vm2803 = vcmp.eq.f32.partialorder %v2802, 8.507059e+37
          %v2804 = vand.u32 %v2726, 2147483648
          %v2805 = vor.u32 1.1754944e-38, %v2804
          %v2806 = vsel %vm2803, %v2805, %v2801
          %v2807 = vmul.f32 %v2695, %v2806
          %v2808 = vrcp.pop %v2731
          %v2809 = vmul.f32 %v2731, %v2808
          %v2810 = vsub.f32 1.0, %v2809
          %v2811 = vmul.f32 %v2808, %v2810
          %v2812 = vadd.f32 %v2808, %v2811
          %vm2813 = vweird.f32 %v2731
          %vm2814 = vweird.f32 %v2808
          %vm2815 = vmor %vm2813, %vm2814
          %v2816 = vsel %vm2815, %v2808, %v2812
          %v2817 = vand.u32 2147483647, %v2731
          %vm2818 = vcmp.eq.f32.partialorder %v2817, 8.507059e+37
          %v2819 = vand.u32 %v2731, 2147483648
          %v2820 = vor.u32 1.1754944e-38, %v2819
          %v2821 = vsel %vm2818, %v2820, %v2816
          %v2822 = vmul.f32 %v2696, %v2821
          %v2823 = vrcp.pop %v2736
          %v2824 = vmul.f32 %v2736, %v2823
          %v2825 = vsub.f32 1.0, %v2824
          %v2826 = vmul.f32 %v2823, %v2825
          %v2827 = vadd.f32 %v2823, %v2826
          %vm2828 = vweird.f32 %v2736
          %vm2829 = vweird.f32 %v2823
          %vm2830 = vmor %vm2828, %vm2829
          %v2831 = vsel %vm2830, %v2823, %v2827
          %v2832 = vand.u32 2147483647, %v2736
          %vm2833 = vcmp.eq.f32.partialorder %v2832, 8.507059e+37
          %v2834 = vand.u32 %v2736, 2147483648
          %v2835 = vor.u32 1.1754944e-38, %v2834
          %v2836 = vsel %vm2833, %v2835, %v2831
          %v2837 = vmul.f32 %v2697, %v2836
          %v2838 = vrcp.pop %v2741
          %v2839 = vmul.f32 %v2741, %v2838
          %v2840 = vsub.f32 1.0, %v2839
          %v2841 = vmul.f32 %v2838, %v2840
          %v2842 = vadd.f32 %v2838, %v2841
          %vm2843 = vweird.f32 %v2741
          %vm2844 = vweird.f32 %v2838
          %vm2845 = vmor %vm2843, %vm2844
          %v2846 = vsel %vm2845, %v2838, %v2842
          %v2847 = vand.u32 2147483647, %v2741
          %vm2848 = vcmp.eq.f32.partialorder %v2847, 8.507059e+37
          %v2849 = vand.u32 %v2741, 2147483648
          %v2850 = vor.u32 1.1754944e-38, %v2849
          %v2851 = vsel %vm2848, %v2850, %v2846
          %v2852 = vmul.f32 %v2698, %v2851
          %v2853 = vrcp.pop %v2746
          %v2854 = vmul.f32 %v2746, %v2853
          %v2855 = vsub.f32 1.0, %v2854
          %v2856 = vmul.f32 %v2853, %v2855
          %v2857 = vadd.f32 %v2853, %v2856
          %vm2858 = vweird.f32 %v2746
          %vm2859 = vweird.f32 %v2853
          %vm2860 = vmor %vm2858, %vm2859
          %v2861 = vsel %vm2860, %v2853, %v2857
          %v2862 = vand.u32 2147483647, %v2746
          %vm2863 = vcmp.eq.f32.partialorder %v2862, 8.507059e+37
          %v2864 = vand.u32 %v2746, 2147483648
          %v2865 = vor.u32 1.1754944e-38, %v2864
          %v2866 = vsel %vm2863, %v2865, %v2861
          %v2867 = vmul.f32 %v2699, %v2866
          %v2868 = vld [vmem:[#allocation2] sm:$0xff]
          %v2869 = vld [vmem:[#allocation2 + $0x8] sm:$0xff]
          %v2870 = vld [vmem:[#allocation2 + $0x10] sm:$0xff]
          %v2871 = vld [vmem:[#allocation2 + $0x18] sm:$0xff]
          %v2872 = vld [vmem:[#allocation2 + $0x20] sm:$0xff]
          %v2873 = vld [vmem:[#allocation2 + $0x28] sm:$0xff]
          %v2874 = vld [vmem:[#allocation2 + $0x30] sm:$0xff]
          %v2875 = vld [vmem:[#allocation2 + $0x38] sm:$0xff]
          %v2876 = vld [vmem:[#allocation14] sm:$0xf]
          %v2877 = vld [vmem:[#allocation14 + $0x4] sm:$0xf]
          %v2878 = vld [vmem:[#allocation14 + $0x8] sm:$0xf]
          %v2879 = vld [vmem:[#allocation14 + $0xc] sm:$0xf]
          %v2880 = vld [vmem:[#allocation14 + $0x10] sm:$0xf]
          %v2881 = vld [vmem:[#allocation14 + $0x14] sm:$0xf]
          %v2882 = vld [vmem:[#allocation14 + $0x18] sm:$0xf]
          %v2883 = vld [vmem:[#allocation14 + $0x1c] sm:$0xf]
          %v2884 = vld [vmem:[#allocation14 + $0x20] sm:$0xf]
          %v2885 = vld [vmem:[#allocation14 + $0x24] sm:$0xf]
          %v2886 = vld [vmem:[#allocation14 + $0x28] sm:$0xf]
          %v2887 = vld [vmem:[#allocation14 + $0x2c] sm:$0xf]
          %v2888 = vld [vmem:[#allocation14 + $0x30] sm:$0xf]
          %v2889 = vld [vmem:[#allocation14 + $0x34] sm:$0xf]
          %v2890 = vld [vmem:[#allocation14 + $0x38] sm:$0xf]
          %v2891 = vld [vmem:[#allocation14 + $0x3c] sm:$0xf]
          %v2892 = vpack.c.bf16 %v2777, %v2762
          %v2893 = vpack.c.bf16 %v2807, %v2792
          %v2894 = vpack.c.bf16 %v2837, %v2822
          %v2895 = vpack.c.bf16 %v2867, %v2852
          %v2912 = vunpack.c.l.b16 %v2876
          %v2913 = vunpack.c.l.b16 %v2877
          %v2914 = vunpack.c.l.b16 %v2878
          %v2915 = vunpack.c.l.b16 %v2879
          %v2916 = vunpack.c.l.b16 %v2880
          %v2917 = vunpack.c.l.b16 %v2881
          %v2918 = vunpack.c.l.b16 %v2882
          %v2919 = vunpack.c.l.b16 %v2883
          %v2920 = vunpack.c.l.b16 %v2884
          %v2921 = vunpack.c.l.b16 %v2885
          %v2922 = vunpack.c.l.b16 %v2886
          %v2923 = vunpack.c.l.b16 %v2887
          %v2924 = vunpack.c.l.b16 %v2888
          %v2925 = vunpack.c.l.b16 %v2889
          %v2926 = vunpack.c.l.b16 %v2890
          %v2927 = vunpack.c.l.b16 %v2891
          %v2928 = vpack.c.b16 %v2913, %v2912
          %v2929 = vpack.c.b16 %v2915, %v2914
          %v2930 = vpack.c.b16 %v2917, %v2916
          %v2931 = vpack.c.b16 %v2919, %v2918
          %v2932 = vpack.c.b16 %v2921, %v2920
          %v2933 = vpack.c.b16 %v2923, %v2922
          %v2934 = vpack.c.b16 %v2925, %v2924
          %v2935 = vpack.c.b16 %v2927, %v2926
          %2944 = vmatpush.bf16.msra.mxu0 %v2935
          %2945 = vmatpush.bf16.msra.mxu0 %v2934
          %2946 = vmatpush.bf16.msra.mxu0 %v2933
          %2947 = vmatpush.bf16.msra.mxu0 %v2932
          %2948 = vmatpush.bf16.msra.mxu0 %v2931
          %2949 = vmatpush.bf16.msra.mxu0 %v2930
          %2950 = vmatpush.bf16.msra.mxu0 %v2929
          %2951 = vmatpush.bf16.msra.mxu0 %v2928
          %2952 = vmatmul.bf16.gmra.mxu0 %v2892
          %v2953 = vpop.f32.mrf.mxu0
          %v2954 = vadd.f32 0.0, %v2953
          %v2955 = vpop.f32.mrf.mxu0
          %v2956 = vadd.f32 0.0, %v2955
          %2957 = vmatmul.bf16.gmra.mxu0 %v2893
          %v2958 = vpop.f32.mrf.mxu0
          %v2959 = vadd.f32 0.0, %v2958
          %v2960 = vpop.f32.mrf.mxu0
          %v2961 = vadd.f32 0.0, %v2960
          %2962 = vmatmul.bf16.gmra.mxu0 %v2894
          %v2963 = vpop.f32.mrf.mxu0
          %v2964 = vadd.f32 0.0, %v2963
          %v2965 = vpop.f32.mrf.mxu0
          %v2966 = vadd.f32 0.0, %v2965
          %2967 = vmatmul.bf16.gmra.mxu0 %v2895
          %v2968 = vpop.f32.mrf.mxu0
          %v2969 = vadd.f32 0.0, %v2968
          %v2970 = vpop.f32.mrf.mxu0
          %v2971 = vadd.f32 0.0, %v2970
          %2972 = vdwg.mxu0
          %v2973 = vadd.f32 %v2868, %v2954
          %v2974 = vadd.f32 %v2869, %v2956
          %v2975 = vadd.f32 %v2870, %v2959
          %v2976 = vadd.f32 %v2871, %v2961
          %v2977 = vadd.f32 %v2872, %v2964
          %v2978 = vadd.f32 %v2873, %v2966
          %v2979 = vadd.f32 %v2874, %v2969
          %v2980 = vadd.f32 %v2875, %v2971
          %v2981 = vld [vmem:[#allocation15] sm:$0x1]
          %v2982 = vld [vmem:[#allocation17] sm:$0x1]
          %v2983 = vld [vmem:[#allocation18] sm:$0xf]
          %v2984 = vld [vmem:[#allocation18 + $0x4] sm:$0xf]
          %v2985 = vld [vmem:[#allocation18 + $0x8] sm:$0xf]
          %v2986 = vld [vmem:[#allocation18 + $0xc] sm:$0xf]
          %v2987 = vld [vmem:[#allocation18 + $0x10] sm:$0xf]
          %v2988 = vld [vmem:[#allocation18 + $0x14] sm:$0xf]
          %v2989 = vld [vmem:[#allocation18 + $0x18] sm:$0xf]
          %v2990 = vld [vmem:[#allocation18 + $0x1c] sm:$0xf]
          %v2991 = vld [vmem:[#allocation18 + $0x20] sm:$0xf]
          %v2992 = vld [vmem:[#allocation18 + $0x24] sm:$0xf]
          %v2993 = vld [vmem:[#allocation18 + $0x28] sm:$0xf]
          %v2994 = vld [vmem:[#allocation18 + $0x2c] sm:$0xf]
          %v2995 = vld [vmem:[#allocation18 + $0x30] sm:$0xf]
          %v2996 = vld [vmem:[#allocation18 + $0x34] sm:$0xf]
          %v2997 = vld [vmem:[#allocation18 + $0x38] sm:$0xf]
          %v2998 = vld [vmem:[#allocation18 + $0x3c] sm:$0xf]
          %v2999 = vld [vmem:[#allocation20] sm:$0x1]
          %v3000 = vld [vmem:[#allocation21] sm:$0xf]
          %v3001 = vld [vmem:[#allocation21 + $0x4] sm:$0xf]
          %v3002 = vld [vmem:[#allocation21 + $0x8] sm:$0xf]
          %v3003 = vld [vmem:[#allocation21 + $0xc] sm:$0xf]
          %v3004 = vld [vmem:[#allocation21 + $0x10] sm:$0xf]
          %v3005 = vld [vmem:[#allocation21 + $0x14] sm:$0xf]
          %v3006 = vld [vmem:[#allocation21 + $0x18] sm:$0xf]
          %v3007 = vld [vmem:[#allocation21 + $0x1c] sm:$0xf]
          %v3008 = vld [vmem:[#allocation21 + $0x20] sm:$0xf]
          %v3009 = vld [vmem:[#allocation21 + $0x24] sm:$0xf]
          %v3010 = vld [vmem:[#allocation21 + $0x28] sm:$0xf]
          %v3011 = vld [vmem:[#allocation21 + $0x2c] sm:$0xf]
          %v3012 = vld [vmem:[#allocation21 + $0x30] sm:$0xf]
          %v3013 = vld [vmem:[#allocation21 + $0x34] sm:$0xf]
          %v3014 = vld [vmem:[#allocation21 + $0x38] sm:$0xf]
          %v3015 = vld [vmem:[#allocation21 + $0x3c] sm:$0xf]
          %v3016 = vld [vmem:[#allocation23] sm:$0x1]
          %v3017 = vld [vmem:[%s21] sm:$0xf]
          %v3018 = vld [vmem:[%s21 + $0x4] sm:$0xf]
          %v3019 = vld [vmem:[%s21 + $0x8] sm:$0xf]
          %v3020 = vld [vmem:[%s21 + $0xc] sm:$0xf]
          %v3021 = vld [vmem:[%s21 + $0x10] sm:$0xf]
          %v3022 = vld [vmem:[%s21 + $0x14] sm:$0xf]
          %v3023 = vld [vmem:[%s21 + $0x18] sm:$0xf]
          %v3024 = vld [vmem:[%s21 + $0x1c] sm:$0xf]
          %v3025 = vld [vmem:[%s21 + $0x20] sm:$0xf]
          %v3026 = vld [vmem:[%s21 + $0x24] sm:$0xf]
          %v3027 = vld [vmem:[%s21 + $0x28] sm:$0xf]
          %v3028 = vld [vmem:[%s21 + $0x2c] sm:$0xf]
          %v3029 = vld [vmem:[%s21 + $0x30] sm:$0xf]
          %v3030 = vld [vmem:[%s21 + $0x34] sm:$0xf]
          %v3031 = vld [vmem:[%s21 + $0x38] sm:$0xf]
          %v3032 = vld [vmem:[%s21 + $0x3c] sm:$0xf]
          %v3033 = vld [vmem:[%s22] sm:$0x7]
          %3034 = vadd.xlane.f32.xlu0 %v2973
          %v3035 = vpop.xlane.xlu0 %3034
          %3036 = vadd.xlane.f32.xlu0 %v2974
          %v3037 = vpop.xlane.xlu0 %3036
          %3038 = vadd.xlane.f32.xlu0 %v2975
          %v3039 = vpop.xlane.xlu0 %3038
          %3040 = vadd.xlane.f32.xlu0 %v2976
          %v3041 = vpop.xlane.xlu0 %3040
          %3042 = vadd.xlane.f32.xlu0 %v2977
          %v3043 = vpop.xlane.xlu0 %3042
          %3044 = vadd.xlane.f32.xlu0 %v2978
          %v3045 = vpop.xlane.xlu0 %3044
          %3046 = vadd.xlane.f32.xlu0 %v2979
          %v3047 = vpop.xlane.xlu0 %3046
          %3048 = vadd.xlane.f32.xlu0 %v2980
          %v3049 = vpop.xlane.xlu0 %3048
          %v3050 = vmul.f32 %v3035, %v1980
          %v3051 = vmul.f32 %v3037, %v1980
          %v3052 = vmul.f32 %v3039, %v1980
          %v3053 = vmul.f32 %v3041, %v1980
          %v3054 = vmul.f32 %v3043, %v1980
          %v3055 = vmul.f32 %v3045, %v1980
          %v3056 = vmul.f32 %v3047, %v1980
          %v3057 = vmul.f32 %v3049, %v1980
          %v3058 = vmul.f32 %v2973, %v2973
          %v3059 = vmul.f32 %v2974, %v2974
          %v3060 = vmul.f32 %v2975, %v2975
          %v3061 = vmul.f32 %v2976, %v2976
          %v3062 = vmul.f32 %v2977, %v2977
          %v3063 = vmul.f32 %v2978, %v2978
          %v3064 = vmul.f32 %v2979, %v2979
          %v3065 = vmul.f32 %v2980, %v2980
          %3066 = vadd.xlane.f32.xlu0 %v3058
          %v3067 = vpop.xlane.xlu0 %3066
          %3068 = vadd.xlane.f32.xlu0 %v3059
          %v3069 = vpop.xlane.xlu0 %3068
          %3070 = vadd.xlane.f32.xlu0 %v3060
          %v3071 = vpop.xlane.xlu0 %3070
          %3072 = vadd.xlane.f32.xlu0 %v3061
          %v3073 = vpop.xlane.xlu0 %3072
          %3074 = vadd.xlane.f32.xlu0 %v3062
          %v3075 = vpop.xlane.xlu0 %3074
          %3076 = vadd.xlane.f32.xlu0 %v3063
          %v3077 = vpop.xlane.xlu0 %3076
          %3078 = vadd.xlane.f32.xlu0 %v3064
          %v3079 = vpop.xlane.xlu0 %3078
          %3080 = vadd.xlane.f32.xlu0 %v3065
          %v3081 = vpop.xlane.xlu0 %3080
          %v3082 = vmul.f32 %v3067, %v1980
          %v3083 = vmul.f32 %v3069, %v1980
          %v3084 = vmul.f32 %v3071, %v1980
          %v3085 = vmul.f32 %v3073, %v1980
          %v3086 = vmul.f32 %v3075, %v1980
          %v3087 = vmul.f32 %v3077, %v1980
          %v3088 = vmul.f32 %v3079, %v1980
          %v3089 = vmul.f32 %v3081, %v1980
          %v3090 = vmul.f32 %v3050, %v3050
          %v3091 = vmul.f32 %v3051, %v3051
          %v3092 = vmul.f32 %v3052, %v3052
          %v3093 = vmul.f32 %v3053, %v3053
          %v3094 = vmul.f32 %v3054, %v3054
          %v3095 = vmul.f32 %v3055, %v3055
          %v3096 = vmul.f32 %v3056, %v3056
          %v3097 = vmul.f32 %v3057, %v3057
          %v3098 = vsub.f32 %v3082, %v3090
          %v3099 = vsub.f32 %v3083, %v3091
          %v3100 = vsub.f32 %v3084, %v3092
          %v3101 = vsub.f32 %v3085, %v3093
          %v3102 = vsub.f32 %v3086, %v3094
          %v3103 = vsub.f32 %v3087, %v3095
          %v3104 = vsub.f32 %v3088, %v3096
          %v3105 = vsub.f32 %v3089, %v3097
          %v3106 = vsub.f32 %v2973, %v3050
          %v3107 = vsub.f32 %v2974, %v3051
          %v3108 = vsub.f32 %v2975, %v3052
          %v3109 = vsub.f32 %v2976, %v3053
          %v3110 = vsub.f32 %v2977, %v3054
          %v3111 = vsub.f32 %v2978, %v3055
          %v3112 = vsub.f32 %v2979, %v3056
          %v3113 = vsub.f32 %v2980, %v3057
          %v3114 = vadd.f32 %v3098, 1e-05
          %v3115 = vadd.f32 %v3099, 1e-05
          %v3116 = vadd.f32 %v3100, 1e-05
          %v3117 = vadd.f32 %v3101, 1e-05
          %v3118 = vadd.f32 %v3102, 1e-05
          %v3119 = vadd.f32 %v3103, 1e-05
          %v3120 = vadd.f32 %v3104, 1e-05
          %v3121 = vadd.f32 %v3105, 1e-05
          %v3122 = vrsqrt.pop %v3114
          %v3123 = vmul.f32 %v3122, %v3114
          %v3124 = vmul.f32 %v3123, %v3122
          %v3125 = vmul.f32 0.5, %v3124
          %v3126 = vsub.f32 1.5, %v3125
          %v3127 = vmul.f32 %v3122, %v3126
          %vm3128 = vweird.f32 %v3114
          %vm3129 = vweird.f32 %v3122
          %vm3130 = vmor %vm3128, %vm3129
          %v3131 = vsel %vm3130, %v3122, %v3127
          %v3132 = vrsqrt.pop %v3115
          %v3133 = vmul.f32 %v3132, %v3115
          %v3134 = vmul.f32 %v3133, %v3132
          %v3135 = vmul.f32 0.5, %v3134
          %v3136 = vsub.f32 1.5, %v3135
          %v3137 = vmul.f32 %v3132, %v3136
          %vm3138 = vweird.f32 %v3115
          %vm3139 = vweird.f32 %v3132
          %vm3140 = vmor %vm3138, %vm3139
          %v3141 = vsel %vm3140, %v3132, %v3137
          %v3142 = vrsqrt.pop %v3116
          %v3143 = vmul.f32 %v3142, %v3116
          %v3144 = vmul.f32 %v3143, %v3142
          %v3145 = vmul.f32 0.5, %v3144
          %v3146 = vsub.f32 1.5, %v3145
          %v3147 = vmul.f32 %v3142, %v3146
          %vm3148 = vweird.f32 %v3116
          %vm3149 = vweird.f32 %v3142
          %vm3150 = vmor %vm3148, %vm3149
          %v3151 = vsel %vm3150, %v3142, %v3147
          %v3152 = vrsqrt.pop %v3117
          %v3153 = vmul.f32 %v3152, %v3117
          %v3154 = vmul.f32 %v3153, %v3152
          %v3155 = vmul.f32 0.5, %v3154
          %v3156 = vsub.f32 1.5, %v3155
          %v3157 = vmul.f32 %v3152, %v3156
          %vm3158 = vweird.f32 %v3117
          %vm3159 = vweird.f32 %v3152
          %vm3160 = vmor %vm3158, %vm3159
          %v3161 = vsel %vm3160, %v3152, %v3157
          %v3162 = vrsqrt.pop %v3118
          %v3163 = vmul.f32 %v3162, %v3118
          %v3164 = vmul.f32 %v3163, %v3162
          %v3165 = vmul.f32 0.5, %v3164
          %v3166 = vsub.f32 1.5, %v3165
          %v3167 = vmul.f32 %v3162, %v3166
          %vm3168 = vweird.f32 %v3118
          %vm3169 = vweird.f32 %v3162
          %vm3170 = vmor %vm3168, %vm3169
          %v3171 = vsel %vm3170, %v3162, %v3167
          %v3172 = vrsqrt.pop %v3119
          %v3173 = vmul.f32 %v3172, %v3119
          %v3174 = vmul.f32 %v3173, %v3172
          %v3175 = vmul.f32 0.5, %v3174
          %v3176 = vsub.f32 1.5, %v3175
          %v3177 = vmul.f32 %v3172, %v3176
          %vm3178 = vweird.f32 %v3119
          %vm3179 = vweird.f32 %v3172
          %vm3180 = vmor %vm3178, %vm3179
          %v3181 = vsel %vm3180, %v3172, %v3177
          %v3182 = vrsqrt.pop %v3120
          %v3183 = vmul.f32 %v3182, %v3120
          %v3184 = vmul.f32 %v3183, %v3182
          %v3185 = vmul.f32 0.5, %v3184
          %v3186 = vsub.f32 1.5, %v3185
          %v3187 = vmul.f32 %v3182, %v3186
          %vm3188 = vweird.f32 %v3120
          %vm3189 = vweird.f32 %v3182
          %vm3190 = vmor %vm3188, %vm3189
          %v3191 = vsel %vm3190, %v3182, %v3187
          %v3192 = vrsqrt.pop %v3121
          %v3193 = vmul.f32 %v3192, %v3121
          %v3194 = vmul.f32 %v3193, %v3192
          %v3195 = vmul.f32 0.5, %v3194
          %v3196 = vsub.f32 1.5, %v3195
          %v3197 = vmul.f32 %v3192, %v3196
          %vm3198 = vweird.f32 %v3121
          %vm3199 = vweird.f32 %v3192
          %vm3200 = vmor %vm3198, %vm3199
          %v3201 = vsel %vm3200, %v3192, %v3197
          %v3202 = vmul.f32 %v3106, %v3131
          %v3203 = vmul.f32 %v3107, %v3141
          %v3204 = vmul.f32 %v3108, %v3151
          %v3205 = vmul.f32 %v3109, %v3161
          %v3206 = vmul.f32 %v3110, %v3171
          %v3207 = vmul.f32 %v3111, %v3181
          %v3208 = vmul.f32 %v3112, %v3191
          %v3209 = vmul.f32 %v3113, %v3201
          %v3211 = vperm.slane %v2981, 0
          %v3213 = vmul.f32 %v3202, %v3211
          %v3214 = vmul.f32 %v3203, %v3211
          %v3215 = vmul.f32 %v3204, %v3211
          %v3216 = vmul.f32 %v3205, %v3211
          %v3217 = vmul.f32 %v3206, %v3211
          %v3218 = vmul.f32 %v3207, %v3211
          %v3219 = vmul.f32 %v3208, %v3211
          %v3220 = vmul.f32 %v3209, %v3211
          %v3222 = vperm.slane %v2982, 0
          %v3224 = vadd.f32 %v3213, %v3222
          %v3225 = vadd.f32 %v3214, %v3222
          %v3226 = vadd.f32 %v3215, %v3222
          %v3227 = vadd.f32 %v3216, %v3222
          %v3228 = vadd.f32 %v3217, %v3222
          %v3229 = vadd.f32 %v3218, %v3222
          %v3230 = vadd.f32 %v3219, %v3222
          %v3231 = vadd.f32 %v3220, %v3222
          %v3232 = vpack.c.bf16 %v3225, %v3224
          %v3233 = vpack.c.bf16 %v3227, %v3226
          %v3234 = vpack.c.bf16 %v3229, %v3228
          %v3235 = vpack.c.bf16 %v3231, %v3230
          %v3237 = vperm.slane %v2999, 0
          %v3255 = vunpack.c.l.b16 %v2983
          %v3256 = vunpack.c.l.b16 %v2984
          %v3257 = vunpack.c.l.b16 %v2985
          %v3258 = vunpack.c.l.b16 %v2986
          %v3259 = vunpack.c.l.b16 %v2987
          %v3260 = vunpack.c.l.b16 %v2988
          %v3261 = vunpack.c.l.b16 %v2989
          %v3262 = vunpack.c.l.b16 %v2990
          %v3263 = vunpack.c.l.b16 %v2991
          %v3264 = vunpack.c.l.b16 %v2992
          %v3265 = vunpack.c.l.b16 %v2993
          %v3266 = vunpack.c.l.b16 %v2994
          %v3267 = vunpack.c.l.b16 %v2995
          %v3268 = vunpack.c.l.b16 %v2996
          %v3269 = vunpack.c.l.b16 %v2997
          %v3270 = vunpack.c.l.b16 %v2998
          %v3271 = vpack.c.b16 %v3256, %v3255
          %v3272 = vpack.c.b16 %v3258, %v3257
          %v3273 = vpack.c.b16 %v3260, %v3259
          %v3274 = vpack.c.b16 %v3262, %v3261
          %v3275 = vpack.c.b16 %v3264, %v3263
          %v3276 = vpack.c.b16 %v3266, %v3265
          %v3277 = vpack.c.b16 %v3268, %v3267
          %v3278 = vpack.c.b16 %v3270, %v3269
          %3287 = vmatpush.bf16.msra.mxu0 %v3278
          %3288 = vmatpush.bf16.msra.mxu0 %v3277
          %3289 = vmatpush.bf16.msra.mxu0 %v3276
          %3290 = vmatpush.bf16.msra.mxu0 %v3275
          %3291 = vmatpush.bf16.msra.mxu0 %v3274
          %3292 = vmatpush.bf16.msra.mxu0 %v3273
          %3293 = vmatpush.bf16.msra.mxu0 %v3272
          %3294 = vmatpush.bf16.msra.mxu0 %v3271
          %3295 = vmatmul.bf16.gmra.mxu0 %v3232
          %v3296 = vpop.f32.mrf.mxu0
          %v3297 = vadd.f32 %v3237, %v3296
          %v3298 = vpop.f32.mrf.mxu0
          %v3299 = vadd.f32 %v3237, %v3298
          %3300 = vmatmul.bf16.gmra.mxu0 %v3233
          %v3301 = vpop.f32.mrf.mxu0
          %v3302 = vadd.f32 %v3237, %v3301
          %v3303 = vpop.f32.mrf.mxu0
          %v3304 = vadd.f32 %v3237, %v3303
          %3305 = vmatmul.bf16.gmra.mxu0 %v3234
          %v3306 = vpop.f32.mrf.mxu0
          %v3307 = vadd.f32 %v3237, %v3306
          %v3308 = vpop.f32.mrf.mxu0
          %v3309 = vadd.f32 %v3237, %v3308
          %3310 = vmatmul.bf16.gmra.mxu0 %v3235
          %v3311 = vpop.f32.mrf.mxu0
          %v3312 = vadd.f32 %v3237, %v3311
          %v3313 = vpop.f32.mrf.mxu0
          %v3314 = vadd.f32 %v3237, %v3313
          %3315 = vdwg.mxu0
          %v3316 = vmul.f32 %v3297, %v3297
          %v3317 = vmul.f32 %v3299, %v3299
          %v3318 = vmul.f32 %v3302, %v3302
          %v3319 = vmul.f32 %v3304, %v3304
          %v3320 = vmul.f32 %v3307, %v3307
          %v3321 = vmul.f32 %v3309, %v3309
          %v3322 = vmul.f32 %v3312, %v3312
          %v3323 = vmul.f32 %v3314, %v3314
          %v3324 = vmul.f32 %v3297, %v3316
          %v3325 = vmul.f32 %v3299, %v3317
          %v3326 = vmul.f32 %v3302, %v3318
          %v3327 = vmul.f32 %v3304, %v3319
          %v3328 = vmul.f32 %v3307, %v3320
          %v3329 = vmul.f32 %v3309, %v3321
          %v3330 = vmul.f32 %v3312, %v3322
          %v3331 = vmul.f32 %v3314, %v3323
          %v3332 = vmul.f32 %v3324, 0.044715
          %v3333 = vmul.f32 %v3325, 0.044715
          %v3334 = vmul.f32 %v3326, 0.044715
          %v3335 = vmul.f32 %v3327, 0.044715
          %v3336 = vmul.f32 %v3328, 0.044715
          %v3337 = vmul.f32 %v3329, 0.044715
          %v3338 = vmul.f32 %v3330, 0.044715
          %v3339 = vmul.f32 %v3331, 0.044715
          %v3340 = vadd.f32 %v3297, %v3332
          %v3341 = vadd.f32 %v3299, %v3333
          %v3342 = vadd.f32 %v3302, %v3334
          %v3343 = vadd.f32 %v3304, %v3335
          %v3344 = vadd.f32 %v3307, %v3336
          %v3345 = vadd.f32 %v3309, %v3337
          %v3346 = vadd.f32 %v3312, %v3338
          %v3347 = vadd.f32 %v3314, %v3339
          %v3348 = vmul.f32 %v3340, 0.7978846
          %v3349 = vmul.f32 %v3341, 0.7978846
          %v3350 = vmul.f32 %v3342, 0.7978846
          %v3351 = vmul.f32 %v3343, 0.7978846
          %v3352 = vmul.f32 %v3344, 0.7978846
          %v3353 = vmul.f32 %v3345, 0.7978846
          %v3354 = vmul.f32 %v3346, 0.7978846
          %v3355 = vmul.f32 %v3347, 0.7978846
          %v3356 = vtanh.pop %v3348
          %v3357 = vtanh.pop %v3349
          %v3358 = vtanh.pop %v3350
          %v3359 = vtanh.pop %v3351
          %v3360 = vtanh.pop %v3352
          %v3361 = vtanh.pop %v3353
          %v3362 = vtanh.pop %v3354
          %v3363 = vtanh.pop %v3355
          %v3364 = vadd.f32 %v3356, 1.0
          %v3365 = vadd.f32 %v3357, 1.0
          %v3366 = vadd.f32 %v3358, 1.0
          %v3367 = vadd.f32 %v3359, 1.0
          %v3368 = vadd.f32 %v3360, 1.0
          %v3369 = vadd.f32 %v3361, 1.0
          %v3370 = vadd.f32 %v3362, 1.0
          %v3371 = vadd.f32 %v3363, 1.0
          %v3372 = vmul.f32 %v3364, 0.5
          %v3373 = vmul.f32 %v3365, 0.5
          %v3374 = vmul.f32 %v3366, 0.5
          %v3375 = vmul.f32 %v3367, 0.5
          %v3376 = vmul.f32 %v3368, 0.5
          %v3377 = vmul.f32 %v3369, 0.5
          %v3378 = vmul.f32 %v3370, 0.5
          %v3379 = vmul.f32 %v3371, 0.5
          %v3380 = vmul.f32 %v3297, %v3372
          %v3381 = vmul.f32 %v3299, %v3373
          %v3382 = vmul.f32 %v3302, %v3374
          %v3383 = vmul.f32 %v3304, %v3375
          %v3384 = vmul.f32 %v3307, %v3376
          %v3385 = vmul.f32 %v3309, %v3377
          %v3386 = vmul.f32 %v3312, %v3378
          %v3387 = vmul.f32 %v3314, %v3379
          %v3388 = vpack.c.bf16 %v3381, %v3380
          %v3389 = vpack.c.bf16 %v3383, %v3382
          %v3390 = vpack.c.bf16 %v3385, %v3384
          %v3391 = vpack.c.bf16 %v3387, %v3386
          %v3408 = vunpack.c.l.b16 %v3000
          %v3409 = vunpack.c.l.b16 %v3001
          %v3410 = vunpack.c.l.b16 %v3002
          %v3411 = vunpack.c.l.b16 %v3003
          %v3412 = vunpack.c.l.b16 %v3004
          %v3413 = vunpack.c.l.b16 %v3005
          %v3414 = vunpack.c.l.b16 %v3006
          %v3415 = vunpack.c.l.b16 %v3007
          %v3416 = vunpack.c.l.b16 %v3008
          %v3417 = vunpack.c.l.b16 %v3009
          %v3418 = vunpack.c.l.b16 %v3010
          %v3419 = vunpack.c.l.b16 %v3011
          %v3420 = vunpack.c.l.b16 %v3012
          %v3421 = vunpack.c.l.b16 %v3013
          %v3422 = vunpack.c.l.b16 %v3014
          %v3423 = vunpack.c.l.b16 %v3015
          %v3424 = vpack.c.b16 %v3409, %v3408
          %v3425 = vpack.c.b16 %v3411, %v3410
          %v3426 = vpack.c.b16 %v3413, %v3412
          %v3427 = vpack.c.b16 %v3415, %v3414
          %v3428 = vpack.c.b16 %v3417, %v3416
          %v3429 = vpack.c.b16 %v3419, %v3418
          %v3430 = vpack.c.b16 %v3421, %v3420
          %v3431 = vpack.c.b16 %v3423, %v3422
          %3440 = vmatpush.bf16.msra.mxu0 %v3431
          %3441 = vmatpush.bf16.msra.mxu0 %v3430
          %3442 = vmatpush.bf16.msra.mxu0 %v3429
          %3443 = vmatpush.bf16.msra.mxu0 %v3428
          %3444 = vmatpush.bf16.msra.mxu0 %v3427
          %3445 = vmatpush.bf16.msra.mxu0 %v3426
          %3446 = vmatpush.bf16.msra.mxu0 %v3425
          %3447 = vmatpush.bf16.msra.mxu0 %v3424
          %3448 = vmatmul.bf16.gmra.mxu0 %v3388
          %v3449 = vpop.f32.mrf.mxu0
          %v3450 = vadd.f32 0.0, %v3449
          %v3451 = vpop.f32.mrf.mxu0
          %v3452 = vadd.f32 0.0, %v3451
          %3453 = vmatmul.bf16.gmra.mxu0 %v3389
          %v3454 = vpop.f32.mrf.mxu0
          %v3455 = vadd.f32 0.0, %v3454
          %v3456 = vpop.f32.mrf.mxu0
          %v3457 = vadd.f32 0.0, %v3456
          %3458 = vmatmul.bf16.gmra.mxu0 %v3390
          %v3459 = vpop.f32.mrf.mxu0
          %v3460 = vadd.f32 0.0, %v3459
          %v3461 = vpop.f32.mrf.mxu0
          %v3462 = vadd.f32 0.0, %v3461
          %3463 = vmatmul.bf16.gmra.mxu0 %v3391
          %v3464 = vpop.f32.mrf.mxu0
          %v3465 = vadd.f32 0.0, %v3464
          %v3466 = vpop.f32.mrf.mxu0
          %v3467 = vadd.f32 0.0, %v3466
          %3468 = vdwg.mxu0
          %v3469 = vadd.f32 %v2973, %v3450
          %v3470 = vadd.f32 %v2974, %v3452
          %v3471 = vadd.f32 %v2975, %v3455
          %v3472 = vadd.f32 %v2976, %v3457
          %v3473 = vadd.f32 %v2977, %v3460
          %v3474 = vadd.f32 %v2978, %v3462
          %v3475 = vadd.f32 %v2979, %v3465
          %v3476 = vadd.f32 %v2980, %v3467
          %v3478 = vperm.slane %v3016, 0
          %v3480 = vadd.f32 %v3469, %v3478
          %v3481 = vadd.f32 %v3470, %v3478
          %v3482 = vadd.f32 %v3471, %v3478
          %v3483 = vadd.f32 %v3472, %v3478
          %v3484 = vadd.f32 %v3473, %v3478
          %v3485 = vadd.f32 %v3474, %v3478
          %v3486 = vadd.f32 %v3475, %v3478
          %v3487 = vadd.f32 %v3476, %v3478
          %v3488 = vpack.c.bf16 %v3481, %v3480
          %v3489 = vpack.c.bf16 %v3483, %v3482
          %v3490 = vpack.c.bf16 %v3485, %v3484
          %v3491 = vpack.c.bf16 %v3487, %v3486
          %3493 = vset.pattern.permute.xlu0 0
          %3494 = vperm.xlu0 %3493, %v3033
          %v3495 = vpop.permute.xlu0 %3494
          %v3513 = vunpack.c.l.b16 %v3017
          %v3514 = vunpack.c.l.b16 %v3018
          %v3515 = vunpack.c.l.b16 %v3019
          %v3516 = vunpack.c.l.b16 %v3020
          %v3517 = vunpack.c.l.b16 %v3021
          %v3518 = vunpack.c.l.b16 %v3022
          %v3519 = vunpack.c.l.b16 %v3023
          %v3520 = vunpack.c.l.b16 %v3024
          %v3521 = vunpack.c.l.b16 %v3025
          %v3522 = vunpack.c.l.b16 %v3026
          %v3523 = vunpack.c.l.b16 %v3027
          %v3524 = vunpack.c.l.b16 %v3028
          %v3525 = vunpack.c.l.b16 %v3029
          %v3526 = vunpack.c.l.b16 %v3030
          %v3527 = vunpack.c.l.b16 %v3031
          %v3528 = vunpack.c.l.b16 %v3032
          %v3529 = vpack.c.b16 %v3514, %v3513
          %v3530 = vpack.c.b16 %v3516, %v3515
          %v3531 = vpack.c.b16 %v3518, %v3517
          %v3532 = vpack.c.b16 %v3520, %v3519
          %v3533 = vpack.c.b16 %v3522, %v3521
          %v3534 = vpack.c.b16 %v3524, %v3523
          %v3535 = vpack.c.b16 %v3526, %v3525
          %v3536 = vpack.c.b16 %v3528, %v3527
          %3545 = vxpose.xlu0.c.b16.start [1/8] %v3529, 128
          %3546 = vxpose.xlu0.c.b16.cont [2/8] %v3530, 128
          %3547 = vxpose.xlu0.c.b16.cont [3/8] %v3531, 128
          %3548 = vxpose.xlu0.c.b16.cont [4/8] %v3532, 128
          %3549 = vxpose.xlu0.c.b16.cont [5/8] %v3533, 128
          %3550 = vxpose.xlu0.c.b16.cont [6/8] %v3534, 128
          %3551 = vxpose.xlu0.c.b16.cont [7/8] %v3535, 128
          %3552 = vxpose.xlu0.c.b16.end [8/8] %v3536, 128
          %v3553 = vpop.trf.xlu0
          %v3554 = vpop.trf.xlu0
          %v3555 = vpop.trf.xlu0
          %v3556 = vpop.trf.xlu0
          %v3557 = vpop.trf.xlu0
          %v3558 = vpop.trf.xlu0
          %v3559 = vpop.trf.xlu0
          %v3560 = vpop.trf.xlu0
          %3561 = vmatpush.bf16.xpose.msra.mxu0 0
          %3562 = vmatpush.bf16.xpose.msra.mxu0 0
          %3563 = vmatpush.bf16.xpose.msra.mxu0 0
          %3564 = vmatpush.bf16.xpose.msra.mxu0 0
          %3565 = vmatpush.bf16.xpose.msra.mxu0 %v3491
          %3566 = vmatpush.bf16.xpose.msra.mxu0 %v3490
          %3567 = vmatpush.bf16.xpose.msra.mxu0 %v3489
          %3568 = vmatpush.bf16.xpose.msra.mxu0 %v3488
          %3569 = vmatmul.bf16.gmra.mxu0 %v3553
          %v3570 = vpop.f32.mrf.mxu0
          %v3571 = vadd.f32 %v3495, %v3570
          %v3572 = vpop.f32.mrf.mxu0
          %3573 = vdwg.mxu0
          %vm3574 = vcmask 518144
          %3575 = vst.msk [vmem:[%s995] sm:$0x7] %vm3574, %v3571
          %3576 = vadd.xlane.f32.xlu0 %v3480
          %v3577 = vpop.xlane.xlu0 %3576
          %3578 = vadd.xlane.f32.xlu0 %v3481
          %v3579 = vpop.xlane.xlu0 %3578
          %3580 = vadd.xlane.f32.xlu0 %v3482
          %v3581 = vpop.xlane.xlu0 %3580
          %3582 = vadd.xlane.f32.xlu0 %v3483
          %v3583 = vpop.xlane.xlu0 %3582
          %3584 = vadd.xlane.f32.xlu0 %v3484
          %v3585 = vpop.xlane.xlu0 %3584
          %3586 = vadd.xlane.f32.xlu0 %v3485
          %v3587 = vpop.xlane.xlu0 %3586
          %3588 = vadd.xlane.f32.xlu0 %v3486
          %v3589 = vpop.xlane.xlu0 %3588
          %3590 = vadd.xlane.f32.xlu0 %v3487
          %v3591 = vpop.xlane.xlu0 %3590
          %v3592 = vmul.f32 %v3577, %v1980
          %v3593 = vmul.f32 %v3579, %v1980
          %v3594 = vmul.f32 %v3581, %v1980
          %v3595 = vmul.f32 %v3583, %v1980
          %v3596 = vmul.f32 %v3585, %v1980
          %v3597 = vmul.f32 %v3587, %v1980
          %v3598 = vmul.f32 %v3589, %v1980
          %v3599 = vmul.f32 %v3591, %v1980
          %v3600 = vmul.f32 %v3480, %v3480
          %v3601 = vmul.f32 %v3481, %v3481
          %v3602 = vmul.f32 %v3482, %v3482
          %v3603 = vmul.f32 %v3483, %v3483
          %v3604 = vmul.f32 %v3484, %v3484
          %v3605 = vmul.f32 %v3485, %v3485
          %v3606 = vmul.f32 %v3486, %v3486
          %v3607 = vmul.f32 %v3487, %v3487
          %3608 = vadd.xlane.f32.xlu0 %v3600
          %v3609 = vpop.xlane.xlu0 %3608
          %3610 = vadd.xlane.f32.xlu0 %v3601
          %v3611 = vpop.xlane.xlu0 %3610
          %3612 = vadd.xlane.f32.xlu0 %v3602
          %v3613 = vpop.xlane.xlu0 %3612
          %3614 = vadd.xlane.f32.xlu0 %v3603
          %v3615 = vpop.xlane.xlu0 %3614
          %3616 = vadd.xlane.f32.xlu0 %v3604
          %v3617 = vpop.xlane.xlu0 %3616
          %3618 = vadd.xlane.f32.xlu0 %v3605
          %v3619 = vpop.xlane.xlu0 %3618
          %3620 = vadd.xlane.f32.xlu0 %v3606
          %v3621 = vpop.xlane.xlu0 %3620
          %3622 = vadd.xlane.f32.xlu0 %v3607
          %v3623 = vpop.xlane.xlu0 %3622
          %v3624 = vmul.f32 %v3609, %v1980
          %v3625 = vmul.f32 %v3611, %v1980
          %v3626 = vmul.f32 %v3613, %v1980
          %v3627 = vmul.f32 %v3615, %v1980
          %v3628 = vmul.f32 %v3617, %v1980
          %v3629 = vmul.f32 %v3619, %v1980
          %v3630 = vmul.f32 %v3621, %v1980
          %v3631 = vmul.f32 %v3623, %v1980
          %v3632 = vmul.f32 %v3592, %v3592
          %v3633 = vmul.f32 %v3593, %v3593
          %v3634 = vmul.f32 %v3594, %v3594
          %v3635 = vmul.f32 %v3595, %v3595
          %v3636 = vmul.f32 %v3596, %v3596
          %v3637 = vmul.f32 %v3597, %v3597
          %v3638 = vmul.f32 %v3598, %v3598
          %v3639 = vmul.f32 %v3599, %v3599
          %v3640 = vsub.f32 %v3624, %v3632
          %v3641 = vsub.f32 %v3625, %v3633
          %v3642 = vsub.f32 %v3626, %v3634
          %v3643 = vsub.f32 %v3627, %v3635
          %v3644 = vsub.f32 %v3628, %v3636
          %v3645 = vsub.f32 %v3629, %v3637
          %v3646 = vsub.f32 %v3630, %v3638
          %v3647 = vsub.f32 %v3631, %v3639
          %v3648 = vsub.f32 %v3480, %v3592
          %v3649 = vsub.f32 %v3481, %v3593
          %v3650 = vsub.f32 %v3482, %v3594
          %v3651 = vsub.f32 %v3483, %v3595
          %v3652 = vsub.f32 %v3484, %v3596
          %v3653 = vsub.f32 %v3485, %v3597
          %v3654 = vsub.f32 %v3486, %v3598
          %v3655 = vsub.f32 %v3487, %v3599
          %v3656 = vadd.f32 %v3640, 1e-05
          %v3657 = vadd.f32 %v3641, 1e-05
          %v3658 = vadd.f32 %v3642, 1e-05
          %v3659 = vadd.f32 %v3643, 1e-05
          %v3660 = vadd.f32 %v3644, 1e-05
          %v3661 = vadd.f32 %v3645, 1e-05
          %v3662 = vadd.f32 %v3646, 1e-05
          %v3663 = vadd.f32 %v3647, 1e-05
          %v3664 = vrsqrt.pop %v3656
          %v3665 = vmul.f32 %v3664, %v3656
          %v3666 = vmul.f32 %v3665, %v3664
          %v3667 = vmul.f32 0.5, %v3666
          %v3668 = vsub.f32 1.5, %v3667
          %v3669 = vmul.f32 %v3664, %v3668
          %vm3670 = vweird.f32 %v3656
          %vm3671 = vweird.f32 %v3664
          %vm3672 = vmor %vm3670, %vm3671
          %v3673 = vsel %vm3672, %v3664, %v3669
          %v3674 = vrsqrt.pop %v3657
          %v3675 = vmul.f32 %v3674, %v3657
          %v3676 = vmul.f32 %v3675, %v3674
          %v3677 = vmul.f32 0.5, %v3676
          %v3678 = vsub.f32 1.5, %v3677
          %v3679 = vmul.f32 %v3674, %v3678
          %vm3680 = vweird.f32 %v3657
          %vm3681 = vweird.f32 %v3674
          %vm3682 = vmor %vm3680, %vm3681
          %v3683 = vsel %vm3682, %v3674, %v3679
          %v3684 = vrsqrt.pop %v3658
          %v3685 = vmul.f32 %v3684, %v3658
          %v3686 = vmul.f32 %v3685, %v3684
          %v3687 = vmul.f32 0.5, %v3686
          %v3688 = vsub.f32 1.5, %v3687
          %v3689 = vmul.f32 %v3684, %v3688
          %vm3690 = vweird.f32 %v3658
          %vm3691 = vweird.f32 %v3684
          %vm3692 = vmor %vm3690, %vm3691
          %v3693 = vsel %vm3692, %v3684, %v3689
          %v3694 = vrsqrt.pop %v3659
          %v3695 = vmul.f32 %v3694, %v3659
          %v3696 = vmul.f32 %v3695, %v3694
          %v3697 = vmul.f32 0.5, %v3696
          %v3698 = vsub.f32 1.5, %v3697
          %v3699 = vmul.f32 %v3694, %v3698
          %vm3700 = vweird.f32 %v3659
          %vm3701 = vweird.f32 %v3694
          %vm3702 = vmor %vm3700, %vm3701
          %v3703 = vsel %vm3702, %v3694, %v3699
          %v3704 = vrsqrt.pop %v3660
          %v3705 = vmul.f32 %v3704, %v3660
          %v3706 = vmul.f32 %v3705, %v3704
          %v3707 = vmul.f32 0.5, %v3706
          %v3708 = vsub.f32 1.5, %v3707
          %v3709 = vmul.f32 %v3704, %v3708
          %vm3710 = vweird.f32 %v3660
          %vm3711 = vweird.f32 %v3704
          %vm3712 = vmor %vm3710, %vm3711
          %v3713 = vsel %vm3712, %v3704, %v3709
          %v3714 = vrsqrt.pop %v3661
          %v3715 = vmul.f32 %v3714, %v3661
          %v3716 = vmul.f32 %v3715, %v3714
          %v3717 = vmul.f32 0.5, %v3716
          %v3718 = vsub.f32 1.5, %v3717
          %v3719 = vmul.f32 %v3714, %v3718
          %vm3720 = vweird.f32 %v3661
          %vm3721 = vweird.f32 %v3714
          %vm3722 = vmor %vm3720, %vm3721
          %v3723 = vsel %vm3722, %v3714, %v3719
          %v3724 = vrsqrt.pop %v3662
          %v3725 = vmul.f32 %v3724, %v3662
          %v3726 = vmul.f32 %v3725, %v3724
          %v3727 = vmul.f32 0.5, %v3726
          %v3728 = vsub.f32 1.5, %v3727
          %v3729 = vmul.f32 %v3724, %v3728
          %vm3730 = vweird.f32 %v3662
          %vm3731 = vweird.f32 %v3724
          %vm3732 = vmor %vm3730, %vm3731
          %v3733 = vsel %vm3732, %v3724, %v3729
          %v3734 = vrsqrt.pop %v3663
          %v3735 = vmul.f32 %v3734, %v3663
          %v3736 = vmul.f32 %v3735, %v3734
          %v3737 = vmul.f32 0.5, %v3736
          %v3738 = vsub.f32 1.5, %v3737
          %v3739 = vmul.f32 %v3734, %v3738
          %vm3740 = vweird.f32 %v3663
          %vm3741 = vweird.f32 %v3734
          %vm3742 = vmor %vm3740, %vm3741
          %v3743 = vsel %vm3742, %v3734, %v3739
          %v3744 = vmul.f32 %v3648, %v3673
          %v3745 = vmul.f32 %v3649, %v3683
          %v3746 = vmul.f32 %v3650, %v3693
          %v3747 = vmul.f32 %v3651, %v3703
          %v3748 = vmul.f32 %v3652, %v3713
          %v3749 = vmul.f32 %v3653, %v3723
          %v3750 = vmul.f32 %v3654, %v3733
          %v3751 = vmul.f32 %v3655, %v3743
          %v3752 = vmul.f32 %v3744, %v3211
          %v3753 = vmul.f32 %v3745, %v3211
          %v3754 = vmul.f32 %v3746, %v3211
          %v3755 = vmul.f32 %v3747, %v3211
          %v3756 = vmul.f32 %v3748, %v3211
          %v3757 = vmul.f32 %v3749, %v3211
          %v3758 = vmul.f32 %v3750, %v3211
          %v3759 = vmul.f32 %v3751, %v3211
          %v3760 = vadd.f32 %v3752, %v3222
          %v3761 = vadd.f32 %v3753, %v3222
          %v3762 = vadd.f32 %v3754, %v3222
          %v3763 = vadd.f32 %v3755, %v3222
          %v3764 = vadd.f32 %v3756, %v3222
          %v3765 = vadd.f32 %v3757, %v3222
          %v3766 = vadd.f32 %v3758, %v3222
          %v3767 = vadd.f32 %v3759, %v3222
          %v3768 = vpack.c.bf16 %v3761, %v3760
          %v3769 = vpack.c.bf16 %v3763, %v3762
          %v3770 = vpack.c.bf16 %v3765, %v3764
          %v3771 = vpack.c.bf16 %v3767, %v3766
          %3772 = vmatpush.bf16.msra.mxu0 %v3278
          %3773 = vmatpush.bf16.msra.mxu0 %v3277
          %3774 = vmatpush.bf16.msra.mxu0 %v3276
          %3775 = vmatpush.bf16.msra.mxu0 %v3275
          %3776 = vmatpush.bf16.msra.mxu0 %v3274
          %3777 = vmatpush.bf16.msra.mxu0 %v3273
          %3778 = vmatpush.bf16.msra.mxu0 %v3272
          %3779 = vmatpush.bf16.msra.mxu0 %v3271
          %3780 = vmatmul.bf16.gmra.mxu0 %v3768
          %v3781 = vpop.f32.mrf.mxu0
          %v3782 = vadd.f32 %v3237, %v3781
          %v3783 = vpop.f32.mrf.mxu0
          %v3784 = vadd.f32 %v3237, %v3783
          %3785 = vmatmul.bf16.gmra.mxu0 %v3769
          %v3786 = vpop.f32.mrf.mxu0
          %v3787 = vadd.f32 %v3237, %v3786
          %v3788 = vpop.f32.mrf.mxu0
          %v3789 = vadd.f32 %v3237, %v3788
          %3790 = vmatmul.bf16.gmra.mxu0 %v3770
          %v3791 = vpop.f32.mrf.mxu0
          %v3792 = vadd.f32 %v3237, %v3791
          %v3793 = vpop.f32.mrf.mxu0
          %v3794 = vadd.f32 %v3237, %v3793
          %3795 = vmatmul.bf16.gmra.mxu0 %v3771
          %v3796 = vpop.f32.mrf.mxu0
          %v3797 = vadd.f32 %v3237, %v3796
          %v3798 = vpop.f32.mrf.mxu0
          %v3799 = vadd.f32 %v3237, %v3798
          %3800 = vdwg.mxu0
          %v3801 = vmul.f32 %v3782, %v3782
          %v3802 = vmul.f32 %v3784, %v3784
          %v3803 = vmul.f32 %v3787, %v3787
          %v3804 = vmul.f32 %v3789, %v3789
          %v3805 = vmul.f32 %v3792, %v3792
          %v3806 = vmul.f32 %v3794, %v3794
          %v3807 = vmul.f32 %v3797, %v3797
          %v3808 = vmul.f32 %v3799, %v3799
          %v3809 = vmul.f32 %v3782, %v3801
          %v3810 = vmul.f32 %v3784, %v3802
          %v3811 = vmul.f32 %v3787, %v3803
          %v3812 = vmul.f32 %v3789, %v3804
          %v3813 = vmul.f32 %v3792, %v3805
          %v3814 = vmul.f32 %v3794, %v3806
          %v3815 = vmul.f32 %v3797, %v3807
          %v3816 = vmul.f32 %v3799, %v3808
          %v3817 = vmul.f32 %v3809, 0.044715
          %v3818 = vmul.f32 %v3810, 0.044715
          %v3819 = vmul.f32 %v3811, 0.044715
          %v3820 = vmul.f32 %v3812, 0.044715
          %v3821 = vmul.f32 %v3813, 0.044715
          %v3822 = vmul.f32 %v3814, 0.044715
          %v3823 = vmul.f32 %v3815, 0.044715
          %v3824 = vmul.f32 %v3816, 0.044715
          %v3825 = vadd.f32 %v3782, %v3817
          %v3826 = vadd.f32 %v3784, %v3818
          %v3827 = vadd.f32 %v3787, %v3819
          %v3828 = vadd.f32 %v3789, %v3820
          %v3829 = vadd.f32 %v3792, %v3821
          %v3830 = vadd.f32 %v3794, %v3822
          %v3831 = vadd.f32 %v3797, %v3823
          %v3832 = vadd.f32 %v3799, %v3824
          %v3833 = vmul.f32 %v3825, 0.7978846
          %v3834 = vmul.f32 %v3826, 0.7978846
          %v3835 = vmul.f32 %v3827, 0.7978846
          %v3836 = vmul.f32 %v3828, 0.7978846
          %v3837 = vmul.f32 %v3829, 0.7978846
          %v3838 = vmul.f32 %v3830, 0.7978846
          %v3839 = vmul.f32 %v3831, 0.7978846
          %v3840 = vmul.f32 %v3832, 0.7978846
          %v3841 = vtanh.pop %v3833
          %v3842 = vtanh.pop %v3834
          %v3843 = vtanh.pop %v3835
          %v3844 = vtanh.pop %v3836
          %v3845 = vtanh.pop %v3837
          %v3846 = vtanh.pop %v3838
          %v3847 = vtanh.pop %v3839
          %v3848 = vtanh.pop %v3840
          %v3849 = vadd.f32 %v3841, 1.0
          %v3850 = vadd.f32 %v3842, 1.0
          %v3851 = vadd.f32 %v3843, 1.0
          %v3852 = vadd.f32 %v3844, 1.0
          %v3853 = vadd.f32 %v3845, 1.0
          %v3854 = vadd.f32 %v3846, 1.0
          %v3855 = vadd.f32 %v3847, 1.0
          %v3856 = vadd.f32 %v3848, 1.0
          %v3857 = vmul.f32 %v3849, 0.5
          %v3858 = vmul.f32 %v3850, 0.5
          %v3859 = vmul.f32 %v3851, 0.5
          %v3860 = vmul.f32 %v3852, 0.5
          %v3861 = vmul.f32 %v3853, 0.5
          %v3862 = vmul.f32 %v3854, 0.5
          %v3863 = vmul.f32 %v3855, 0.5
          %v3864 = vmul.f32 %v3856, 0.5
          %v3865 = vmul.f32 %v3782, %v3857
          %v3866 = vmul.f32 %v3784, %v3858
          %v3867 = vmul.f32 %v3787, %v3859
          %v3868 = vmul.f32 %v3789, %v3860
          %v3869 = vmul.f32 %v3792, %v3861
          %v3870 = vmul.f32 %v3794, %v3862
          %v3871 = vmul.f32 %v3797, %v3863
          %v3872 = vmul.f32 %v3799, %v3864
          %v3873 = vpack.c.bf16 %v3866, %v3865
          %v3874 = vpack.c.bf16 %v3868, %v3867
          %v3875 = vpack.c.bf16 %v3870, %v3869
          %v3876 = vpack.c.bf16 %v3872, %v3871
          %3877 = vmatpush.bf16.msra.mxu0 %v3431
          %3878 = vmatpush.bf16.msra.mxu0 %v3430
          %3879 = vmatpush.bf16.msra.mxu0 %v3429
          %3880 = vmatpush.bf16.msra.mxu0 %v3428
          %3881 = vmatpush.bf16.msra.mxu0 %v3427
          %3882 = vmatpush.bf16.msra.mxu0 %v3426
          %3883 = vmatpush.bf16.msra.mxu0 %v3425
          %3884 = vmatpush.bf16.msra.mxu0 %v3424
          %3885 = vmatmul.bf16.gmra.mxu0 %v3873
          %v3886 = vpop.f32.mrf.mxu0
          %v3887 = vadd.f32 0.0, %v3886
          %v3888 = vpop.f32.mrf.mxu0
          %v3889 = vadd.f32 0.0, %v3888
          %3890 = vmatmul.bf16.gmra.mxu0 %v3874
          %v3891 = vpop.f32.mrf.mxu0
          %v3892 = vadd.f32 0.0, %v3891
          %v3893 = vpop.f32.mrf.mxu0
          %v3894 = vadd.f32 0.0, %v3893
          %3895 = vmatmul.bf16.gmra.mxu0 %v3875
          %v3896 = vpop.f32.mrf.mxu0
          %v3897 = vadd.f32 0.0, %v3896
          %v3898 = vpop.f32.mrf.mxu0
          %v3899 = vadd.f32 0.0, %v3898
          %3900 = vmatmul.bf16.gmra.mxu0 %v3876
          %v3901 = vpop.f32.mrf.mxu0
          %v3902 = vadd.f32 0.0, %v3901
          %v3903 = vpop.f32.mrf.mxu0
          %v3904 = vadd.f32 0.0, %v3903
          %3905 = vdwg.mxu0
          %v3906 = vadd.f32 %v3480, %v3887
          %v3907 = vadd.f32 %v3481, %v3889
          %v3908 = vadd.f32 %v3482, %v3892
          %v3909 = vadd.f32 %v3483, %v3894
          %v3910 = vadd.f32 %v3484, %v3897
          %v3911 = vadd.f32 %v3485, %v3899
          %v3912 = vadd.f32 %v3486, %v3902
          %v3913 = vadd.f32 %v3487, %v3904
          %v3914 = vadd.f32 %v3906, %v3478
          %v3915 = vadd.f32 %v3907, %v3478
          %v3916 = vadd.f32 %v3908, %v3478
          %v3917 = vadd.f32 %v3909, %v3478
          %v3918 = vadd.f32 %v3910, %v3478
          %v3919 = vadd.f32 %v3911, %v3478
          %v3920 = vadd.f32 %v3912, %v3478
          %v3921 = vadd.f32 %v3913, %v3478
          %v3922 = vpack.c.bf16 %v3915, %v3914
          %v3923 = vpack.c.bf16 %v3917, %v3916
          %v3924 = vpack.c.bf16 %v3919, %v3918
          %v3925 = vpack.c.bf16 %v3921, %v3920
          %3926 = vmatpush.bf16.xpose.msra.mxu0 0
          %3927 = vmatpush.bf16.xpose.msra.mxu0 0
          %3928 = vmatpush.bf16.xpose.msra.mxu0 0
          %3929 = vmatpush.bf16.xpose.msra.mxu0 0
          %3930 = vmatpush.bf16.xpose.msra.mxu0 %v3925
          %3931 = vmatpush.bf16.xpose.msra.mxu0 %v3924
          %3932 = vmatpush.bf16.xpose.msra.mxu0 %v3923
          %3933 = vmatpush.bf16.xpose.msra.mxu0 %v3922
          %3934 = vmatmul.bf16.gmra.mxu0 %v3553
          %v3935 = vpop.f32.mrf.mxu0
          %v3936 = vadd.f32 %v3495, %v3935
          %v3937 = vpop.f32.mrf.mxu0
          %3938 = vdwg.mxu0
          %s3939 = scalar_lea.vmem %s995, 4
          %3940 = vst.msk [vmem:[%s3939] sm:$0x7] %vm3574, %v3936
        $region164: #{oformer_forward.3} parent=111 // pred_fallthru
          _
        %p3941 = scmp.lt.s32.totalorder %s45, 1
        %s3942 = scalar_select %p3941, %s45, 1
        %p3943 = scmp.lt.s32.totalorder %s46, 0
        %s3944 = scalar_select %p3943, %s46, 0
        %s3945 = smul.addr %s3942, 2
        %s3946 = sadd.s32 %s3944, %s3945
        %s3947 = smul.addr %s3946, 4
        %s3948 = scalar_lea.vmem %s23, %s3947
        // Predicated region
        $region165: #{oformer_forward.3} parent=111 // pred_check
          %p3949 = pneg %p583
        $region166: #{oformer_forward.3} parent=111 // pred_check_branch
          %3951 = sbr.rel (%p3949) target = $region168
        $region167: #{oformer_forward.3} parent=111 // pred_region
          _
        $region168: #{oformer_forward.3} parent=111 // pred_fallthru
          _
      $region112: #{oformer_forward.3} parent=5 // pred_fallthru
        _
      %p3952 = scmp.le.s32.totalorder 2, %s35
      // Predicated region
      $region169: #{oformer_forward.3} parent=5 // pred_check
        %p3953 = pneg %p3952
      $region170: #{oformer_forward.3} parent=5 // pred_check_branch
        %3955 = sbr.rel (%p3953) target = $region172
      $region171: #{oformer_forward.3} parent=5 // pred_region
        %s3956 = ssub.s32 %s35, 2
        // Predicated region
        $region173: #{oformer_forward.3} parent=171 // pred_check
          %p3957 = pneg %p589
        $region174: #{oformer_forward.3} parent=171 // pred_check_branch
          %3959 = sbr.rel (%p3957) target = $region176
        $region175: #{oformer_forward.3} parent=171 // pred_region
          %p3960 = scmp.lt.s32.totalorder %s48, 1
          %s3961 = scalar_select %p3960, %s48, 1
          %p3962 = scmp.lt.s32.totalorder %s49, 0
          %s3963 = scalar_select %p3962, %s49, 0
          %s3964 = smul.addr %s3961, 2
          %s3965 = sadd.s32 %s3963, %s3964
          %s3966 = smul.addr %s3965, 4
          %s3967 = scalar_lea.vmem %s23, %s3966
        $region176: #{oformer_forward.3} parent=171 // pred_fallthru
          _
      $region172: #{oformer_forward.3} parent=5 // pred_fallthru
        _
    $region6: #{oformer_forward.3} parent=1 // loop_footer
      %s39 = sadd.s32 1, %s35
    $region7: #{oformer_forward.3} parent=1 // loop_footer_branch
      %34 = sbr.rel target = $region3
    $region8: #{oformer_forward.3} parent=1 // loop_exit
      _
    %3968 = vsyncpa [#allocation8], 1
    %s3969 = scalar_lea.sflag [#allocation8], 1
    %3970 = vsyncpa %s3969, 1
    %3971 = vsyncpa [#allocation10], 1
    %3972 = vsyncpa [#allocation13], 1
    %3973 = vsyncpa [#allocation16], 1
    %3974 = vsyncpa [#allocation19], 1
    %3975 = vsyncpa [#allocation22], 1

</llo_original>
